<compile_context>
chip_gen: v7x
topology: tpu7x:2x2x1
jax: 0.10.0
libtpu: 0.0.40
codegen_flags: <defaults>
</compile_context>

<pallas_src>
import jax
import jax.numpy as jnp
from jax.experimental import pallas as pl
from jax.experimental.pallas import tpu as pltpu


# ----------------------------------------------------------------------------
# Fused Pallas kernel: one grid step == one image, everything stays in VMEM.
# ----------------------------------------------------------------------------
def fused_cnn_kernel(x_ref, w1_ref, b1_ref, w2_ref, b2_ref, w3_ref, b3_ref,
                     fw1_ref, fb1_ref, fw2_ref, fb2_ref, o_ref,
                     xp1, hp1, xp2, hp2, xp3):
    """ImprovedCNN forward for a single image.

    x_ref  : (1, 16, 16, 1)   NHWC input tile
    w*_ref : (9, Cin, Cout)   conv taps ordered (dy*3 + dx)
    b*_ref : (1, Cout)
    fw1_ref: (64, 64) (in,out);  fw2_ref: (1, 64) (PyTorch (out,in) row)
    fb1_ref: (1, 64);            fb2_ref: (1, 1)
    o_ref  : (1, 1, 1)
    scratch: xp1 (18,18,1) / xp2 (10,10,16) / xp3 (6,6,32) padded layer inputs,
             hp1 (8,16,16) / hp2 (4,8,32)   row-pooled (H-direction) buffers.
    """
    f32 = jnp.float32

    # ---- Conv1: 1 -> 16, 3x3, pad 1, ReLU.  Cin == 1, so this is a VPU
    #      broadcast-accumulate over 9 taps (no degenerate K=1 MXU matmuls). --
    xp1[...] = jnp.zeros(xp1.shape, f32)                 # in-kernel zero padding
    xp1[1:17, 1:17, :] = x_ref[0]
    acc1 = jnp.zeros((16, 16, 16), f32)
    for dy in range(3):
        for dx in range(3):
            acc1 = acc1 + xp1[dy:dy + 16, dx:dx + 16, :] * w1_ref[3 * dy + dx, 0]
    y1 = jnp.maximum(acc1 + b1_ref[0], 0.0)              # (H=16, W=16, C=16)

    # ---- MaxPool 2x2 fused: write pooled result straight into the padded
    #      conv2 input scratch (no HBM, no reshape glue). ---------------------
    xp2[...] = jnp.zeros(xp2.shape, f32)
    for i in range(8):                                   # pool along H
        hp1[i] = jnp.maximum(y1[2 * i], y1[2 * i + 1])             # (16, 16)
    for j in range(8):                                   # pool along W
        xp2[1:9, 1 + j, :] = jnp.maximum(hp1[:, 2 * j, :], hp1[:, 2 * j + 1, :])

    # ---- Conv2: 16 -> 32.  Whole-slab per-tap MXU matmuls: (64,16)@(16,32). --
    acc2 = jnp.zeros((64, 32), f32)
    for dy in range(3):
        for dx in range(3):
            patch = xp2[dy:dy + 8, dx:dx + 8, :].reshape(64, 16)
            acc2 = acc2 + jnp.dot(patch, w2_ref[3 * dy + dx],
                                  preferred_element_type=f32)
    y2 = jnp.maximum(acc2 + b2_ref[0], 0.0).reshape(8, 8, 32)      # (8, 8, 32)

    # ---- MaxPool 2x2 -> padded conv3 input. ---------------------------------
    xp3[...] = jnp.zeros(xp3.shape, f32)
    for i in range(4):
        hp2[i] = jnp.maximum(y2[2 * i], y2[2 * i + 1])             # (8, 32)
    for j in range(4):
        xp3[1:5, 1 + j, :] = jnp.maximum(hp2[:, 2 * j, :], hp2[:, 2 * j + 1, :])

    # ---- Conv3: 32 -> 64 + ReLU, fused with the global average pool. --------
    gsum = jnp.zeros((1, 64), f32)
    for h in range(4):
        acc3 = jnp.zeros((4, 64), f32)
        for dy in range(3):
            for dx in range(3):
                patch = xp3[h + dy, dx:dx + 4, :]                  # (4, 32)
                acc3 = acc3 + jnp.dot(patch, w3_ref[3 * dy + dx],
                                      preferred_element_type=f32)
        y3 = jnp.maximum(acc3 + b3_ref[0], 0.0)                    # (4, 64)
        gsum = gsum + jnp.sum(y3, axis=0, keepdims=True)
    g = gsum * (1.0 / 16.0)                                        # GAP (1, 64)

    # ---- Head: Linear(64,64)+ReLU -> Dropout (identity at inference) ->
    #      Linear(64,1) as a VPU multiply + lane reduction (no 1-wide matmul).
    h1 = jnp.maximum(jnp.dot(g, fw1_ref[...],
                             preferred_element_type=f32) + fb1_ref[0], 0.0)
    out = jnp.sum(h1 * fw2_ref[...], axis=1, keepdims=True) + fb2_ref[...]
    o_ref[0] = out.astype(o_ref.dtype)


# ----------------------------------------------------------------------------
# pallas_call wrapper
# ----------------------------------------------------------------------------
def fused_forward(x_nhwc, p):
    N = x_nhwc.shape[0]
    (w1p, b1p, w2p, b2p, w3p, b3p, fw1p, fb1p, fw2p, fb2p) = p
    out = pl.pallas_call(
        fused_cnn_kernel,
        out_shape=jax.ShapeDtypeStruct((N, 1, 1), jnp.float32),
        grid=(N,),
        in_specs=[
            pl.BlockSpec((1, 16, 16, 1), lambda n: (n, 0, 0, 0)),
            pl.BlockSpec((9, 1, 16), lambda n: (0, 0, 0)),
            pl.BlockSpec((1, 16), lambda n: (0, 0)),
            pl.BlockSpec((9, 16, 32), lambda n: (0, 0, 0)),
            pl.BlockSpec((1, 32), lambda n: (0, 0)),
            pl.BlockSpec((9, 32, 64), lambda n: (0, 0, 0)),
            pl.BlockSpec((1, 64), lambda n: (0, 0)),
            pl.BlockSpec((64, 64), lambda n: (0, 0)),
            pl.BlockSpec((1, 64), lambda n: (0, 0)),
            pl.BlockSpec((1, 64), lambda n: (0, 0)),
            pl.BlockSpec((1, 1), lambda n: (0, 0)),
        ],
        out_specs=pl.BlockSpec((1, 1, 1), lambda n: (n, 0, 0)),
        scratch_shapes=[
            pltpu.VMEM((18, 18, 1), jnp.float32),    # padded conv1 input
            pltpu.VMEM((8, 16, 16), jnp.float32),    # H-pooled conv1 output
            pltpu.VMEM((10, 10, 16), jnp.float32),   # padded conv2 input
            pltpu.VMEM((4, 8, 32), jnp.float32),     # H-pooled conv2 output
            pltpu.VMEM((6, 6, 32), jnp.float32),     # padded conv3 input
        ],
        compiler_params=pltpu.CompilerParams(
            dimension_semantics=("parallel",)),
    )(x_nhwc, w1p, b1p, w2p, b2p, w3p, b3p, fw1p, fb1p, fw2p, fb2p)
    return out.reshape(N, 1)


# ----------------------------------------------------------------------------
# Parameter layout prep (done ONCE, outside the jitted forward)
# ----------------------------------------------------------------------------
def _flatten_conv_w(w_oihw):
    # (Cout, Cin, 3, 3) -> (9, Cin, Cout), tap index = dy*3 + dx
    Cout, Cin = w_oihw.shape[0], w_oihw.shape[1]
    return jnp.transpose(w_oihw, (2, 3, 1, 0)).reshape(9, Cin, Cout)


def prepare_params(params):
    w1, b1, w2, b2, w3, b3, fw1, fb1, fw2, fb2 = params
    return (_flatten_conv_w(w1), b1.reshape(1, -1),
            _flatten_conv_w(w2), b2.reshape(1, -1),
            _flatten_conv_w(w3), b3.reshape(1, -1),
            fw1.T, fb1.reshape(1, -1),            # Linear(64,64): (in,out)
            fw2, fb2.reshape(1, 1))               # Linear(64,1): keep (1,64) row


@jax.jit
def pallas_forward(x_nchw, prepared):
    x = jnp.transpose(x_nchw, (0, 2, 3, 1))       # NCHW -> NHWC (N,16,16,1)
    return fused_forward(x, prepared)


# ----------------------------------------------------------------------------
# Pure-JAX reference (matches PyTorch eval-mode semantics)
# ----------------------------------------------------------------------------
@jax.jit
def reference_forward(x_nchw, params):
    w1, b1, w2, b2, w3, b3, fw1, fb1, fw2, fb2 = params

    def conv(x, w, b):
        y = jax.lax.conv_general_dilated(
            x, w, (1, 1), 'SAME',
            dimension_numbers=('NCHW', 'OIHW', 'NCHW'))
        return jax.nn.relu(y + b[None, :, None, None])

    def pool(x):
        return jax.lax.reduce_window(x, -jnp.inf, jax.lax.max,
                                     (1, 1, 2, 2), (1, 1, 2, 2), 'VALID')

    y = pool(conv(x_nchw, w1, b1))
    y = pool(conv(y, w2, b2))
    y = conv(y, w3, b3)
    g = jnp.mean(y, axis=(2, 3))
    h = jax.nn.relu(g @ fw1.T + fb1)
    return h @ fw2.T + fb2


# ----------------------------------------------------------------------------
# Main
# ----------------------------------------------------------------------------
if __name__ == "__main__":
    key = jax.random.PRNGKey(0)
    ks = jax.random.split(key, 11)
    f32 = jnp.float32

    # Deterministic synthetic parameters (PyTorch layouts).
    w1 = 0.2 * jax.random.normal(ks[1], (16, 1, 3, 3), f32)
    b1 = 0.1 * jax.random.normal(ks[2], (16,), f32)
    w2 = 0.1 * jax.random.normal(ks[3], (32, 16, 3, 3), f32)
    b2 = 0.1 * jax.random.normal(ks[4], (32,), f32)
    w3 = 0.1 * jax.random.normal(ks[5], (64, 32, 3, 3), f32)
    b3 = 0.1 * jax.random.normal(ks[6], (64,), f32)
    fw1 = 0.1 * jax.random.normal(ks[7], (64, 64), f32)     # Linear(64,64): (out,in)
    fb1 = 0.1 * jax.random.normal(ks[8], (64,), f32)
    fw2 = 0.1 * jax.random.normal(ks[9], (1, 64), f32)      # Linear(64,1): (out,in)
    fb2 = 0.1 * jax.random.normal(ks[10], (1,), f32)
    params = (w1, b1, w2, b2, w3, b3, fw1, fb1, fw2, fb2)
    prepared = prepare_params(params)                       # once, outside jit

    # Example input, NCHW as in PyTorch: batch=2, channels=1, 16x16 spatial.
    x = jax.random.normal(ks[0], (2, 1, 16, 16), f32)

    out = pallas_forward(x, prepared)
    out = jax.block_until_ready(out)
    assert out.shape == (2, 1) and out.dtype == jnp.float32

    ref = jax.block_until_ready(reference_forward(x, params))
    assert bool(jnp.allclose(out, ref, atol=1e-4, rtol=1e-4)), (out, ref)

    print("KERNEL_OK")
</pallas_src>

<mosaic_0001>
module attributes {stable_mosaic.version = 11 : i64} {
  func.func @fused_cnn_kernel(%arg0: i32, %arg1: memref<1x16x16x1xf32, #tpu.memory_space<vmem>>, %arg2: memref<9x1x16xf32, #tpu.memory_space<vmem>>, %arg3: memref<1x16xf32, #tpu.memory_space<vmem>>, %arg4: memref<9x16x32xf32, #tpu.memory_space<vmem>>, %arg5: memref<1x32xf32, #tpu.memory_space<vmem>>, %arg6: memref<9x32x64xf32, #tpu.memory_space<vmem>>, %arg7: memref<1x64xf32, #tpu.memory_space<vmem>>, %arg8: memref<64x64xf32, #tpu.memory_space<vmem>>, %arg9: memref<1x64xf32, #tpu.memory_space<vmem>>, %arg10: memref<1x64xf32, #tpu.memory_space<vmem>>, %arg11: memref<1x1xf32, #tpu.memory_space<vmem>>, %arg12: memref<1x1x1xf32, #tpu.memory_space<vmem>>, %arg13: memref<18x18x1xf32, #tpu.memory_space<vmem>>, %arg14: memref<8x16x16xf32, #tpu.memory_space<vmem>>, %arg15: memref<10x10x16xf32, #tpu.memory_space<vmem>>, %arg16: memref<4x8x32xf32, #tpu.memory_space<vmem>>, %arg17: memref<6x6x32xf32, #tpu.memory_space<vmem>>) attributes {dimension_semantics = [#tpu.dimension_semantics<parallel>], iteration_bounds = array<i64: 2>, scalar_prefetch = 0 : i64, scratch_operands = 5 : i64, tpu.core_type = #tpu.core_type<tc>, window_params = [{transform_indices = @transform_0, window_bounds = array<i64: 1, 16, 16, 1>}, {pipeline_mode = #tpu.pipeline_mode<synchronous>, transform_indices = @transform_1, window_bounds = array<i64: 9, 1, 16>}, {pipeline_mode = #tpu.pipeline_mode<synchronous>, transform_indices = @transform_2, window_bounds = array<i64: 1, 16>}, {pipeline_mode = #tpu.pipeline_mode<synchronous>, transform_indices = @transform_3, window_bounds = array<i64: 9, 16, 32>}, {pipeline_mode = #tpu.pipeline_mode<synchronous>, transform_indices = @transform_4, window_bounds = array<i64: 1, 32>}, {pipeline_mode = #tpu.pipeline_mode<synchronous>, transform_indices = @transform_5, window_bounds = array<i64: 9, 32, 64>}, {pipeline_mode = #tpu.pipeline_mode<synchronous>, transform_indices = @transform_6, window_bounds = array<i64: 1, 64>}, {pipeline_mode = #tpu.pipeline_mode<synchronous>, transform_indices = @transform_7, window_bounds = array<i64: 64, 64>}, {pipeline_mode = #tpu.pipeline_mode<synchronous>, transform_indices = @transform_8, window_bounds = array<i64: 1, 64>}, {pipeline_mode = #tpu.pipeline_mode<synchronous>, transform_indices = @transform_9, window_bounds = array<i64: 1, 64>}, {pipeline_mode = #tpu.pipeline_mode<synchronous>, transform_indices = @transform_10, window_bounds = array<i64: 1, 1>}, {transform_indices = @transform_11, window_bounds = array<i64: 1, 1, 1>}]} {
    %cst = arith.constant 0.000000e+00 : f32
    %0 = vector.broadcast %cst : f32 to vector<18x18x1xf32>
    %c0 = arith.constant 0 : index
    %c0_0 = arith.constant 0 : index
    %c0_1 = arith.constant 0 : index
    %1 = vector.load %arg13[%c0, %c0_0, %c0_1] : memref<18x18x1xf32, #tpu.memory_space<vmem>>, vector<18x18x1xf32>
    tpu.vector_store %arg13[%c0, %c0_0, %c0_1], %0 {strides = array<i32>} : memref<18x18x1xf32, #tpu.memory_space<vmem>>, vector<18x18x1xf32>,
    %c0_2 = arith.constant 0 : index
    %c0_3 = arith.constant 0 : index
    %c0_4 = arith.constant 0 : index
    %c0_5 = arith.constant 0 : index
    %2 = vector.load %arg1[%c0_2, %c0_3, %c0_4, %c0_5] : memref<1x16x16x1xf32, #tpu.memory_space<vmem>>, vector<1x16x16x1xf32>
    %3 = vector.shape_cast %2 : vector<1x16x16x1xf32> to vector<16x16x1xf32>
    %c1 = arith.constant 1 : index
    %c1_6 = arith.constant 1 : index
    %c0_7 = arith.constant 0 : index
    %4 = vector.load %arg13[%c1, %c1_6, %c0_7] : memref<18x18x1xf32, #tpu.memory_space<vmem>>, vector<16x16x1xf32>
    tpu.vector_store %arg13[%c1, %c1_6, %c0_7], %3 {strides = array<i32>} : memref<18x18x1xf32, #tpu.memory_space<vmem>>, vector<16x16x1xf32>,
    %cst_8 = arith.constant 0.000000e+00 : f32
    %5 = vector.broadcast %cst_8 : f32 to vector<16x16x16xf32>
    %c0_9 = arith.constant 0 : index
    %c0_10 = arith.constant 0 : index
    %c0_11 = arith.constant 0 : index
    %6 = vector.load %arg13[%c0_9, %c0_10, %c0_11] : memref<18x18x1xf32, #tpu.memory_space<vmem>>, vector<16x16x1xf32>
    %c0_12 = arith.constant 0 : index
    %c0_13 = arith.constant 0 : index
    %c0_14 = arith.constant 0 : index
    %7 = vector.load %arg2[%c0_12, %c0_13, %c0_14] : memref<9x1x16xf32, #tpu.memory_space<vmem>>, vector<1x1x16xf32>
    %8 = vector.shape_cast %7 : vector<1x1x16xf32> to vector<16xf32>
    %9 = vector.shape_cast %8 : vector<16xf32> to vector<1x1x16xf32>
    %10 = vector.broadcast %6 : vector<16x16x1xf32> to vector<16x16x16xf32>
    %11 = vector.broadcast %9 : vector<1x1x16xf32> to vector<16x16x16xf32>
    %12 = arith.mulf %10, %11 : vector<16x16x16xf32>
    %13 = arith.addf %5, %12 : vector<16x16x16xf32>
    %c0_15 = arith.constant 0 : index
    %c1_16 = arith.constant 1 : index
    %c0_17 = arith.constant 0 : index
    %14 = vector.load %arg13[%c0_15, %c1_16, %c0_17] : memref<18x18x1xf32, #tpu.memory_space<vmem>>, vector<16x16x1xf32>
    %c1_18 = arith.constant 1 : index
    %c0_19 = arith.constant 0 : index
    %c0_20 = arith.constant 0 : index
    %15 = vector.load %arg2[%c1_18, %c0_19, %c0_20] : memref<9x1x16xf32, #tpu.memory_space<vmem>>, vector<1x1x16xf32>
    %16 = vector.shape_cast %15 : vector<1x1x16xf32> to vector<16xf32>
    %17 = vector.shape_cast %16 : vector<16xf32> to vector<1x1x16xf32>
    %18 = vector.broadcast %14 : vector<16x16x1xf32> to vector<16x16x16xf32>
    %19 = vector.broadcast %17 : vector<1x1x16xf32> to vector<16x16x16xf32>
    %20 = arith.mulf %18, %19 : vector<16x16x16xf32>
    %21 = arith.addf %13, %20 : vector<16x16x16xf32>
    %c0_21 = arith.constant 0 : index
    %c2 = arith.constant 2 : index
    %c0_22 = arith.constant 0 : index
    %22 = vector.load %arg13[%c0_21, %c2, %c0_22] : memref<18x18x1xf32, #tpu.memory_space<vmem>>, vector<16x16x1xf32>
    %c2_23 = arith.constant 2 : index
    %c0_24 = arith.constant 0 : index
    %c0_25 = arith.constant 0 : index
    %23 = vector.load %arg2[%c2_23, %c0_24, %c0_25] : memref<9x1x16xf32, #tpu.memory_space<vmem>>, vector<1x1x16xf32>
    %24 = vector.shape_cast %23 : vector<1x1x16xf32> to vector<16xf32>
    %25 = vector.shape_cast %24 : vector<16xf32> to vector<1x1x16xf32>
    %26 = vector.broadcast %22 : vector<16x16x1xf32> to vector<16x16x16xf32>
    %27 = vector.broadcast %25 : vector<1x1x16xf32> to vector<16x16x16xf32>
    %28 = arith.mulf %26, %27 : vector<16x16x16xf32>
    %29 = arith.addf %21, %28 : vector<16x16x16xf32>
    %c1_26 = arith.constant 1 : index
    %c0_27 = arith.constant 0 : index
    %c0_28 = arith.constant 0 : index
    %30 = vector.load %arg13[%c1_26, %c0_27, %c0_28] : memref<18x18x1xf32, #tpu.memory_space<vmem>>, vector<16x16x1xf32>
    %c3 = arith.constant 3 : index
    %c0_29 = arith.constant 0 : index
    %c0_30 = arith.constant 0 : index
    %31 = vector.load %arg2[%c3, %c0_29, %c0_30] : memref<9x1x16xf32, #tpu.memory_space<vmem>>, vector<1x1x16xf32>
    %32 = vector.shape_cast %31 : vector<1x1x16xf32> to vector<16xf32>
    %33 = vector.shape_cast %32 : vector<16xf32> to vector<1x1x16xf32>
    %34 = vector.broadcast %30 : vector<16x16x1xf32> to vector<16x16x16xf32>
    %35 = vector.broadcast %33 : vector<1x1x16xf32> to vector<16x16x16xf32>
    %36 = arith.mulf %34, %35 : vector<16x16x16xf32>
    %37 = arith.addf %29, %36 : vector<16x16x16xf32>
    %c1_31 = arith.constant 1 : index
    %c1_32 = arith.constant 1 : index
    %c0_33 = arith.constant 0 : index
    %38 = vector.load %arg13[%c1_31, %c1_32, %c0_33] : memref<18x18x1xf32, #tpu.memory_space<vmem>>, vector<16x16x1xf32>
    %c4 = arith.constant 4 : index
    %c0_34 = arith.constant 0 : index
    %c0_35 = arith.constant 0 : index
    %39 = vector.load %arg2[%c4, %c0_34, %c0_35] : memref<9x1x16xf32, #tpu.memory_space<vmem>>, vector<1x1x16xf32>
    %40 = vector.shape_cast %39 : vector<1x1x16xf32> to vector<16xf32>
    %41 = vector.shape_cast %40 : vector<16xf32> to vector<1x1x16xf32>
    %42 = vector.broadcast %38 : vector<16x16x1xf32> to vector<16x16x16xf32>
    %43 = vector.broadcast %41 : vector<1x1x16xf32> to vector<16x16x16xf32>
    %44 = arith.mulf %42, %43 : vector<16x16x16xf32>
    %45 = arith.addf %37, %44 : vector<16x16x16xf32>
    %c1_36 = arith.constant 1 : index
    %c2_37 = arith.constant 2 : index
    %c0_38 = arith.constant 0 : index
    %46 = vector.load %arg13[%c1_36, %c2_37, %c0_38] : memref<18x18x1xf32, #tpu.memory_space<vmem>>, vector<16x16x1xf32>
    %c5 = arith.constant 5 : index
    %c0_39 = arith.constant 0 : index
    %c0_40 = arith.constant 0 : index
    %47 = vector.load %arg2[%c5, %c0_39, %c0_40] : memref<9x1x16xf32, #tpu.memory_space<vmem>>, vector<1x1x16xf32>
    %48 = vector.shape_cast %47 : vector<1x1x16xf32> to vector<16xf32>
    %49 = vector.shape_cast %48 : vector<16xf32> to vector<1x1x16xf32>
    %50 = vector.broadcast %46 : vector<16x16x1xf32> to vector<16x16x16xf32>
    %51 = vector.broadcast %49 : vector<1x1x16xf32> to vector<16x16x16xf32>
    %52 = arith.mulf %50, %51 : vector<16x16x16xf32>
    %53 = arith.addf %45, %52 : vector<16x16x16xf32>
    %c2_41 = arith.constant 2 : index
    %c0_42 = arith.constant 0 : index
    %c0_43 = arith.constant 0 : index
    %54 = vector.load %arg13[%c2_41, %c0_42, %c0_43] : memref<18x18x1xf32, #tpu.memory_space<vmem>>, vector<16x16x1xf32>
    %c6 = arith.constant 6 : index
    %c0_44 = arith.constant 0 : index
    %c0_45 = arith.constant 0 : index
    %55 = vector.load %arg2[%c6, %c0_44, %c0_45] : memref<9x1x16xf32, #tpu.memory_space<vmem>>, vector<1x1x16xf32>
    %56 = vector.shape_cast %55 : vector<1x1x16xf32> to vector<16xf32>
    %57 = vector.shape_cast %56 : vector<16xf32> to vector<1x1x16xf32>
    %58 = vector.broadcast %54 : vector<16x16x1xf32> to vector<16x16x16xf32>
    %59 = vector.broadcast %57 : vector<1x1x16xf32> to vector<16x16x16xf32>
    %60 = arith.mulf %58, %59 : vector<16x16x16xf32>
    %61 = arith.addf %53, %60 : vector<16x16x16xf32>
    %c2_46 = arith.constant 2 : index
    %c1_47 = arith.constant 1 : index
    %c0_48 = arith.constant 0 : index
    %62 = vector.load %arg13[%c2_46, %c1_47, %c0_48] : memref<18x18x1xf32, #tpu.memory_space<vmem>>, vector<16x16x1xf32>
    %c7 = arith.constant 7 : index
    %c0_49 = arith.constant 0 : index
    %c0_50 = arith.constant 0 : index
    %63 = vector.load %arg2[%c7, %c0_49, %c0_50] : memref<9x1x16xf32, #tpu.memory_space<vmem>>, vector<1x1x16xf32>
    %64 = vector.shape_cast %63 : vector<1x1x16xf32> to vector<16xf32>
    %65 = vector.shape_cast %64 : vector<16xf32> to vector<1x1x16xf32>
    %66 = vector.broadcast %62 : vector<16x16x1xf32> to vector<16x16x16xf32>
    %67 = vector.broadcast %65 : vector<1x1x16xf32> to vector<16x16x16xf32>
    %68 = arith.mulf %66, %67 : vector<16x16x16xf32>
    %69 = arith.addf %61, %68 : vector<16x16x16xf32>
    %c2_51 = arith.constant 2 : index
    %c2_52 = arith.constant 2 : index
    %c0_53 = arith.constant 0 : index
    %70 = vector.load %arg13[%c2_51, %c2_52, %c0_53] : memref<18x18x1xf32, #tpu.memory_space<vmem>>, vector<16x16x1xf32>
    %c8 = arith.constant 8 : index
    %c0_54 = arith.constant 0 : index
    %c0_55 = arith.constant 0 : index
    %71 = vector.load %arg2[%c8, %c0_54, %c0_55] : memref<9x1x16xf32, #tpu.memory_space<vmem>>, vector<1x1x16xf32>
    %72 = vector.shape_cast %71 : vector<1x1x16xf32> to vector<16xf32>
    %73 = vector.shape_cast %72 : vector<16xf32> to vector<1x1x16xf32>
    %74 = vector.broadcast %70 : vector<16x16x1xf32> to vector<16x16x16xf32>
    %75 = vector.broadcast %73 : vector<1x1x16xf32> to vector<16x16x16xf32>
    %76 = arith.mulf %74, %75 : vector<16x16x16xf32>
    %77 = arith.addf %69, %76 : vector<16x16x16xf32>
    %c0_56 = arith.constant 0 : index
    %c0_57 = arith.constant 0 : index
    %78 = vector.load %arg3[%c0_56, %c0_57] : memref<1x16xf32, #tpu.memory_space<vmem>>, vector<1x16xf32>
    %79 = vector.shape_cast %78 : vector<1x16xf32> to vector<16xf32>
    %80 = vector.shape_cast %79 : vector<16xf32> to vector<1x1x16xf32>
    %81 = vector.broadcast %80 : vector<1x1x16xf32> to vector<16x16x16xf32>
    %82 = arith.addf %77, %81 : vector<16x16x16xf32>
    %cst_58 = arith.constant 0.000000e+00 : f32
    %83 = vector.broadcast %cst_58 : f32 to vector<16x16x16xf32>
    %84 = arith.maximumf %82, %83 : vector<16x16x16xf32>
    %cst_59 = arith.constant 0.000000e+00 : f32
    %85 = vector.broadcast %cst_59 : f32 to vector<10x10x16xf32>
    %c0_60 = arith.constant 0 : index
    %c0_61 = arith.constant 0 : index
    %c0_62 = arith.constant 0 : index
    %86 = vector.load %arg15[%c0_60, %c0_61, %c0_62] : memref<10x10x16xf32, #tpu.memory_space<vmem>>, vector<10x10x16xf32>
    tpu.vector_store %arg15[%c0_60, %c0_61, %c0_62], %85 {strides = array<i32>} : memref<10x10x16xf32, #tpu.memory_space<vmem>>, vector<10x10x16xf32>,
    %87 = vector.extract_strided_slice %84 {offsets = [0, 0, 0], sizes = [1, 16, 16], strides = [1, 1, 1]} : vector<16x16x16xf32> to vector<1x16x16xf32>
    %88 = vector.shape_cast %87 : vector<1x16x16xf32> to vector<16x16xf32>
    %89 = vector.extract_strided_slice %84 {offsets = [1, 0, 0], sizes = [1, 16, 16], strides = [1, 1, 1]} : vector<16x16x16xf32> to vector<1x16x16xf32>
    %90 = vector.shape_cast %89 : vector<1x16x16xf32> to vector<16x16xf32>
    %91 = arith.maximumf %88, %90 : vector<16x16xf32>
    %c0_63 = arith.constant 0 : index
    %c0_64 = arith.constant 0 : index
    %c0_65 = arith.constant 0 : index
    %92 = vector.load %arg14[%c0_63, %c0_64, %c0_65] : memref<8x16x16xf32, #tpu.memory_space<vmem>>, vector<1x16x16xf32>
    %93 = vector.shape_cast %92 : vector<1x16x16xf32> to vector<16x16xf32>
    %94 = vector.shape_cast %91 : vector<16x16xf32> to vector<1x16x16xf32>
    tpu.vector_store %arg14[%c0_63, %c0_64, %c0_65], %94 {strides = array<i32>} : memref<8x16x16xf32, #tpu.memory_space<vmem>>, vector<1x16x16xf32>,
    %95 = vector.extract_strided_slice %84 {offsets = [2, 0, 0], sizes = [1, 16, 16], strides = [1, 1, 1]} : vector<16x16x16xf32> to vector<1x16x16xf32>
    %96 = vector.shape_cast %95 : vector<1x16x16xf32> to vector<16x16xf32>
    %97 = vector.extract_strided_slice %84 {offsets = [3, 0, 0], sizes = [1, 16, 16], strides = [1, 1, 1]} : vector<16x16x16xf32> to vector<1x16x16xf32>
    %98 = vector.shape_cast %97 : vector<1x16x16xf32> to vector<16x16xf32>
    %99 = arith.maximumf %96, %98 : vector<16x16xf32>
    %c1_66 = arith.constant 1 : index
    %c0_67 = arith.constant 0 : index
    %c0_68 = arith.constant 0 : index
    %100 = vector.load %arg14[%c1_66, %c0_67, %c0_68] : memref<8x16x16xf32, #tpu.memory_space<vmem>>, vector<1x16x16xf32>
    %101 = vector.shape_cast %100 : vector<1x16x16xf32> to vector<16x16xf32>
    %102 = vector.shape_cast %99 : vector<16x16xf32> to vector<1x16x16xf32>
    tpu.vector_store %arg14[%c1_66, %c0_67, %c0_68], %102 {strides = array<i32>} : memref<8x16x16xf32, #tpu.memory_space<vmem>>, vector<1x16x16xf32>,
    %103 = vector.extract_strided_slice %84 {offsets = [4, 0, 0], sizes = [1, 16, 16], strides = [1, 1, 1]} : vector<16x16x16xf32> to vector<1x16x16xf32>
    %104 = vector.shape_cast %103 : vector<1x16x16xf32> to vector<16x16xf32>
    %105 = vector.extract_strided_slice %84 {offsets = [5, 0, 0], sizes = [1, 16, 16], strides = [1, 1, 1]} : vector<16x16x16xf32> to vector<1x16x16xf32>
    %106 = vector.shape_cast %105 : vector<1x16x16xf32> to vector<16x16xf32>
    %107 = arith.maximumf %104, %106 : vector<16x16xf32>
    %c2_69 = arith.constant 2 : index
    %c0_70 = arith.constant 0 : index
    %c0_71 = arith.constant 0 : index
    %108 = vector.load %arg14[%c2_69, %c0_70, %c0_71] : memref<8x16x16xf32, #tpu.memory_space<vmem>>, vector<1x16x16xf32>
    %109 = vector.shape_cast %108 : vector<1x16x16xf32> to vector<16x16xf32>
    %110 = vector.shape_cast %107 : vector<16x16xf32> to vector<1x16x16xf32>
    tpu.vector_store %arg14[%c2_69, %c0_70, %c0_71], %110 {strides = array<i32>} : memref<8x16x16xf32, #tpu.memory_space<vmem>>, vector<1x16x16xf32>,
    %111 = vector.extract_strided_slice %84 {offsets = [6, 0, 0], sizes = [1, 16, 16], strides = [1, 1, 1]} : vector<16x16x16xf32> to vector<1x16x16xf32>
    %112 = vector.shape_cast %111 : vector<1x16x16xf32> to vector<16x16xf32>
    %113 = vector.extract_strided_slice %84 {offsets = [7, 0, 0], sizes = [1, 16, 16], strides = [1, 1, 1]} : vector<16x16x16xf32> to vector<1x16x16xf32>
    %114 = vector.shape_cast %113 : vector<1x16x16xf32> to vector<16x16xf32>
    %115 = arith.maximumf %112, %114 : vector<16x16xf32>
    %c3_72 = arith.constant 3 : index
    %c0_73 = arith.constant 0 : index
    %c0_74 = arith.constant 0 : index
    %116 = vector.load %arg14[%c3_72, %c0_73, %c0_74] : memref<8x16x16xf32, #tpu.memory_space<vmem>>, vector<1x16x16xf32>
    %117 = vector.shape_cast %116 : vector<1x16x16xf32> to vector<16x16xf32>
    %118 = vector.shape_cast %115 : vector<16x16xf32> to vector<1x16x16xf32>
    tpu.vector_store %arg14[%c3_72, %c0_73, %c0_74], %118 {strides = array<i32>} : memref<8x16x16xf32, #tpu.memory_space<vmem>>, vector<1x16x16xf32>,
    %119 = vector.extract_strided_slice %84 {offsets = [8, 0, 0], sizes = [1, 16, 16], strides = [1, 1, 1]} : vector<16x16x16xf32> to vector<1x16x16xf32>
    %120 = vector.shape_cast %119 : vector<1x16x16xf32> to vector<16x16xf32>
    %121 = vector.extract_strided_slice %84 {offsets = [9, 0, 0], sizes = [1, 16, 16], strides = [1, 1, 1]} : vector<16x16x16xf32> to vector<1x16x16xf32>
    %122 = vector.shape_cast %121 : vector<1x16x16xf32> to vector<16x16xf32>
    %123 = arith.maximumf %120, %122 : vector<16x16xf32>
    %c4_75 = arith.constant 4 : index
    %c0_76 = arith.constant 0 : index
    %c0_77 = arith.constant 0 : index
    %124 = vector.load %arg14[%c4_75, %c0_76, %c0_77] : memref<8x16x16xf32, #tpu.memory_space<vmem>>, vector<1x16x16xf32>
    %125 = vector.shape_cast %124 : vector<1x16x16xf32> to vector<16x16xf32>
    %126 = vector.shape_cast %123 : vector<16x16xf32> to vector<1x16x16xf32>
    tpu.vector_store %arg14[%c4_75, %c0_76, %c0_77], %126 {strides = array<i32>} : memref<8x16x16xf32, #tpu.memory_space<vmem>>, vector<1x16x16xf32>,
    %127 = vector.extract_strided_slice %84 {offsets = [10, 0, 0], sizes = [1, 16, 16], strides = [1, 1, 1]} : vector<16x16x16xf32> to vector<1x16x16xf32>
    %128 = vector.shape_cast %127 : vector<1x16x16xf32> to vector<16x16xf32>
    %129 = vector.extract_strided_slice %84 {offsets = [11, 0, 0], sizes = [1, 16, 16], strides = [1, 1, 1]} : vector<16x16x16xf32> to vector<1x16x16xf32>
    %130 = vector.shape_cast %129 : vector<1x16x16xf32> to vector<16x16xf32>
    %131 = arith.maximumf %128, %130 : vector<16x16xf32>
    %c5_78 = arith.constant 5 : index
    %c0_79 = arith.constant 0 : index
    %c0_80 = arith.constant 0 : index
    %132 = vector.load %arg14[%c5_78, %c0_79, %c0_80] : memref<8x16x16xf32, #tpu.memory_space<vmem>>, vector<1x16x16xf32>
    %133 = vector.shape_cast %132 : vector<1x16x16xf32> to vector<16x16xf32>
    %134 = vector.shape_cast %131 : vector<16x16xf32> to vector<1x16x16xf32>
    tpu.vector_store %arg14[%c5_78, %c0_79, %c0_80], %134 {strides = array<i32>} : memref<8x16x16xf32, #tpu.memory_space<vmem>>, vector<1x16x16xf32>,
    %135 = vector.extract_strided_slice %84 {offsets = [12, 0, 0], sizes = [1, 16, 16], strides = [1, 1, 1]} : vector<16x16x16xf32> to vector<1x16x16xf32>
    %136 = vector.shape_cast %135 : vector<1x16x16xf32> to vector<16x16xf32>
    %137 = vector.extract_strided_slice %84 {offsets = [13, 0, 0], sizes = [1, 16, 16], strides = [1, 1, 1]} : vector<16x16x16xf32> to vector<1x16x16xf32>
    %138 = vector.shape_cast %137 : vector<1x16x16xf32> to vector<16x16xf32>
    %139 = arith.maximumf %136, %138 : vector<16x16xf32>
    %c6_81 = arith.constant 6 : index
    %c0_82 = arith.constant 0 : index
    %c0_83 = arith.constant 0 : index
    %140 = vector.load %arg14[%c6_81, %c0_82, %c0_83] : memref<8x16x16xf32, #tpu.memory_space<vmem>>, vector<1x16x16xf32>
    %141 = vector.shape_cast %140 : vector<1x16x16xf32> to vector<16x16xf32>
    %142 = vector.shape_cast %139 : vector<16x16xf32> to vector<1x16x16xf32>
    tpu.vector_store %arg14[%c6_81, %c0_82, %c0_83], %142 {strides = array<i32>} : memref<8x16x16xf32, #tpu.memory_space<vmem>>, vector<1x16x16xf32>,
    %143 = vector.extract_strided_slice %84 {offsets = [14, 0, 0], sizes = [1, 16, 16], strides = [1, 1, 1]} : vector<16x16x16xf32> to vector<1x16x16xf32>
    %144 = vector.shape_cast %143 : vector<1x16x16xf32> to vector<16x16xf32>
    %145 = vector.extract_strided_slice %84 {offsets = [15, 0, 0], sizes = [1, 16, 16], strides = [1, 1, 1]} : vector<16x16x16xf32> to vector<1x16x16xf32>
    %146 = vector.shape_cast %145 : vector<1x16x16xf32> to vector<16x16xf32>
    %147 = arith.maximumf %144, %146 : vector<16x16xf32>
    %c7_84 = arith.constant 7 : index
    %c0_85 = arith.constant 0 : index
    %c0_86 = arith.constant 0 : index
    %148 = vector.load %arg14[%c7_84, %c0_85, %c0_86] : memref<8x16x16xf32, #tpu.memory_space<vmem>>, vector<1x16x16xf32>
    %149 = vector.shape_cast %148 : vector<1x16x16xf32> to vector<16x16xf32>
    %150 = vector.shape_cast %147 : vector<16x16xf32> to vector<1x16x16xf32>
    tpu.vector_store %arg14[%c7_84, %c0_85, %c0_86], %150 {strides = array<i32>} : memref<8x16x16xf32, #tpu.memory_space<vmem>>, vector<1x16x16xf32>,
    %c0_87 = arith.constant 0 : index
    %c0_88 = arith.constant 0 : index
    %c0_89 = arith.constant 0 : index
    %151 = vector.load %arg14[%c0_87, %c0_88, %c0_89] : memref<8x16x16xf32, #tpu.memory_space<vmem>>, vector<8x1x16xf32>
    %152 = vector.shape_cast %151 : vector<8x1x16xf32> to vector<8x16xf32>
    %c0_90 = arith.constant 0 : index
    %c1_91 = arith.constant 1 : index
    %c0_92 = arith.constant 0 : index
    %153 = vector.load %arg14[%c0_90, %c1_91, %c0_92] : memref<8x16x16xf32, #tpu.memory_space<vmem>>, vector<8x1x16xf32>
    %154 = vector.shape_cast %153 : vector<8x1x16xf32> to vector<8x16xf32>
    %155 = arith.maximumf %152, %154 : vector<8x16xf32>
    %c1_93 = arith.constant 1 : index
    %c1_94 = arith.constant 1 : index
    %c0_95 = arith.constant 0 : index
    %156 = vector.load %arg15[%c1_93, %c1_94, %c0_95] : memref<10x10x16xf32, #tpu.memory_space<vmem>>, vector<8x1x16xf32>
    %157 = vector.shape_cast %156 : vector<8x1x16xf32> to vector<8x16xf32>
    %158 = vector.shape_cast %155 : vector<8x16xf32> to vector<8x1x16xf32>
    tpu.vector_store %arg15[%c1_93, %c1_94, %c0_95], %158 {strides = array<i32>} : memref<10x10x16xf32, #tpu.memory_space<vmem>>, vector<8x1x16xf32>,
    %c0_96 = arith.constant 0 : index
    %c2_97 = arith.constant 2 : index
    %c0_98 = arith.constant 0 : index
    %159 = vector.load %arg14[%c0_96, %c2_97, %c0_98] : memref<8x16x16xf32, #tpu.memory_space<vmem>>, vector<8x1x16xf32>
    %160 = vector.shape_cast %159 : vector<8x1x16xf32> to vector<8x16xf32>
    %c0_99 = arith.constant 0 : index
    %c3_100 = arith.constant 3 : index
    %c0_101 = arith.constant 0 : index
    %161 = vector.load %arg14[%c0_99, %c3_100, %c0_101] : memref<8x16x16xf32, #tpu.memory_space<vmem>>, vector<8x1x16xf32>
    %162 = vector.shape_cast %161 : vector<8x1x16xf32> to vector<8x16xf32>
    %163 = arith.maximumf %160, %162 : vector<8x16xf32>
    %c1_102 = arith.constant 1 : index
    %c2_103 = arith.constant 2 : index
    %c0_104 = arith.constant 0 : index
    %164 = vector.load %arg15[%c1_102, %c2_103, %c0_104] : memref<10x10x16xf32, #tpu.memory_space<vmem>>, vector<8x1x16xf32>
    %165 = vector.shape_cast %164 : vector<8x1x16xf32> to vector<8x16xf32>
    %166 = vector.shape_cast %163 : vector<8x16xf32> to vector<8x1x16xf32>
    tpu.vector_store %arg15[%c1_102, %c2_103, %c0_104], %166 {strides = array<i32>} : memref<10x10x16xf32, #tpu.memory_space<vmem>>, vector<8x1x16xf32>,
    %c0_105 = arith.constant 0 : index
    %c4_106 = arith.constant 4 : index
    %c0_107 = arith.constant 0 : index
    %167 = vector.load %arg14[%c0_105, %c4_106, %c0_107] : memref<8x16x16xf32, #tpu.memory_space<vmem>>, vector<8x1x16xf32>
    %168 = vector.shape_cast %167 : vector<8x1x16xf32> to vector<8x16xf32>
    %c0_108 = arith.constant 0 : index
    %c5_109 = arith.constant 5 : index
    %c0_110 = arith.constant 0 : index
    %169 = vector.load %arg14[%c0_108, %c5_109, %c0_110] : memref<8x16x16xf32, #tpu.memory_space<vmem>>, vector<8x1x16xf32>
    %170 = vector.shape_cast %169 : vector<8x1x16xf32> to vector<8x16xf32>
    %171 = arith.maximumf %168, %170 : vector<8x16xf32>
    %c1_111 = arith.constant 1 : index
    %c3_112 = arith.constant 3 : index
    %c0_113 = arith.constant 0 : index
    %172 = vector.load %arg15[%c1_111, %c3_112, %c0_113] : memref<10x10x16xf32, #tpu.memory_space<vmem>>, vector<8x1x16xf32>
    %173 = vector.shape_cast %172 : vector<8x1x16xf32> to vector<8x16xf32>
    %174 = vector.shape_cast %171 : vector<8x16xf32> to vector<8x1x16xf32>
    tpu.vector_store %arg15[%c1_111, %c3_112, %c0_113], %174 {strides = array<i32>} : memref<10x10x16xf32, #tpu.memory_space<vmem>>, vector<8x1x16xf32>,
    %c0_114 = arith.constant 0 : index
    %c6_115 = arith.constant 6 : index
    %c0_116 = arith.constant 0 : index
    %175 = vector.load %arg14[%c0_114, %c6_115, %c0_116] : memref<8x16x16xf32, #tpu.memory_space<vmem>>, vector<8x1x16xf32>
    %176 = vector.shape_cast %175 : vector<8x1x16xf32> to vector<8x16xf32>
    %c0_117 = arith.constant 0 : index
    %c7_118 = arith.constant 7 : index
    %c0_119 = arith.constant 0 : index
    %177 = vector.load %arg14[%c0_117, %c7_118, %c0_119] : memref<8x16x16xf32, #tpu.memory_space<vmem>>, vector<8x1x16xf32>
    %178 = vector.shape_cast %177 : vector<8x1x16xf32> to vector<8x16xf32>
    %179 = arith.maximumf %176, %178 : vector<8x16xf32>
    %c1_120 = arith.constant 1 : index
    %c4_121 = arith.constant 4 : index
    %c0_122 = arith.constant 0 : index
    %180 = vector.load %arg15[%c1_120, %c4_121, %c0_122] : memref<10x10x16xf32, #tpu.memory_space<vmem>>, vector<8x1x16xf32>
    %181 = vector.shape_cast %180 : vector<8x1x16xf32> to vector<8x16xf32>
    %182 = vector.shape_cast %179 : vector<8x16xf32> to vector<8x1x16xf32>
    tpu.vector_store %arg15[%c1_120, %c4_121, %c0_122], %182 {strides = array<i32>} : memref<10x10x16xf32, #tpu.memory_space<vmem>>, vector<8x1x16xf32>,
    %c0_123 = arith.constant 0 : index
    %c8_124 = arith.constant 8 : index
    %c0_125 = arith.constant 0 : index
    %183 = vector.load %arg14[%c0_123, %c8_124, %c0_125] : memref<8x16x16xf32, #tpu.memory_space<vmem>>, vector<8x1x16xf32>
    %184 = vector.shape_cast %183 : vector<8x1x16xf32> to vector<8x16xf32>
    %c0_126 = arith.constant 0 : index
    %c9 = arith.constant 9 : index
    %c0_127 = arith.constant 0 : index
    %185 = vector.load %arg14[%c0_126, %c9, %c0_127] : memref<8x16x16xf32, #tpu.memory_space<vmem>>, vector<8x1x16xf32>
    %186 = vector.shape_cast %185 : vector<8x1x16xf32> to vector<8x16xf32>
    %187 = arith.maximumf %184, %186 : vector<8x16xf32>
    %c1_128 = arith.constant 1 : index
    %c5_129 = arith.constant 5 : index
    %c0_130 = arith.constant 0 : index
    %188 = vector.load %arg15[%c1_128, %c5_129, %c0_130] : memref<10x10x16xf32, #tpu.memory_space<vmem>>, vector<8x1x16xf32>
    %189 = vector.shape_cast %188 : vector<8x1x16xf32> to vector<8x16xf32>
    %190 = vector.shape_cast %187 : vector<8x16xf32> to vector<8x1x16xf32>
    tpu.vector_store %arg15[%c1_128, %c5_129, %c0_130], %190 {strides = array<i32>} : memref<10x10x16xf32, #tpu.memory_space<vmem>>, vector<8x1x16xf32>,
    %c0_131 = arith.constant 0 : index
    %c10 = arith.constant 10 : index
    %c0_132 = arith.constant 0 : index
    %191 = vector.load %arg14[%c0_131, %c10, %c0_132] : memref<8x16x16xf32, #tpu.memory_space<vmem>>, vector<8x1x16xf32>
    %192 = vector.shape_cast %191 : vector<8x1x16xf32> to vector<8x16xf32>
    %c0_133 = arith.constant 0 : index
    %c11 = arith.constant 11 : index
    %c0_134 = arith.constant 0 : index
    %193 = vector.load %arg14[%c0_133, %c11, %c0_134] : memref<8x16x16xf32, #tpu.memory_space<vmem>>, vector<8x1x16xf32>
    %194 = vector.shape_cast %193 : vector<8x1x16xf32> to vector<8x16xf32>
    %195 = arith.maximumf %192, %194 : vector<8x16xf32>
    %c1_135 = arith.constant 1 : index
    %c6_136 = arith.constant 6 : index
    %c0_137 = arith.constant 0 : index
    %196 = vector.load %arg15[%c1_135, %c6_136, %c0_137] : memref<10x10x16xf32, #tpu.memory_space<vmem>>, vector<8x1x16xf32>
    %197 = vector.shape_cast %196 : vector<8x1x16xf32> to vector<8x16xf32>
    %198 = vector.shape_cast %195 : vector<8x16xf32> to vector<8x1x16xf32>
    tpu.vector_store %arg15[%c1_135, %c6_136, %c0_137], %198 {strides = array<i32>} : memref<10x10x16xf32, #tpu.memory_space<vmem>>, vector<8x1x16xf32>,
    %c0_138 = arith.constant 0 : index
    %c12 = arith.constant 12 : index
    %c0_139 = arith.constant 0 : index
    %199 = vector.load %arg14[%c0_138, %c12, %c0_139] : memref<8x16x16xf32, #tpu.memory_space<vmem>>, vector<8x1x16xf32>
    %200 = vector.shape_cast %199 : vector<8x1x16xf32> to vector<8x16xf32>
    %c0_140 = arith.constant 0 : index
    %c13 = arith.constant 13 : index
    %c0_141 = arith.constant 0 : index
    %201 = vector.load %arg14[%c0_140, %c13, %c0_141] : memref<8x16x16xf32, #tpu.memory_space<vmem>>, vector<8x1x16xf32>
    %202 = vector.shape_cast %201 : vector<8x1x16xf32> to vector<8x16xf32>
    %203 = arith.maximumf %200, %202 : vector<8x16xf32>
    %c1_142 = arith.constant 1 : index
    %c7_143 = arith.constant 7 : index
    %c0_144 = arith.constant 0 : index
    %204 = vector.load %arg15[%c1_142, %c7_143, %c0_144] : memref<10x10x16xf32, #tpu.memory_space<vmem>>, vector<8x1x16xf32>
    %205 = vector.shape_cast %204 : vector<8x1x16xf32> to vector<8x16xf32>
    %206 = vector.shape_cast %203 : vector<8x16xf32> to vector<8x1x16xf32>
    tpu.vector_store %arg15[%c1_142, %c7_143, %c0_144], %206 {strides = array<i32>} : memref<10x10x16xf32, #tpu.memory_space<vmem>>, vector<8x1x16xf32>,
    %c0_145 = arith.constant 0 : index
    %c14 = arith.constant 14 : index
    %c0_146 = arith.constant 0 : index
    %207 = vector.load %arg14[%c0_145, %c14, %c0_146] : memref<8x16x16xf32, #tpu.memory_space<vmem>>, vector<8x1x16xf32>
    %208 = vector.shape_cast %207 : vector<8x1x16xf32> to vector<8x16xf32>
    %c0_147 = arith.constant 0 : index
    %c15 = arith.constant 15 : index
    %c0_148 = arith.constant 0 : index
    %209 = vector.load %arg14[%c0_147, %c15, %c0_148] : memref<8x16x16xf32, #tpu.memory_space<vmem>>, vector<8x1x16xf32>
    %210 = vector.shape_cast %209 : vector<8x1x16xf32> to vector<8x16xf32>
    %211 = arith.maximumf %208, %210 : vector<8x16xf32>
    %c1_149 = arith.constant 1 : index
    %c8_150 = arith.constant 8 : index
    %c0_151 = arith.constant 0 : index
    %212 = vector.load %arg15[%c1_149, %c8_150, %c0_151] : memref<10x10x16xf32, #tpu.memory_space<vmem>>, vector<8x1x16xf32>
    %213 = vector.shape_cast %212 : vector<8x1x16xf32> to vector<8x16xf32>
    %214 = vector.shape_cast %211 : vector<8x16xf32> to vector<8x1x16xf32>
    tpu.vector_store %arg15[%c1_149, %c8_150, %c0_151], %214 {strides = array<i32>} : memref<10x10x16xf32, #tpu.memory_space<vmem>>, vector<8x1x16xf32>,
    %cst_152 = arith.constant 0.000000e+00 : f32
    %215 = vector.broadcast %cst_152 : f32 to vector<64x32xf32>
    %c0_153 = arith.constant 0 : index
    %c0_154 = arith.constant 0 : index
    %c0_155 = arith.constant 0 : index
    %216 = vector.load %arg15[%c0_153, %c0_154, %c0_155] : memref<10x10x16xf32, #tpu.memory_space<vmem>>, vector<8x8x16xf32>
    %217 = vector.shape_cast %216 : vector<8x8x16xf32> to vector<64x16xf32>
    %c0_156 = arith.constant 0 : index
    %c0_157 = arith.constant 0 : index
    %c0_158 = arith.constant 0 : index
    %218 = vector.load %arg4[%c0_156, %c0_157, %c0_158] : memref<9x16x32xf32, #tpu.memory_space<vmem>>, vector<1x16x32xf32>
    %219 = vector.shape_cast %218 : vector<1x16x32xf32> to vector<16x32xf32>
    %cst_159 = arith.constant dense<0.000000e+00> : vector<64x32xf32>
    %220 = tpu.matmul %217, %219, %cst_159 {dimension_numbers = #tpu.dot_dimension_numbers<[1], [0], [0], [1], [0, 0, 1, 1], [], []>} : vector<64x16xf32>, vector<16x32xf32>, vector<64x32xf32> -> vector<64x32xf32>
    %221 = arith.addf %215, %220 : vector<64x32xf32>
    %c0_160 = arith.constant 0 : index
    %c1_161 = arith.constant 1 : index
    %c0_162 = arith.constant 0 : index
    %222 = vector.load %arg15[%c0_160, %c1_161, %c0_162] : memref<10x10x16xf32, #tpu.memory_space<vmem>>, vector<8x8x16xf32>
    %223 = vector.shape_cast %222 : vector<8x8x16xf32> to vector<64x16xf32>
    %c1_163 = arith.constant 1 : index
    %c0_164 = arith.constant 0 : index
    %c0_165 = arith.constant 0 : index
    %224 = vector.load %arg4[%c1_163, %c0_164, %c0_165] : memref<9x16x32xf32, #tpu.memory_space<vmem>>, vector<1x16x32xf32>
    %225 = vector.shape_cast %224 : vector<1x16x32xf32> to vector<16x32xf32>
    %cst_166 = arith.constant dense<0.000000e+00> : vector<64x32xf32>
    %226 = tpu.matmul %223, %225, %cst_166 {dimension_numbers = #tpu.dot_dimension_numbers<[1], [0], [0], [1], [0, 0, 1, 1], [], []>} : vector<64x16xf32>, vector<16x32xf32>, vector<64x32xf32> -> vector<64x32xf32>
    %227 = arith.addf %221, %226 : vector<64x32xf32>
    %c0_167 = arith.constant 0 : index
    %c2_168 = arith.constant 2 : index
    %c0_169 = arith.constant 0 : index
    %228 = vector.load %arg15[%c0_167, %c2_168, %c0_169] : memref<10x10x16xf32, #tpu.memory_space<vmem>>, vector<8x8x16xf32>
    %229 = vector.shape_cast %228 : vector<8x8x16xf32> to vector<64x16xf32>
    %c2_170 = arith.constant 2 : index
    %c0_171 = arith.constant 0 : index
    %c0_172 = arith.constant 0 : index
    %230 = vector.load %arg4[%c2_170, %c0_171, %c0_172] : memref<9x16x32xf32, #tpu.memory_space<vmem>>, vector<1x16x32xf32>
    %231 = vector.shape_cast %230 : vector<1x16x32xf32> to vector<16x32xf32>
    %cst_173 = arith.constant dense<0.000000e+00> : vector<64x32xf32>
    %232 = tpu.matmul %229, %231, %cst_173 {dimension_numbers = #tpu.dot_dimension_numbers<[1], [0], [0], [1], [0, 0, 1, 1], [], []>} : vector<64x16xf32>, vector<16x32xf32>, vector<64x32xf32> -> vector<64x32xf32>
    %233 = arith.addf %227, %232 : vector<64x32xf32>
    %c1_174 = arith.constant 1 : index
    %c0_175 = arith.constant 0 : index
    %c0_176 = arith.constant 0 : index
    %234 = vector.load %arg15[%c1_174, %c0_175, %c0_176] : memref<10x10x16xf32, #tpu.memory_space<vmem>>, vector<8x8x16xf32>
    %235 = vector.shape_cast %234 : vector<8x8x16xf32> to vector<64x16xf32>
    %c3_177 = arith.constant 3 : index
    %c0_178 = arith.constant 0 : index
    %c0_179 = arith.constant 0 : index
    %236 = vector.load %arg4[%c3_177, %c0_178, %c0_179] : memref<9x16x32xf32, #tpu.memory_space<vmem>>, vector<1x16x32xf32>
    %237 = vector.shape_cast %236 : vector<1x16x32xf32> to vector<16x32xf32>
    %cst_180 = arith.constant dense<0.000000e+00> : vector<64x32xf32>
    %238 = tpu.matmul %235, %237, %cst_180 {dimension_numbers = #tpu.dot_dimension_numbers<[1], [0], [0], [1], [0, 0, 1, 1], [], []>} : vector<64x16xf32>, vector<16x32xf32>, vector<64x32xf32> -> vector<64x32xf32>
    %239 = arith.addf %233, %238 : vector<64x32xf32>
    %c1_181 = arith.constant 1 : index
    %c1_182 = arith.constant 1 : index
    %c0_183 = arith.constant 0 : index
    %240 = vector.load %arg15[%c1_181, %c1_182, %c0_183] : memref<10x10x16xf32, #tpu.memory_space<vmem>>, vector<8x8x16xf32>
    %241 = vector.shape_cast %240 : vector<8x8x16xf32> to vector<64x16xf32>
    %c4_184 = arith.constant 4 : index
    %c0_185 = arith.constant 0 : index
    %c0_186 = arith.constant 0 : index
    %242 = vector.load %arg4[%c4_184, %c0_185, %c0_186] : memref<9x16x32xf32, #tpu.memory_space<vmem>>, vector<1x16x32xf32>
    %243 = vector.shape_cast %242 : vector<1x16x32xf32> to vector<16x32xf32>
    %cst_187 = arith.constant dense<0.000000e+00> : vector<64x32xf32>
    %244 = tpu.matmul %241, %243, %cst_187 {dimension_numbers = #tpu.dot_dimension_numbers<[1], [0], [0], [1], [0, 0, 1, 1], [], []>} : vector<64x16xf32>, vector<16x32xf32>, vector<64x32xf32> -> vector<64x32xf32>
    %245 = arith.addf %239, %244 : vector<64x32xf32>
    %c1_188 = arith.constant 1 : index
    %c2_189 = arith.constant 2 : index
    %c0_190 = arith.constant 0 : index
    %246 = vector.load %arg15[%c1_188, %c2_189, %c0_190] : memref<10x10x16xf32, #tpu.memory_space<vmem>>, vector<8x8x16xf32>
    %247 = vector.shape_cast %246 : vector<8x8x16xf32> to vector<64x16xf32>
    %c5_191 = arith.constant 5 : index
    %c0_192 = arith.constant 0 : index
    %c0_193 = arith.constant 0 : index
    %248 = vector.load %arg4[%c5_191, %c0_192, %c0_193] : memref<9x16x32xf32, #tpu.memory_space<vmem>>, vector<1x16x32xf32>
    %249 = vector.shape_cast %248 : vector<1x16x32xf32> to vector<16x32xf32>
    %cst_194 = arith.constant dense<0.000000e+00> : vector<64x32xf32>
    %250 = tpu.matmul %247, %249, %cst_194 {dimension_numbers = #tpu.dot_dimension_numbers<[1], [0], [0], [1], [0, 0, 1, 1], [], []>} : vector<64x16xf32>, vector<16x32xf32>, vector<64x32xf32> -> vector<64x32xf32>
    %251 = arith.addf %245, %250 : vector<64x32xf32>
    %c2_195 = arith.constant 2 : index
    %c0_196 = arith.constant 0 : index
    %c0_197 = arith.constant 0 : index
    %252 = vector.load %arg15[%c2_195, %c0_196, %c0_197] : memref<10x10x16xf32, #tpu.memory_space<vmem>>, vector<8x8x16xf32>
    %253 = vector.shape_cast %252 : vector<8x8x16xf32> to vector<64x16xf32>
    %c6_198 = arith.constant 6 : index
    %c0_199 = arith.constant 0 : index
    %c0_200 = arith.constant 0 : index
    %254 = vector.load %arg4[%c6_198, %c0_199, %c0_200] : memref<9x16x32xf32, #tpu.memory_space<vmem>>, vector<1x16x32xf32>
    %255 = vector.shape_cast %254 : vector<1x16x32xf32> to vector<16x32xf32>
    %cst_201 = arith.constant dense<0.000000e+00> : vector<64x32xf32>
    %256 = tpu.matmul %253, %255, %cst_201 {dimension_numbers = #tpu.dot_dimension_numbers<[1], [0], [0], [1], [0, 0, 1, 1], [], []>} : vector<64x16xf32>, vector<16x32xf32>, vector<64x32xf32> -> vector<64x32xf32>
    %257 = arith.addf %251, %256 : vector<64x32xf32>
    %c2_202 = arith.constant 2 : index
    %c1_203 = arith.constant 1 : index
    %c0_204 = arith.constant 0 : index
    %258 = vector.load %arg15[%c2_202, %c1_203, %c0_204] : memref<10x10x16xf32, #tpu.memory_space<vmem>>, vector<8x8x16xf32>
    %259 = vector.shape_cast %258 : vector<8x8x16xf32> to vector<64x16xf32>
    %c7_205 = arith.constant 7 : index
    %c0_206 = arith.constant 0 : index
    %c0_207 = arith.constant 0 : index
    %260 = vector.load %arg4[%c7_205, %c0_206, %c0_207] : memref<9x16x32xf32, #tpu.memory_space<vmem>>, vector<1x16x32xf32>
    %261 = vector.shape_cast %260 : vector<1x16x32xf32> to vector<16x32xf32>
    %cst_208 = arith.constant dense<0.000000e+00> : vector<64x32xf32>
    %262 = tpu.matmul %259, %261, %cst_208 {dimension_numbers = #tpu.dot_dimension_numbers<[1], [0], [0], [1], [0, 0, 1, 1], [], []>} : vector<64x16xf32>, vector<16x32xf32>, vector<64x32xf32> -> vector<64x32xf32>
    %263 = arith.addf %257, %262 : vector<64x32xf32>
    %c2_209 = arith.constant 2 : index
    %c2_210 = arith.constant 2 : index
    %c0_211 = arith.constant 0 : index
    %264 = vector.load %arg15[%c2_209, %c2_210, %c0_211] : memref<10x10x16xf32, #tpu.memory_space<vmem>>, vector<8x8x16xf32>
    %265 = vector.shape_cast %264 : vector<8x8x16xf32> to vector<64x16xf32>
    %c8_212 = arith.constant 8 : index
    %c0_213 = arith.constant 0 : index
    %c0_214 = arith.constant 0 : index
    %266 = vector.load %arg4[%c8_212, %c0_213, %c0_214] : memref<9x16x32xf32, #tpu.memory_space<vmem>>, vector<1x16x32xf32>
    %267 = vector.shape_cast %266 : vector<1x16x32xf32> to vector<16x32xf32>
    %cst_215 = arith.constant dense<0.000000e+00> : vector<64x32xf32>
    %268 = tpu.matmul %265, %267, %cst_215 {dimension_numbers = #tpu.dot_dimension_numbers<[1], [0], [0], [1], [0, 0, 1, 1], [], []>} : vector<64x16xf32>, vector<16x32xf32>, vector<64x32xf32> -> vector<64x32xf32>
    %269 = arith.addf %263, %268 : vector<64x32xf32>
    %c0_216 = arith.constant 0 : index
    %c0_217 = arith.constant 0 : index
    %270 = vector.load %arg5[%c0_216, %c0_217] : memref<1x32xf32, #tpu.memory_space<vmem>>, vector<1x32xf32>
    %271 = vector.shape_cast %270 : vector<1x32xf32> to vector<32xf32>
    %272 = vector.shape_cast %271 : vector<32xf32> to vector<1x32xf32>
    %273 = vector.broadcast %272 : vector<1x32xf32> to vector<64x32xf32>
    %274 = arith.addf %269, %273 : vector<64x32xf32>
    %cst_218 = arith.constant 0.000000e+00 : f32
    %275 = vector.broadcast %cst_218 : f32 to vector<64x32xf32>
    %276 = arith.maximumf %274, %275 : vector<64x32xf32>
    %277 = vector.shape_cast %276 : vector<64x32xf32> to vector<8x8x32xf32>
    %cst_219 = arith.constant 0.000000e+00 : f32
    %278 = vector.broadcast %cst_219 : f32 to vector<6x6x32xf32>
    %c0_220 = arith.constant 0 : index
    %c0_221 = arith.constant 0 : index
    %c0_222 = arith.constant 0 : index
    %279 = vector.load %arg17[%c0_220, %c0_221, %c0_222] : memref<6x6x32xf32, #tpu.memory_space<vmem>>, vector<6x6x32xf32>
    tpu.vector_store %arg17[%c0_220, %c0_221, %c0_222], %278 {strides = array<i32>} : memref<6x6x32xf32, #tpu.memory_space<vmem>>, vector<6x6x32xf32>,
    %280 = vector.extract_strided_slice %277 {offsets = [0, 0, 0], sizes = [1, 8, 32], strides = [1, 1, 1]} : vector<8x8x32xf32> to vector<1x8x32xf32>
    %281 = vector.shape_cast %280 : vector<1x8x32xf32> to vector<8x32xf32>
    %282 = vector.extract_strided_slice %277 {offsets = [1, 0, 0], sizes = [1, 8, 32], strides = [1, 1, 1]} : vector<8x8x32xf32> to vector<1x8x32xf32>
    %283 = vector.shape_cast %282 : vector<1x8x32xf32> to vector<8x32xf32>
    %284 = arith.maximumf %281, %283 : vector<8x32xf32>
    %c0_223 = arith.constant 0 : index
    %c0_224 = arith.constant 0 : index
    %c0_225 = arith.constant 0 : index
    %285 = vector.load %arg16[%c0_223, %c0_224, %c0_225] : memref<4x8x32xf32, #tpu.memory_space<vmem>>, vector<1x8x32xf32>
    %286 = vector.shape_cast %285 : vector<1x8x32xf32> to vector<8x32xf32>
    %287 = vector.shape_cast %284 : vector<8x32xf32> to vector<1x8x32xf32>
    tpu.vector_store %arg16[%c0_223, %c0_224, %c0_225], %287 {strides = array<i32>} : memref<4x8x32xf32, #tpu.memory_space<vmem>>, vector<1x8x32xf32>,
    %288 = vector.extract_strided_slice %277 {offsets = [2, 0, 0], sizes = [1, 8, 32], strides = [1, 1, 1]} : vector<8x8x32xf32> to vector<1x8x32xf32>
    %289 = vector.shape_cast %288 : vector<1x8x32xf32> to vector<8x32xf32>
    %290 = vector.extract_strided_slice %277 {offsets = [3, 0, 0], sizes = [1, 8, 32], strides = [1, 1, 1]} : vector<8x8x32xf32> to vector<1x8x32xf32>
    %291 = vector.shape_cast %290 : vector<1x8x32xf32> to vector<8x32xf32>
    %292 = arith.maximumf %289, %291 : vector<8x32xf32>
    %c1_226 = arith.constant 1 : index
    %c0_227 = arith.constant 0 : index
    %c0_228 = arith.constant 0 : index
    %293 = vector.load %arg16[%c1_226, %c0_227, %c0_228] : memref<4x8x32xf32, #tpu.memory_space<vmem>>, vector<1x8x32xf32>
    %294 = vector.shape_cast %293 : vector<1x8x32xf32> to vector<8x32xf32>
    %295 = vector.shape_cast %292 : vector<8x32xf32> to vector<1x8x32xf32>
    tpu.vector_store %arg16[%c1_226, %c0_227, %c0_228], %295 {strides = array<i32>} : memref<4x8x32xf32, #tpu.memory_space<vmem>>, vector<1x8x32xf32>,
    %296 = vector.extract_strided_slice %277 {offsets = [4, 0, 0], sizes = [1, 8, 32], strides = [1, 1, 1]} : vector<8x8x32xf32> to vector<1x8x32xf32>
    %297 = vector.shape_cast %296 : vector<1x8x32xf32> to vector<8x32xf32>
    %298 = vector.extract_strided_slice %277 {offsets = [5, 0, 0], sizes = [1, 8, 32], strides = [1, 1, 1]} : vector<8x8x32xf32> to vector<1x8x32xf32>
    %299 = vector.shape_cast %298 : vector<1x8x32xf32> to vector<8x32xf32>
    %300 = arith.maximumf %297, %299 : vector<8x32xf32>
    %c2_229 = arith.constant 2 : index
    %c0_230 = arith.constant 0 : index
    %c0_231 = arith.constant 0 : index
    %301 = vector.load %arg16[%c2_229, %c0_230, %c0_231] : memref<4x8x32xf32, #tpu.memory_space<vmem>>, vector<1x8x32xf32>
    %302 = vector.shape_cast %301 : vector<1x8x32xf32> to vector<8x32xf32>
    %303 = vector.shape_cast %300 : vector<8x32xf32> to vector<1x8x32xf32>
    tpu.vector_store %arg16[%c2_229, %c0_230, %c0_231], %303 {strides = array<i32>} : memref<4x8x32xf32, #tpu.memory_space<vmem>>, vector<1x8x32xf32>,
    %304 = vector.extract_strided_slice %277 {offsets = [6, 0, 0], sizes = [1, 8, 32], strides = [1, 1, 1]} : vector<8x8x32xf32> to vector<1x8x32xf32>
    %305 = vector.shape_cast %304 : vector<1x8x32xf32> to vector<8x32xf32>
    %306 = vector.extract_strided_slice %277 {offsets = [7, 0, 0], sizes = [1, 8, 32], strides = [1, 1, 1]} : vector<8x8x32xf32> to vector<1x8x32xf32>
    %307 = vector.shape_cast %306 : vector<1x8x32xf32> to vector<8x32xf32>
    %308 = arith.maximumf %305, %307 : vector<8x32xf32>
    %c3_232 = arith.constant 3 : index
    %c0_233 = arith.constant 0 : index
    %c0_234 = arith.constant 0 : index
    %309 = vector.load %arg16[%c3_232, %c0_233, %c0_234] : memref<4x8x32xf32, #tpu.memory_space<vmem>>, vector<1x8x32xf32>
    %310 = vector.shape_cast %309 : vector<1x8x32xf32> to vector<8x32xf32>
    %311 = vector.shape_cast %308 : vector<8x32xf32> to vector<1x8x32xf32>
    tpu.vector_store %arg16[%c3_232, %c0_233, %c0_234], %311 {strides = array<i32>} : memref<4x8x32xf32, #tpu.memory_space<vmem>>, vector<1x8x32xf32>,
    %c0_235 = arith.constant 0 : index
    %c0_236 = arith.constant 0 : index
    %c0_237 = arith.constant 0 : index
    %312 = vector.load %arg16[%c0_235, %c0_236, %c0_237] : memref<4x8x32xf32, #tpu.memory_space<vmem>>, vector<4x1x32xf32>
    %313 = vector.shape_cast %312 : vector<4x1x32xf32> to vector<4x32xf32>
    %c0_238 = arith.constant 0 : index
    %c1_239 = arith.constant 1 : index
    %c0_240 = arith.constant 0 : index
    %314 = vector.load %arg16[%c0_238, %c1_239, %c0_240] : memref<4x8x32xf32, #tpu.memory_space<vmem>>, vector<4x1x32xf32>
    %315 = vector.shape_cast %314 : vector<4x1x32xf32> to vector<4x32xf32>
    %316 = arith.maximumf %313, %315 : vector<4x32xf32>
    %c1_241 = arith.constant 1 : index
    %c1_242 = arith.constant 1 : index
    %c0_243 = arith.constant 0 : index
    %317 = vector.load %arg17[%c1_241, %c1_242, %c0_243] : memref<6x6x32xf32, #tpu.memory_space<vmem>>, vector<4x1x32xf32>
    %318 = vector.shape_cast %317 : vector<4x1x32xf32> to vector<4x32xf32>
    %319 = vector.shape_cast %316 : vector<4x32xf32> to vector<4x1x32xf32>
    tpu.vector_store %arg17[%c1_241, %c1_242, %c0_243], %319 {strides = array<i32>} : memref<6x6x32xf32, #tpu.memory_space<vmem>>, vector<4x1x32xf32>,
    %c0_244 = arith.constant 0 : index
    %c2_245 = arith.constant 2 : index
    %c0_246 = arith.constant 0 : index
    %320 = vector.load %arg16[%c0_244, %c2_245, %c0_246] : memref<4x8x32xf32, #tpu.memory_space<vmem>>, vector<4x1x32xf32>
    %321 = vector.shape_cast %320 : vector<4x1x32xf32> to vector<4x32xf32>
    %c0_247 = arith.constant 0 : index
    %c3_248 = arith.constant 3 : index
    %c0_249 = arith.constant 0 : index
    %322 = vector.load %arg16[%c0_247, %c3_248, %c0_249] : memref<4x8x32xf32, #tpu.memory_space<vmem>>, vector<4x1x32xf32>
    %323 = vector.shape_cast %322 : vector<4x1x32xf32> to vector<4x32xf32>
    %324 = arith.maximumf %321, %323 : vector<4x32xf32>
    %c1_250 = arith.constant 1 : index
    %c2_251 = arith.constant 2 : index
    %c0_252 = arith.constant 0 : index
    %325 = vector.load %arg17[%c1_250, %c2_251, %c0_252] : memref<6x6x32xf32, #tpu.memory_space<vmem>>, vector<4x1x32xf32>
    %326 = vector.shape_cast %325 : vector<4x1x32xf32> to vector<4x32xf32>
    %327 = vector.shape_cast %324 : vector<4x32xf32> to vector<4x1x32xf32>
    tpu.vector_store %arg17[%c1_250, %c2_251, %c0_252], %327 {strides = array<i32>} : memref<6x6x32xf32, #tpu.memory_space<vmem>>, vector<4x1x32xf32>,
    %c0_253 = arith.constant 0 : index
    %c4_254 = arith.constant 4 : index
    %c0_255 = arith.constant 0 : index
    %328 = vector.load %arg16[%c0_253, %c4_254, %c0_255] : memref<4x8x32xf32, #tpu.memory_space<vmem>>, vector<4x1x32xf32>
    %329 = vector.shape_cast %328 : vector<4x1x32xf32> to vector<4x32xf32>
    %c0_256 = arith.constant 0 : index
    %c5_257 = arith.constant 5 : index
    %c0_258 = arith.constant 0 : index
    %330 = vector.load %arg16[%c0_256, %c5_257, %c0_258] : memref<4x8x32xf32, #tpu.memory_space<vmem>>, vector<4x1x32xf32>
    %331 = vector.shape_cast %330 : vector<4x1x32xf32> to vector<4x32xf32>
    %332 = arith.maximumf %329, %331 : vector<4x32xf32>
    %c1_259 = arith.constant 1 : index
    %c3_260 = arith.constant 3 : index
    %c0_261 = arith.constant 0 : index
    %333 = vector.load %arg17[%c1_259, %c3_260, %c0_261] : memref<6x6x32xf32, #tpu.memory_space<vmem>>, vector<4x1x32xf32>
    %334 = vector.shape_cast %333 : vector<4x1x32xf32> to vector<4x32xf32>
    %335 = vector.shape_cast %332 : vector<4x32xf32> to vector<4x1x32xf32>
    tpu.vector_store %arg17[%c1_259, %c3_260, %c0_261], %335 {strides = array<i32>} : memref<6x6x32xf32, #tpu.memory_space<vmem>>, vector<4x1x32xf32>,
    %c0_262 = arith.constant 0 : index
    %c6_263 = arith.constant 6 : index
    %c0_264 = arith.constant 0 : index
    %336 = vector.load %arg16[%c0_262, %c6_263, %c0_264] : memref<4x8x32xf32, #tpu.memory_space<vmem>>, vector<4x1x32xf32>
    %337 = vector.shape_cast %336 : vector<4x1x32xf32> to vector<4x32xf32>
    %c0_265 = arith.constant 0 : index
    %c7_266 = arith.constant 7 : index
    %c0_267 = arith.constant 0 : index
    %338 = vector.load %arg16[%c0_265, %c7_266, %c0_267] : memref<4x8x32xf32, #tpu.memory_space<vmem>>, vector<4x1x32xf32>
    %339 = vector.shape_cast %338 : vector<4x1x32xf32> to vector<4x32xf32>
    %340 = arith.maximumf %337, %339 : vector<4x32xf32>
    %c1_268 = arith.constant 1 : index
    %c4_269 = arith.constant 4 : index
    %c0_270 = arith.constant 0 : index
    %341 = vector.load %arg17[%c1_268, %c4_269, %c0_270] : memref<6x6x32xf32, #tpu.memory_space<vmem>>, vector<4x1x32xf32>
    %342 = vector.shape_cast %341 : vector<4x1x32xf32> to vector<4x32xf32>
    %343 = vector.shape_cast %340 : vector<4x32xf32> to vector<4x1x32xf32>
    tpu.vector_store %arg17[%c1_268, %c4_269, %c0_270], %343 {strides = array<i32>} : memref<6x6x32xf32, #tpu.memory_space<vmem>>, vector<4x1x32xf32>,
    %cst_271 = arith.constant 0.000000e+00 : f32
    %344 = vector.broadcast %cst_271 : f32 to vector<1x64xf32>
    %cst_272 = arith.constant 0.000000e+00 : f32
    %345 = vector.broadcast %cst_272 : f32 to vector<4x64xf32>
    %c0_273 = arith.constant 0 : index
    %c0_274 = arith.constant 0 : index
    %c0_275 = arith.constant 0 : index
    %346 = vector.load %arg17[%c0_273, %c0_274, %c0_275] : memref<6x6x32xf32, #tpu.memory_space<vmem>>, vector<1x4x32xf32>
    %347 = vector.shape_cast %346 : vector<1x4x32xf32> to vector<4x32xf32>
    %c0_276 = arith.constant 0 : index
    %c0_277 = arith.constant 0 : index
    %c0_278 = arith.constant 0 : index
    %348 = vector.load %arg6[%c0_276, %c0_277, %c0_278] : memref<9x32x64xf32, #tpu.memory_space<vmem>>, vector<1x32x64xf32>
    %349 = vector.shape_cast %348 : vector<1x32x64xf32> to vector<32x64xf32>
    %cst_279 = arith.constant dense<0.000000e+00> : vector<4x64xf32>
    %350 = tpu.matmul %347, %349, %cst_279 {dimension_numbers = #tpu.dot_dimension_numbers<[1], [0], [0], [1], [0, 0, 1, 1], [], []>} : vector<4x32xf32>, vector<32x64xf32>, vector<4x64xf32> -> vector<4x64xf32>
    %351 = arith.addf %345, %350 : vector<4x64xf32>
    %c0_280 = arith.constant 0 : index
    %c1_281 = arith.constant 1 : index
    %c0_282 = arith.constant 0 : index
    %352 = vector.load %arg17[%c0_280, %c1_281, %c0_282] : memref<6x6x32xf32, #tpu.memory_space<vmem>>, vector<1x4x32xf32>
    %353 = vector.shape_cast %352 : vector<1x4x32xf32> to vector<4x32xf32>
    %c1_283 = arith.constant 1 : index
    %c0_284 = arith.constant 0 : index
    %c0_285 = arith.constant 0 : index
    %354 = vector.load %arg6[%c1_283, %c0_284, %c0_285] : memref<9x32x64xf32, #tpu.memory_space<vmem>>, vector<1x32x64xf32>
    %355 = vector.shape_cast %354 : vector<1x32x64xf32> to vector<32x64xf32>
    %cst_286 = arith.constant dense<0.000000e+00> : vector<4x64xf32>
    %356 = tpu.matmul %353, %355, %cst_286 {dimension_numbers = #tpu.dot_dimension_numbers<[1], [0], [0], [1], [0, 0, 1, 1], [], []>} : vector<4x32xf32>, vector<32x64xf32>, vector<4x64xf32> -> vector<4x64xf32>
    %357 = arith.addf %351, %356 : vector<4x64xf32>
    %c0_287 = arith.constant 0 : index
    %c2_288 = arith.constant 2 : index
    %c0_289 = arith.constant 0 : index
    %358 = vector.load %arg17[%c0_287, %c2_288, %c0_289] : memref<6x6x32xf32, #tpu.memory_space<vmem>>, vector<1x4x32xf32>
    %359 = vector.shape_cast %358 : vector<1x4x32xf32> to vector<4x32xf32>
    %c2_290 = arith.constant 2 : index
    %c0_291 = arith.constant 0 : index
    %c0_292 = arith.constant 0 : index
    %360 = vector.load %arg6[%c2_290, %c0_291, %c0_292] : memref<9x32x64xf32, #tpu.memory_space<vmem>>, vector<1x32x64xf32>
    %361 = vector.shape_cast %360 : vector<1x32x64xf32> to vector<32x64xf32>
    %cst_293 = arith.constant dense<0.000000e+00> : vector<4x64xf32>
    %362 = tpu.matmul %359, %361, %cst_293 {dimension_numbers = #tpu.dot_dimension_numbers<[1], [0], [0], [1], [0, 0, 1, 1], [], []>} : vector<4x32xf32>, vector<32x64xf32>, vector<4x64xf32> -> vector<4x64xf32>
    %363 = arith.addf %357, %362 : vector<4x64xf32>
    %c1_294 = arith.constant 1 : index
    %c0_295 = arith.constant 0 : index
    %c0_296 = arith.constant 0 : index
    %364 = vector.load %arg17[%c1_294, %c0_295, %c0_296] : memref<6x6x32xf32, #tpu.memory_space<vmem>>, vector<1x4x32xf32>
    %365 = vector.shape_cast %364 : vector<1x4x32xf32> to vector<4x32xf32>
    %c3_297 = arith.constant 3 : index
    %c0_298 = arith.constant 0 : index
    %c0_299 = arith.constant 0 : index
    %366 = vector.load %arg6[%c3_297, %c0_298, %c0_299] : memref<9x32x64xf32, #tpu.memory_space<vmem>>, vector<1x32x64xf32>
    %367 = vector.shape_cast %366 : vector<1x32x64xf32> to vector<32x64xf32>
    %cst_300 = arith.constant dense<0.000000e+00> : vector<4x64xf32>
    %368 = tpu.matmul %365, %367, %cst_300 {dimension_numbers = #tpu.dot_dimension_numbers<[1], [0], [0], [1], [0, 0, 1, 1], [], []>} : vector<4x32xf32>, vector<32x64xf32>, vector<4x64xf32> -> vector<4x64xf32>
    %369 = arith.addf %363, %368 : vector<4x64xf32>
    %c1_301 = arith.constant 1 : index
    %c1_302 = arith.constant 1 : index
    %c0_303 = arith.constant 0 : index
    %370 = vector.load %arg17[%c1_301, %c1_302, %c0_303] : memref<6x6x32xf32, #tpu.memory_space<vmem>>, vector<1x4x32xf32>
    %371 = vector.shape_cast %370 : vector<1x4x32xf32> to vector<4x32xf32>
    %c4_304 = arith.constant 4 : index
    %c0_305 = arith.constant 0 : index
    %c0_306 = arith.constant 0 : index
    %372 = vector.load %arg6[%c4_304, %c0_305, %c0_306] : memref<9x32x64xf32, #tpu.memory_space<vmem>>, vector<1x32x64xf32>
    %373 = vector.shape_cast %372 : vector<1x32x64xf32> to vector<32x64xf32>
    %cst_307 = arith.constant dense<0.000000e+00> : vector<4x64xf32>
    %374 = tpu.matmul %371, %373, %cst_307 {dimension_numbers = #tpu.dot_dimension_numbers<[1], [0], [0], [1], [0, 0, 1, 1], [], []>} : vector<4x32xf32>, vector<32x64xf32>, vector<4x64xf32> -> vector<4x64xf32>
    %375 = arith.addf %369, %374 : vector<4x64xf32>
    %c1_308 = arith.constant 1 : index
    %c2_309 = arith.constant 2 : index
    %c0_310 = arith.constant 0 : index
    %376 = vector.load %arg17[%c1_308, %c2_309, %c0_310] : memref<6x6x32xf32, #tpu.memory_space<vmem>>, vector<1x4x32xf32>
    %377 = vector.shape_cast %376 : vector<1x4x32xf32> to vector<4x32xf32>
    %c5_311 = arith.constant 5 : index
    %c0_312 = arith.constant 0 : index
    %c0_313 = arith.constant 0 : index
    %378 = vector.load %arg6[%c5_311, %c0_312, %c0_313] : memref<9x32x64xf32, #tpu.memory_space<vmem>>, vector<1x32x64xf32>
    %379 = vector.shape_cast %378 : vector<1x32x64xf32> to vector<32x64xf32>
    %cst_314 = arith.constant dense<0.000000e+00> : vector<4x64xf32>
    %380 = tpu.matmul %377, %379, %cst_314 {dimension_numbers = #tpu.dot_dimension_numbers<[1], [0], [0], [1], [0, 0, 1, 1], [], []>} : vector<4x32xf32>, vector<32x64xf32>, vector<4x64xf32> -> vector<4x64xf32>
    %381 = arith.addf %375, %380 : vector<4x64xf32>
    %c2_315 = arith.constant 2 : index
    %c0_316 = arith.constant 0 : index
    %c0_317 = arith.constant 0 : index
    %382 = vector.load %arg17[%c2_315, %c0_316, %c0_317] : memref<6x6x32xf32, #tpu.memory_space<vmem>>, vector<1x4x32xf32>
    %383 = vector.shape_cast %382 : vector<1x4x32xf32> to vector<4x32xf32>
    %c6_318 = arith.constant 6 : index
    %c0_319 = arith.constant 0 : index
    %c0_320 = arith.constant 0 : index
    %384 = vector.load %arg6[%c6_318, %c0_319, %c0_320] : memref<9x32x64xf32, #tpu.memory_space<vmem>>, vector<1x32x64xf32>
    %385 = vector.shape_cast %384 : vector<1x32x64xf32> to vector<32x64xf32>
    %cst_321 = arith.constant dense<0.000000e+00> : vector<4x64xf32>
    %386 = tpu.matmul %383, %385, %cst_321 {dimension_numbers = #tpu.dot_dimension_numbers<[1], [0], [0], [1], [0, 0, 1, 1], [], []>} : vector<4x32xf32>, vector<32x64xf32>, vector<4x64xf32> -> vector<4x64xf32>
    %387 = arith.addf %381, %386 : vector<4x64xf32>
    %c2_322 = arith.constant 2 : index
    %c1_323 = arith.constant 1 : index
    %c0_324 = arith.constant 0 : index
    %388 = vector.load %arg17[%c2_322, %c1_323, %c0_324] : memref<6x6x32xf32, #tpu.memory_space<vmem>>, vector<1x4x32xf32>
    %389 = vector.shape_cast %388 : vector<1x4x32xf32> to vector<4x32xf32>
    %c7_325 = arith.constant 7 : index
    %c0_326 = arith.constant 0 : index
    %c0_327 = arith.constant 0 : index
    %390 = vector.load %arg6[%c7_325, %c0_326, %c0_327] : memref<9x32x64xf32, #tpu.memory_space<vmem>>, vector<1x32x64xf32>
    %391 = vector.shape_cast %390 : vector<1x32x64xf32> to vector<32x64xf32>
    %cst_328 = arith.constant dense<0.000000e+00> : vector<4x64xf32>
    %392 = tpu.matmul %389, %391, %cst_328 {dimension_numbers = #tpu.dot_dimension_numbers<[1], [0], [0], [1], [0, 0, 1, 1], [], []>} : vector<4x32xf32>, vector<32x64xf32>, vector<4x64xf32> -> vector<4x64xf32>
    %393 = arith.addf %387, %392 : vector<4x64xf32>
    %c2_329 = arith.constant 2 : index
    %c2_330 = arith.constant 2 : index
    %c0_331 = arith.constant 0 : index
    %394 = vector.load %arg17[%c2_329, %c2_330, %c0_331] : memref<6x6x32xf32, #tpu.memory_space<vmem>>, vector<1x4x32xf32>
    %395 = vector.shape_cast %394 : vector<1x4x32xf32> to vector<4x32xf32>
    %c8_332 = arith.constant 8 : index
    %c0_333 = arith.constant 0 : index
    %c0_334 = arith.constant 0 : index
    %396 = vector.load %arg6[%c8_332, %c0_333, %c0_334] : memref<9x32x64xf32, #tpu.memory_space<vmem>>, vector<1x32x64xf32>
    %397 = vector.shape_cast %396 : vector<1x32x64xf32> to vector<32x64xf32>
    %cst_335 = arith.constant dense<0.000000e+00> : vector<4x64xf32>
    %398 = tpu.matmul %395, %397, %cst_335 {dimension_numbers = #tpu.dot_dimension_numbers<[1], [0], [0], [1], [0, 0, 1, 1], [], []>} : vector<4x32xf32>, vector<32x64xf32>, vector<4x64xf32> -> vector<4x64xf32>
    %399 = arith.addf %393, %398 : vector<4x64xf32>
    %c0_336 = arith.constant 0 : index
    %c0_337 = arith.constant 0 : index
    %400 = vector.load %arg7[%c0_336, %c0_337] : memref<1x64xf32, #tpu.memory_space<vmem>>, vector<1x64xf32>
    %401 = vector.shape_cast %400 : vector<1x64xf32> to vector<64xf32>
    %402 = vector.shape_cast %401 : vector<64xf32> to vector<1x64xf32>
    %403 = vector.broadcast %402 : vector<1x64xf32> to vector<4x64xf32>
    %404 = arith.addf %399, %403 : vector<4x64xf32>
    %cst_338 = arith.constant 0.000000e+00 : f32
    %405 = vector.broadcast %cst_338 : f32 to vector<4x64xf32>
    %406 = arith.maximumf %404, %405 : vector<4x64xf32>
    %cst_339 = arith.constant dense<0.000000e+00> : vector<64xf32>
    %407 = vector.multi_reduction <add>, %406, %cst_339 [0] : vector<4x64xf32> to vector<64xf32>
    %408 = vector.shape_cast %407 : vector<64xf32> to vector<1x64xf32>
    %409 = arith.addf %344, %408 : vector<1x64xf32>
    %cst_340 = arith.constant 0.000000e+00 : f32
    %410 = vector.broadcast %cst_340 : f32 to vector<4x64xf32>
    %c1_341 = arith.constant 1 : index
    %c0_342 = arith.constant 0 : index
    %c0_343 = arith.constant 0 : index
    %411 = vector.load %arg17[%c1_341, %c0_342, %c0_343] : memref<6x6x32xf32, #tpu.memory_space<vmem>>, vector<1x4x32xf32>
    %412 = vector.shape_cast %411 : vector<1x4x32xf32> to vector<4x32xf32>
    %c0_344 = arith.constant 0 : index
    %c0_345 = arith.constant 0 : index
    %c0_346 = arith.constant 0 : index
    %413 = vector.load %arg6[%c0_344, %c0_345, %c0_346] : memref<9x32x64xf32, #tpu.memory_space<vmem>>, vector<1x32x64xf32>
    %414 = vector.shape_cast %413 : vector<1x32x64xf32> to vector<32x64xf32>
    %cst_347 = arith.constant dense<0.000000e+00> : vector<4x64xf32>
    %415 = tpu.matmul %412, %414, %cst_347 {dimension_numbers = #tpu.dot_dimension_numbers<[1], [0], [0], [1], [0, 0, 1, 1], [], []>} : vector<4x32xf32>, vector<32x64xf32>, vector<4x64xf32> -> vector<4x64xf32>
    %416 = arith.addf %410, %415 : vector<4x64xf32>
    %c1_348 = arith.constant 1 : index
    %c1_349 = arith.constant 1 : index
    %c0_350 = arith.constant 0 : index
    %417 = vector.load %arg17[%c1_348, %c1_349, %c0_350] : memref<6x6x32xf32, #tpu.memory_space<vmem>>, vector<1x4x32xf32>
    %418 = vector.shape_cast %417 : vector<1x4x32xf32> to vector<4x32xf32>
    %c1_351 = arith.constant 1 : index
    %c0_352 = arith.constant 0 : index
    %c0_353 = arith.constant 0 : index
    %419 = vector.load %arg6[%c1_351, %c0_352, %c0_353] : memref<9x32x64xf32, #tpu.memory_space<vmem>>, vector<1x32x64xf32>
    %420 = vector.shape_cast %419 : vector<1x32x64xf32> to vector<32x64xf32>
    %cst_354 = arith.constant dense<0.000000e+00> : vector<4x64xf32>
    %421 = tpu.matmul %418, %420, %cst_354 {dimension_numbers = #tpu.dot_dimension_numbers<[1], [0], [0], [1], [0, 0, 1, 1], [], []>} : vector<4x32xf32>, vector<32x64xf32>, vector<4x64xf32> -> vector<4x64xf32>
    %422 = arith.addf %416, %421 : vector<4x64xf32>
    %c1_355 = arith.constant 1 : index
    %c2_356 = arith.constant 2 : index
    %c0_357 = arith.constant 0 : index
    %423 = vector.load %arg17[%c1_355, %c2_356, %c0_357] : memref<6x6x32xf32, #tpu.memory_space<vmem>>, vector<1x4x32xf32>
    %424 = vector.shape_cast %423 : vector<1x4x32xf32> to vector<4x32xf32>
    %c2_358 = arith.constant 2 : index
    %c0_359 = arith.constant 0 : index
    %c0_360 = arith.constant 0 : index
    %425 = vector.load %arg6[%c2_358, %c0_359, %c0_360] : memref<9x32x64xf32, #tpu.memory_space<vmem>>, vector<1x32x64xf32>
    %426 = vector.shape_cast %425 : vector<1x32x64xf32> to vector<32x64xf32>
    %cst_361 = arith.constant dense<0.000000e+00> : vector<4x64xf32>
    %427 = tpu.matmul %424, %426, %cst_361 {dimension_numbers = #tpu.dot_dimension_numbers<[1], [0], [0], [1], [0, 0, 1, 1], [], []>} : vector<4x32xf32>, vector<32x64xf32>, vector<4x64xf32> -> vector<4x64xf32>
    %428 = arith.addf %422, %427 : vector<4x64xf32>
    %c2_362 = arith.constant 2 : index
    %c0_363 = arith.constant 0 : index
    %c0_364 = arith.constant 0 : index
    %429 = vector.load %arg17[%c2_362, %c0_363, %c0_364] : memref<6x6x32xf32, #tpu.memory_space<vmem>>, vector<1x4x32xf32>
    %430 = vector.shape_cast %429 : vector<1x4x32xf32> to vector<4x32xf32>
    %c3_365 = arith.constant 3 : index
    %c0_366 = arith.constant 0 : index
    %c0_367 = arith.constant 0 : index
    %431 = vector.load %arg6[%c3_365, %c0_366, %c0_367] : memref<9x32x64xf32, #tpu.memory_space<vmem>>, vector<1x32x64xf32>
    %432 = vector.shape_cast %431 : vector<1x32x64xf32> to vector<32x64xf32>
    %cst_368 = arith.constant dense<0.000000e+00> : vector<4x64xf32>
    %433 = tpu.matmul %430, %432, %cst_368 {dimension_numbers = #tpu.dot_dimension_numbers<[1], [0], [0], [1], [0, 0, 1, 1], [], []>} : vector<4x32xf32>, vector<32x64xf32>, vector<4x64xf32> -> vector<4x64xf32>
    %434 = arith.addf %428, %433 : vector<4x64xf32>
    %c2_369 = arith.constant 2 : index
    %c1_370 = arith.constant 1 : index
    %c0_371 = arith.constant 0 : index
    %435 = vector.load %arg17[%c2_369, %c1_370, %c0_371] : memref<6x6x32xf32, #tpu.memory_space<vmem>>, vector<1x4x32xf32>
    %436 = vector.shape_cast %435 : vector<1x4x32xf32> to vector<4x32xf32>
    %c4_372 = arith.constant 4 : index
    %c0_373 = arith.constant 0 : index
    %c0_374 = arith.constant 0 : index
    %437 = vector.load %arg6[%c4_372, %c0_373, %c0_374] : memref<9x32x64xf32, #tpu.memory_space<vmem>>, vector<1x32x64xf32>
    %438 = vector.shape_cast %437 : vector<1x32x64xf32> to vector<32x64xf32>
    %cst_375 = arith.constant dense<0.000000e+00> : vector<4x64xf32>
    %439 = tpu.matmul %436, %438, %cst_375 {dimension_numbers = #tpu.dot_dimension_numbers<[1], [0], [0], [1], [0, 0, 1, 1], [], []>} : vector<4x32xf32>, vector<32x64xf32>, vector<4x64xf32> -> vector<4x64xf32>
    %440 = arith.addf %434, %439 : vector<4x64xf32>
    %c2_376 = arith.constant 2 : index
    %c2_377 = arith.constant 2 : index
    %c0_378 = arith.constant 0 : index
    %441 = vector.load %arg17[%c2_376, %c2_377, %c0_378] : memref<6x6x32xf32, #tpu.memory_space<vmem>>, vector<1x4x32xf32>
    %442 = vector.shape_cast %441 : vector<1x4x32xf32> to vector<4x32xf32>
    %c5_379 = arith.constant 5 : index
    %c0_380 = arith.constant 0 : index
    %c0_381 = arith.constant 0 : index
    %443 = vector.load %arg6[%c5_379, %c0_380, %c0_381] : memref<9x32x64xf32, #tpu.memory_space<vmem>>, vector<1x32x64xf32>
    %444 = vector.shape_cast %443 : vector<1x32x64xf32> to vector<32x64xf32>
    %cst_382 = arith.constant dense<0.000000e+00> : vector<4x64xf32>
    %445 = tpu.matmul %442, %444, %cst_382 {dimension_numbers = #tpu.dot_dimension_numbers<[1], [0], [0], [1], [0, 0, 1, 1], [], []>} : vector<4x32xf32>, vector<32x64xf32>, vector<4x64xf32> -> vector<4x64xf32>
    %446 = arith.addf %440, %445 : vector<4x64xf32>
    %c3_383 = arith.constant 3 : index
    %c0_384 = arith.constant 0 : index
    %c0_385 = arith.constant 0 : index
    %447 = vector.load %arg17[%c3_383, %c0_384, %c0_385] : memref<6x6x32xf32, #tpu.memory_space<vmem>>, vector<1x4x32xf32>
    %448 = vector.shape_cast %447 : vector<1x4x32xf32> to vector<4x32xf32>
    %c6_386 = arith.constant 6 : index
    %c0_387 = arith.constant 0 : index
    %c0_388 = arith.constant 0 : index
    %449 = vector.load %arg6[%c6_386, %c0_387, %c0_388] : memref<9x32x64xf32, #tpu.memory_space<vmem>>, vector<1x32x64xf32>
    %450 = vector.shape_cast %449 : vector<1x32x64xf32> to vector<32x64xf32>
    %cst_389 = arith.constant dense<0.000000e+00> : vector<4x64xf32>
    %451 = tpu.matmul %448, %450, %cst_389 {dimension_numbers = #tpu.dot_dimension_numbers<[1], [0], [0], [1], [0, 0, 1, 1], [], []>} : vector<4x32xf32>, vector<32x64xf32>, vector<4x64xf32> -> vector<4x64xf32>
    %452 = arith.addf %446, %451 : vector<4x64xf32>
    %c3_390 = arith.constant 3 : index
    %c1_391 = arith.constant 1 : index
    %c0_392 = arith.constant 0 : index
    %453 = vector.load %arg17[%c3_390, %c1_391, %c0_392] : memref<6x6x32xf32, #tpu.memory_space<vmem>>, vector<1x4x32xf32>
    %454 = vector.shape_cast %453 : vector<1x4x32xf32> to vector<4x32xf32>
    %c7_393 = arith.constant 7 : index
    %c0_394 = arith.constant 0 : index
    %c0_395 = arith.constant 0 : index
    %455 = vector.load %arg6[%c7_393, %c0_394, %c0_395] : memref<9x32x64xf32, #tpu.memory_space<vmem>>, vector<1x32x64xf32>
    %456 = vector.shape_cast %455 : vector<1x32x64xf32> to vector<32x64xf32>
    %cst_396 = arith.constant dense<0.000000e+00> : vector<4x64xf32>
    %457 = tpu.matmul %454, %456, %cst_396 {dimension_numbers = #tpu.dot_dimension_numbers<[1], [0], [0], [1], [0, 0, 1, 1], [], []>} : vector<4x32xf32>, vector<32x64xf32>, vector<4x64xf32> -> vector<4x64xf32>
    %458 = arith.addf %452, %457 : vector<4x64xf32>
    %c3_397 = arith.constant 3 : index
    %c2_398 = arith.constant 2 : index
    %c0_399 = arith.constant 0 : index
    %459 = vector.load %arg17[%c3_397, %c2_398, %c0_399] : memref<6x6x32xf32, #tpu.memory_space<vmem>>, vector<1x4x32xf32>
    %460 = vector.shape_cast %459 : vector<1x4x32xf32> to vector<4x32xf32>
    %c8_400 = arith.constant 8 : index
    %c0_401 = arith.constant 0 : index
    %c0_402 = arith.constant 0 : index
    %461 = vector.load %arg6[%c8_400, %c0_401, %c0_402] : memref<9x32x64xf32, #tpu.memory_space<vmem>>, vector<1x32x64xf32>
    %462 = vector.shape_cast %461 : vector<1x32x64xf32> to vector<32x64xf32>
    %cst_403 = arith.constant dense<0.000000e+00> : vector<4x64xf32>
    %463 = tpu.matmul %460, %462, %cst_403 {dimension_numbers = #tpu.dot_dimension_numbers<[1], [0], [0], [1], [0, 0, 1, 1], [], []>} : vector<4x32xf32>, vector<32x64xf32>, vector<4x64xf32> -> vector<4x64xf32>
    %464 = arith.addf %458, %463 : vector<4x64xf32>
    %c0_404 = arith.constant 0 : index
    %c0_405 = arith.constant 0 : index
    %465 = vector.load %arg7[%c0_404, %c0_405] : memref<1x64xf32, #tpu.memory_space<vmem>>, vector<1x64xf32>
    %466 = vector.shape_cast %465 : vector<1x64xf32> to vector<64xf32>
    %467 = vector.shape_cast %466 : vector<64xf32> to vector<1x64xf32>
    %468 = vector.broadcast %467 : vector<1x64xf32> to vector<4x64xf32>
    %469 = arith.addf %464, %468 : vector<4x64xf32>
    %cst_406 = arith.constant 0.000000e+00 : f32
    %470 = vector.broadcast %cst_406 : f32 to vector<4x64xf32>
    %471 = arith.maximumf %469, %470 : vector<4x64xf32>
    %cst_407 = arith.constant dense<0.000000e+00> : vector<64xf32>
    %472 = vector.multi_reduction <add>, %471, %cst_407 [0] : vector<4x64xf32> to vector<64xf32>
    %473 = vector.shape_cast %472 : vector<64xf32> to vector<1x64xf32>
    %474 = arith.addf %409, %473 : vector<1x64xf32>
    %cst_408 = arith.constant 0.000000e+00 : f32
    %475 = vector.broadcast %cst_408 : f32 to vector<4x64xf32>
    %c2_409 = arith.constant 2 : index
    %c0_410 = arith.constant 0 : index
    %c0_411 = arith.constant 0 : index
    %476 = vector.load %arg17[%c2_409, %c0_410, %c0_411] : memref<6x6x32xf32, #tpu.memory_space<vmem>>, vector<1x4x32xf32>
    %477 = vector.shape_cast %476 : vector<1x4x32xf32> to vector<4x32xf32>
    %c0_412 = arith.constant 0 : index
    %c0_413 = arith.constant 0 : index
    %c0_414 = arith.constant 0 : index
    %478 = vector.load %arg6[%c0_412, %c0_413, %c0_414] : memref<9x32x64xf32, #tpu.memory_space<vmem>>, vector<1x32x64xf32>
    %479 = vector.shape_cast %478 : vector<1x32x64xf32> to vector<32x64xf32>
    %cst_415 = arith.constant dense<0.000000e+00> : vector<4x64xf32>
    %480 = tpu.matmul %477, %479, %cst_415 {dimension_numbers = #tpu.dot_dimension_numbers<[1], [0], [0], [1], [0, 0, 1, 1], [], []>} : vector<4x32xf32>, vector<32x64xf32>, vector<4x64xf32> -> vector<4x64xf32>
    %481 = arith.addf %475, %480 : vector<4x64xf32>
    %c2_416 = arith.constant 2 : index
    %c1_417 = arith.constant 1 : index
    %c0_418 = arith.constant 0 : index
    %482 = vector.load %arg17[%c2_416, %c1_417, %c0_418] : memref<6x6x32xf32, #tpu.memory_space<vmem>>, vector<1x4x32xf32>
    %483 = vector.shape_cast %482 : vector<1x4x32xf32> to vector<4x32xf32>
    %c1_419 = arith.constant 1 : index
    %c0_420 = arith.constant 0 : index
    %c0_421 = arith.constant 0 : index
    %484 = vector.load %arg6[%c1_419, %c0_420, %c0_421] : memref<9x32x64xf32, #tpu.memory_space<vmem>>, vector<1x32x64xf32>
    %485 = vector.shape_cast %484 : vector<1x32x64xf32> to vector<32x64xf32>
    %cst_422 = arith.constant dense<0.000000e+00> : vector<4x64xf32>
    %486 = tpu.matmul %483, %485, %cst_422 {dimension_numbers = #tpu.dot_dimension_numbers<[1], [0], [0], [1], [0, 0, 1, 1], [], []>} : vector<4x32xf32>, vector<32x64xf32>, vector<4x64xf32> -> vector<4x64xf32>
    %487 = arith.addf %481, %486 : vector<4x64xf32>
    %c2_423 = arith.constant 2 : index
    %c2_424 = arith.constant 2 : index
    %c0_425 = arith.constant 0 : index
    %488 = vector.load %arg17[%c2_423, %c2_424, %c0_425] : memref<6x6x32xf32, #tpu.memory_space<vmem>>, vector<1x4x32xf32>
    %489 = vector.shape_cast %488 : vector<1x4x32xf32> to vector<4x32xf32>
    %c2_426 = arith.constant 2 : index
    %c0_427 = arith.constant 0 : index
    %c0_428 = arith.constant 0 : index
    %490 = vector.load %arg6[%c2_426, %c0_427, %c0_428] : memref<9x32x64xf32, #tpu.memory_space<vmem>>, vector<1x32x64xf32>
    %491 = vector.shape_cast %490 : vector<1x32x64xf32> to vector<32x64xf32>
    %cst_429 = arith.constant dense<0.000000e+00> : vector<4x64xf32>
    %492 = tpu.matmul %489, %491, %cst_429 {dimension_numbers = #tpu.dot_dimension_numbers<[1], [0], [0], [1], [0, 0, 1, 1], [], []>} : vector<4x32xf32>, vector<32x64xf32>, vector<4x64xf32> -> vector<4x64xf32>
    %493 = arith.addf %487, %492 : vector<4x64xf32>
    %c3_430 = arith.constant 3 : index
    %c0_431 = arith.constant 0 : index
    %c0_432 = arith.constant 0 : index
    %494 = vector.load %arg17[%c3_430, %c0_431, %c0_432] : memref<6x6x32xf32, #tpu.memory_space<vmem>>, vector<1x4x32xf32>
    %495 = vector.shape_cast %494 : vector<1x4x32xf32> to vector<4x32xf32>
    %c3_433 = arith.constant 3 : index
    %c0_434 = arith.constant 0 : index
    %c0_435 = arith.constant 0 : index
    %496 = vector.load %arg6[%c3_433, %c0_434, %c0_435] : memref<9x32x64xf32, #tpu.memory_space<vmem>>, vector<1x32x64xf32>
    %497 = vector.shape_cast %496 : vector<1x32x64xf32> to vector<32x64xf32>
    %cst_436 = arith.constant dense<0.000000e+00> : vector<4x64xf32>
    %498 = tpu.matmul %495, %497, %cst_436 {dimension_numbers = #tpu.dot_dimension_numbers<[1], [0], [0], [1], [0, 0, 1, 1], [], []>} : vector<4x32xf32>, vector<32x64xf32>, vector<4x64xf32> -> vector<4x64xf32>
    %499 = arith.addf %493, %498 : vector<4x64xf32>
    %c3_437 = arith.constant 3 : index
    %c1_438 = arith.constant 1 : index
    %c0_439 = arith.constant 0 : index
    %500 = vector.load %arg17[%c3_437, %c1_438, %c0_439] : memref<6x6x32xf32, #tpu.memory_space<vmem>>, vector<1x4x32xf32>
    %501 = vector.shape_cast %500 : vector<1x4x32xf32> to vector<4x32xf32>
    %c4_440 = arith.constant 4 : index
    %c0_441 = arith.constant 0 : index
    %c0_442 = arith.constant 0 : index
    %502 = vector.load %arg6[%c4_440, %c0_441, %c0_442] : memref<9x32x64xf32, #tpu.memory_space<vmem>>, vector<1x32x64xf32>
    %503 = vector.shape_cast %502 : vector<1x32x64xf32> to vector<32x64xf32>
    %cst_443 = arith.constant dense<0.000000e+00> : vector<4x64xf32>
    %504 = tpu.matmul %501, %503, %cst_443 {dimension_numbers = #tpu.dot_dimension_numbers<[1], [0], [0], [1], [0, 0, 1, 1], [], []>} : vector<4x32xf32>, vector<32x64xf32>, vector<4x64xf32> -> vector<4x64xf32>
    %505 = arith.addf %499, %504 : vector<4x64xf32>
    %c3_444 = arith.constant 3 : index
    %c2_445 = arith.constant 2 : index
    %c0_446 = arith.constant 0 : index
    %506 = vector.load %arg17[%c3_444, %c2_445, %c0_446] : memref<6x6x32xf32, #tpu.memory_space<vmem>>, vector<1x4x32xf32>
    %507 = vector.shape_cast %506 : vector<1x4x32xf32> to vector<4x32xf32>
    %c5_447 = arith.constant 5 : index
    %c0_448 = arith.constant 0 : index
    %c0_449 = arith.constant 0 : index
    %508 = vector.load %arg6[%c5_447, %c0_448, %c0_449] : memref<9x32x64xf32, #tpu.memory_space<vmem>>, vector<1x32x64xf32>
    %509 = vector.shape_cast %508 : vector<1x32x64xf32> to vector<32x64xf32>
    %cst_450 = arith.constant dense<0.000000e+00> : vector<4x64xf32>
    %510 = tpu.matmul %507, %509, %cst_450 {dimension_numbers = #tpu.dot_dimension_numbers<[1], [0], [0], [1], [0, 0, 1, 1], [], []>} : vector<4x32xf32>, vector<32x64xf32>, vector<4x64xf32> -> vector<4x64xf32>
    %511 = arith.addf %505, %510 : vector<4x64xf32>
    %c4_451 = arith.constant 4 : index
    %c0_452 = arith.constant 0 : index
    %c0_453 = arith.constant 0 : index
    %512 = vector.load %arg17[%c4_451, %c0_452, %c0_453] : memref<6x6x32xf32, #tpu.memory_space<vmem>>, vector<1x4x32xf32>
    %513 = vector.shape_cast %512 : vector<1x4x32xf32> to vector<4x32xf32>
    %c6_454 = arith.constant 6 : index
    %c0_455 = arith.constant 0 : index
    %c0_456 = arith.constant 0 : index
    %514 = vector.load %arg6[%c6_454, %c0_455, %c0_456] : memref<9x32x64xf32, #tpu.memory_space<vmem>>, vector<1x32x64xf32>
    %515 = vector.shape_cast %514 : vector<1x32x64xf32> to vector<32x64xf32>
    %cst_457 = arith.constant dense<0.000000e+00> : vector<4x64xf32>
    %516 = tpu.matmul %513, %515, %cst_457 {dimension_numbers = #tpu.dot_dimension_numbers<[1], [0], [0], [1], [0, 0, 1, 1], [], []>} : vector<4x32xf32>, vector<32x64xf32>, vector<4x64xf32> -> vector<4x64xf32>
    %517 = arith.addf %511, %516 : vector<4x64xf32>
    %c4_458 = arith.constant 4 : index
    %c1_459 = arith.constant 1 : index
    %c0_460 = arith.constant 0 : index
    %518 = vector.load %arg17[%c4_458, %c1_459, %c0_460] : memref<6x6x32xf32, #tpu.memory_space<vmem>>, vector<1x4x32xf32>
    %519 = vector.shape_cast %518 : vector<1x4x32xf32> to vector<4x32xf32>
    %c7_461 = arith.constant 7 : index
    %c0_462 = arith.constant 0 : index
    %c0_463 = arith.constant 0 : index
    %520 = vector.load %arg6[%c7_461, %c0_462, %c0_463] : memref<9x32x64xf32, #tpu.memory_space<vmem>>, vector<1x32x64xf32>
    %521 = vector.shape_cast %520 : vector<1x32x64xf32> to vector<32x64xf32>
    %cst_464 = arith.constant dense<0.000000e+00> : vector<4x64xf32>
    %522 = tpu.matmul %519, %521, %cst_464 {dimension_numbers = #tpu.dot_dimension_numbers<[1], [0], [0], [1], [0, 0, 1, 1], [], []>} : vector<4x32xf32>, vector<32x64xf32>, vector<4x64xf32> -> vector<4x64xf32>
    %523 = arith.addf %517, %522 : vector<4x64xf32>
    %c4_465 = arith.constant 4 : index
    %c2_466 = arith.constant 2 : index
    %c0_467 = arith.constant 0 : index
    %524 = vector.load %arg17[%c4_465, %c2_466, %c0_467] : memref<6x6x32xf32, #tpu.memory_space<vmem>>, vector<1x4x32xf32>
    %525 = vector.shape_cast %524 : vector<1x4x32xf32> to vector<4x32xf32>
    %c8_468 = arith.constant 8 : index
    %c0_469 = arith.constant 0 : index
    %c0_470 = arith.constant 0 : index
    %526 = vector.load %arg6[%c8_468, %c0_469, %c0_470] : memref<9x32x64xf32, #tpu.memory_space<vmem>>, vector<1x32x64xf32>
    %527 = vector.shape_cast %526 : vector<1x32x64xf32> to vector<32x64xf32>
    %cst_471 = arith.constant dense<0.000000e+00> : vector<4x64xf32>
    %528 = tpu.matmul %525, %527, %cst_471 {dimension_numbers = #tpu.dot_dimension_numbers<[1], [0], [0], [1], [0, 0, 1, 1], [], []>} : vector<4x32xf32>, vector<32x64xf32>, vector<4x64xf32> -> vector<4x64xf32>
    %529 = arith.addf %523, %528 : vector<4x64xf32>
    %c0_472 = arith.constant 0 : index
    %c0_473 = arith.constant 0 : index
    %530 = vector.load %arg7[%c0_472, %c0_473] : memref<1x64xf32, #tpu.memory_space<vmem>>, vector<1x64xf32>
    %531 = vector.shape_cast %530 : vector<1x64xf32> to vector<64xf32>
    %532 = vector.shape_cast %531 : vector<64xf32> to vector<1x64xf32>
    %533 = vector.broadcast %532 : vector<1x64xf32> to vector<4x64xf32>
    %534 = arith.addf %529, %533 : vector<4x64xf32>
    %cst_474 = arith.constant 0.000000e+00 : f32
    %535 = vector.broadcast %cst_474 : f32 to vector<4x64xf32>
    %536 = arith.maximumf %534, %535 : vector<4x64xf32>
    %cst_475 = arith.constant dense<0.000000e+00> : vector<64xf32>
    %537 = vector.multi_reduction <add>, %536, %cst_475 [0] : vector<4x64xf32> to vector<64xf32>
    %538 = vector.shape_cast %537 : vector<64xf32> to vector<1x64xf32>
    %539 = arith.addf %474, %538 : vector<1x64xf32>
    %cst_476 = arith.constant 0.000000e+00 : f32
    %540 = vector.broadcast %cst_476 : f32 to vector<4x64xf32>
    %c3_477 = arith.constant 3 : index
    %c0_478 = arith.constant 0 : index
    %c0_479 = arith.constant 0 : index
    %541 = vector.load %arg17[%c3_477, %c0_478, %c0_479] : memref<6x6x32xf32, #tpu.memory_space<vmem>>, vector<1x4x32xf32>
    %542 = vector.shape_cast %541 : vector<1x4x32xf32> to vector<4x32xf32>
    %c0_480 = arith.constant 0 : index
    %c0_481 = arith.constant 0 : index
    %c0_482 = arith.constant 0 : index
    %543 = vector.load %arg6[%c0_480, %c0_481, %c0_482] : memref<9x32x64xf32, #tpu.memory_space<vmem>>, vector<1x32x64xf32>
    %544 = vector.shape_cast %543 : vector<1x32x64xf32> to vector<32x64xf32>
    %cst_483 = arith.constant dense<0.000000e+00> : vector<4x64xf32>
    %545 = tpu.matmul %542, %544, %cst_483 {dimension_numbers = #tpu.dot_dimension_numbers<[1], [0], [0], [1], [0, 0, 1, 1], [], []>} : vector<4x32xf32>, vector<32x64xf32>, vector<4x64xf32> -> vector<4x64xf32>
    %546 = arith.addf %540, %545 : vector<4x64xf32>
    %c3_484 = arith.constant 3 : index
    %c1_485 = arith.constant 1 : index
    %c0_486 = arith.constant 0 : index
    %547 = vector.load %arg17[%c3_484, %c1_485, %c0_486] : memref<6x6x32xf32, #tpu.memory_space<vmem>>, vector<1x4x32xf32>
    %548 = vector.shape_cast %547 : vector<1x4x32xf32> to vector<4x32xf32>
    %c1_487 = arith.constant 1 : index
    %c0_488 = arith.constant 0 : index
    %c0_489 = arith.constant 0 : index
    %549 = vector.load %arg6[%c1_487, %c0_488, %c0_489] : memref<9x32x64xf32, #tpu.memory_space<vmem>>, vector<1x32x64xf32>
    %550 = vector.shape_cast %549 : vector<1x32x64xf32> to vector<32x64xf32>
    %cst_490 = arith.constant dense<0.000000e+00> : vector<4x64xf32>
    %551 = tpu.matmul %548, %550, %cst_490 {dimension_numbers = #tpu.dot_dimension_numbers<[1], [0], [0], [1], [0, 0, 1, 1], [], []>} : vector<4x32xf32>, vector<32x64xf32>, vector<4x64xf32> -> vector<4x64xf32>
    %552 = arith.addf %546, %551 : vector<4x64xf32>
    %c3_491 = arith.constant 3 : index
    %c2_492 = arith.constant 2 : index
    %c0_493 = arith.constant 0 : index
    %553 = vector.load %arg17[%c3_491, %c2_492, %c0_493] : memref<6x6x32xf32, #tpu.memory_space<vmem>>, vector<1x4x32xf32>
    %554 = vector.shape_cast %553 : vector<1x4x32xf32> to vector<4x32xf32>
    %c2_494 = arith.constant 2 : index
    %c0_495 = arith.constant 0 : index
    %c0_496 = arith.constant 0 : index
    %555 = vector.load %arg6[%c2_494, %c0_495, %c0_496] : memref<9x32x64xf32, #tpu.memory_space<vmem>>, vector<1x32x64xf32>
    %556 = vector.shape_cast %555 : vector<1x32x64xf32> to vector<32x64xf32>
    %cst_497 = arith.constant dense<0.000000e+00> : vector<4x64xf32>
    %557 = tpu.matmul %554, %556, %cst_497 {dimension_numbers = #tpu.dot_dimension_numbers<[1], [0], [0], [1], [0, 0, 1, 1], [], []>} : vector<4x32xf32>, vector<32x64xf32>, vector<4x64xf32> -> vector<4x64xf32>
    %558 = arith.addf %552, %557 : vector<4x64xf32>
    %c4_498 = arith.constant 4 : index
    %c0_499 = arith.constant 0 : index
    %c0_500 = arith.constant 0 : index
    %559 = vector.load %arg17[%c4_498, %c0_499, %c0_500] : memref<6x6x32xf32, #tpu.memory_space<vmem>>, vector<1x4x32xf32>
    %560 = vector.shape_cast %559 : vector<1x4x32xf32> to vector<4x32xf32>
    %c3_501 = arith.constant 3 : index
    %c0_502 = arith.constant 0 : index
    %c0_503 = arith.constant 0 : index
    %561 = vector.load %arg6[%c3_501, %c0_502, %c0_503] : memref<9x32x64xf32, #tpu.memory_space<vmem>>, vector<1x32x64xf32>
    %562 = vector.shape_cast %561 : vector<1x32x64xf32> to vector<32x64xf32>
    %cst_504 = arith.constant dense<0.000000e+00> : vector<4x64xf32>
    %563 = tpu.matmul %560, %562, %cst_504 {dimension_numbers = #tpu.dot_dimension_numbers<[1], [0], [0], [1], [0, 0, 1, 1], [], []>} : vector<4x32xf32>, vector<32x64xf32>, vector<4x64xf32> -> vector<4x64xf32>
    %564 = arith.addf %558, %563 : vector<4x64xf32>
    %c4_505 = arith.constant 4 : index
    %c1_506 = arith.constant 1 : index
    %c0_507 = arith.constant 0 : index
    %565 = vector.load %arg17[%c4_505, %c1_506, %c0_507] : memref<6x6x32xf32, #tpu.memory_space<vmem>>, vector<1x4x32xf32>
    %566 = vector.shape_cast %565 : vector<1x4x32xf32> to vector<4x32xf32>
    %c4_508 = arith.constant 4 : index
    %c0_509 = arith.constant 0 : index
    %c0_510 = arith.constant 0 : index
    %567 = vector.load %arg6[%c4_508, %c0_509, %c0_510] : memref<9x32x64xf32, #tpu.memory_space<vmem>>, vector<1x32x64xf32>
    %568 = vector.shape_cast %567 : vector<1x32x64xf32> to vector<32x64xf32>
    %cst_511 = arith.constant dense<0.000000e+00> : vector<4x64xf32>
    %569 = tpu.matmul %566, %568, %cst_511 {dimension_numbers = #tpu.dot_dimension_numbers<[1], [0], [0], [1], [0, 0, 1, 1], [], []>} : vector<4x32xf32>, vector<32x64xf32>, vector<4x64xf32> -> vector<4x64xf32>
    %570 = arith.addf %564, %569 : vector<4x64xf32>
    %c4_512 = arith.constant 4 : index
    %c2_513 = arith.constant 2 : index
    %c0_514 = arith.constant 0 : index
    %571 = vector.load %arg17[%c4_512, %c2_513, %c0_514] : memref<6x6x32xf32, #tpu.memory_space<vmem>>, vector<1x4x32xf32>
    %572 = vector.shape_cast %571 : vector<1x4x32xf32> to vector<4x32xf32>
    %c5_515 = arith.constant 5 : index
    %c0_516 = arith.constant 0 : index
    %c0_517 = arith.constant 0 : index
    %573 = vector.load %arg6[%c5_515, %c0_516, %c0_517] : memref<9x32x64xf32, #tpu.memory_space<vmem>>, vector<1x32x64xf32>
    %574 = vector.shape_cast %573 : vector<1x32x64xf32> to vector<32x64xf32>
    %cst_518 = arith.constant dense<0.000000e+00> : vector<4x64xf32>
    %575 = tpu.matmul %572, %574, %cst_518 {dimension_numbers = #tpu.dot_dimension_numbers<[1], [0], [0], [1], [0, 0, 1, 1], [], []>} : vector<4x32xf32>, vector<32x64xf32>, vector<4x64xf32> -> vector<4x64xf32>
    %576 = arith.addf %570, %575 : vector<4x64xf32>
    %c5_519 = arith.constant 5 : index
    %c0_520 = arith.constant 0 : index
    %c0_521 = arith.constant 0 : index
    %577 = vector.load %arg17[%c5_519, %c0_520, %c0_521] : memref<6x6x32xf32, #tpu.memory_space<vmem>>, vector<1x4x32xf32>
    %578 = vector.shape_cast %577 : vector<1x4x32xf32> to vector<4x32xf32>
    %c6_522 = arith.constant 6 : index
    %c0_523 = arith.constant 0 : index
    %c0_524 = arith.constant 0 : index
    %579 = vector.load %arg6[%c6_522, %c0_523, %c0_524] : memref<9x32x64xf32, #tpu.memory_space<vmem>>, vector<1x32x64xf32>
    %580 = vector.shape_cast %579 : vector<1x32x64xf32> to vector<32x64xf32>
    %cst_525 = arith.constant dense<0.000000e+00> : vector<4x64xf32>
    %581 = tpu.matmul %578, %580, %cst_525 {dimension_numbers = #tpu.dot_dimension_numbers<[1], [0], [0], [1], [0, 0, 1, 1], [], []>} : vector<4x32xf32>, vector<32x64xf32>, vector<4x64xf32> -> vector<4x64xf32>
    %582 = arith.addf %576, %581 : vector<4x64xf32>
    %c5_526 = arith.constant 5 : index
    %c1_527 = arith.constant 1 : index
    %c0_528 = arith.constant 0 : index
    %583 = vector.load %arg17[%c5_526, %c1_527, %c0_528] : memref<6x6x32xf32, #tpu.memory_space<vmem>>, vector<1x4x32xf32>
    %584 = vector.shape_cast %583 : vector<1x4x32xf32> to vector<4x32xf32>
    %c7_529 = arith.constant 7 : index
    %c0_530 = arith.constant 0 : index
    %c0_531 = arith.constant 0 : index
    %585 = vector.load %arg6[%c7_529, %c0_530, %c0_531] : memref<9x32x64xf32, #tpu.memory_space<vmem>>, vector<1x32x64xf32>
    %586 = vector.shape_cast %585 : vector<1x32x64xf32> to vector<32x64xf32>
    %cst_532 = arith.constant dense<0.000000e+00> : vector<4x64xf32>
    %587 = tpu.matmul %584, %586, %cst_532 {dimension_numbers = #tpu.dot_dimension_numbers<[1], [0], [0], [1], [0, 0, 1, 1], [], []>} : vector<4x32xf32>, vector<32x64xf32>, vector<4x64xf32> -> vector<4x64xf32>
    %588 = arith.addf %582, %587 : vector<4x64xf32>
    %c5_533 = arith.constant 5 : index
    %c2_534 = arith.constant 2 : index
    %c0_535 = arith.constant 0 : index
    %589 = vector.load %arg17[%c5_533, %c2_534, %c0_535] : memref<6x6x32xf32, #tpu.memory_space<vmem>>, vector<1x4x32xf32>
    %590 = vector.shape_cast %589 : vector<1x4x32xf32> to vector<4x32xf32>
    %c8_536 = arith.constant 8 : index
    %c0_537 = arith.constant 0 : index
    %c0_538 = arith.constant 0 : index
    %591 = vector.load %arg6[%c8_536, %c0_537, %c0_538] : memref<9x32x64xf32, #tpu.memory_space<vmem>>, vector<1x32x64xf32>
    %592 = vector.shape_cast %591 : vector<1x32x64xf32> to vector<32x64xf32>
    %cst_539 = arith.constant dense<0.000000e+00> : vector<4x64xf32>
    %593 = tpu.matmul %590, %592, %cst_539 {dimension_numbers = #tpu.dot_dimension_numbers<[1], [0], [0], [1], [0, 0, 1, 1], [], []>} : vector<4x32xf32>, vector<32x64xf32>, vector<4x64xf32> -> vector<4x64xf32>
    %594 = arith.addf %588, %593 : vector<4x64xf32>
    %c0_540 = arith.constant 0 : index
    %c0_541 = arith.constant 0 : index
    %595 = vector.load %arg7[%c0_540, %c0_541] : memref<1x64xf32, #tpu.memory_space<vmem>>, vector<1x64xf32>
    %596 = vector.shape_cast %595 : vector<1x64xf32> to vector<64xf32>
    %597 = vector.shape_cast %596 : vector<64xf32> to vector<1x64xf32>
    %598 = vector.broadcast %597 : vector<1x64xf32> to vector<4x64xf32>
    %599 = arith.addf %594, %598 : vector<4x64xf32>
    %cst_542 = arith.constant 0.000000e+00 : f32
    %600 = vector.broadcast %cst_542 : f32 to vector<4x64xf32>
    %601 = arith.maximumf %599, %600 : vector<4x64xf32>
    %cst_543 = arith.constant dense<0.000000e+00> : vector<64xf32>
    %602 = vector.multi_reduction <add>, %601, %cst_543 [0] : vector<4x64xf32> to vector<64xf32>
    %603 = vector.shape_cast %602 : vector<64xf32> to vector<1x64xf32>
    %604 = arith.addf %539, %603 : vector<1x64xf32>
    %cst_544 = arith.constant 6.250000e-02 : f32
    %605 = vector.broadcast %cst_544 : f32 to vector<1x64xf32>
    %606 = arith.mulf %604, %605 : vector<1x64xf32>
    %c0_545 = arith.constant 0 : index
    %c0_546 = arith.constant 0 : index
    %607 = vector.load %arg8[%c0_545, %c0_546] : memref<64x64xf32, #tpu.memory_space<vmem>>, vector<64x64xf32>
    %cst_547 = arith.constant dense<0.000000e+00> : vector<1x64xf32>
    %608 = tpu.matmul %606, %607, %cst_547 {dimension_numbers = #tpu.dot_dimension_numbers<[1], [0], [0], [1], [0, 0, 1, 1], [], []>} : vector<1x64xf32>, vector<64x64xf32>, vector<1x64xf32> -> vector<1x64xf32>
    %c0_548 = arith.constant 0 : index
    %c0_549 = arith.constant 0 : index
    %609 = vector.load %arg9[%c0_548, %c0_549] : memref<1x64xf32, #tpu.memory_space<vmem>>, vector<1x64xf32>
    %610 = vector.shape_cast %609 : vector<1x64xf32> to vector<64xf32>
    %611 = vector.shape_cast %610 : vector<64xf32> to vector<1x64xf32>
    %612 = arith.addf %608, %611 : vector<1x64xf32>
    %cst_550 = arith.constant 0.000000e+00 : f32
    %613 = vector.broadcast %cst_550 : f32 to vector<1x64xf32>
    %614 = arith.maximumf %612, %613 : vector<1x64xf32>
    %c0_551 = arith.constant 0 : index
    %c0_552 = arith.constant 0 : index
    %615 = vector.load %arg10[%c0_551, %c0_552] : memref<1x64xf32, #tpu.memory_space<vmem>>, vector<1x64xf32>
    %616 = arith.mulf %614, %615 : vector<1x64xf32>
    %cst_553 = arith.constant dense<0.000000e+00> : vector<1xf32>
    %617 = vector.multi_reduction <add>, %616, %cst_553 [1] : vector<1x64xf32> to vector<1xf32>
    %618 = vector.shape_cast %617 : vector<1xf32> to vector<1x1xf32>
    %c0_554 = arith.constant 0 : index
    %c0_555 = arith.constant 0 : index
    %619 = vector.load %arg11[%c0_554, %c0_555] : memref<1x1xf32, #tpu.memory_space<vmem>>, vector<1x1xf32>
    %620 = arith.addf %618, %619 : vector<1x1xf32>
    %c0_556 = arith.constant 0 : index
    %c0_557 = arith.constant 0 : index
    %c0_558 = arith.constant 0 : index
    %621 = vector.load %arg12[%c0_556, %c0_557, %c0_558] : memref<1x1x1xf32, #tpu.memory_space<vmem>>, vector<1x1x1xf32>
    %622 = vector.shape_cast %621 : vector<1x1x1xf32> to vector<1x1xf32>
    %623 = vector.shape_cast %620 : vector<1x1xf32> to vector<1x1x1xf32>
    tpu.vector_store %arg12[%c0_556, %c0_557, %c0_558], %623 {strides = array<i32>} : memref<1x1x1xf32, #tpu.memory_space<vmem>>, vector<1x1x1xf32>,
    return
  }
  func.func @transform_0(%arg0: i32) -> (i32, i32, i32, i32) {
    %c0_i32 = arith.constant 0 : i32
    %c0_i32_0 = arith.constant 0 : i32
    %c0_i32_1 = arith.constant 0 : i32
    %c0_i32_2 = arith.constant 0 : i32
    return %arg0, %c0_i32, %c0_i32_0, %c0_i32_1 : i32, i32, i32, i32
  }
  func.func @transform_1(%arg0: i32) -> (i32, i32, i32) {
    %c0_i32 = arith.constant 0 : i32
    %c0_i32_0 = arith.constant 0 : i32
    %c0_i32_1 = arith.constant 0 : i32
    %c0_i32_2 = arith.constant 0 : i32
    return %c0_i32, %c0_i32_0, %c0_i32_1 : i32, i32, i32
  }
  func.func @transform_2(%arg0: i32) -> (i32, i32) {
    %c0_i32 = arith.constant 0 : i32
    %c0_i32_0 = arith.constant 0 : i32
    %c0_i32_1 = arith.constant 0 : i32
    return %c0_i32, %c0_i32_0 : i32, i32
  }
  func.func @transform_3(%arg0: i32) -> (i32, i32, i32) {
    %c0_i32 = arith.constant 0 : i32
    %c0_i32_0 = arith.constant 0 : i32
    %c0_i32_1 = arith.constant 0 : i32
    %c0_i32_2 = arith.constant 0 : i32
    return %c0_i32, %c0_i32_0, %c0_i32_1 : i32, i32, i32
  }
  func.func @transform_4(%arg0: i32) -> (i32, i32) {
    %c0_i32 = arith.constant 0 : i32
    %c0_i32_0 = arith.constant 0 : i32
    %c0_i32_1 = arith.constant 0 : i32
    return %c0_i32, %c0_i32_0 : i32, i32
  }
  func.func @transform_5(%arg0: i32) -> (i32, i32, i32) {
    %c0_i32 = arith.constant 0 : i32
    %c0_i32_0 = arith.constant 0 : i32
    %c0_i32_1 = arith.constant 0 : i32
    %c0_i32_2 = arith.constant 0 : i32
    return %c0_i32, %c0_i32_0, %c0_i32_1 : i32, i32, i32
  }
  func.func @transform_6(%arg0: i32) -> (i32, i32) {
    %c0_i32 = arith.constant 0 : i32
    %c0_i32_0 = arith.constant 0 : i32
    %c0_i32_1 = arith.constant 0 : i32
    return %c0_i32, %c0_i32_0 : i32, i32
  }
  func.func @transform_7(%arg0: i32) -> (i32, i32) {
    %c0_i32 = arith.constant 0 : i32
    %c0_i32_0 = arith.constant 0 : i32
    %c0_i32_1 = arith.constant 0 : i32
    return %c0_i32, %c0_i32_0 : i32, i32
  }
  func.func @transform_8(%arg0: i32) -> (i32, i32) {
    %c0_i32 = arith.constant 0 : i32
    %c0_i32_0 = arith.constant 0 : i32
    %c0_i32_1 = arith.constant 0 : i32
    return %c0_i32, %c0_i32_0 : i32, i32
  }
  func.func @transform_9(%arg0: i32) -> (i32, i32) {
    %c0_i32 = arith.constant 0 : i32
    %c0_i32_0 = arith.constant 0 : i32
    %c0_i32_1 = arith.constant 0 : i32
    return %c0_i32, %c0_i32_0 : i32, i32
  }
  func.func @transform_10(%arg0: i32) -> (i32, i32) {
    %c0_i32 = arith.constant 0 : i32
    %c0_i32_0 = arith.constant 0 : i32
    %c0_i32_1 = arith.constant 0 : i32
    return %c0_i32, %c0_i32_0 : i32, i32
  }
  func.func @transform_11(%arg0: i32) -> (i32, i32, i32) {
    %c0_i32 = arith.constant 0 : i32
    %c0_i32_0 = arith.constant 0 : i32
    %c0_i32_1 = arith.constant 0 : i32
    return %arg0, %c0_i32, %c0_i32_0 : i32, i32, i32
  }
}

</mosaic_0001>

<llo_original>
// kernel: pallas_forward.1
$region0: #{pallas_forward.1}
  #allocation0 [shape = 'u32[]', space=smem, size = 0x4, offset = 0x4, fixed_abs, tag = 'smem constant byte address 0x4 - core index']
  #allocation1 [shape = 'u32[144,128]{1,0:T(1,128)}', space=vmem, size = 0x12000, scoped, tag = 'internal scratch']
  #allocation2 [shape = 'f32[18,18,1]{2,1,0:T(8,128)}', space=vmem, size = 0x36000, scoped, tag = 'scratch operand']
  #allocation3 [shape = 'f32[8,16,16]{2,1,0:T(8,128)}', space=vmem, size = 0x10000, scoped, tag = 'scratch operand']
  #allocation4 [shape = 'f32[10,10,16]{2,1,0:T(8,128)}', space=vmem, size = 0x14000, scoped, tag = 'scratch operand']
  #allocation5 [shape = 'f32[4,8,32]{2,1,0:T(8,128)}', space=vmem, size = 0x4000, scoped, tag = 'scratch operand']
  #allocation6 [shape = 'f32[6,6,32]{2,1,0:T(8,128)}', space=vmem, size = 0x6000, scoped, tag = 'scratch operand']
  #allocation7 [shape = 'f32[1,1]{1,0:T(1,128)S(1)}', space=vmem, size = 0x200, scoped, tag = 'scoped memory for pallas_forward.1']
  %s0 = inlined_call_operand.vmem [shape: f32[2,16,16,1], index: 0, kind: input, shape index: {}]
  %s1 = inlined_call_operand.vmem [shape: f32[9,1,16], index: 1, kind: input, shape index: {}]
  %s2 = inlined_call_operand.vmem [shape: f32[1,16], index: 2, kind: input, shape index: {}]
  %s3 = inlined_call_operand.vmem [shape: f32[9,16,32], index: 3, kind: input, shape index: {}]
  %s4 = inlined_call_operand.vmem [shape: f32[1,32], index: 4, kind: input, shape index: {}]
  %s5 = inlined_call_operand.vmem [shape: f32[9,32,64], index: 5, kind: input, shape index: {}]
  %s6 = inlined_call_operand.vmem [shape: f32[1,64], index: 6, kind: input, shape index: {}]
  %s7 = inlined_call_operand.vmem [shape: f32[64,64], index: 7, kind: input, shape index: {}]
  %s8 = inlined_call_operand.vmem [shape: f32[1,64], index: 8, kind: input, shape index: {}]
  %s9 = inlined_call_operand.vmem [shape: f32[1,64], index: 9, kind: input, shape index: {}]
  %s10 = inlined_call_operand.<no memory space> [shape: f32[1,1], index: 10, kind: input, shape index: {}]
  %s11 = inlined_call_operand.vmem [shape: f32[2,1,1], index: 11, kind: output, shape index: {}]
  %s12 = sld [smem:[#allocation0]]
  $region77: #{pallas_forward.1} parent=0
    _
  %s14 = ssub.s32 1, %s12
  %s15 = scalar_select 0, %s14, %s12
  %v16 = vstv %s10
  %17 = vst [vmem:[#allocation7] sm:$0x1] %v16
  loop: start=0, step=1, limit=4
  $region2: #{pallas_forward.1} parent=0 // loop_pre_header
    _
  $region3: #{pallas_forward.1} parent=0 // loop_header
    %s19 = sphi 0, %s23
    %p20 = scmp.ge.s32.totalorder %s19, 4
    %s29 = sphi 0, %s31
    %s32 = sphi 0, %s29
    %s33 = sphi 0, %s32
    %s49 = sphi 0, %s33
    %s53 = sphi 0, %s53
    %s55 = sphi 0, %s53
    %s56 = sphi 0, %s55
    %s70 = sphi 0, %s56
    %s74 = sphi 0, %s74
    %s76 = sphi 0, %s74
    %s77 = sphi 0, %s76
    %s91 = sphi 0, %s77
    %s95 = sphi 0, %s95
    %s97 = sphi 0, %s95
    %s98 = sphi 0, %s97
    %s112 = sphi 0, %s98
    %s116 = sphi 0, %s116
    %s118 = sphi 0, %s116
    %s119 = sphi 0, %s118
    %s133 = sphi 0, %s119
    %s137 = sphi 0, %s137
    %s139 = sphi 0, %s137
    %s140 = sphi 0, %s139
    %s154 = sphi 0, %s140
    %s158 = sphi 0, %s158
    %s160 = sphi 0, %s158
    %s161 = sphi 0, %s160
    %s175 = sphi 0, %s161
    %s179 = sphi 0, %s179
    %s181 = sphi 0, %s179
    %s182 = sphi 0, %s181
    %s196 = sphi 0, %s182
    %s200 = sphi 0, %s200
    %s202 = sphi 0, %s200
    %s203 = sphi 0, %s202
    %s217 = sphi 0, %s203
    %s221 = sphi 0, %s221
    %s223 = sphi 0, %s221
    %s224 = sphi 0, %s223
    %s238 = sphi 0, %s224
    %s242 = sphi 0, %s242
    %s244 = sphi 0, %s242
    %s245 = sphi 0, %s244
    %s259 = sphi 0, %s245
    %s265 = sphi 0, %s267
    %s268 = sphi 0, %s265
    %s269 = sphi 0, %s268
    %s285 = sphi 0, %s269
  $region4: #{pallas_forward.1} parent=0 // loop_header_branch
    %22 = sbr.rel (%p20) target = $region8
  $region5: #{pallas_forward.1} parent=0 // loop_body
    %s24 = ssub.s32 %s19, 1
    %s25 = ssub.s32 %s19, 2
    %s26 = sadd.s32 %s19, 1
    %s27 = ssub.s32 %s19, %s26
    %p28 = scmp.eq.s32.totalorder %s27, 0
    %s30 = sadd.s32 %s29, 1
    %s31 = scalar_select %p28, %s29, %s30
    %p34 = pneg %p28
    %p35 = scmp.eq.s32.totalorder %s19, 1
    %p36 = por %p34, %p35
    %p37 = scmp.ne.s32.totalorder %s29, %s32
    %p38 = scmp.eq.s32.totalorder %s19, 0
    %p39 = por %p37, %p38
    %p40 = scmp.ne.s32.totalorder %s29, %s32
    %p41 = scmp.eq.s32.totalorder %s24, 1
    %p42 = por %p40, %p41
    %p43 = scmp.ne.s32.totalorder %s32, %s33
    %p44 = scmp.eq.s32.totalorder %s24, 0
    %p45 = por %p43, %p44
    %p46 = scmp.ne.s32.totalorder %s32, %s33
    %p47 = scmp.eq.s32.totalorder %s25, 1
    %p48 = por %p46, %p47
    %p50 = scmp.ne.s32.totalorder %s33, %s49
    %p51 = scmp.eq.s32.totalorder %s25, 0
    %p52 = por %p50, %p51
    %s54 = sadd.s32 %s53, 1
    %p57 = scmp.eq.s32.totalorder %s19, 1
    %p58 = scmp.ne.s32.totalorder %s53, %s55
    %p59 = scmp.eq.s32.totalorder %s19, 0
    %p60 = por %p58, %p59
    %p61 = scmp.ne.s32.totalorder %s53, %s55
    %p62 = scmp.eq.s32.totalorder %s24, 1
    %p63 = por %p61, %p62
    %p64 = scmp.ne.s32.totalorder %s55, %s56
    %p65 = scmp.eq.s32.totalorder %s24, 0
    %p66 = por %p64, %p65
    %p67 = scmp.ne.s32.totalorder %s55, %s56
    %p68 = scmp.eq.s32.totalorder %s25, 1
    %p69 = por %p67, %p68
    %p71 = scmp.ne.s32.totalorder %s56, %s70
    %p72 = scmp.eq.s32.totalorder %s25, 0
    %p73 = por %p71, %p72
    %s75 = sadd.s32 %s74, 1
    %p78 = scmp.eq.s32.totalorder %s19, 1
    %p79 = scmp.ne.s32.totalorder %s74, %s76
    %p80 = scmp.eq.s32.totalorder %s19, 0
    %p81 = por %p79, %p80
    %p82 = scmp.ne.s32.totalorder %s74, %s76
    %p83 = scmp.eq.s32.totalorder %s24, 1
    %p84 = por %p82, %p83
    %p85 = scmp.ne.s32.totalorder %s76, %s77
    %p86 = scmp.eq.s32.totalorder %s24, 0
    %p87 = por %p85, %p86
    %p88 = scmp.ne.s32.totalorder %s76, %s77
    %p89 = scmp.eq.s32.totalorder %s25, 1
    %p90 = por %p88, %p89
    %p92 = scmp.ne.s32.totalorder %s77, %s91
    %p93 = scmp.eq.s32.totalorder %s25, 0
    %p94 = por %p92, %p93
    %s96 = sadd.s32 %s95, 1
    %p99 = scmp.eq.s32.totalorder %s19, 1
    %p100 = scmp.ne.s32.totalorder %s95, %s97
    %p101 = scmp.eq.s32.totalorder %s19, 0
    %p102 = por %p100, %p101
    %p103 = scmp.ne.s32.totalorder %s95, %s97
    %p104 = scmp.eq.s32.totalorder %s24, 1
    %p105 = por %p103, %p104
    %p106 = scmp.ne.s32.totalorder %s97, %s98
    %p107 = scmp.eq.s32.totalorder %s24, 0
    %p108 = por %p106, %p107
    %p109 = scmp.ne.s32.totalorder %s97, %s98
    %p110 = scmp.eq.s32.totalorder %s25, 1
    %p111 = por %p109, %p110
    %p113 = scmp.ne.s32.totalorder %s98, %s112
    %p114 = scmp.eq.s32.totalorder %s25, 0
    %p115 = por %p113, %p114
    %s117 = sadd.s32 %s116, 1
    %p120 = scmp.eq.s32.totalorder %s19, 1
    %p121 = scmp.ne.s32.totalorder %s116, %s118
    %p122 = scmp.eq.s32.totalorder %s19, 0
    %p123 = por %p121, %p122
    %p124 = scmp.ne.s32.totalorder %s116, %s118
    %p125 = scmp.eq.s32.totalorder %s24, 1
    %p126 = por %p124, %p125
    %p127 = scmp.ne.s32.totalorder %s118, %s119
    %p128 = scmp.eq.s32.totalorder %s24, 0
    %p129 = por %p127, %p128
    %p130 = scmp.ne.s32.totalorder %s118, %s119
    %p131 = scmp.eq.s32.totalorder %s25, 1
    %p132 = por %p130, %p131
    %p134 = scmp.ne.s32.totalorder %s119, %s133
    %p135 = scmp.eq.s32.totalorder %s25, 0
    %p136 = por %p134, %p135
    %s138 = sadd.s32 %s137, 1
    %p141 = scmp.eq.s32.totalorder %s19, 1
    %p142 = scmp.ne.s32.totalorder %s137, %s139
    %p143 = scmp.eq.s32.totalorder %s19, 0
    %p144 = por %p142, %p143
    %p145 = scmp.ne.s32.totalorder %s137, %s139
    %p146 = scmp.eq.s32.totalorder %s24, 1
    %p147 = por %p145, %p146
    %p148 = scmp.ne.s32.totalorder %s139, %s140
    %p149 = scmp.eq.s32.totalorder %s24, 0
    %p150 = por %p148, %p149
    %p151 = scmp.ne.s32.totalorder %s139, %s140
    %p152 = scmp.eq.s32.totalorder %s25, 1
    %p153 = por %p151, %p152
    %p155 = scmp.ne.s32.totalorder %s140, %s154
    %p156 = scmp.eq.s32.totalorder %s25, 0
    %p157 = por %p155, %p156
    %s159 = sadd.s32 %s158, 1
    %p162 = scmp.eq.s32.totalorder %s19, 1
    %p163 = scmp.ne.s32.totalorder %s158, %s160
    %p164 = scmp.eq.s32.totalorder %s19, 0
    %p165 = por %p163, %p164
    %p166 = scmp.ne.s32.totalorder %s158, %s160
    %p167 = scmp.eq.s32.totalorder %s24, 1
    %p168 = por %p166, %p167
    %p169 = scmp.ne.s32.totalorder %s160, %s161
    %p170 = scmp.eq.s32.totalorder %s24, 0
    %p171 = por %p169, %p170
    %p172 = scmp.ne.s32.totalorder %s160, %s161
    %p173 = scmp.eq.s32.totalorder %s25, 1
    %p174 = por %p172, %p173
    %p176 = scmp.ne.s32.totalorder %s161, %s175
    %p177 = scmp.eq.s32.totalorder %s25, 0
    %p178 = por %p176, %p177
    %s180 = sadd.s32 %s179, 1
    %p183 = scmp.eq.s32.totalorder %s19, 1
    %p184 = scmp.ne.s32.totalorder %s179, %s181
    %p185 = scmp.eq.s32.totalorder %s19, 0
    %p186 = por %p184, %p185
    %p187 = scmp.ne.s32.totalorder %s179, %s181
    %p188 = scmp.eq.s32.totalorder %s24, 1
    %p189 = por %p187, %p188
    %p190 = scmp.ne.s32.totalorder %s181, %s182
    %p191 = scmp.eq.s32.totalorder %s24, 0
    %p192 = por %p190, %p191
    %p193 = scmp.ne.s32.totalorder %s181, %s182
    %p194 = scmp.eq.s32.totalorder %s25, 1
    %p195 = por %p193, %p194
    %p197 = scmp.ne.s32.totalorder %s182, %s196
    %p198 = scmp.eq.s32.totalorder %s25, 0
    %p199 = por %p197, %p198
    %s201 = sadd.s32 %s200, 1
    %p204 = scmp.eq.s32.totalorder %s19, 1
    %p205 = scmp.ne.s32.totalorder %s200, %s202
    %p206 = scmp.eq.s32.totalorder %s19, 0
    %p207 = por %p205, %p206
    %p208 = scmp.ne.s32.totalorder %s200, %s202
    %p209 = scmp.eq.s32.totalorder %s24, 1
    %p210 = por %p208, %p209
    %p211 = scmp.ne.s32.totalorder %s202, %s203
    %p212 = scmp.eq.s32.totalorder %s24, 0
    %p213 = por %p211, %p212
    %p214 = scmp.ne.s32.totalorder %s202, %s203
    %p215 = scmp.eq.s32.totalorder %s25, 1
    %p216 = por %p214, %p215
    %p218 = scmp.ne.s32.totalorder %s203, %s217
    %p219 = scmp.eq.s32.totalorder %s25, 0
    %p220 = por %p218, %p219
    %s222 = sadd.s32 %s221, 1
    %p225 = scmp.eq.s32.totalorder %s19, 1
    %p226 = scmp.ne.s32.totalorder %s221, %s223
    %p227 = scmp.eq.s32.totalorder %s19, 0
    %p228 = por %p226, %p227
    %p229 = scmp.ne.s32.totalorder %s221, %s223
    %p230 = scmp.eq.s32.totalorder %s24, 1
    %p231 = por %p229, %p230
    %p232 = scmp.ne.s32.totalorder %s223, %s224
    %p233 = scmp.eq.s32.totalorder %s24, 0
    %p234 = por %p232, %p233
    %p235 = scmp.ne.s32.totalorder %s223, %s224
    %p236 = scmp.eq.s32.totalorder %s25, 1
    %p237 = por %p235, %p236
    %p239 = scmp.ne.s32.totalorder %s224, %s238
    %p240 = scmp.eq.s32.totalorder %s25, 0
    %p241 = por %p239, %p240
    %s243 = sadd.s32 %s242, 1
    %p246 = scmp.eq.s32.totalorder %s19, 1
    %p247 = scmp.ne.s32.totalorder %s242, %s244
    %p248 = scmp.eq.s32.totalorder %s19, 0
    %p249 = por %p247, %p248
    %p250 = scmp.ne.s32.totalorder %s242, %s244
    %p251 = scmp.eq.s32.totalorder %s24, 1
    %p252 = por %p250, %p251
    %p253 = scmp.ne.s32.totalorder %s244, %s245
    %p254 = scmp.eq.s32.totalorder %s24, 0
    %p255 = por %p253, %p254
    %p256 = scmp.ne.s32.totalorder %s244, %s245
    %p257 = scmp.eq.s32.totalorder %s25, 1
    %p258 = por %p256, %p257
    %p260 = scmp.ne.s32.totalorder %s245, %s259
    %p261 = scmp.eq.s32.totalorder %s25, 0
    %p262 = por %p260, %p261
    %s263 = ssub.s32 %s19, %s26
    %p264 = scmp.eq.s32.totalorder %s263, 0
    %s266 = sadd.s32 %s265, 1
    %s267 = scalar_select %p264, %s265, %s266
    %p270 = pneg %p264
    %p271 = scmp.eq.s32.totalorder %s19, 1
    %p272 = por %p270, %p271
    %p273 = scmp.ne.s32.totalorder %s265, %s268
    %p274 = scmp.eq.s32.totalorder %s19, 0
    %p275 = por %p273, %p274
    %p276 = scmp.ne.s32.totalorder %s265, %s268
    %p277 = scmp.eq.s32.totalorder %s24, 1
    %p278 = por %p276, %p277
    %p279 = scmp.ne.s32.totalorder %s268, %s269
    %p280 = scmp.eq.s32.totalorder %s24, 0
    %p281 = por %p279, %p280
    %p282 = scmp.ne.s32.totalorder %s268, %s269
    %p283 = scmp.eq.s32.totalorder %s25, 1
    %p284 = por %p282, %p283
    %p286 = scmp.ne.s32.totalorder %s269, %s285
    %p287 = scmp.eq.s32.totalorder %s25, 0
    %p288 = por %p286, %p287
    %p289 = scmp.le.s32.totalorder 1, %s19
    %p290 = scmp.lt.s32.totalorder %s19, 3
    %p291 = pnand %p289, %p290
    %p292 = pneg %p291
    // Predicated region
    $region9: #{pallas_forward.1} parent=5 // pred_check
      _
    $region10: #{pallas_forward.1} parent=5 // pred_check_branch
      %294 = sbr.rel (%p291) target = $region12
    $region11: #{pallas_forward.1} parent=5 // pred_region
      %s295 = ssub.s32 %s19, 1
      // Predicated region
      $region13: #{pallas_forward.1} parent=11 // pred_check
        %p296 = pneg %p66
      $region14: #{pallas_forward.1} parent=11 // pred_check_branch
        %298 = sbr.rel (%p296) target = $region16
      $region15: #{pallas_forward.1} parent=11 // pred_region
        _
      $region16: #{pallas_forward.1} parent=11 // pred_fallthru
        _
      // Predicated region
      $region17: #{pallas_forward.1} parent=11 // pred_check
        %p299 = pneg %p87
      $region18: #{pallas_forward.1} parent=11 // pred_check_branch
        %301 = sbr.rel (%p299) target = $region20
      $region19: #{pallas_forward.1} parent=11 // pred_region
        _
      $region20: #{pallas_forward.1} parent=11 // pred_fallthru
        _
      // Predicated region
      $region21: #{pallas_forward.1} parent=11 // pred_check
        %p302 = pneg %p108
      $region22: #{pallas_forward.1} parent=11 // pred_check_branch
        %304 = sbr.rel (%p302) target = $region24
      $region23: #{pallas_forward.1} parent=11 // pred_region
        _
      $region24: #{pallas_forward.1} parent=11 // pred_fallthru
        _
      // Predicated region
      $region25: #{pallas_forward.1} parent=11 // pred_check
        %p305 = pneg %p129
      $region26: #{pallas_forward.1} parent=11 // pred_check_branch
        %307 = sbr.rel (%p305) target = $region28
      $region27: #{pallas_forward.1} parent=11 // pred_region
        _
      $region28: #{pallas_forward.1} parent=11 // pred_fallthru
        _
      // Predicated region
      $region29: #{pallas_forward.1} parent=11 // pred_check
        %p308 = pneg %p150
      $region30: #{pallas_forward.1} parent=11 // pred_check_branch
        %310 = sbr.rel (%p308) target = $region32
      $region31: #{pallas_forward.1} parent=11 // pred_region
        _
      $region32: #{pallas_forward.1} parent=11 // pred_fallthru
        _
      // Predicated region
      $region33: #{pallas_forward.1} parent=11 // pred_check
        %p311 = pneg %p171
      $region34: #{pallas_forward.1} parent=11 // pred_check_branch
        %313 = sbr.rel (%p311) target = $region36
      $region35: #{pallas_forward.1} parent=11 // pred_region
        _
      $region36: #{pallas_forward.1} parent=11 // pred_fallthru
        _
      // Predicated region
      $region37: #{pallas_forward.1} parent=11 // pred_check
        %p314 = pneg %p192
      $region38: #{pallas_forward.1} parent=11 // pred_check_branch
        %316 = sbr.rel (%p314) target = $region40
      $region39: #{pallas_forward.1} parent=11 // pred_region
        _
      $region40: #{pallas_forward.1} parent=11 // pred_fallthru
        _
      // Predicated region
      $region41: #{pallas_forward.1} parent=11 // pred_check
        %p317 = pneg %p213
      $region42: #{pallas_forward.1} parent=11 // pred_check_branch
        %319 = sbr.rel (%p317) target = $region44
      $region43: #{pallas_forward.1} parent=11 // pred_region
        _
      $region44: #{pallas_forward.1} parent=11 // pred_fallthru
        _
      // Predicated region
      $region45: #{pallas_forward.1} parent=11 // pred_check
        %p320 = pneg %p234
      $region46: #{pallas_forward.1} parent=11 // pred_check_branch
        %322 = sbr.rel (%p320) target = $region48
      $region47: #{pallas_forward.1} parent=11 // pred_region
        _
      $region48: #{pallas_forward.1} parent=11 // pred_fallthru
        _
      // Predicated region
      $region49: #{pallas_forward.1} parent=11 // pred_check
        %p323 = pneg %p255
      $region50: #{pallas_forward.1} parent=11 // pred_check_branch
        %325 = sbr.rel (%p323) target = $region52
      $region51: #{pallas_forward.1} parent=11 // pred_region
        _
      $region52: #{pallas_forward.1} parent=11 // pred_fallthru
        _
    $region12: #{pallas_forward.1} parent=5 // pred_fallthru
      _
    %p326 = scmp.lt.s32.totalorder %s19, 2
    // Predicated region
    $region53: #{pallas_forward.1} parent=5 // pred_check
      %p327 = pneg %p326
    $region54: #{pallas_forward.1} parent=5 // pred_check_branch
      %329 = sbr.rel (%p327) target = $region56
    $region55: #{pallas_forward.1} parent=5 // pred_region
      // Predicated region
      $region57: #{pallas_forward.1} parent=55 // pred_check
        %p330 = pneg %p39
      $region58: #{pallas_forward.1} parent=55 // pred_check_branch
        %332 = sbr.rel (%p330) target = $region60
      $region59: #{pallas_forward.1} parent=55 // pred_region
        %p333 = scmp.lt.s32.totalorder %s19, 1
        %s334 = scalar_select %p333, %s19, 1
        %s335 = smul.addr %s334, 32
        %s336 = smul.addr %s335, 8
        %s337 = scalar_lea.vmem %s0, %s336
      $region60: #{pallas_forward.1} parent=55 // pred_fallthru
        _
    $region56: #{pallas_forward.1} parent=5 // pred_fallthru
      _
    %p338 = scmp.le.s32.totalorder 1, %s19
    %p339 = scmp.lt.s32.totalorder %s19, 3
    %p340 = pnand %p338, %p339
    %p341 = pneg %p340
    // Predicated region
    $region61: #{pallas_forward.1} parent=5 // pred_check
      _
    $region62: #{pallas_forward.1} parent=5 // pred_check_branch
      %343 = sbr.rel (%p340) target = $region64
    $region63: #{pallas_forward.1} parent=5 // pred_region
      %s344 = ssub.s32 %s19, 1
      %p345 = scmp.lt.s32.totalorder %s24, 1
      %s346 = scalar_select %p345, %s24, 1
      %s347 = smul.addr %s346, 32
      %s348 = smul.addr %s347, 8
      %s349 = scalar_lea.vmem %s0, %s348
      %p350 = pneg %p45
      %p351 = pneg %p42
      %p352 = pneg %p66
      %p353 = pneg %p63
      %p354 = pneg %p87
      %p355 = pneg %p84
      %p356 = pneg %p108
      %p357 = pneg %p105
      %p358 = pneg %p129
      %p359 = pneg %p126
      %p360 = pneg %p150
      %p361 = pneg %p147
      %p362 = pneg %p171
      %p363 = pneg %p168
      %p364 = pneg %p192
      %p365 = pneg %p189
      %p366 = pneg %p213
      %p367 = pneg %p210
      %p368 = pneg %p234
      %p369 = pneg %p231
      %p370 = pneg %p255
      %p371 = pneg %p252
      %p372 = pneg %p281
      %p373 = pneg %p278
      %p374 = scmp.lt.s32.totalorder %s24, 1
      %s375 = scalar_select %p374, %s24, 1
      %s376 = scalar_lea.vmem %s11, %s375
      %p377 = scmp.lt.s32.totalorder %s24, 1
      %s378 = scalar_select %p377, %s24, 1
      %s379 = smul.addr %s378, 32
      %s380 = smul.addr %s379, 8
      %s381 = scalar_lea.vmem %s0, %s380
      %p382 = scmp.lt.s32.totalorder %s24, 1
      %s383 = scalar_select %p382, %s24, 1
      %s384 = scalar_lea.vmem %s11, %s383
      %vm385 = vcmask 7168
      %386 = vst.msk [vmem:[#allocation2] sm:$0xff] %vm385, 0.0
      %387 = vst.msk [vmem:[#allocation2 + $0x8] sm:$0xff] %vm385, 0.0
      %vm388 = vcmask 1024
      %389 = vst.msk [vmem:[#allocation2 + $0x10] sm:$0x3] %vm388, 0.0
      %390 = vst.msk [vmem:[#allocation2 + $0x18] sm:$0xff] %vm385, 0.0
      %391 = vst.msk [vmem:[#allocation2 + $0x20] sm:$0xff] %vm385, 0.0
      %392 = vst.msk [vmem:[#allocation2 + $0x28] sm:$0x3] %vm388, 0.0
      %393 = vst.msk [vmem:[#allocation2 + $0x30] sm:$0xff] %vm385, 0.0
      %394 = vst.msk [vmem:[#allocation2 + $0x38] sm:$0xff] %vm385, 0.0
      %395 = vst.msk [vmem:[#allocation2 + $0x40] sm:$0x3] %vm388, 0.0
      %396 = vst.msk [vmem:[#allocation2 + $0x48] sm:$0xff] %vm385, 0.0
      %397 = vst.msk [vmem:[#allocation2 + $0x50] sm:$0xff] %vm385, 0.0
      %398 = vst.msk [vmem:[#allocation2 + $0x58] sm:$0x3] %vm388, 0.0
      %399 = vst.msk [vmem:[#allocation2 + $0x60] sm:$0xff] %vm385, 0.0
      %400 = vst.msk [vmem:[#allocation2 + $0x68] sm:$0xff] %vm385, 0.0
      %401 = vst.msk [vmem:[#allocation2 + $0x70] sm:$0x3] %vm388, 0.0
      %402 = vst.msk [vmem:[#allocation2 + $0x78] sm:$0xff] %vm385, 0.0
      %403 = vst.msk [vmem:[#allocation2 + $0x80] sm:$0xff] %vm385, 0.0
      %404 = vst.msk [vmem:[#allocation2 + $0x88] sm:$0x3] %vm388, 0.0
      %405 = vst.msk [vmem:[#allocation2 + $0x90] sm:$0xff] %vm385, 0.0
      %406 = vst.msk [vmem:[#allocation2 + $0x98] sm:$0xff] %vm385, 0.0
      %407 = vst.msk [vmem:[#allocation2 + $0xa0] sm:$0x3] %vm388, 0.0
      %408 = vst.msk [vmem:[#allocation2 + $0xa8] sm:$0xff] %vm385, 0.0
      %409 = vst.msk [vmem:[#allocation2 + $0xb0] sm:$0xff] %vm385, 0.0
      %410 = vst.msk [vmem:[#allocation2 + $0xb8] sm:$0x3] %vm388, 0.0
      %411 = vst.msk [vmem:[#allocation2 + $0xc0] sm:$0xff] %vm385, 0.0
      %412 = vst.msk [vmem:[#allocation2 + $0xc8] sm:$0xff] %vm385, 0.0
      %413 = vst.msk [vmem:[#allocation2 + $0xd0] sm:$0x3] %vm388, 0.0
      %414 = vst.msk [vmem:[#allocation2 + $0xd8] sm:$0xff] %vm385, 0.0
      %415 = vst.msk [vmem:[#allocation2 + $0xe0] sm:$0xff] %vm385, 0.0
      %416 = vst.msk [vmem:[#allocation2 + $0xe8] sm:$0x3] %vm388, 0.0
      %417 = vst.msk [vmem:[#allocation2 + $0xf0] sm:$0xff] %vm385, 0.0
      %418 = vst.msk [vmem:[#allocation2 + $0xf8] sm:$0xff] %vm385, 0.0
      %419 = vst.msk [vmem:[#allocation2 + $0x100] sm:$0x3] %vm388, 0.0
      %420 = vst.msk [vmem:[#allocation2 + $0x108] sm:$0xff] %vm385, 0.0
      %421 = vst.msk [vmem:[#allocation2 + $0x110] sm:$0xff] %vm385, 0.0
      %422 = vst.msk [vmem:[#allocation2 + $0x118] sm:$0x3] %vm388, 0.0
      %423 = vst.msk [vmem:[#allocation2 + $0x120] sm:$0xff] %vm385, 0.0
      %424 = vst.msk [vmem:[#allocation2 + $0x128] sm:$0xff] %vm385, 0.0
      %425 = vst.msk [vmem:[#allocation2 + $0x130] sm:$0x3] %vm388, 0.0
      %426 = vst.msk [vmem:[#allocation2 + $0x138] sm:$0xff] %vm385, 0.0
      %427 = vst.msk [vmem:[#allocation2 + $0x140] sm:$0xff] %vm385, 0.0
      %428 = vst.msk [vmem:[#allocation2 + $0x148] sm:$0x3] %vm388, 0.0
      %429 = vst.msk [vmem:[#allocation2 + $0x150] sm:$0xff] %vm385, 0.0
      %430 = vst.msk [vmem:[#allocation2 + $0x158] sm:$0xff] %vm385, 0.0
      %431 = vst.msk [vmem:[#allocation2 + $0x160] sm:$0x3] %vm388, 0.0
      %432 = vst.msk [vmem:[#allocation2 + $0x168] sm:$0xff] %vm385, 0.0
      %433 = vst.msk [vmem:[#allocation2 + $0x170] sm:$0xff] %vm385, 0.0
      %434 = vst.msk [vmem:[#allocation2 + $0x178] sm:$0x3] %vm388, 0.0
      %435 = vst.msk [vmem:[#allocation2 + $0x180] sm:$0xff] %vm385, 0.0
      %436 = vst.msk [vmem:[#allocation2 + $0x188] sm:$0xff] %vm385, 0.0
      %437 = vst.msk [vmem:[#allocation2 + $0x190] sm:$0x3] %vm388, 0.0
      %438 = vst.msk [vmem:[#allocation2 + $0x198] sm:$0xff] %vm385, 0.0
      %439 = vst.msk [vmem:[#allocation2 + $0x1a0] sm:$0xff] %vm385, 0.0
      %440 = vst.msk [vmem:[#allocation2 + $0x1a8] sm:$0x3] %vm388, 0.0
      %v441 = vld [vmem:[%s381] sm:$0xff]
      %v442 = vld [vmem:[%s381 + $0x8] sm:$0xff]
      %v443 = vld [vmem:[%s381 + $0x10] sm:$0xff]
      %v444 = vld [vmem:[%s381 + $0x18] sm:$0xff]
      %v445 = vld [vmem:[%s381 + $0x20] sm:$0xff]
      %v446 = vld [vmem:[%s381 + $0x28] sm:$0xff]
      %v447 = vld [vmem:[%s381 + $0x30] sm:$0xff]
      %v448 = vld [vmem:[%s381 + $0x38] sm:$0xff]
      %v449 = vld [vmem:[%s381 + $0x40] sm:$0xff]
      %v450 = vld [vmem:[%s381 + $0x48] sm:$0xff]
      %v451 = vld [vmem:[%s381 + $0x50] sm:$0xff]
      %v452 = vld [vmem:[%s381 + $0x58] sm:$0xff]
      %v453 = vld [vmem:[%s381 + $0x60] sm:$0xff]
      %v454 = vld [vmem:[%s381 + $0x68] sm:$0xff]
      %v455 = vld [vmem:[%s381 + $0x70] sm:$0xff]
      %v456 = vld [vmem:[%s381 + $0x78] sm:$0xff]
      %v457 = vld [vmem:[%s381 + $0x80] sm:$0xff]
      %v458 = vld [vmem:[%s381 + $0x88] sm:$0xff]
      %v459 = vld [vmem:[%s381 + $0x90] sm:$0xff]
      %v460 = vld [vmem:[%s381 + $0x98] sm:$0xff]
      %v461 = vld [vmem:[%s381 + $0xa0] sm:$0xff]
      %v462 = vld [vmem:[%s381 + $0xa8] sm:$0xff]
      %v463 = vld [vmem:[%s381 + $0xb0] sm:$0xff]
      %v464 = vld [vmem:[%s381 + $0xb8] sm:$0xff]
      %v465 = vld [vmem:[%s381 + $0xc0] sm:$0xff]
      %v466 = vld [vmem:[%s381 + $0xc8] sm:$0xff]
      %v467 = vld [vmem:[%s381 + $0xd0] sm:$0xff]
      %v468 = vld [vmem:[%s381 + $0xd8] sm:$0xff]
      %v469 = vld [vmem:[%s381 + $0xe0] sm:$0xff]
      %v470 = vld [vmem:[%s381 + $0xe8] sm:$0xff]
      %v471 = vld [vmem:[%s381 + $0xf0] sm:$0xff]
      %v472 = vld [vmem:[%s381 + $0xf8] sm:$0xff]
      %s473 = scalar_lea.vmem [#allocation2], 24
      %474 = vst.msk [vmem:[%s473 + $0x1] sm:$0xff] %vm385, %v441
      %475 = vst.msk [vmem:[%s473 + $0x9] sm:$0xff] %vm385, %v442
      %476 = vst.msk [vmem:[%s473 + $0x19] sm:$0xff] %vm385, %v443
      %477 = vst.msk [vmem:[%s473 + $0x21] sm:$0xff] %vm385, %v444
      %478 = vst.msk [vmem:[%s473 + $0x31] sm:$0xff] %vm385, %v445
      %479 = vst.msk [vmem:[%s473 + $0x39] sm:$0xff] %vm385, %v446
      %480 = vst.msk [vmem:[%s473 + $0x49] sm:$0xff] %vm385, %v447
      %481 = vst.msk [vmem:[%s473 + $0x51] sm:$0xff] %vm385, %v448
      %482 = vst.msk [vmem:[%s473 + $0x61] sm:$0xff] %vm385, %v449
      %483 = vst.msk [vmem:[%s473 + $0x69] sm:$0xff] %vm385, %v450
      %484 = vst.msk [vmem:[%s473 + $0x79] sm:$0xff] %vm385, %v451
      %485 = vst.msk [vmem:[%s473 + $0x81] sm:$0xff] %vm385, %v452
      %486 = vst.msk [vmem:[%s473 + $0x91] sm:$0xff] %vm385, %v453
      %487 = vst.msk [vmem:[%s473 + $0x99] sm:$0xff] %vm385, %v454
      %488 = vst.msk [vmem:[%s473 + $0xa9] sm:$0xff] %vm385, %v455
      %489 = vst.msk [vmem:[%s473 + $0xb1] sm:$0xff] %vm385, %v456
      %490 = vst.msk [vmem:[%s473 + $0xc1] sm:$0xff] %vm385, %v457
      %491 = vst.msk [vmem:[%s473 + $0xc9] sm:$0xff] %vm385, %v458
      %492 = vst.msk [vmem:[%s473 + $0xd9] sm:$0xff] %vm385, %v459
      %493 = vst.msk [vmem:[%s473 + $0xe1] sm:$0xff] %vm385, %v460
      %494 = vst.msk [vmem:[%s473 + $0xf1] sm:$0xff] %vm385, %v461
      %495 = vst.msk [vmem:[%s473 + $0xf9] sm:$0xff] %vm385, %v462
      %496 = vst.msk [vmem:[%s473 + $0x109] sm:$0xff] %vm385, %v463
      %497 = vst.msk [vmem:[%s473 + $0x111] sm:$0xff] %vm385, %v464
      %498 = vst.msk [vmem:[%s473 + $0x121] sm:$0xff] %vm385, %v465
      %499 = vst.msk [vmem:[%s473 + $0x129] sm:$0xff] %vm385, %v466
      %500 = vst.msk [vmem:[%s473 + $0x139] sm:$0xff] %vm385, %v467
      %501 = vst.msk [vmem:[%s473 + $0x141] sm:$0xff] %vm385, %v468
      %502 = vst.msk [vmem:[%s473 + $0x151] sm:$0xff] %vm385, %v469
      %503 = vst.msk [vmem:[%s473 + $0x159] sm:$0xff] %vm385, %v470
      %504 = vst.msk [vmem:[%s473 + $0x169] sm:$0xff] %vm385, %v471
      %505 = vst.msk [vmem:[%s473 + $0x171] sm:$0xff] %vm385, %v472
      %v506 = vld [vmem:[#allocation2] sm:$0xff]
      %v507 = vld [vmem:[#allocation2 + $0x8] sm:$0xff]
      %v508 = vld [vmem:[#allocation2 + $0x18] sm:$0xff]
      %v509 = vld [vmem:[#allocation2 + $0x20] sm:$0xff]
      %v510 = vld [vmem:[#allocation2 + $0x30] sm:$0xff]
      %v511 = vld [vmem:[#allocation2 + $0x38] sm:$0xff]
      %v512 = vld [vmem:[#allocation2 + $0x48] sm:$0xff]
      %v513 = vld [vmem:[#allocation2 + $0x50] sm:$0xff]
      %v514 = vld [vmem:[#allocation2 + $0x60] sm:$0xff]
      %v515 = vld [vmem:[#allocation2 + $0x68] sm:$0xff]
      %v516 = vld [vmem:[#allocation2 + $0x78] sm:$0xff]
      %v517 = vld [vmem:[#allocation2 + $0x80] sm:$0xff]
      %v518 = vld [vmem:[#allocation2 + $0x90] sm:$0xff]
      %v519 = vld [vmem:[#allocation2 + $0x98] sm:$0xff]
      %v520 = vld [vmem:[#allocation2 + $0xa8] sm:$0xff]
      %v521 = vld [vmem:[#allocation2 + $0xb0] sm:$0xff]
      %v522 = vld [vmem:[#allocation2 + $0xc0] sm:$0xff]
      %v523 = vld [vmem:[#allocation2 + $0xc8] sm:$0xff]
      %v524 = vld [vmem:[#allocation2 + $0xd8] sm:$0xff]
      %v525 = vld [vmem:[#allocation2 + $0xe0] sm:$0xff]
      %v526 = vld [vmem:[#allocation2 + $0xf0] sm:$0xff]
      %v527 = vld [vmem:[#allocation2 + $0xf8] sm:$0xff]
      %v528 = vld [vmem:[#allocation2 + $0x108] sm:$0xff]
      %v529 = vld [vmem:[#allocation2 + $0x110] sm:$0xff]
      %v530 = vld [vmem:[#allocation2 + $0x120] sm:$0xff]
      %v531 = vld [vmem:[#allocation2 + $0x128] sm:$0xff]
      %v532 = vld [vmem:[#allocation2 + $0x138] sm:$0xff]
      %v533 = vld [vmem:[#allocation2 + $0x140] sm:$0xff]
      %v534 = vld [vmem:[#allocation2 + $0x150] sm:$0xff]
      %v535 = vld [vmem:[#allocation2 + $0x158] sm:$0xff]
      %v536 = vld [vmem:[#allocation2 + $0x168] sm:$0xff]
      %v537 = vld [vmem:[#allocation2 + $0x170] sm:$0xff]
      %v538 = vld [vmem:[%s1] sm:$0x1]
      %540 = vset.pattern.permute.xlu0 0
      %541 = vperm.xlu0 %540, %v506
      %v542 = vpop.permute.xlu0 %541
      %545 = vset.pattern.permute.xlu0 0
      %546 = vperm.xlu0 %545, %v507
      %v547 = vpop.permute.xlu0 %546
      %550 = vset.pattern.permute.xlu0 0
      %551 = vperm.xlu0 %550, %v508
      %v552 = vpop.permute.xlu0 %551
      %555 = vset.pattern.permute.xlu0 0
      %556 = vperm.xlu0 %555, %v509
      %v557 = vpop.permute.xlu0 %556
      %560 = vset.pattern.permute.xlu0 0
      %561 = vperm.xlu0 %560, %v510
      %v562 = vpop.permute.xlu0 %561
      %565 = vset.pattern.permute.xlu0 0
      %566 = vperm.xlu0 %565, %v511
      %v567 = vpop.permute.xlu0 %566
      %570 = vset.pattern.permute.xlu0 0
      %571 = vperm.xlu0 %570, %v512
      %v572 = vpop.permute.xlu0 %571
      %575 = vset.pattern.permute.xlu0 0
      %576 = vperm.xlu0 %575, %v513
      %v577 = vpop.permute.xlu0 %576
      %580 = vset.pattern.permute.xlu0 0
      %581 = vperm.xlu0 %580, %v514
      %v582 = vpop.permute.xlu0 %581
      %585 = vset.pattern.permute.xlu0 0
      %586 = vperm.xlu0 %585, %v515
      %v587 = vpop.permute.xlu0 %586
      %590 = vset.pattern.permute.xlu0 0
      %591 = vperm.xlu0 %590, %v516
      %v592 = vpop.permute.xlu0 %591
      %595 = vset.pattern.permute.xlu0 0
      %596 = vperm.xlu0 %595, %v517
      %v597 = vpop.permute.xlu0 %596
      %600 = vset.pattern.permute.xlu0 0
      %601 = vperm.xlu0 %600, %v518
      %v602 = vpop.permute.xlu0 %601
      %605 = vset.pattern.permute.xlu0 0
      %606 = vperm.xlu0 %605, %v519
      %v607 = vpop.permute.xlu0 %606
      %610 = vset.pattern.permute.xlu0 0
      %611 = vperm.xlu0 %610, %v520
      %v612 = vpop.permute.xlu0 %611
      %615 = vset.pattern.permute.xlu0 0
      %616 = vperm.xlu0 %615, %v521
      %v617 = vpop.permute.xlu0 %616
      %620 = vset.pattern.permute.xlu0 0
      %621 = vperm.xlu0 %620, %v522
      %v622 = vpop.permute.xlu0 %621
      %625 = vset.pattern.permute.xlu0 0
      %626 = vperm.xlu0 %625, %v523
      %v627 = vpop.permute.xlu0 %626
      %630 = vset.pattern.permute.xlu0 0
      %631 = vperm.xlu0 %630, %v524
      %v632 = vpop.permute.xlu0 %631
      %635 = vset.pattern.permute.xlu0 0
      %636 = vperm.xlu0 %635, %v525
      %v637 = vpop.permute.xlu0 %636
      %640 = vset.pattern.permute.xlu0 0
      %641 = vperm.xlu0 %640, %v526
      %v642 = vpop.permute.xlu0 %641
      %645 = vset.pattern.permute.xlu0 0
      %646 = vperm.xlu0 %645, %v527
      %v647 = vpop.permute.xlu0 %646
      %650 = vset.pattern.permute.xlu0 0
      %651 = vperm.xlu0 %650, %v528
      %v652 = vpop.permute.xlu0 %651
      %655 = vset.pattern.permute.xlu0 0
      %656 = vperm.xlu0 %655, %v529
      %v657 = vpop.permute.xlu0 %656
      %660 = vset.pattern.permute.xlu0 0
      %661 = vperm.xlu0 %660, %v530
      %v662 = vpop.permute.xlu0 %661
      %665 = vset.pattern.permute.xlu0 0
      %666 = vperm.xlu0 %665, %v531
      %v667 = vpop.permute.xlu0 %666
      %670 = vset.pattern.permute.xlu0 0
      %671 = vperm.xlu0 %670, %v532
      %v672 = vpop.permute.xlu0 %671
      %675 = vset.pattern.permute.xlu0 0
      %676 = vperm.xlu0 %675, %v533
      %v677 = vpop.permute.xlu0 %676
      %680 = vset.pattern.permute.xlu0 0
      %681 = vperm.xlu0 %680, %v534
      %v682 = vpop.permute.xlu0 %681
      %685 = vset.pattern.permute.xlu0 0
      %686 = vperm.xlu0 %685, %v535
      %v687 = vpop.permute.xlu0 %686
      %690 = vset.pattern.permute.xlu0 0
      %691 = vperm.xlu0 %690, %v536
      %v692 = vpop.permute.xlu0 %691
      %695 = vset.pattern.permute.xlu0 0
      %696 = vperm.xlu0 %695, %v537
      %v697 = vpop.permute.xlu0 %696
      %v700 = vlaneseq
      %v701 = vshrl.u32 %v700, 7
      %v702 = vsub.s32 0, %v701
      %v703 = vrot.slane %v538, %v702
      %v705 = vmul.f32 %v542, %v703
      %v706 = vmul.f32 %v547, %v703
      %v707 = vmul.f32 %v552, %v703
      %v708 = vmul.f32 %v557, %v703
      %v709 = vmul.f32 %v562, %v703
      %v710 = vmul.f32 %v567, %v703
      %v711 = vmul.f32 %v572, %v703
      %v712 = vmul.f32 %v577, %v703
      %v713 = vmul.f32 %v582, %v703
      %v714 = vmul.f32 %v587, %v703
      %v715 = vmul.f32 %v592, %v703
      %v716 = vmul.f32 %v597, %v703
      %v717 = vmul.f32 %v602, %v703
      %v718 = vmul.f32 %v607, %v703
      %v719 = vmul.f32 %v612, %v703
      %v720 = vmul.f32 %v617, %v703
      %v721 = vmul.f32 %v622, %v703
      %v722 = vmul.f32 %v627, %v703
      %v723 = vmul.f32 %v632, %v703
      %v724 = vmul.f32 %v637, %v703
      %v725 = vmul.f32 %v642, %v703
      %v726 = vmul.f32 %v647, %v703
      %v727 = vmul.f32 %v652, %v703
      %v728 = vmul.f32 %v657, %v703
      %v729 = vmul.f32 %v662, %v703
      %v730 = vmul.f32 %v667, %v703
      %v731 = vmul.f32 %v672, %v703
      %v732 = vmul.f32 %v677, %v703
      %v733 = vmul.f32 %v682, %v703
      %v734 = vmul.f32 %v687, %v703
      %v735 = vmul.f32 %v692, %v703
      %v736 = vmul.f32 %v697, %v703
      %v737 = vadd.f32 %v705, 0.0
      %v738 = vadd.f32 %v706, 0.0
      %v739 = vadd.f32 %v707, 0.0
      %v740 = vadd.f32 %v708, 0.0
      %v741 = vadd.f32 %v709, 0.0
      %v742 = vadd.f32 %v710, 0.0
      %v743 = vadd.f32 %v711, 0.0
      %v744 = vadd.f32 %v712, 0.0
      %v745 = vadd.f32 %v713, 0.0
      %v746 = vadd.f32 %v714, 0.0
      %v747 = vadd.f32 %v715, 0.0
      %v748 = vadd.f32 %v716, 0.0
      %v749 = vadd.f32 %v717, 0.0
      %v750 = vadd.f32 %v718, 0.0
      %v751 = vadd.f32 %v719, 0.0
      %v752 = vadd.f32 %v720, 0.0
      %v753 = vadd.f32 %v721, 0.0
      %v754 = vadd.f32 %v722, 0.0
      %v755 = vadd.f32 %v723, 0.0
      %v756 = vadd.f32 %v724, 0.0
      %v757 = vadd.f32 %v725, 0.0
      %v758 = vadd.f32 %v726, 0.0
      %v759 = vadd.f32 %v727, 0.0
      %v760 = vadd.f32 %v728, 0.0
      %v761 = vadd.f32 %v729, 0.0
      %v762 = vadd.f32 %v730, 0.0
      %v763 = vadd.f32 %v731, 0.0
      %v764 = vadd.f32 %v732, 0.0
      %v765 = vadd.f32 %v733, 0.0
      %v766 = vadd.f32 %v734, 0.0
      %v767 = vadd.f32 %v735, 0.0
      %v768 = vadd.f32 %v736, 0.0
      %v769 = vld [vmem:[#allocation2 + $0x1] sm:$0xff]
      %v770 = vld [vmem:[#allocation2 + $0x9] sm:$0xff]
      %v771 = vld [vmem:[#allocation2 + $0x19] sm:$0xff]
      %v772 = vld [vmem:[#allocation2 + $0x21] sm:$0xff]
      %v773 = vld [vmem:[#allocation2 + $0x31] sm:$0xff]
      %v774 = vld [vmem:[#allocation2 + $0x39] sm:$0xff]
      %v775 = vld [vmem:[#allocation2 + $0x49] sm:$0xff]
      %v776 = vld [vmem:[#allocation2 + $0x51] sm:$0xff]
      %v777 = vld [vmem:[#allocation2 + $0x61] sm:$0xff]
      %v778 = vld [vmem:[#allocation2 + $0x69] sm:$0xff]
      %v779 = vld [vmem:[#allocation2 + $0x79] sm:$0xff]
      %v780 = vld [vmem:[#allocation2 + $0x81] sm:$0xff]
      %v781 = vld [vmem:[#allocation2 + $0x91] sm:$0xff]
      %v782 = vld [vmem:[#allocation2 + $0x99] sm:$0xff]
      %v783 = vld [vmem:[#allocation2 + $0xa9] sm:$0xff]
      %v784 = vld [vmem:[#allocation2 + $0xb1] sm:$0xff]
      %v785 = vld [vmem:[#allocation2 + $0xc1] sm:$0xff]
      %v786 = vld [vmem:[#allocation2 + $0xc9] sm:$0xff]
      %v787 = vld [vmem:[#allocation2 + $0xd9] sm:$0xff]
      %v788 = vld [vmem:[#allocation2 + $0xe1] sm:$0xff]
      %v789 = vld [vmem:[#allocation2 + $0xf1] sm:$0xff]
      %v790 = vld [vmem:[#allocation2 + $0xf9] sm:$0xff]
      %v791 = vld [vmem:[#allocation2 + $0x109] sm:$0xff]
      %v792 = vld [vmem:[#allocation2 + $0x111] sm:$0xff]
      %v793 = vld [vmem:[#allocation2 + $0x121] sm:$0xff]
      %v794 = vld [vmem:[#allocation2 + $0x129] sm:$0xff]
      %v795 = vld [vmem:[#allocation2 + $0x139] sm:$0xff]
      %v796 = vld [vmem:[#allocation2 + $0x141] sm:$0xff]
      %v797 = vld [vmem:[#allocation2 + $0x151] sm:$0xff]
      %v798 = vld [vmem:[#allocation2 + $0x159] sm:$0xff]
      %v799 = vld [vmem:[#allocation2 + $0x169] sm:$0xff]
      %v800 = vld [vmem:[#allocation2 + $0x171] sm:$0xff]
      %s801 = scalar_lea.vmem %s1, 1
      %v802 = vld [vmem:[%s801] sm:$0x1]
      %804 = vset.pattern.permute.xlu0 0
      %805 = vperm.xlu0 %804, %v769
      %v806 = vpop.permute.xlu0 %805
      %809 = vset.pattern.permute.xlu0 0
      %810 = vperm.xlu0 %809, %v770
      %v811 = vpop.permute.xlu0 %810
      %814 = vset.pattern.permute.xlu0 0
      %815 = vperm.xlu0 %814, %v771
      %v816 = vpop.permute.xlu0 %815
      %819 = vset.pattern.permute.xlu0 0
      %820 = vperm.xlu0 %819, %v772
      %v821 = vpop.permute.xlu0 %820
      %824 = vset.pattern.permute.xlu0 0
      %825 = vperm.xlu0 %824, %v773
      %v826 = vpop.permute.xlu0 %825
      %829 = vset.pattern.permute.xlu0 0
      %830 = vperm.xlu0 %829, %v774
      %v831 = vpop.permute.xlu0 %830
      %834 = vset.pattern.permute.xlu0 0
      %835 = vperm.xlu0 %834, %v775
      %v836 = vpop.permute.xlu0 %835
      %839 = vset.pattern.permute.xlu0 0
      %840 = vperm.xlu0 %839, %v776
      %v841 = vpop.permute.xlu0 %840
      %844 = vset.pattern.permute.xlu0 0
      %845 = vperm.xlu0 %844, %v777
      %v846 = vpop.permute.xlu0 %845
      %849 = vset.pattern.permute.xlu0 0
      %850 = vperm.xlu0 %849, %v778
      %v851 = vpop.permute.xlu0 %850
      %854 = vset.pattern.permute.xlu0 0
      %855 = vperm.xlu0 %854, %v779
      %v856 = vpop.permute.xlu0 %855
      %859 = vset.pattern.permute.xlu0 0
      %860 = vperm.xlu0 %859, %v780
      %v861 = vpop.permute.xlu0 %860
      %864 = vset.pattern.permute.xlu0 0
      %865 = vperm.xlu0 %864, %v781
      %v866 = vpop.permute.xlu0 %865
      %869 = vset.pattern.permute.xlu0 0
      %870 = vperm.xlu0 %869, %v782
      %v871 = vpop.permute.xlu0 %870
      %874 = vset.pattern.permute.xlu0 0
      %875 = vperm.xlu0 %874, %v783
      %v876 = vpop.permute.xlu0 %875
      %879 = vset.pattern.permute.xlu0 0
      %880 = vperm.xlu0 %879, %v784
      %v881 = vpop.permute.xlu0 %880
      %884 = vset.pattern.permute.xlu0 0
      %885 = vperm.xlu0 %884, %v785
      %v886 = vpop.permute.xlu0 %885
      %889 = vset.pattern.permute.xlu0 0
      %890 = vperm.xlu0 %889, %v786
      %v891 = vpop.permute.xlu0 %890
      %894 = vset.pattern.permute.xlu0 0
      %895 = vperm.xlu0 %894, %v787
      %v896 = vpop.permute.xlu0 %895
      %899 = vset.pattern.permute.xlu0 0
      %900 = vperm.xlu0 %899, %v788
      %v901 = vpop.permute.xlu0 %900
      %904 = vset.pattern.permute.xlu0 0
      %905 = vperm.xlu0 %904, %v789
      %v906 = vpop.permute.xlu0 %905
      %909 = vset.pattern.permute.xlu0 0
      %910 = vperm.xlu0 %909, %v790
      %v911 = vpop.permute.xlu0 %910
      %914 = vset.pattern.permute.xlu0 0
      %915 = vperm.xlu0 %914, %v791
      %v916 = vpop.permute.xlu0 %915
      %919 = vset.pattern.permute.xlu0 0
      %920 = vperm.xlu0 %919, %v792
      %v921 = vpop.permute.xlu0 %920
      %924 = vset.pattern.permute.xlu0 0
      %925 = vperm.xlu0 %924, %v793
      %v926 = vpop.permute.xlu0 %925
      %929 = vset.pattern.permute.xlu0 0
      %930 = vperm.xlu0 %929, %v794
      %v931 = vpop.permute.xlu0 %930
      %934 = vset.pattern.permute.xlu0 0
      %935 = vperm.xlu0 %934, %v795
      %v936 = vpop.permute.xlu0 %935
      %939 = vset.pattern.permute.xlu0 0
      %940 = vperm.xlu0 %939, %v796
      %v941 = vpop.permute.xlu0 %940
      %944 = vset.pattern.permute.xlu0 0
      %945 = vperm.xlu0 %944, %v797
      %v946 = vpop.permute.xlu0 %945
      %949 = vset.pattern.permute.xlu0 0
      %950 = vperm.xlu0 %949, %v798
      %v951 = vpop.permute.xlu0 %950
      %954 = vset.pattern.permute.xlu0 0
      %955 = vperm.xlu0 %954, %v799
      %v956 = vpop.permute.xlu0 %955
      %959 = vset.pattern.permute.xlu0 0
      %960 = vperm.xlu0 %959, %v800
      %v961 = vpop.permute.xlu0 %960
      %v964 = vlaneseq
      %v965 = vshrl.u32 %v964, 7
      %v966 = vsub.s32 0, %v965
      %v967 = vrot.slane %v802, %v966
      %v969 = vmul.f32 %v806, %v967
      %v970 = vmul.f32 %v811, %v967
      %v971 = vmul.f32 %v816, %v967
      %v972 = vmul.f32 %v821, %v967
      %v973 = vmul.f32 %v826, %v967
      %v974 = vmul.f32 %v831, %v967
      %v975 = vmul.f32 %v836, %v967
      %v976 = vmul.f32 %v841, %v967
      %v977 = vmul.f32 %v846, %v967
      %v978 = vmul.f32 %v851, %v967
      %v979 = vmul.f32 %v856, %v967
      %v980 = vmul.f32 %v861, %v967
      %v981 = vmul.f32 %v866, %v967
      %v982 = vmul.f32 %v871, %v967
      %v983 = vmul.f32 %v876, %v967
      %v984 = vmul.f32 %v881, %v967
      %v985 = vmul.f32 %v886, %v967
      %v986 = vmul.f32 %v891, %v967
      %v987 = vmul.f32 %v896, %v967
      %v988 = vmul.f32 %v901, %v967
      %v989 = vmul.f32 %v906, %v967
      %v990 = vmul.f32 %v911, %v967
      %v991 = vmul.f32 %v916, %v967
      %v992 = vmul.f32 %v921, %v967
      %v993 = vmul.f32 %v926, %v967
      %v994 = vmul.f32 %v931, %v967
      %v995 = vmul.f32 %v936, %v967
      %v996 = vmul.f32 %v941, %v967
      %v997 = vmul.f32 %v946, %v967
      %v998 = vmul.f32 %v951, %v967
      %v999 = vmul.f32 %v956, %v967
      %v1000 = vmul.f32 %v961, %v967
      %v1001 = vadd.f32 %v737, %v969
      %v1002 = vadd.f32 %v738, %v970
      %v1003 = vadd.f32 %v739, %v971
      %v1004 = vadd.f32 %v740, %v972
      %v1005 = vadd.f32 %v741, %v973
      %v1006 = vadd.f32 %v742, %v974
      %v1007 = vadd.f32 %v743, %v975
      %v1008 = vadd.f32 %v744, %v976
      %v1009 = vadd.f32 %v745, %v977
      %v1010 = vadd.f32 %v746, %v978
      %v1011 = vadd.f32 %v747, %v979
      %v1012 = vadd.f32 %v748, %v980
      %v1013 = vadd.f32 %v749, %v981
      %v1014 = vadd.f32 %v750, %v982
      %v1015 = vadd.f32 %v751, %v983
      %v1016 = vadd.f32 %v752, %v984
      %v1017 = vadd.f32 %v753, %v985
      %v1018 = vadd.f32 %v754, %v986
      %v1019 = vadd.f32 %v755, %v987
      %v1020 = vadd.f32 %v756, %v988
      %v1021 = vadd.f32 %v757, %v989
      %v1022 = vadd.f32 %v758, %v990
      %v1023 = vadd.f32 %v759, %v991
      %v1024 = vadd.f32 %v760, %v992
      %v1025 = vadd.f32 %v761, %v993
      %v1026 = vadd.f32 %v762, %v994
      %v1027 = vadd.f32 %v763, %v995
      %v1028 = vadd.f32 %v764, %v996
      %v1029 = vadd.f32 %v765, %v997
      %v1030 = vadd.f32 %v766, %v998
      %v1031 = vadd.f32 %v767, %v999
      %v1032 = vadd.f32 %v768, %v1000
      %v1033 = vld [vmem:[#allocation2 + $0x2] sm:$0xff]
      %v1034 = vld [vmem:[#allocation2 + $0xa] sm:$0xff]
      %v1035 = vld [vmem:[#allocation2 + $0x1a] sm:$0xff]
      %v1036 = vld [vmem:[#allocation2 + $0x22] sm:$0xff]
      %v1037 = vld [vmem:[#allocation2 + $0x32] sm:$0xff]
      %v1038 = vld [vmem:[#allocation2 + $0x3a] sm:$0xff]
      %v1039 = vld [vmem:[#allocation2 + $0x4a] sm:$0xff]
      %v1040 = vld [vmem:[#allocation2 + $0x52] sm:$0xff]
      %v1041 = vld [vmem:[#allocation2 + $0x62] sm:$0xff]
      %v1042 = vld [vmem:[#allocation2 + $0x6a] sm:$0xff]
      %v1043 = vld [vmem:[#allocation2 + $0x7a] sm:$0xff]
      %v1044 = vld [vmem:[#allocation2 + $0x82] sm:$0xff]
      %v1045 = vld [vmem:[#allocation2 + $0x92] sm:$0xff]
      %v1046 = vld [vmem:[#allocation2 + $0x9a] sm:$0xff]
      %v1047 = vld [vmem:[#allocation2 + $0xaa] sm:$0xff]
      %v1048 = vld [vmem:[#allocation2 + $0xb2] sm:$0xff]
      %v1049 = vld [vmem:[#allocation2 + $0xc2] sm:$0xff]
      %v1050 = vld [vmem:[#allocation2 + $0xca] sm:$0xff]
      %v1051 = vld [vmem:[#allocation2 + $0xda] sm:$0xff]
      %v1052 = vld [vmem:[#allocation2 + $0xe2] sm:$0xff]
      %v1053 = vld [vmem:[#allocation2 + $0xf2] sm:$0xff]
      %v1054 = vld [vmem:[#allocation2 + $0xfa] sm:$0xff]
      %v1055 = vld [vmem:[#allocation2 + $0x10a] sm:$0xff]
      %v1056 = vld [vmem:[#allocation2 + $0x112] sm:$0xff]
      %v1057 = vld [vmem:[#allocation2 + $0x122] sm:$0xff]
      %v1058 = vld [vmem:[#allocation2 + $0x12a] sm:$0xff]
      %v1059 = vld [vmem:[#allocation2 + $0x13a] sm:$0xff]
      %v1060 = vld [vmem:[#allocation2 + $0x142] sm:$0xff]
      %v1061 = vld [vmem:[#allocation2 + $0x152] sm:$0xff]
      %v1062 = vld [vmem:[#allocation2 + $0x15a] sm:$0xff]
      %v1063 = vld [vmem:[#allocation2 + $0x16a] sm:$0xff]
      %v1064 = vld [vmem:[#allocation2 + $0x172] sm:$0xff]
      %s1065 = scalar_lea.vmem %s1, 2
      %v1066 = vld [vmem:[%s1065] sm:$0x1]
      %1068 = vset.pattern.permute.xlu0 0
      %1069 = vperm.xlu0 %1068, %v1033
      %v1070 = vpop.permute.xlu0 %1069
      %1073 = vset.pattern.permute.xlu0 0
      %1074 = vperm.xlu0 %1073, %v1034
      %v1075 = vpop.permute.xlu0 %1074
      %1078 = vset.pattern.permute.xlu0 0
      %1079 = vperm.xlu0 %1078, %v1035
      %v1080 = vpop.permute.xlu0 %1079
      %1083 = vset.pattern.permute.xlu0 0
      %1084 = vperm.xlu0 %1083, %v1036
      %v1085 = vpop.permute.xlu0 %1084
      %1088 = vset.pattern.permute.xlu0 0
      %1089 = vperm.xlu0 %1088, %v1037
      %v1090 = vpop.permute.xlu0 %1089
      %1093 = vset.pattern.permute.xlu0 0
      %1094 = vperm.xlu0 %1093, %v1038
      %v1095 = vpop.permute.xlu0 %1094
      %1098 = vset.pattern.permute.xlu0 0
      %1099 = vperm.xlu0 %1098, %v1039
      %v1100 = vpop.permute.xlu0 %1099
      %1103 = vset.pattern.permute.xlu0 0
      %1104 = vperm.xlu0 %1103, %v1040
      %v1105 = vpop.permute.xlu0 %1104
      %1108 = vset.pattern.permute.xlu0 0
      %1109 = vperm.xlu0 %1108, %v1041
      %v1110 = vpop.permute.xlu0 %1109
      %1113 = vset.pattern.permute.xlu0 0
      %1114 = vperm.xlu0 %1113, %v1042
      %v1115 = vpop.permute.xlu0 %1114
      %1118 = vset.pattern.permute.xlu0 0
      %1119 = vperm.xlu0 %1118, %v1043
      %v1120 = vpop.permute.xlu0 %1119
      %1123 = vset.pattern.permute.xlu0 0
      %1124 = vperm.xlu0 %1123, %v1044
      %v1125 = vpop.permute.xlu0 %1124
      %1128 = vset.pattern.permute.xlu0 0
      %1129 = vperm.xlu0 %1128, %v1045
      %v1130 = vpop.permute.xlu0 %1129
      %1133 = vset.pattern.permute.xlu0 0
      %1134 = vperm.xlu0 %1133, %v1046
      %v1135 = vpop.permute.xlu0 %1134
      %1138 = vset.pattern.permute.xlu0 0
      %1139 = vperm.xlu0 %1138, %v1047
      %v1140 = vpop.permute.xlu0 %1139
      %1143 = vset.pattern.permute.xlu0 0
      %1144 = vperm.xlu0 %1143, %v1048
      %v1145 = vpop.permute.xlu0 %1144
      %1148 = vset.pattern.permute.xlu0 0
      %1149 = vperm.xlu0 %1148, %v1049
      %v1150 = vpop.permute.xlu0 %1149
      %1153 = vset.pattern.permute.xlu0 0
      %1154 = vperm.xlu0 %1153, %v1050
      %v1155 = vpop.permute.xlu0 %1154
      %1158 = vset.pattern.permute.xlu0 0
      %1159 = vperm.xlu0 %1158, %v1051
      %v1160 = vpop.permute.xlu0 %1159
      %1163 = vset.pattern.permute.xlu0 0
      %1164 = vperm.xlu0 %1163, %v1052
      %v1165 = vpop.permute.xlu0 %1164
      %1168 = vset.pattern.permute.xlu0 0
      %1169 = vperm.xlu0 %1168, %v1053
      %v1170 = vpop.permute.xlu0 %1169
      %1173 = vset.pattern.permute.xlu0 0
      %1174 = vperm.xlu0 %1173, %v1054
      %v1175 = vpop.permute.xlu0 %1174
      %1178 = vset.pattern.permute.xlu0 0
      %1179 = vperm.xlu0 %1178, %v1055
      %v1180 = vpop.permute.xlu0 %1179
      %1183 = vset.pattern.permute.xlu0 0
      %1184 = vperm.xlu0 %1183, %v1056
      %v1185 = vpop.permute.xlu0 %1184
      %1188 = vset.pattern.permute.xlu0 0
      %1189 = vperm.xlu0 %1188, %v1057
      %v1190 = vpop.permute.xlu0 %1189
      %1193 = vset.pattern.permute.xlu0 0
      %1194 = vperm.xlu0 %1193, %v1058
      %v1195 = vpop.permute.xlu0 %1194
      %1198 = vset.pattern.permute.xlu0 0
      %1199 = vperm.xlu0 %1198, %v1059
      %v1200 = vpop.permute.xlu0 %1199
      %1203 = vset.pattern.permute.xlu0 0
      %1204 = vperm.xlu0 %1203, %v1060
      %v1205 = vpop.permute.xlu0 %1204
      %1208 = vset.pattern.permute.xlu0 0
      %1209 = vperm.xlu0 %1208, %v1061
      %v1210 = vpop.permute.xlu0 %1209
      %1213 = vset.pattern.permute.xlu0 0
      %1214 = vperm.xlu0 %1213, %v1062
      %v1215 = vpop.permute.xlu0 %1214
      %1218 = vset.pattern.permute.xlu0 0
      %1219 = vperm.xlu0 %1218, %v1063
      %v1220 = vpop.permute.xlu0 %1219
      %1223 = vset.pattern.permute.xlu0 0
      %1224 = vperm.xlu0 %1223, %v1064
      %v1225 = vpop.permute.xlu0 %1224
      %v1228 = vlaneseq
      %v1229 = vshrl.u32 %v1228, 7
      %v1230 = vsub.s32 0, %v1229
      %v1231 = vrot.slane %v1066, %v1230
      %v1233 = vmul.f32 %v1070, %v1231
      %v1234 = vmul.f32 %v1075, %v1231
      %v1235 = vmul.f32 %v1080, %v1231
      %v1236 = vmul.f32 %v1085, %v1231
      %v1237 = vmul.f32 %v1090, %v1231
      %v1238 = vmul.f32 %v1095, %v1231
      %v1239 = vmul.f32 %v1100, %v1231
      %v1240 = vmul.f32 %v1105, %v1231
      %v1241 = vmul.f32 %v1110, %v1231
      %v1242 = vmul.f32 %v1115, %v1231
      %v1243 = vmul.f32 %v1120, %v1231
      %v1244 = vmul.f32 %v1125, %v1231
      %v1245 = vmul.f32 %v1130, %v1231
      %v1246 = vmul.f32 %v1135, %v1231
      %v1247 = vmul.f32 %v1140, %v1231
      %v1248 = vmul.f32 %v1145, %v1231
      %v1249 = vmul.f32 %v1150, %v1231
      %v1250 = vmul.f32 %v1155, %v1231
      %v1251 = vmul.f32 %v1160, %v1231
      %v1252 = vmul.f32 %v1165, %v1231
      %v1253 = vmul.f32 %v1170, %v1231
      %v1254 = vmul.f32 %v1175, %v1231
      %v1255 = vmul.f32 %v1180, %v1231
      %v1256 = vmul.f32 %v1185, %v1231
      %v1257 = vmul.f32 %v1190, %v1231
      %v1258 = vmul.f32 %v1195, %v1231
      %v1259 = vmul.f32 %v1200, %v1231
      %v1260 = vmul.f32 %v1205, %v1231
      %v1261 = vmul.f32 %v1210, %v1231
      %v1262 = vmul.f32 %v1215, %v1231
      %v1263 = vmul.f32 %v1220, %v1231
      %v1264 = vmul.f32 %v1225, %v1231
      %v1265 = vadd.f32 %v1001, %v1233
      %v1266 = vadd.f32 %v1002, %v1234
      %v1267 = vadd.f32 %v1003, %v1235
      %v1268 = vadd.f32 %v1004, %v1236
      %v1269 = vadd.f32 %v1005, %v1237
      %v1270 = vadd.f32 %v1006, %v1238
      %v1271 = vadd.f32 %v1007, %v1239
      %v1272 = vadd.f32 %v1008, %v1240
      %v1273 = vadd.f32 %v1009, %v1241
      %v1274 = vadd.f32 %v1010, %v1242
      %v1275 = vadd.f32 %v1011, %v1243
      %v1276 = vadd.f32 %v1012, %v1244
      %v1277 = vadd.f32 %v1013, %v1245
      %v1278 = vadd.f32 %v1014, %v1246
      %v1279 = vadd.f32 %v1015, %v1247
      %v1280 = vadd.f32 %v1016, %v1248
      %v1281 = vadd.f32 %v1017, %v1249
      %v1282 = vadd.f32 %v1018, %v1250
      %v1283 = vadd.f32 %v1019, %v1251
      %v1284 = vadd.f32 %v1020, %v1252
      %v1285 = vadd.f32 %v1021, %v1253
      %v1286 = vadd.f32 %v1022, %v1254
      %v1287 = vadd.f32 %v1023, %v1255
      %v1288 = vadd.f32 %v1024, %v1256
      %v1289 = vadd.f32 %v1025, %v1257
      %v1290 = vadd.f32 %v1026, %v1258
      %v1291 = vadd.f32 %v1027, %v1259
      %v1292 = vadd.f32 %v1028, %v1260
      %v1293 = vadd.f32 %v1029, %v1261
      %v1294 = vadd.f32 %v1030, %v1262
      %v1295 = vadd.f32 %v1031, %v1263
      %v1296 = vadd.f32 %v1032, %v1264
      %v1297 = vld [vmem:[%s473] sm:$0xff]
      %v1298 = vld [vmem:[%s473 + $0x8] sm:$0xff]
      %v1299 = vld [vmem:[%s473 + $0x18] sm:$0xff]
      %v1300 = vld [vmem:[%s473 + $0x20] sm:$0xff]
      %v1301 = vld [vmem:[%s473 + $0x30] sm:$0xff]
      %v1302 = vld [vmem:[%s473 + $0x38] sm:$0xff]
      %v1303 = vld [vmem:[%s473 + $0x48] sm:$0xff]
      %v1304 = vld [vmem:[%s473 + $0x50] sm:$0xff]
      %v1305 = vld [vmem:[%s473 + $0x60] sm:$0xff]
      %v1306 = vld [vmem:[%s473 + $0x68] sm:$0xff]
      %v1307 = vld [vmem:[%s473 + $0x78] sm:$0xff]
      %v1308 = vld [vmem:[%s473 + $0x80] sm:$0xff]
      %v1309 = vld [vmem:[%s473 + $0x90] sm:$0xff]
      %v1310 = vld [vmem:[%s473 + $0x98] sm:$0xff]
      %v1311 = vld [vmem:[%s473 + $0xa8] sm:$0xff]
      %v1312 = vld [vmem:[%s473 + $0xb0] sm:$0xff]
      %v1313 = vld [vmem:[%s473 + $0xc0] sm:$0xff]
      %v1314 = vld [vmem:[%s473 + $0xc8] sm:$0xff]
      %v1315 = vld [vmem:[%s473 + $0xd8] sm:$0xff]
      %v1316 = vld [vmem:[%s473 + $0xe0] sm:$0xff]
      %v1317 = vld [vmem:[%s473 + $0xf0] sm:$0xff]
      %v1318 = vld [vmem:[%s473 + $0xf8] sm:$0xff]
      %v1319 = vld [vmem:[%s473 + $0x108] sm:$0xff]
      %v1320 = vld [vmem:[%s473 + $0x110] sm:$0xff]
      %v1321 = vld [vmem:[%s473 + $0x120] sm:$0xff]
      %v1322 = vld [vmem:[%s473 + $0x128] sm:$0xff]
      %v1323 = vld [vmem:[%s473 + $0x138] sm:$0xff]
      %v1324 = vld [vmem:[%s473 + $0x140] sm:$0xff]
      %v1325 = vld [vmem:[%s473 + $0x150] sm:$0xff]
      %v1326 = vld [vmem:[%s473 + $0x158] sm:$0xff]
      %v1327 = vld [vmem:[%s473 + $0x168] sm:$0xff]
      %v1328 = vld [vmem:[%s473 + $0x170] sm:$0xff]
      %s1329 = scalar_lea.vmem %s1, 3
      %v1330 = vld [vmem:[%s1329] sm:$0x1]
      %1332 = vset.pattern.permute.xlu0 0
      %1333 = vperm.xlu0 %1332, %v1297
      %v1334 = vpop.permute.xlu0 %1333
      %1337 = vset.pattern.permute.xlu0 0
      %1338 = vperm.xlu0 %1337, %v1298
      %v1339 = vpop.permute.xlu0 %1338
      %1342 = vset.pattern.permute.xlu0 0
      %1343 = vperm.xlu0 %1342, %v1299
      %v1344 = vpop.permute.xlu0 %1343
      %1347 = vset.pattern.permute.xlu0 0
      %1348 = vperm.xlu0 %1347, %v1300
      %v1349 = vpop.permute.xlu0 %1348
      %1352 = vset.pattern.permute.xlu0 0
      %1353 = vperm.xlu0 %1352, %v1301
      %v1354 = vpop.permute.xlu0 %1353
      %1357 = vset.pattern.permute.xlu0 0
      %1358 = vperm.xlu0 %1357, %v1302
      %v1359 = vpop.permute.xlu0 %1358
      %1362 = vset.pattern.permute.xlu0 0
      %1363 = vperm.xlu0 %1362, %v1303
      %v1364 = vpop.permute.xlu0 %1363
      %1367 = vset.pattern.permute.xlu0 0
      %1368 = vperm.xlu0 %1367, %v1304
      %v1369 = vpop.permute.xlu0 %1368
      %1372 = vset.pattern.permute.xlu0 0
      %1373 = vperm.xlu0 %1372, %v1305
      %v1374 = vpop.permute.xlu0 %1373
      %1377 = vset.pattern.permute.xlu0 0
      %1378 = vperm.xlu0 %1377, %v1306
      %v1379 = vpop.permute.xlu0 %1378
      %1382 = vset.pattern.permute.xlu0 0
      %1383 = vperm.xlu0 %1382, %v1307
      %v1384 = vpop.permute.xlu0 %1383
      %1387 = vset.pattern.permute.xlu0 0
      %1388 = vperm.xlu0 %1387, %v1308
      %v1389 = vpop.permute.xlu0 %1388
      %1392 = vset.pattern.permute.xlu0 0
      %1393 = vperm.xlu0 %1392, %v1309
      %v1394 = vpop.permute.xlu0 %1393
      %1397 = vset.pattern.permute.xlu0 0
      %1398 = vperm.xlu0 %1397, %v1310
      %v1399 = vpop.permute.xlu0 %1398
      %1402 = vset.pattern.permute.xlu0 0
      %1403 = vperm.xlu0 %1402, %v1311
      %v1404 = vpop.permute.xlu0 %1403
      %1407 = vset.pattern.permute.xlu0 0
      %1408 = vperm.xlu0 %1407, %v1312
      %v1409 = vpop.permute.xlu0 %1408
      %1412 = vset.pattern.permute.xlu0 0
      %1413 = vperm.xlu0 %1412, %v1313
      %v1414 = vpop.permute.xlu0 %1413
      %1417 = vset.pattern.permute.xlu0 0
      %1418 = vperm.xlu0 %1417, %v1314
      %v1419 = vpop.permute.xlu0 %1418
      %1422 = vset.pattern.permute.xlu0 0
      %1423 = vperm.xlu0 %1422, %v1315
      %v1424 = vpop.permute.xlu0 %1423
      %1427 = vset.pattern.permute.xlu0 0
      %1428 = vperm.xlu0 %1427, %v1316
      %v1429 = vpop.permute.xlu0 %1428
      %1432 = vset.pattern.permute.xlu0 0
      %1433 = vperm.xlu0 %1432, %v1317
      %v1434 = vpop.permute.xlu0 %1433
      %1437 = vset.pattern.permute.xlu0 0
      %1438 = vperm.xlu0 %1437, %v1318
      %v1439 = vpop.permute.xlu0 %1438
      %1442 = vset.pattern.permute.xlu0 0
      %1443 = vperm.xlu0 %1442, %v1319
      %v1444 = vpop.permute.xlu0 %1443
      %1447 = vset.pattern.permute.xlu0 0
      %1448 = vperm.xlu0 %1447, %v1320
      %v1449 = vpop.permute.xlu0 %1448
      %1452 = vset.pattern.permute.xlu0 0
      %1453 = vperm.xlu0 %1452, %v1321
      %v1454 = vpop.permute.xlu0 %1453
      %1457 = vset.pattern.permute.xlu0 0
      %1458 = vperm.xlu0 %1457, %v1322
      %v1459 = vpop.permute.xlu0 %1458
      %1462 = vset.pattern.permute.xlu0 0
      %1463 = vperm.xlu0 %1462, %v1323
      %v1464 = vpop.permute.xlu0 %1463
      %1467 = vset.pattern.permute.xlu0 0
      %1468 = vperm.xlu0 %1467, %v1324
      %v1469 = vpop.permute.xlu0 %1468
      %1472 = vset.pattern.permute.xlu0 0
      %1473 = vperm.xlu0 %1472, %v1325
      %v1474 = vpop.permute.xlu0 %1473
      %1477 = vset.pattern.permute.xlu0 0
      %1478 = vperm.xlu0 %1477, %v1326
      %v1479 = vpop.permute.xlu0 %1478
      %1482 = vset.pattern.permute.xlu0 0
      %1483 = vperm.xlu0 %1482, %v1327
      %v1484 = vpop.permute.xlu0 %1483
      %1487 = vset.pattern.permute.xlu0 0
      %1488 = vperm.xlu0 %1487, %v1328
      %v1489 = vpop.permute.xlu0 %1488
      %v1492 = vlaneseq
      %v1493 = vshrl.u32 %v1492, 7
      %v1494 = vsub.s32 0, %v1493
      %v1495 = vrot.slane %v1330, %v1494
      %v1497 = vmul.f32 %v1334, %v1495
      %v1498 = vmul.f32 %v1339, %v1495
      %v1499 = vmul.f32 %v1344, %v1495
      %v1500 = vmul.f32 %v1349, %v1495
      %v1501 = vmul.f32 %v1354, %v1495
      %v1502 = vmul.f32 %v1359, %v1495
      %v1503 = vmul.f32 %v1364, %v1495
      %v1504 = vmul.f32 %v1369, %v1495
      %v1505 = vmul.f32 %v1374, %v1495
      %v1506 = vmul.f32 %v1379, %v1495
      %v1507 = vmul.f32 %v1384, %v1495
      %v1508 = vmul.f32 %v1389, %v1495
      %v1509 = vmul.f32 %v1394, %v1495
      %v1510 = vmul.f32 %v1399, %v1495
      %v1511 = vmul.f32 %v1404, %v1495
      %v1512 = vmul.f32 %v1409, %v1495
      %v1513 = vmul.f32 %v1414, %v1495
      %v1514 = vmul.f32 %v1419, %v1495
      %v1515 = vmul.f32 %v1424, %v1495
      %v1516 = vmul.f32 %v1429, %v1495
      %v1517 = vmul.f32 %v1434, %v1495
      %v1518 = vmul.f32 %v1439, %v1495
      %v1519 = vmul.f32 %v1444, %v1495
      %v1520 = vmul.f32 %v1449, %v1495
      %v1521 = vmul.f32 %v1454, %v1495
      %v1522 = vmul.f32 %v1459, %v1495
      %v1523 = vmul.f32 %v1464, %v1495
      %v1524 = vmul.f32 %v1469, %v1495
      %v1525 = vmul.f32 %v1474, %v1495
      %v1526 = vmul.f32 %v1479, %v1495
      %v1527 = vmul.f32 %v1484, %v1495
      %v1528 = vmul.f32 %v1489, %v1495
      %v1529 = vadd.f32 %v1265, %v1497
      %v1530 = vadd.f32 %v1266, %v1498
      %v1531 = vadd.f32 %v1267, %v1499
      %v1532 = vadd.f32 %v1268, %v1500
      %v1533 = vadd.f32 %v1269, %v1501
      %v1534 = vadd.f32 %v1270, %v1502
      %v1535 = vadd.f32 %v1271, %v1503
      %v1536 = vadd.f32 %v1272, %v1504
      %v1537 = vadd.f32 %v1273, %v1505
      %v1538 = vadd.f32 %v1274, %v1506
      %v1539 = vadd.f32 %v1275, %v1507
      %v1540 = vadd.f32 %v1276, %v1508
      %v1541 = vadd.f32 %v1277, %v1509
      %v1542 = vadd.f32 %v1278, %v1510
      %v1543 = vadd.f32 %v1279, %v1511
      %v1544 = vadd.f32 %v1280, %v1512
      %v1545 = vadd.f32 %v1281, %v1513
      %v1546 = vadd.f32 %v1282, %v1514
      %v1547 = vadd.f32 %v1283, %v1515
      %v1548 = vadd.f32 %v1284, %v1516
      %v1549 = vadd.f32 %v1285, %v1517
      %v1550 = vadd.f32 %v1286, %v1518
      %v1551 = vadd.f32 %v1287, %v1519
      %v1552 = vadd.f32 %v1288, %v1520
      %v1553 = vadd.f32 %v1289, %v1521
      %v1554 = vadd.f32 %v1290, %v1522
      %v1555 = vadd.f32 %v1291, %v1523
      %v1556 = vadd.f32 %v1292, %v1524
      %v1557 = vadd.f32 %v1293, %v1525
      %v1558 = vadd.f32 %v1294, %v1526
      %v1559 = vadd.f32 %v1295, %v1527
      %v1560 = vadd.f32 %v1296, %v1528
      %v1561 = vld [vmem:[%s473 + $0x1] sm:$0xff]
      %v1562 = vld [vmem:[%s473 + $0x9] sm:$0xff]
      %v1563 = vld [vmem:[%s473 + $0x19] sm:$0xff]
      %v1564 = vld [vmem:[%s473 + $0x21] sm:$0xff]
      %v1565 = vld [vmem:[%s473 + $0x31] sm:$0xff]
      %v1566 = vld [vmem:[%s473 + $0x39] sm:$0xff]
      %v1567 = vld [vmem:[%s473 + $0x49] sm:$0xff]
      %v1568 = vld [vmem:[%s473 + $0x51] sm:$0xff]
      %v1569 = vld [vmem:[%s473 + $0x61] sm:$0xff]
      %v1570 = vld [vmem:[%s473 + $0x69] sm:$0xff]
      %v1571 = vld [vmem:[%s473 + $0x79] sm:$0xff]
      %v1572 = vld [vmem:[%s473 + $0x81] sm:$0xff]
      %v1573 = vld [vmem:[%s473 + $0x91] sm:$0xff]
      %v1574 = vld [vmem:[%s473 + $0x99] sm:$0xff]
      %v1575 = vld [vmem:[%s473 + $0xa9] sm:$0xff]
      %v1576 = vld [vmem:[%s473 + $0xb1] sm:$0xff]
      %v1577 = vld [vmem:[%s473 + $0xc1] sm:$0xff]
      %v1578 = vld [vmem:[%s473 + $0xc9] sm:$0xff]
      %v1579 = vld [vmem:[%s473 + $0xd9] sm:$0xff]
      %v1580 = vld [vmem:[%s473 + $0xe1] sm:$0xff]
      %v1581 = vld [vmem:[%s473 + $0xf1] sm:$0xff]
      %v1582 = vld [vmem:[%s473 + $0xf9] sm:$0xff]
      %v1583 = vld [vmem:[%s473 + $0x109] sm:$0xff]
      %v1584 = vld [vmem:[%s473 + $0x111] sm:$0xff]
      %v1585 = vld [vmem:[%s473 + $0x121] sm:$0xff]
      %v1586 = vld [vmem:[%s473 + $0x129] sm:$0xff]
      %v1587 = vld [vmem:[%s473 + $0x139] sm:$0xff]
      %v1588 = vld [vmem:[%s473 + $0x141] sm:$0xff]
      %v1589 = vld [vmem:[%s473 + $0x151] sm:$0xff]
      %v1590 = vld [vmem:[%s473 + $0x159] sm:$0xff]
      %v1591 = vld [vmem:[%s473 + $0x169] sm:$0xff]
      %v1592 = vld [vmem:[%s473 + $0x171] sm:$0xff]
      %s1593 = scalar_lea.vmem %s1, 4
      %v1594 = vld [vmem:[%s1593] sm:$0x1]
      %1596 = vset.pattern.permute.xlu0 0
      %1597 = vperm.xlu0 %1596, %v1561
      %v1598 = vpop.permute.xlu0 %1597
      %1601 = vset.pattern.permute.xlu0 0
      %1602 = vperm.xlu0 %1601, %v1562
      %v1603 = vpop.permute.xlu0 %1602
      %1606 = vset.pattern.permute.xlu0 0
      %1607 = vperm.xlu0 %1606, %v1563
      %v1608 = vpop.permute.xlu0 %1607
      %1611 = vset.pattern.permute.xlu0 0
      %1612 = vperm.xlu0 %1611, %v1564
      %v1613 = vpop.permute.xlu0 %1612
      %1616 = vset.pattern.permute.xlu0 0
      %1617 = vperm.xlu0 %1616, %v1565
      %v1618 = vpop.permute.xlu0 %1617
      %1621 = vset.pattern.permute.xlu0 0
      %1622 = vperm.xlu0 %1621, %v1566
      %v1623 = vpop.permute.xlu0 %1622
      %1626 = vset.pattern.permute.xlu0 0
      %1627 = vperm.xlu0 %1626, %v1567
      %v1628 = vpop.permute.xlu0 %1627
      %1631 = vset.pattern.permute.xlu0 0
      %1632 = vperm.xlu0 %1631, %v1568
      %v1633 = vpop.permute.xlu0 %1632
      %1636 = vset.pattern.permute.xlu0 0
      %1637 = vperm.xlu0 %1636, %v1569
      %v1638 = vpop.permute.xlu0 %1637
      %1641 = vset.pattern.permute.xlu0 0
      %1642 = vperm.xlu0 %1641, %v1570
      %v1643 = vpop.permute.xlu0 %1642
      %1646 = vset.pattern.permute.xlu0 0
      %1647 = vperm.xlu0 %1646, %v1571
      %v1648 = vpop.permute.xlu0 %1647
      %1651 = vset.pattern.permute.xlu0 0
      %1652 = vperm.xlu0 %1651, %v1572
      %v1653 = vpop.permute.xlu0 %1652
      %1656 = vset.pattern.permute.xlu0 0
      %1657 = vperm.xlu0 %1656, %v1573
      %v1658 = vpop.permute.xlu0 %1657
      %1661 = vset.pattern.permute.xlu0 0
      %1662 = vperm.xlu0 %1661, %v1574
      %v1663 = vpop.permute.xlu0 %1662
      %1666 = vset.pattern.permute.xlu0 0
      %1667 = vperm.xlu0 %1666, %v1575
      %v1668 = vpop.permute.xlu0 %1667
      %1671 = vset.pattern.permute.xlu0 0
      %1672 = vperm.xlu0 %1671, %v1576
      %v1673 = vpop.permute.xlu0 %1672
      %1676 = vset.pattern.permute.xlu0 0
      %1677 = vperm.xlu0 %1676, %v1577
      %v1678 = vpop.permute.xlu0 %1677
      %1681 = vset.pattern.permute.xlu0 0
      %1682 = vperm.xlu0 %1681, %v1578
      %v1683 = vpop.permute.xlu0 %1682
      %1686 = vset.pattern.permute.xlu0 0
      %1687 = vperm.xlu0 %1686, %v1579
      %v1688 = vpop.permute.xlu0 %1687
      %1691 = vset.pattern.permute.xlu0 0
      %1692 = vperm.xlu0 %1691, %v1580
      %v1693 = vpop.permute.xlu0 %1692
      %1696 = vset.pattern.permute.xlu0 0
      %1697 = vperm.xlu0 %1696, %v1581
      %v1698 = vpop.permute.xlu0 %1697
      %1701 = vset.pattern.permute.xlu0 0
      %1702 = vperm.xlu0 %1701, %v1582
      %v1703 = vpop.permute.xlu0 %1702
      %1706 = vset.pattern.permute.xlu0 0
      %1707 = vperm.xlu0 %1706, %v1583
      %v1708 = vpop.permute.xlu0 %1707
      %1711 = vset.pattern.permute.xlu0 0
      %1712 = vperm.xlu0 %1711, %v1584
      %v1713 = vpop.permute.xlu0 %1712
      %1716 = vset.pattern.permute.xlu0 0
      %1717 = vperm.xlu0 %1716, %v1585
      %v1718 = vpop.permute.xlu0 %1717
      %1721 = vset.pattern.permute.xlu0 0
      %1722 = vperm.xlu0 %1721, %v1586
      %v1723 = vpop.permute.xlu0 %1722
      %1726 = vset.pattern.permute.xlu0 0
      %1727 = vperm.xlu0 %1726, %v1587
      %v1728 = vpop.permute.xlu0 %1727
      %1731 = vset.pattern.permute.xlu0 0
      %1732 = vperm.xlu0 %1731, %v1588
      %v1733 = vpop.permute.xlu0 %1732
      %1736 = vset.pattern.permute.xlu0 0
      %1737 = vperm.xlu0 %1736, %v1589
      %v1738 = vpop.permute.xlu0 %1737
      %1741 = vset.pattern.permute.xlu0 0
      %1742 = vperm.xlu0 %1741, %v1590
      %v1743 = vpop.permute.xlu0 %1742
      %1746 = vset.pattern.permute.xlu0 0
      %1747 = vperm.xlu0 %1746, %v1591
      %v1748 = vpop.permute.xlu0 %1747
      %1751 = vset.pattern.permute.xlu0 0
      %1752 = vperm.xlu0 %1751, %v1592
      %v1753 = vpop.permute.xlu0 %1752
      %v1756 = vlaneseq
      %v1757 = vshrl.u32 %v1756, 7
      %v1758 = vsub.s32 0, %v1757
      %v1759 = vrot.slane %v1594, %v1758
      %v1761 = vmul.f32 %v1598, %v1759
      %v1762 = vmul.f32 %v1603, %v1759
      %v1763 = vmul.f32 %v1608, %v1759
      %v1764 = vmul.f32 %v1613, %v1759
      %v1765 = vmul.f32 %v1618, %v1759
      %v1766 = vmul.f32 %v1623, %v1759
      %v1767 = vmul.f32 %v1628, %v1759
      %v1768 = vmul.f32 %v1633, %v1759
      %v1769 = vmul.f32 %v1638, %v1759
      %v1770 = vmul.f32 %v1643, %v1759
      %v1771 = vmul.f32 %v1648, %v1759
      %v1772 = vmul.f32 %v1653, %v1759
      %v1773 = vmul.f32 %v1658, %v1759
      %v1774 = vmul.f32 %v1663, %v1759
      %v1775 = vmul.f32 %v1668, %v1759
      %v1776 = vmul.f32 %v1673, %v1759
      %v1777 = vmul.f32 %v1678, %v1759
      %v1778 = vmul.f32 %v1683, %v1759
      %v1779 = vmul.f32 %v1688, %v1759
      %v1780 = vmul.f32 %v1693, %v1759
      %v1781 = vmul.f32 %v1698, %v1759
      %v1782 = vmul.f32 %v1703, %v1759
      %v1783 = vmul.f32 %v1708, %v1759
      %v1784 = vmul.f32 %v1713, %v1759
      %v1785 = vmul.f32 %v1718, %v1759
      %v1786 = vmul.f32 %v1723, %v1759
      %v1787 = vmul.f32 %v1728, %v1759
      %v1788 = vmul.f32 %v1733, %v1759
      %v1789 = vmul.f32 %v1738, %v1759
      %v1790 = vmul.f32 %v1743, %v1759
      %v1791 = vmul.f32 %v1748, %v1759
      %v1792 = vmul.f32 %v1753, %v1759
      %v1793 = vadd.f32 %v1529, %v1761
      %v1794 = vadd.f32 %v1530, %v1762
      %v1795 = vadd.f32 %v1531, %v1763
      %v1796 = vadd.f32 %v1532, %v1764
      %v1797 = vadd.f32 %v1533, %v1765
      %v1798 = vadd.f32 %v1534, %v1766
      %v1799 = vadd.f32 %v1535, %v1767
      %v1800 = vadd.f32 %v1536, %v1768
      %v1801 = vadd.f32 %v1537, %v1769
      %v1802 = vadd.f32 %v1538, %v1770
      %v1803 = vadd.f32 %v1539, %v1771
      %v1804 = vadd.f32 %v1540, %v1772
      %v1805 = vadd.f32 %v1541, %v1773
      %v1806 = vadd.f32 %v1542, %v1774
      %v1807 = vadd.f32 %v1543, %v1775
      %v1808 = vadd.f32 %v1544, %v1776
      %v1809 = vadd.f32 %v1545, %v1777
      %v1810 = vadd.f32 %v1546, %v1778
      %v1811 = vadd.f32 %v1547, %v1779
      %v1812 = vadd.f32 %v1548, %v1780
      %v1813 = vadd.f32 %v1549, %v1781
      %v1814 = vadd.f32 %v1550, %v1782
      %v1815 = vadd.f32 %v1551, %v1783
      %v1816 = vadd.f32 %v1552, %v1784
      %v1817 = vadd.f32 %v1553, %v1785
      %v1818 = vadd.f32 %v1554, %v1786
      %v1819 = vadd.f32 %v1555, %v1787
      %v1820 = vadd.f32 %v1556, %v1788
      %v1821 = vadd.f32 %v1557, %v1789
      %v1822 = vadd.f32 %v1558, %v1790
      %v1823 = vadd.f32 %v1559, %v1791
      %v1824 = vadd.f32 %v1560, %v1792
      %v1825 = vld [vmem:[%s473 + $0x2] sm:$0xff]
      %v1826 = vld [vmem:[%s473 + $0xa] sm:$0xff]
      %v1827 = vld [vmem:[%s473 + $0x1a] sm:$0xff]
      %v1828 = vld [vmem:[%s473 + $0x22] sm:$0xff]
      %v1829 = vld [vmem:[%s473 + $0x32] sm:$0xff]
      %v1830 = vld [vmem:[%s473 + $0x3a] sm:$0xff]
      %v1831 = vld [vmem:[%s473 + $0x4a] sm:$0xff]
      %v1832 = vld [vmem:[%s473 + $0x52] sm:$0xff]
      %v1833 = vld [vmem:[%s473 + $0x62] sm:$0xff]
      %v1834 = vld [vmem:[%s473 + $0x6a] sm:$0xff]
      %v1835 = vld [vmem:[%s473 + $0x7a] sm:$0xff]
      %v1836 = vld [vmem:[%s473 + $0x82] sm:$0xff]
      %v1837 = vld [vmem:[%s473 + $0x92] sm:$0xff]
      %v1838 = vld [vmem:[%s473 + $0x9a] sm:$0xff]
      %v1839 = vld [vmem:[%s473 + $0xaa] sm:$0xff]
      %v1840 = vld [vmem:[%s473 + $0xb2] sm:$0xff]
      %v1841 = vld [vmem:[%s473 + $0xc2] sm:$0xff]
      %v1842 = vld [vmem:[%s473 + $0xca] sm:$0xff]
      %v1843 = vld [vmem:[%s473 + $0xda] sm:$0xff]
      %v1844 = vld [vmem:[%s473 + $0xe2] sm:$0xff]
      %v1845 = vld [vmem:[%s473 + $0xf2] sm:$0xff]
      %v1846 = vld [vmem:[%s473 + $0xfa] sm:$0xff]
      %v1847 = vld [vmem:[%s473 + $0x10a] sm:$0xff]
      %v1848 = vld [vmem:[%s473 + $0x112] sm:$0xff]
      %v1849 = vld [vmem:[%s473 + $0x122] sm:$0xff]
      %v1850 = vld [vmem:[%s473 + $0x12a] sm:$0xff]
      %v1851 = vld [vmem:[%s473 + $0x13a] sm:$0xff]
      %v1852 = vld [vmem:[%s473 + $0x142] sm:$0xff]
      %v1853 = vld [vmem:[%s473 + $0x152] sm:$0xff]
      %v1854 = vld [vmem:[%s473 + $0x15a] sm:$0xff]
      %v1855 = vld [vmem:[%s473 + $0x16a] sm:$0xff]
      %v1856 = vld [vmem:[%s473 + $0x172] sm:$0xff]
      %s1857 = scalar_lea.vmem %s1, 5
      %v1858 = vld [vmem:[%s1857] sm:$0x1]
      %1860 = vset.pattern.permute.xlu0 0
      %1861 = vperm.xlu0 %1860, %v1825
      %v1862 = vpop.permute.xlu0 %1861
      %1865 = vset.pattern.permute.xlu0 0
      %1866 = vperm.xlu0 %1865, %v1826
      %v1867 = vpop.permute.xlu0 %1866
      %1870 = vset.pattern.permute.xlu0 0
      %1871 = vperm.xlu0 %1870, %v1827
      %v1872 = vpop.permute.xlu0 %1871
      %1875 = vset.pattern.permute.xlu0 0
      %1876 = vperm.xlu0 %1875, %v1828
      %v1877 = vpop.permute.xlu0 %1876
      %1880 = vset.pattern.permute.xlu0 0
      %1881 = vperm.xlu0 %1880, %v1829
      %v1882 = vpop.permute.xlu0 %1881
      %1885 = vset.pattern.permute.xlu0 0
      %1886 = vperm.xlu0 %1885, %v1830
      %v1887 = vpop.permute.xlu0 %1886
      %1890 = vset.pattern.permute.xlu0 0
      %1891 = vperm.xlu0 %1890, %v1831
      %v1892 = vpop.permute.xlu0 %1891
      %1895 = vset.pattern.permute.xlu0 0
      %1896 = vperm.xlu0 %1895, %v1832
      %v1897 = vpop.permute.xlu0 %1896
      %1900 = vset.pattern.permute.xlu0 0
      %1901 = vperm.xlu0 %1900, %v1833
      %v1902 = vpop.permute.xlu0 %1901
      %1905 = vset.pattern.permute.xlu0 0
      %1906 = vperm.xlu0 %1905, %v1834
      %v1907 = vpop.permute.xlu0 %1906
      %1910 = vset.pattern.permute.xlu0 0
      %1911 = vperm.xlu0 %1910, %v1835
      %v1912 = vpop.permute.xlu0 %1911
      %1915 = vset.pattern.permute.xlu0 0
      %1916 = vperm.xlu0 %1915, %v1836
      %v1917 = vpop.permute.xlu0 %1916
      %1920 = vset.pattern.permute.xlu0 0
      %1921 = vperm.xlu0 %1920, %v1837
      %v1922 = vpop.permute.xlu0 %1921
      %1925 = vset.pattern.permute.xlu0 0
      %1926 = vperm.xlu0 %1925, %v1838
      %v1927 = vpop.permute.xlu0 %1926
      %1930 = vset.pattern.permute.xlu0 0
      %1931 = vperm.xlu0 %1930, %v1839
      %v1932 = vpop.permute.xlu0 %1931
      %1935 = vset.pattern.permute.xlu0 0
      %1936 = vperm.xlu0 %1935, %v1840
      %v1937 = vpop.permute.xlu0 %1936
      %1940 = vset.pattern.permute.xlu0 0
      %1941 = vperm.xlu0 %1940, %v1841
      %v1942 = vpop.permute.xlu0 %1941
      %1945 = vset.pattern.permute.xlu0 0
      %1946 = vperm.xlu0 %1945, %v1842
      %v1947 = vpop.permute.xlu0 %1946
      %1950 = vset.pattern.permute.xlu0 0
      %1951 = vperm.xlu0 %1950, %v1843
      %v1952 = vpop.permute.xlu0 %1951
      %1955 = vset.pattern.permute.xlu0 0
      %1956 = vperm.xlu0 %1955, %v1844
      %v1957 = vpop.permute.xlu0 %1956
      %1960 = vset.pattern.permute.xlu0 0
      %1961 = vperm.xlu0 %1960, %v1845
      %v1962 = vpop.permute.xlu0 %1961
      %1965 = vset.pattern.permute.xlu0 0
      %1966 = vperm.xlu0 %1965, %v1846
      %v1967 = vpop.permute.xlu0 %1966
      %1970 = vset.pattern.permute.xlu0 0
      %1971 = vperm.xlu0 %1970, %v1847
      %v1972 = vpop.permute.xlu0 %1971
      %1975 = vset.pattern.permute.xlu0 0
      %1976 = vperm.xlu0 %1975, %v1848
      %v1977 = vpop.permute.xlu0 %1976
      %1980 = vset.pattern.permute.xlu0 0
      %1981 = vperm.xlu0 %1980, %v1849
      %v1982 = vpop.permute.xlu0 %1981
      %1985 = vset.pattern.permute.xlu0 0
      %1986 = vperm.xlu0 %1985, %v1850
      %v1987 = vpop.permute.xlu0 %1986
      %1990 = vset.pattern.permute.xlu0 0
      %1991 = vperm.xlu0 %1990, %v1851
      %v1992 = vpop.permute.xlu0 %1991
      %1995 = vset.pattern.permute.xlu0 0
      %1996 = vperm.xlu0 %1995, %v1852
      %v1997 = vpop.permute.xlu0 %1996
      %2000 = vset.pattern.permute.xlu0 0
      %2001 = vperm.xlu0 %2000, %v1853
      %v2002 = vpop.permute.xlu0 %2001
      %2005 = vset.pattern.permute.xlu0 0
      %2006 = vperm.xlu0 %2005, %v1854
      %v2007 = vpop.permute.xlu0 %2006
      %2010 = vset.pattern.permute.xlu0 0
      %2011 = vperm.xlu0 %2010, %v1855
      %v2012 = vpop.permute.xlu0 %2011
      %2015 = vset.pattern.permute.xlu0 0
      %2016 = vperm.xlu0 %2015, %v1856
      %v2017 = vpop.permute.xlu0 %2016
      %v2020 = vlaneseq
      %v2021 = vshrl.u32 %v2020, 7
      %v2022 = vsub.s32 0, %v2021
      %v2023 = vrot.slane %v1858, %v2022
      %v2025 = vmul.f32 %v1862, %v2023
      %v2026 = vmul.f32 %v1867, %v2023
      %v2027 = vmul.f32 %v1872, %v2023
      %v2028 = vmul.f32 %v1877, %v2023
      %v2029 = vmul.f32 %v1882, %v2023
      %v2030 = vmul.f32 %v1887, %v2023
      %v2031 = vmul.f32 %v1892, %v2023
      %v2032 = vmul.f32 %v1897, %v2023
      %v2033 = vmul.f32 %v1902, %v2023
      %v2034 = vmul.f32 %v1907, %v2023
      %v2035 = vmul.f32 %v1912, %v2023
      %v2036 = vmul.f32 %v1917, %v2023
      %v2037 = vmul.f32 %v1922, %v2023
      %v2038 = vmul.f32 %v1927, %v2023
      %v2039 = vmul.f32 %v1932, %v2023
      %v2040 = vmul.f32 %v1937, %v2023
      %v2041 = vmul.f32 %v1942, %v2023
      %v2042 = vmul.f32 %v1947, %v2023
      %v2043 = vmul.f32 %v1952, %v2023
      %v2044 = vmul.f32 %v1957, %v2023
      %v2045 = vmul.f32 %v1962, %v2023
      %v2046 = vmul.f32 %v1967, %v2023
      %v2047 = vmul.f32 %v1972, %v2023
      %v2048 = vmul.f32 %v1977, %v2023
      %v2049 = vmul.f32 %v1982, %v2023
      %v2050 = vmul.f32 %v1987, %v2023
      %v2051 = vmul.f32 %v1992, %v2023
      %v2052 = vmul.f32 %v1997, %v2023
      %v2053 = vmul.f32 %v2002, %v2023
      %v2054 = vmul.f32 %v2007, %v2023
      %v2055 = vmul.f32 %v2012, %v2023
      %v2056 = vmul.f32 %v2017, %v2023
      %v2057 = vadd.f32 %v1793, %v2025
      %v2058 = vadd.f32 %v1794, %v2026
      %v2059 = vadd.f32 %v1795, %v2027
      %v2060 = vadd.f32 %v1796, %v2028
      %v2061 = vadd.f32 %v1797, %v2029
      %v2062 = vadd.f32 %v1798, %v2030
      %v2063 = vadd.f32 %v1799, %v2031
      %v2064 = vadd.f32 %v1800, %v2032
      %v2065 = vadd.f32 %v1801, %v2033
      %v2066 = vadd.f32 %v1802, %v2034
      %v2067 = vadd.f32 %v1803, %v2035
      %v2068 = vadd.f32 %v1804, %v2036
      %v2069 = vadd.f32 %v1805, %v2037
      %v2070 = vadd.f32 %v1806, %v2038
      %v2071 = vadd.f32 %v1807, %v2039
      %v2072 = vadd.f32 %v1808, %v2040
      %v2073 = vadd.f32 %v1809, %v2041
      %v2074 = vadd.f32 %v1810, %v2042
      %v2075 = vadd.f32 %v1811, %v2043
      %v2076 = vadd.f32 %v1812, %v2044
      %v2077 = vadd.f32 %v1813, %v2045
      %v2078 = vadd.f32 %v1814, %v2046
      %v2079 = vadd.f32 %v1815, %v2047
      %v2080 = vadd.f32 %v1816, %v2048
      %v2081 = vadd.f32 %v1817, %v2049
      %v2082 = vadd.f32 %v1818, %v2050
      %v2083 = vadd.f32 %v1819, %v2051
      %v2084 = vadd.f32 %v1820, %v2052
      %v2085 = vadd.f32 %v1821, %v2053
      %v2086 = vadd.f32 %v1822, %v2054
      %v2087 = vadd.f32 %v1823, %v2055
      %v2088 = vadd.f32 %v1824, %v2056
      %s2089 = scalar_lea.vmem [#allocation2], 48
      %v2090 = vld [vmem:[%s2089] sm:$0xff]
      %v2091 = vld [vmem:[%s2089 + $0x8] sm:$0xff]
      %v2092 = vld [vmem:[%s2089 + $0x18] sm:$0xff]
      %v2093 = vld [vmem:[%s2089 + $0x20] sm:$0xff]
      %v2094 = vld [vmem:[%s2089 + $0x30] sm:$0xff]
      %v2095 = vld [vmem:[%s2089 + $0x38] sm:$0xff]
      %v2096 = vld [vmem:[%s2089 + $0x48] sm:$0xff]
      %v2097 = vld [vmem:[%s2089 + $0x50] sm:$0xff]
      %v2098 = vld [vmem:[%s2089 + $0x60] sm:$0xff]
      %v2099 = vld [vmem:[%s2089 + $0x68] sm:$0xff]
      %v2100 = vld [vmem:[%s2089 + $0x78] sm:$0xff]
      %v2101 = vld [vmem:[%s2089 + $0x80] sm:$0xff]
      %v2102 = vld [vmem:[%s2089 + $0x90] sm:$0xff]
      %v2103 = vld [vmem:[%s2089 + $0x98] sm:$0xff]
      %v2104 = vld [vmem:[%s2089 + $0xa8] sm:$0xff]
      %v2105 = vld [vmem:[%s2089 + $0xb0] sm:$0xff]
      %v2106 = vld [vmem:[%s2089 + $0xc0] sm:$0xff]
      %v2107 = vld [vmem:[%s2089 + $0xc8] sm:$0xff]
      %v2108 = vld [vmem:[%s2089 + $0xd8] sm:$0xff]
      %v2109 = vld [vmem:[%s2089 + $0xe0] sm:$0xff]
      %v2110 = vld [vmem:[%s2089 + $0xf0] sm:$0xff]
      %v2111 = vld [vmem:[%s2089 + $0xf8] sm:$0xff]
      %v2112 = vld [vmem:[%s2089 + $0x108] sm:$0xff]
      %v2113 = vld [vmem:[%s2089 + $0x110] sm:$0xff]
      %v2114 = vld [vmem:[%s2089 + $0x120] sm:$0xff]
      %v2115 = vld [vmem:[%s2089 + $0x128] sm:$0xff]
      %v2116 = vld [vmem:[%s2089 + $0x138] sm:$0xff]
      %v2117 = vld [vmem:[%s2089 + $0x140] sm:$0xff]
      %v2118 = vld [vmem:[%s2089 + $0x150] sm:$0xff]
      %v2119 = vld [vmem:[%s2089 + $0x158] sm:$0xff]
      %v2120 = vld [vmem:[%s2089 + $0x168] sm:$0xff]
      %v2121 = vld [vmem:[%s2089 + $0x170] sm:$0xff]
      %s2122 = scalar_lea.vmem %s1, 6
      %v2123 = vld [vmem:[%s2122] sm:$0x1]
      %2125 = vset.pattern.permute.xlu0 0
      %2126 = vperm.xlu0 %2125, %v2090
      %v2127 = vpop.permute.xlu0 %2126
      %2130 = vset.pattern.permute.xlu0 0
      %2131 = vperm.xlu0 %2130, %v2091
      %v2132 = vpop.permute.xlu0 %2131
      %2135 = vset.pattern.permute.xlu0 0
      %2136 = vperm.xlu0 %2135, %v2092
      %v2137 = vpop.permute.xlu0 %2136
      %2140 = vset.pattern.permute.xlu0 0
      %2141 = vperm.xlu0 %2140, %v2093
      %v2142 = vpop.permute.xlu0 %2141
      %2145 = vset.pattern.permute.xlu0 0
      %2146 = vperm.xlu0 %2145, %v2094
      %v2147 = vpop.permute.xlu0 %2146
      %2150 = vset.pattern.permute.xlu0 0
      %2151 = vperm.xlu0 %2150, %v2095
      %v2152 = vpop.permute.xlu0 %2151
      %2155 = vset.pattern.permute.xlu0 0
      %2156 = vperm.xlu0 %2155, %v2096
      %v2157 = vpop.permute.xlu0 %2156
      %2160 = vset.pattern.permute.xlu0 0
      %2161 = vperm.xlu0 %2160, %v2097
      %v2162 = vpop.permute.xlu0 %2161
      %2165 = vset.pattern.permute.xlu0 0
      %2166 = vperm.xlu0 %2165, %v2098
      %v2167 = vpop.permute.xlu0 %2166
      %2170 = vset.pattern.permute.xlu0 0
      %2171 = vperm.xlu0 %2170, %v2099
      %v2172 = vpop.permute.xlu0 %2171
      %2175 = vset.pattern.permute.xlu0 0
      %2176 = vperm.xlu0 %2175, %v2100
      %v2177 = vpop.permute.xlu0 %2176
      %2180 = vset.pattern.permute.xlu0 0
      %2181 = vperm.xlu0 %2180, %v2101
      %v2182 = vpop.permute.xlu0 %2181
      %2185 = vset.pattern.permute.xlu0 0
      %2186 = vperm.xlu0 %2185, %v2102
      %v2187 = vpop.permute.xlu0 %2186
      %2190 = vset.pattern.permute.xlu0 0
      %2191 = vperm.xlu0 %2190, %v2103
      %v2192 = vpop.permute.xlu0 %2191
      %2195 = vset.pattern.permute.xlu0 0
      %2196 = vperm.xlu0 %2195, %v2104
      %v2197 = vpop.permute.xlu0 %2196
      %2200 = vset.pattern.permute.xlu0 0
      %2201 = vperm.xlu0 %2200, %v2105
      %v2202 = vpop.permute.xlu0 %2201
      %2205 = vset.pattern.permute.xlu0 0
      %2206 = vperm.xlu0 %2205, %v2106
      %v2207 = vpop.permute.xlu0 %2206
      %2210 = vset.pattern.permute.xlu0 0
      %2211 = vperm.xlu0 %2210, %v2107
      %v2212 = vpop.permute.xlu0 %2211
      %2215 = vset.pattern.permute.xlu0 0
      %2216 = vperm.xlu0 %2215, %v2108
      %v2217 = vpop.permute.xlu0 %2216
      %2220 = vset.pattern.permute.xlu0 0
      %2221 = vperm.xlu0 %2220, %v2109
      %v2222 = vpop.permute.xlu0 %2221
      %2225 = vset.pattern.permute.xlu0 0
      %2226 = vperm.xlu0 %2225, %v2110
      %v2227 = vpop.permute.xlu0 %2226
      %2230 = vset.pattern.permute.xlu0 0
      %2231 = vperm.xlu0 %2230, %v2111
      %v2232 = vpop.permute.xlu0 %2231
      %2235 = vset.pattern.permute.xlu0 0
      %2236 = vperm.xlu0 %2235, %v2112
      %v2237 = vpop.permute.xlu0 %2236
      %2240 = vset.pattern.permute.xlu0 0
      %2241 = vperm.xlu0 %2240, %v2113
      %v2242 = vpop.permute.xlu0 %2241
      %2245 = vset.pattern.permute.xlu0 0
      %2246 = vperm.xlu0 %2245, %v2114
      %v2247 = vpop.permute.xlu0 %2246
      %2250 = vset.pattern.permute.xlu0 0
      %2251 = vperm.xlu0 %2250, %v2115
      %v2252 = vpop.permute.xlu0 %2251
      %2255 = vset.pattern.permute.xlu0 0
      %2256 = vperm.xlu0 %2255, %v2116
      %v2257 = vpop.permute.xlu0 %2256
      %2260 = vset.pattern.permute.xlu0 0
      %2261 = vperm.xlu0 %2260, %v2117
      %v2262 = vpop.permute.xlu0 %2261
      %2265 = vset.pattern.permute.xlu0 0
      %2266 = vperm.xlu0 %2265, %v2118
      %v2267 = vpop.permute.xlu0 %2266
      %2270 = vset.pattern.permute.xlu0 0
      %2271 = vperm.xlu0 %2270, %v2119
      %v2272 = vpop.permute.xlu0 %2271
      %2275 = vset.pattern.permute.xlu0 0
      %2276 = vperm.xlu0 %2275, %v2120
      %v2277 = vpop.permute.xlu0 %2276
      %2280 = vset.pattern.permute.xlu0 0
      %2281 = vperm.xlu0 %2280, %v2121
      %v2282 = vpop.permute.xlu0 %2281
      %v2285 = vlaneseq
      %v2286 = vshrl.u32 %v2285, 7
      %v2287 = vsub.s32 0, %v2286
      %v2288 = vrot.slane %v2123, %v2287
      %v2290 = vmul.f32 %v2127, %v2288
      %v2291 = vmul.f32 %v2132, %v2288
      %v2292 = vmul.f32 %v2137, %v2288
      %v2293 = vmul.f32 %v2142, %v2288
      %v2294 = vmul.f32 %v2147, %v2288
      %v2295 = vmul.f32 %v2152, %v2288
      %v2296 = vmul.f32 %v2157, %v2288
      %v2297 = vmul.f32 %v2162, %v2288
      %v2298 = vmul.f32 %v2167, %v2288
      %v2299 = vmul.f32 %v2172, %v2288
      %v2300 = vmul.f32 %v2177, %v2288
      %v2301 = vmul.f32 %v2182, %v2288
      %v2302 = vmul.f32 %v2187, %v2288
      %v2303 = vmul.f32 %v2192, %v2288
      %v2304 = vmul.f32 %v2197, %v2288
      %v2305 = vmul.f32 %v2202, %v2288
      %v2306 = vmul.f32 %v2207, %v2288
      %v2307 = vmul.f32 %v2212, %v2288
      %v2308 = vmul.f32 %v2217, %v2288
      %v2309 = vmul.f32 %v2222, %v2288
      %v2310 = vmul.f32 %v2227, %v2288
      %v2311 = vmul.f32 %v2232, %v2288
      %v2312 = vmul.f32 %v2237, %v2288
      %v2313 = vmul.f32 %v2242, %v2288
      %v2314 = vmul.f32 %v2247, %v2288
      %v2315 = vmul.f32 %v2252, %v2288
      %v2316 = vmul.f32 %v2257, %v2288
      %v2317 = vmul.f32 %v2262, %v2288
      %v2318 = vmul.f32 %v2267, %v2288
      %v2319 = vmul.f32 %v2272, %v2288
      %v2320 = vmul.f32 %v2277, %v2288
      %v2321 = vmul.f32 %v2282, %v2288
      %v2322 = vadd.f32 %v2057, %v2290
      %v2323 = vadd.f32 %v2058, %v2291
      %v2324 = vadd.f32 %v2059, %v2292
      %v2325 = vadd.f32 %v2060, %v2293
      %v2326 = vadd.f32 %v2061, %v2294
      %v2327 = vadd.f32 %v2062, %v2295
      %v2328 = vadd.f32 %v2063, %v2296
      %v2329 = vadd.f32 %v2064, %v2297
      %v2330 = vadd.f32 %v2065, %v2298
      %v2331 = vadd.f32 %v2066, %v2299
      %v2332 = vadd.f32 %v2067, %v2300
      %v2333 = vadd.f32 %v2068, %v2301
      %v2334 = vadd.f32 %v2069, %v2302
      %v2335 = vadd.f32 %v2070, %v2303
      %v2336 = vadd.f32 %v2071, %v2304
      %v2337 = vadd.f32 %v2072, %v2305
      %v2338 = vadd.f32 %v2073, %v2306
      %v2339 = vadd.f32 %v2074, %v2307
      %v2340 = vadd.f32 %v2075, %v2308
      %v2341 = vadd.f32 %v2076, %v2309
      %v2342 = vadd.f32 %v2077, %v2310
      %v2343 = vadd.f32 %v2078, %v2311
      %v2344 = vadd.f32 %v2079, %v2312
      %v2345 = vadd.f32 %v2080, %v2313
      %v2346 = vadd.f32 %v2081, %v2314
      %v2347 = vadd.f32 %v2082, %v2315
      %v2348 = vadd.f32 %v2083, %v2316
      %v2349 = vadd.f32 %v2084, %v2317
      %v2350 = vadd.f32 %v2085, %v2318
      %v2351 = vadd.f32 %v2086, %v2319
      %v2352 = vadd.f32 %v2087, %v2320
      %v2353 = vadd.f32 %v2088, %v2321
      %v2354 = vld [vmem:[%s2089 + $0x1] sm:$0xff]
      %v2355 = vld [vmem:[%s2089 + $0x9] sm:$0xff]
      %v2356 = vld [vmem:[%s2089 + $0x19] sm:$0xff]
      %v2357 = vld [vmem:[%s2089 + $0x21] sm:$0xff]
      %v2358 = vld [vmem:[%s2089 + $0x31] sm:$0xff]
      %v2359 = vld [vmem:[%s2089 + $0x39] sm:$0xff]
      %v2360 = vld [vmem:[%s2089 + $0x49] sm:$0xff]
      %v2361 = vld [vmem:[%s2089 + $0x51] sm:$0xff]
      %v2362 = vld [vmem:[%s2089 + $0x61] sm:$0xff]
      %v2363 = vld [vmem:[%s2089 + $0x69] sm:$0xff]
      %v2364 = vld [vmem:[%s2089 + $0x79] sm:$0xff]
      %v2365 = vld [vmem:[%s2089 + $0x81] sm:$0xff]
      %v2366 = vld [vmem:[%s2089 + $0x91] sm:$0xff]
      %v2367 = vld [vmem:[%s2089 + $0x99] sm:$0xff]
      %v2368 = vld [vmem:[%s2089 + $0xa9] sm:$0xff]
      %v2369 = vld [vmem:[%s2089 + $0xb1] sm:$0xff]
      %v2370 = vld [vmem:[%s2089 + $0xc1] sm:$0xff]
      %v2371 = vld [vmem:[%s2089 + $0xc9] sm:$0xff]
      %v2372 = vld [vmem:[%s2089 + $0xd9] sm:$0xff]
      %v2373 = vld [vmem:[%s2089 + $0xe1] sm:$0xff]
      %v2374 = vld [vmem:[%s2089 + $0xf1] sm:$0xff]
      %v2375 = vld [vmem:[%s2089 + $0xf9] sm:$0xff]
      %v2376 = vld [vmem:[%s2089 + $0x109] sm:$0xff]
      %v2377 = vld [vmem:[%s2089 + $0x111] sm:$0xff]
      %v2378 = vld [vmem:[%s2089 + $0x121] sm:$0xff]
      %v2379 = vld [vmem:[%s2089 + $0x129] sm:$0xff]
      %v2380 = vld [vmem:[%s2089 + $0x139] sm:$0xff]
      %v2381 = vld [vmem:[%s2089 + $0x141] sm:$0xff]
      %v2382 = vld [vmem:[%s2089 + $0x151] sm:$0xff]
      %v2383 = vld [vmem:[%s2089 + $0x159] sm:$0xff]
      %v2384 = vld [vmem:[%s2089 + $0x169] sm:$0xff]
      %v2385 = vld [vmem:[%s2089 + $0x171] sm:$0xff]
      %s2386 = scalar_lea.vmem %s1, 7
      %v2387 = vld [vmem:[%s2386] sm:$0x1]
      %2389 = vset.pattern.permute.xlu0 0
      %2390 = vperm.xlu0 %2389, %v2354
      %v2391 = vpop.permute.xlu0 %2390
      %2394 = vset.pattern.permute.xlu0 0
      %2395 = vperm.xlu0 %2394, %v2355
      %v2396 = vpop.permute.xlu0 %2395
      %2399 = vset.pattern.permute.xlu0 0
      %2400 = vperm.xlu0 %2399, %v2356
      %v2401 = vpop.permute.xlu0 %2400
      %2404 = vset.pattern.permute.xlu0 0
      %2405 = vperm.xlu0 %2404, %v2357
      %v2406 = vpop.permute.xlu0 %2405
      %2409 = vset.pattern.permute.xlu0 0
      %2410 = vperm.xlu0 %2409, %v2358
      %v2411 = vpop.permute.xlu0 %2410
      %2414 = vset.pattern.permute.xlu0 0
      %2415 = vperm.xlu0 %2414, %v2359
      %v2416 = vpop.permute.xlu0 %2415
      %2419 = vset.pattern.permute.xlu0 0
      %2420 = vperm.xlu0 %2419, %v2360
      %v2421 = vpop.permute.xlu0 %2420
      %2424 = vset.pattern.permute.xlu0 0
      %2425 = vperm.xlu0 %2424, %v2361
      %v2426 = vpop.permute.xlu0 %2425
      %2429 = vset.pattern.permute.xlu0 0
      %2430 = vperm.xlu0 %2429, %v2362
      %v2431 = vpop.permute.xlu0 %2430
      %2434 = vset.pattern.permute.xlu0 0
      %2435 = vperm.xlu0 %2434, %v2363
      %v2436 = vpop.permute.xlu0 %2435
      %2439 = vset.pattern.permute.xlu0 0
      %2440 = vperm.xlu0 %2439, %v2364
      %v2441 = vpop.permute.xlu0 %2440
      %2444 = vset.pattern.permute.xlu0 0
      %2445 = vperm.xlu0 %2444, %v2365
      %v2446 = vpop.permute.xlu0 %2445
      %2449 = vset.pattern.permute.xlu0 0
      %2450 = vperm.xlu0 %2449, %v2366
      %v2451 = vpop.permute.xlu0 %2450
      %2454 = vset.pattern.permute.xlu0 0
      %2455 = vperm.xlu0 %2454, %v2367
      %v2456 = vpop.permute.xlu0 %2455
      %2459 = vset.pattern.permute.xlu0 0
      %2460 = vperm.xlu0 %2459, %v2368
      %v2461 = vpop.permute.xlu0 %2460
      %2464 = vset.pattern.permute.xlu0 0
      %2465 = vperm.xlu0 %2464, %v2369
      %v2466 = vpop.permute.xlu0 %2465
      %2469 = vset.pattern.permute.xlu0 0
      %2470 = vperm.xlu0 %2469, %v2370
      %v2471 = vpop.permute.xlu0 %2470
      %2474 = vset.pattern.permute.xlu0 0
      %2475 = vperm.xlu0 %2474, %v2371
      %v2476 = vpop.permute.xlu0 %2475
      %2479 = vset.pattern.permute.xlu0 0
      %2480 = vperm.xlu0 %2479, %v2372
      %v2481 = vpop.permute.xlu0 %2480
      %2484 = vset.pattern.permute.xlu0 0
      %2485 = vperm.xlu0 %2484, %v2373
      %v2486 = vpop.permute.xlu0 %2485
      %2489 = vset.pattern.permute.xlu0 0
      %2490 = vperm.xlu0 %2489, %v2374
      %v2491 = vpop.permute.xlu0 %2490
      %2494 = vset.pattern.permute.xlu0 0
      %2495 = vperm.xlu0 %2494, %v2375
      %v2496 = vpop.permute.xlu0 %2495
      %2499 = vset.pattern.permute.xlu0 0
      %2500 = vperm.xlu0 %2499, %v2376
      %v2501 = vpop.permute.xlu0 %2500
      %2504 = vset.pattern.permute.xlu0 0
      %2505 = vperm.xlu0 %2504, %v2377
      %v2506 = vpop.permute.xlu0 %2505
      %2509 = vset.pattern.permute.xlu0 0
      %2510 = vperm.xlu0 %2509, %v2378
      %v2511 = vpop.permute.xlu0 %2510
      %2514 = vset.pattern.permute.xlu0 0
      %2515 = vperm.xlu0 %2514, %v2379
      %v2516 = vpop.permute.xlu0 %2515
      %2519 = vset.pattern.permute.xlu0 0
      %2520 = vperm.xlu0 %2519, %v2380
      %v2521 = vpop.permute.xlu0 %2520
      %2524 = vset.pattern.permute.xlu0 0
      %2525 = vperm.xlu0 %2524, %v2381
      %v2526 = vpop.permute.xlu0 %2525
      %2529 = vset.pattern.permute.xlu0 0
      %2530 = vperm.xlu0 %2529, %v2382
      %v2531 = vpop.permute.xlu0 %2530
      %2534 = vset.pattern.permute.xlu0 0
      %2535 = vperm.xlu0 %2534, %v2383
      %v2536 = vpop.permute.xlu0 %2535
      %2539 = vset.pattern.permute.xlu0 0
      %2540 = vperm.xlu0 %2539, %v2384
      %v2541 = vpop.permute.xlu0 %2540
      %2544 = vset.pattern.permute.xlu0 0
      %2545 = vperm.xlu0 %2544, %v2385
      %v2546 = vpop.permute.xlu0 %2545
      %v2549 = vlaneseq
      %v2550 = vshrl.u32 %v2549, 7
      %v2551 = vsub.s32 0, %v2550
      %v2552 = vrot.slane %v2387, %v2551
      %v2554 = vmul.f32 %v2391, %v2552
      %v2555 = vmul.f32 %v2396, %v2552
      %v2556 = vmul.f32 %v2401, %v2552
      %v2557 = vmul.f32 %v2406, %v2552
      %v2558 = vmul.f32 %v2411, %v2552
      %v2559 = vmul.f32 %v2416, %v2552
      %v2560 = vmul.f32 %v2421, %v2552
      %v2561 = vmul.f32 %v2426, %v2552
      %v2562 = vmul.f32 %v2431, %v2552
      %v2563 = vmul.f32 %v2436, %v2552
      %v2564 = vmul.f32 %v2441, %v2552
      %v2565 = vmul.f32 %v2446, %v2552
      %v2566 = vmul.f32 %v2451, %v2552
      %v2567 = vmul.f32 %v2456, %v2552
      %v2568 = vmul.f32 %v2461, %v2552
      %v2569 = vmul.f32 %v2466, %v2552
      %v2570 = vmul.f32 %v2471, %v2552
      %v2571 = vmul.f32 %v2476, %v2552
      %v2572 = vmul.f32 %v2481, %v2552
      %v2573 = vmul.f32 %v2486, %v2552
      %v2574 = vmul.f32 %v2491, %v2552
      %v2575 = vmul.f32 %v2496, %v2552
      %v2576 = vmul.f32 %v2501, %v2552
      %v2577 = vmul.f32 %v2506, %v2552
      %v2578 = vmul.f32 %v2511, %v2552
      %v2579 = vmul.f32 %v2516, %v2552
      %v2580 = vmul.f32 %v2521, %v2552
      %v2581 = vmul.f32 %v2526, %v2552
      %v2582 = vmul.f32 %v2531, %v2552
      %v2583 = vmul.f32 %v2536, %v2552
      %v2584 = vmul.f32 %v2541, %v2552
      %v2585 = vmul.f32 %v2546, %v2552
      %v2586 = vadd.f32 %v2322, %v2554
      %v2587 = vadd.f32 %v2323, %v2555
      %v2588 = vadd.f32 %v2324, %v2556
      %v2589 = vadd.f32 %v2325, %v2557
      %v2590 = vadd.f32 %v2326, %v2558
      %v2591 = vadd.f32 %v2327, %v2559
      %v2592 = vadd.f32 %v2328, %v2560
      %v2593 = vadd.f32 %v2329, %v2561
      %v2594 = vadd.f32 %v2330, %v2562
      %v2595 = vadd.f32 %v2331, %v2563
      %v2596 = vadd.f32 %v2332, %v2564
      %v2597 = vadd.f32 %v2333, %v2565
      %v2598 = vadd.f32 %v2334, %v2566
      %v2599 = vadd.f32 %v2335, %v2567
      %v2600 = vadd.f32 %v2336, %v2568
      %v2601 = vadd.f32 %v2337, %v2569
      %v2602 = vadd.f32 %v2338, %v2570
      %v2603 = vadd.f32 %v2339, %v2571
      %v2604 = vadd.f32 %v2340, %v2572
      %v2605 = vadd.f32 %v2341, %v2573
      %v2606 = vadd.f32 %v2342, %v2574
      %v2607 = vadd.f32 %v2343, %v2575
      %v2608 = vadd.f32 %v2344, %v2576
      %v2609 = vadd.f32 %v2345, %v2577
      %v2610 = vadd.f32 %v2346, %v2578
      %v2611 = vadd.f32 %v2347, %v2579
      %v2612 = vadd.f32 %v2348, %v2580
      %v2613 = vadd.f32 %v2349, %v2581
      %v2614 = vadd.f32 %v2350, %v2582
      %v2615 = vadd.f32 %v2351, %v2583
      %v2616 = vadd.f32 %v2352, %v2584
      %v2617 = vadd.f32 %v2353, %v2585
      %v2618 = vld [vmem:[%s2089 + $0x2] sm:$0xff]
      %v2619 = vld [vmem:[%s2089 + $0xa] sm:$0xff]
      %v2620 = vld [vmem:[%s2089 + $0x1a] sm:$0xff]
      %v2621 = vld [vmem:[%s2089 + $0x22] sm:$0xff]
      %v2622 = vld [vmem:[%s2089 + $0x32] sm:$0xff]
      %v2623 = vld [vmem:[%s2089 + $0x3a] sm:$0xff]
      %v2624 = vld [vmem:[%s2089 + $0x4a] sm:$0xff]
      %v2625 = vld [vmem:[%s2089 + $0x52] sm:$0xff]
      %v2626 = vld [vmem:[%s2089 + $0x62] sm:$0xff]
      %v2627 = vld [vmem:[%s2089 + $0x6a] sm:$0xff]
      %v2628 = vld [vmem:[%s2089 + $0x7a] sm:$0xff]
      %v2629 = vld [vmem:[%s2089 + $0x82] sm:$0xff]
      %v2630 = vld [vmem:[%s2089 + $0x92] sm:$0xff]
      %v2631 = vld [vmem:[%s2089 + $0x9a] sm:$0xff]
      %v2632 = vld [vmem:[%s2089 + $0xaa] sm:$0xff]
      %v2633 = vld [vmem:[%s2089 + $0xb2] sm:$0xff]
      %v2634 = vld [vmem:[%s2089 + $0xc2] sm:$0xff]
      %v2635 = vld [vmem:[%s2089 + $0xca] sm:$0xff]
      %v2636 = vld [vmem:[%s2089 + $0xda] sm:$0xff]
      %v2637 = vld [vmem:[%s2089 + $0xe2] sm:$0xff]
      %v2638 = vld [vmem:[%s2089 + $0xf2] sm:$0xff]
      %v2639 = vld [vmem:[%s2089 + $0xfa] sm:$0xff]
      %v2640 = vld [vmem:[%s2089 + $0x10a] sm:$0xff]
      %v2641 = vld [vmem:[%s2089 + $0x112] sm:$0xff]
      %v2642 = vld [vmem:[%s2089 + $0x122] sm:$0xff]
      %v2643 = vld [vmem:[%s2089 + $0x12a] sm:$0xff]
      %v2644 = vld [vmem:[%s2089 + $0x13a] sm:$0xff]
      %v2645 = vld [vmem:[%s2089 + $0x142] sm:$0xff]
      %v2646 = vld [vmem:[%s2089 + $0x152] sm:$0xff]
      %v2647 = vld [vmem:[%s2089 + $0x15a] sm:$0xff]
      %v2648 = vld [vmem:[%s2089 + $0x16a] sm:$0xff]
      %v2649 = vld [vmem:[%s2089 + $0x172] sm:$0xff]
      %s2650 = scalar_lea.vmem %s1, 8
      %v2651 = vld [vmem:[%s2650] sm:$0x1]
      %2653 = vset.pattern.permute.xlu0 0
      %2654 = vperm.xlu0 %2653, %v2618
      %v2655 = vpop.permute.xlu0 %2654
      %2658 = vset.pattern.permute.xlu0 0
      %2659 = vperm.xlu0 %2658, %v2619
      %v2660 = vpop.permute.xlu0 %2659
      %2663 = vset.pattern.permute.xlu0 0
      %2664 = vperm.xlu0 %2663, %v2620
      %v2665 = vpop.permute.xlu0 %2664
      %2668 = vset.pattern.permute.xlu0 0
      %2669 = vperm.xlu0 %2668, %v2621
      %v2670 = vpop.permute.xlu0 %2669
      %2673 = vset.pattern.permute.xlu0 0
      %2674 = vperm.xlu0 %2673, %v2622
      %v2675 = vpop.permute.xlu0 %2674
      %2678 = vset.pattern.permute.xlu0 0
      %2679 = vperm.xlu0 %2678, %v2623
      %v2680 = vpop.permute.xlu0 %2679
      %2683 = vset.pattern.permute.xlu0 0
      %2684 = vperm.xlu0 %2683, %v2624
      %v2685 = vpop.permute.xlu0 %2684
      %2688 = vset.pattern.permute.xlu0 0
      %2689 = vperm.xlu0 %2688, %v2625
      %v2690 = vpop.permute.xlu0 %2689
      %2693 = vset.pattern.permute.xlu0 0
      %2694 = vperm.xlu0 %2693, %v2626
      %v2695 = vpop.permute.xlu0 %2694
      %2698 = vset.pattern.permute.xlu0 0
      %2699 = vperm.xlu0 %2698, %v2627
      %v2700 = vpop.permute.xlu0 %2699
      %2703 = vset.pattern.permute.xlu0 0
      %2704 = vperm.xlu0 %2703, %v2628
      %v2705 = vpop.permute.xlu0 %2704
      %2708 = vset.pattern.permute.xlu0 0
      %2709 = vperm.xlu0 %2708, %v2629
      %v2710 = vpop.permute.xlu0 %2709
      %2713 = vset.pattern.permute.xlu0 0
      %2714 = vperm.xlu0 %2713, %v2630
      %v2715 = vpop.permute.xlu0 %2714
      %2718 = vset.pattern.permute.xlu0 0
      %2719 = vperm.xlu0 %2718, %v2631
      %v2720 = vpop.permute.xlu0 %2719
      %2723 = vset.pattern.permute.xlu0 0
      %2724 = vperm.xlu0 %2723, %v2632
      %v2725 = vpop.permute.xlu0 %2724
      %2728 = vset.pattern.permute.xlu0 0
      %2729 = vperm.xlu0 %2728, %v2633
      %v2730 = vpop.permute.xlu0 %2729
      %2733 = vset.pattern.permute.xlu0 0
      %2734 = vperm.xlu0 %2733, %v2634
      %v2735 = vpop.permute.xlu0 %2734
      %2738 = vset.pattern.permute.xlu0 0
      %2739 = vperm.xlu0 %2738, %v2635
      %v2740 = vpop.permute.xlu0 %2739
      %2743 = vset.pattern.permute.xlu0 0
      %2744 = vperm.xlu0 %2743, %v2636
      %v2745 = vpop.permute.xlu0 %2744
      %2748 = vset.pattern.permute.xlu0 0
      %2749 = vperm.xlu0 %2748, %v2637
      %v2750 = vpop.permute.xlu0 %2749
      %2753 = vset.pattern.permute.xlu0 0
      %2754 = vperm.xlu0 %2753, %v2638
      %v2755 = vpop.permute.xlu0 %2754
      %2758 = vset.pattern.permute.xlu0 0
      %2759 = vperm.xlu0 %2758, %v2639
      %v2760 = vpop.permute.xlu0 %2759
      %2763 = vset.pattern.permute.xlu0 0
      %2764 = vperm.xlu0 %2763, %v2640
      %v2765 = vpop.permute.xlu0 %2764
      %2768 = vset.pattern.permute.xlu0 0
      %2769 = vperm.xlu0 %2768, %v2641
      %v2770 = vpop.permute.xlu0 %2769
      %2773 = vset.pattern.permute.xlu0 0
      %2774 = vperm.xlu0 %2773, %v2642
      %v2775 = vpop.permute.xlu0 %2774
      %2778 = vset.pattern.permute.xlu0 0
      %2779 = vperm.xlu0 %2778, %v2643
      %v2780 = vpop.permute.xlu0 %2779
      %2783 = vset.pattern.permute.xlu0 0
      %2784 = vperm.xlu0 %2783, %v2644
      %v2785 = vpop.permute.xlu0 %2784
      %2788 = vset.pattern.permute.xlu0 0
      %2789 = vperm.xlu0 %2788, %v2645
      %v2790 = vpop.permute.xlu0 %2789
      %2793 = vset.pattern.permute.xlu0 0
      %2794 = vperm.xlu0 %2793, %v2646
      %v2795 = vpop.permute.xlu0 %2794
      %2798 = vset.pattern.permute.xlu0 0
      %2799 = vperm.xlu0 %2798, %v2647
      %v2800 = vpop.permute.xlu0 %2799
      %2803 = vset.pattern.permute.xlu0 0
      %2804 = vperm.xlu0 %2803, %v2648
      %v2805 = vpop.permute.xlu0 %2804
      %2808 = vset.pattern.permute.xlu0 0
      %2809 = vperm.xlu0 %2808, %v2649
      %v2810 = vpop.permute.xlu0 %2809
      %v2813 = vlaneseq
      %v2814 = vshrl.u32 %v2813, 7
      %v2815 = vsub.s32 0, %v2814
      %v2816 = vrot.slane %v2651, %v2815
      %v2818 = vmul.f32 %v2655, %v2816
      %v2819 = vmul.f32 %v2660, %v2816
      %v2820 = vmul.f32 %v2665, %v2816
      %v2821 = vmul.f32 %v2670, %v2816
      %v2822 = vmul.f32 %v2675, %v2816
      %v2823 = vmul.f32 %v2680, %v2816
      %v2824 = vmul.f32 %v2685, %v2816
      %v2825 = vmul.f32 %v2690, %v2816
      %v2826 = vmul.f32 %v2695, %v2816
      %v2827 = vmul.f32 %v2700, %v2816
      %v2828 = vmul.f32 %v2705, %v2816
      %v2829 = vmul.f32 %v2710, %v2816
      %v2830 = vmul.f32 %v2715, %v2816
      %v2831 = vmul.f32 %v2720, %v2816
      %v2832 = vmul.f32 %v2725, %v2816
      %v2833 = vmul.f32 %v2730, %v2816
      %v2834 = vmul.f32 %v2735, %v2816
      %v2835 = vmul.f32 %v2740, %v2816
      %v2836 = vmul.f32 %v2745, %v2816
      %v2837 = vmul.f32 %v2750, %v2816
      %v2838 = vmul.f32 %v2755, %v2816
      %v2839 = vmul.f32 %v2760, %v2816
      %v2840 = vmul.f32 %v2765, %v2816
      %v2841 = vmul.f32 %v2770, %v2816
      %v2842 = vmul.f32 %v2775, %v2816
      %v2843 = vmul.f32 %v2780, %v2816
      %v2844 = vmul.f32 %v2785, %v2816
      %v2845 = vmul.f32 %v2790, %v2816
      %v2846 = vmul.f32 %v2795, %v2816
      %v2847 = vmul.f32 %v2800, %v2816
      %v2848 = vmul.f32 %v2805, %v2816
      %v2849 = vmul.f32 %v2810, %v2816
      %v2850 = vadd.f32 %v2586, %v2818
      %v2851 = vadd.f32 %v2587, %v2819
      %v2852 = vadd.f32 %v2588, %v2820
      %v2853 = vadd.f32 %v2589, %v2821
      %v2854 = vadd.f32 %v2590, %v2822
      %v2855 = vadd.f32 %v2591, %v2823
      %v2856 = vadd.f32 %v2592, %v2824
      %v2857 = vadd.f32 %v2593, %v2825
      %v2858 = vadd.f32 %v2594, %v2826
      %v2859 = vadd.f32 %v2595, %v2827
      %v2860 = vadd.f32 %v2596, %v2828
      %v2861 = vadd.f32 %v2597, %v2829
      %v2862 = vadd.f32 %v2598, %v2830
      %v2863 = vadd.f32 %v2599, %v2831
      %v2864 = vadd.f32 %v2600, %v2832
      %v2865 = vadd.f32 %v2601, %v2833
      %v2866 = vadd.f32 %v2602, %v2834
      %v2867 = vadd.f32 %v2603, %v2835
      %v2868 = vadd.f32 %v2604, %v2836
      %v2869 = vadd.f32 %v2605, %v2837
      %v2870 = vadd.f32 %v2606, %v2838
      %v2871 = vadd.f32 %v2607, %v2839
      %v2872 = vadd.f32 %v2608, %v2840
      %v2873 = vadd.f32 %v2609, %v2841
      %v2874 = vadd.f32 %v2610, %v2842
      %v2875 = vadd.f32 %v2611, %v2843
      %v2876 = vadd.f32 %v2612, %v2844
      %v2877 = vadd.f32 %v2613, %v2845
      %v2878 = vadd.f32 %v2614, %v2846
      %v2879 = vadd.f32 %v2615, %v2847
      %v2880 = vadd.f32 %v2616, %v2848
      %v2881 = vadd.f32 %v2617, %v2849
      %v2882 = vld [vmem:[%s2] sm:$0x1]
      %v2884 = vlaneseq
      %v2885 = vshrl.u32 %v2884, 7
      %v2886 = vsub.s32 0, %v2885
      %v2887 = vrot.slane %v2882, %v2886
      %v2889 = vadd.f32 %v2850, %v2887
      %v2890 = vadd.f32 %v2851, %v2887
      %v2891 = vadd.f32 %v2852, %v2887
      %v2892 = vadd.f32 %v2853, %v2887
      %v2893 = vadd.f32 %v2854, %v2887
      %v2894 = vadd.f32 %v2855, %v2887
      %v2895 = vadd.f32 %v2856, %v2887
      %v2896 = vadd.f32 %v2857, %v2887
      %v2897 = vadd.f32 %v2858, %v2887
      %v2898 = vadd.f32 %v2859, %v2887
      %v2899 = vadd.f32 %v2860, %v2887
      %v2900 = vadd.f32 %v2861, %v2887
      %v2901 = vadd.f32 %v2862, %v2887
      %v2902 = vadd.f32 %v2863, %v2887
      %v2903 = vadd.f32 %v2864, %v2887
      %v2904 = vadd.f32 %v2865, %v2887
      %v2905 = vadd.f32 %v2866, %v2887
      %v2906 = vadd.f32 %v2867, %v2887
      %v2907 = vadd.f32 %v2868, %v2887
      %v2908 = vadd.f32 %v2869, %v2887
      %v2909 = vadd.f32 %v2870, %v2887
      %v2910 = vadd.f32 %v2871, %v2887
      %v2911 = vadd.f32 %v2872, %v2887
      %v2912 = vadd.f32 %v2873, %v2887
      %v2913 = vadd.f32 %v2874, %v2887
      %v2914 = vadd.f32 %v2875, %v2887
      %v2915 = vadd.f32 %v2876, %v2887
      %v2916 = vadd.f32 %v2877, %v2887
      %v2917 = vadd.f32 %v2878, %v2887
      %v2918 = vadd.f32 %v2879, %v2887
      %v2919 = vadd.f32 %v2880, %v2887
      %v2920 = vadd.f32 %v2881, %v2887
      %v2921 = vmax.f32 %v2889, 0.0
      %v2922 = vmax.f32 %v2890, 0.0
      %v2923 = vmax.f32 %v2891, 0.0
      %v2924 = vmax.f32 %v2892, 0.0
      %v2925 = vmax.f32 %v2893, 0.0
      %v2926 = vmax.f32 %v2894, 0.0
      %v2927 = vmax.f32 %v2895, 0.0
      %v2928 = vmax.f32 %v2896, 0.0
      %v2929 = vmax.f32 %v2897, 0.0
      %v2930 = vmax.f32 %v2898, 0.0
      %v2931 = vmax.f32 %v2899, 0.0
      %v2932 = vmax.f32 %v2900, 0.0
      %v2933 = vmax.f32 %v2901, 0.0
      %v2934 = vmax.f32 %v2902, 0.0
      %v2935 = vmax.f32 %v2903, 0.0
      %v2936 = vmax.f32 %v2904, 0.0
      %v2937 = vmax.f32 %v2905, 0.0
      %v2938 = vmax.f32 %v2906, 0.0
      %v2939 = vmax.f32 %v2907, 0.0
      %v2940 = vmax.f32 %v2908, 0.0
      %v2941 = vmax.f32 %v2909, 0.0
      %v2942 = vmax.f32 %v2910, 0.0
      %v2943 = vmax.f32 %v2911, 0.0
      %v2944 = vmax.f32 %v2912, 0.0
      %v2945 = vmax.f32 %v2913, 0.0
      %v2946 = vmax.f32 %v2914, 0.0
      %v2947 = vmax.f32 %v2915, 0.0
      %v2948 = vmax.f32 %v2916, 0.0
      %v2949 = vmax.f32 %v2917, 0.0
      %v2950 = vmax.f32 %v2918, 0.0
      %v2951 = vmax.f32 %v2919, 0.0
      %v2952 = vmax.f32 %v2920, 0.0
      %vm2953 = vcmask 130048
      %2954 = vst.msk [vmem:[#allocation4] sm:$0xff] %vm2953, 0.0
      %vm2955 = vcmask 123904
      %2956 = vst.msk [vmem:[#allocation4 + $0x8] sm:$0x3] %vm2955, 0.0
      %2957 = vst.msk [vmem:[#allocation4 + $0x10] sm:$0xff] %vm2953, 0.0
      %2958 = vst.msk [vmem:[#allocation4 + $0x18] sm:$0x3] %vm2955, 0.0
      %2959 = vst.msk [vmem:[#allocation4 + $0x20] sm:$0xff] %vm2953, 0.0
      %2960 = vst.msk [vmem:[#allocation4 + $0x28] sm:$0x3] %vm2955, 0.0
      %2961 = vst.msk [vmem:[#allocation4 + $0x30] sm:$0xff] %vm2953, 0.0
      %2962 = vst.msk [vmem:[#allocation4 + $0x38] sm:$0x3] %vm2955, 0.0
      %2963 = vst.msk [vmem:[#allocation4 + $0x40] sm:$0xff] %vm2953, 0.0
      %2964 = vst.msk [vmem:[#allocation4 + $0x48] sm:$0x3] %vm2955, 0.0
      %2965 = vst.msk [vmem:[#allocation4 + $0x50] sm:$0xff] %vm2953, 0.0
      %2966 = vst.msk [vmem:[#allocation4 + $0x58] sm:$0x3] %vm2955, 0.0
      %2967 = vst.msk [vmem:[#allocation4 + $0x60] sm:$0xff] %vm2953, 0.0
      %2968 = vst.msk [vmem:[#allocation4 + $0x68] sm:$0x3] %vm2955, 0.0
      %2969 = vst.msk [vmem:[#allocation4 + $0x70] sm:$0xff] %vm2953, 0.0
      %2970 = vst.msk [vmem:[#allocation4 + $0x78] sm:$0x3] %vm2955, 0.0
      %2971 = vst.msk [vmem:[#allocation4 + $0x80] sm:$0xff] %vm2953, 0.0
      %2972 = vst.msk [vmem:[#allocation4 + $0x88] sm:$0x3] %vm2955, 0.0
      %2973 = vst.msk [vmem:[#allocation4 + $0x90] sm:$0xff] %vm2953, 0.0
      %2974 = vst.msk [vmem:[#allocation4 + $0x98] sm:$0x3] %vm2955, 0.0
      %v2975 = vmax.f32 %v2921, %v2923
      %v2976 = vmax.f32 %v2922, %v2924
      %2977 = vst.msk [vmem:[#allocation3] sm:$0xff] %vm2953, %v2975
      %2978 = vst.msk [vmem:[#allocation3 + $0x8] sm:$0xff] %vm2953, %v2976
      %v2979 = vmax.f32 %v2925, %v2927
      %v2980 = vmax.f32 %v2926, %v2928
      %s2981 = scalar_lea.vmem [#allocation3], 16
      %2982 = vst.msk [vmem:[%s2981] sm:$0xff] %vm2953, %v2979
      %2983 = vst.msk [vmem:[%s2981 + $0x8] sm:$0xff] %vm2953, %v2980
      %v2984 = vmax.f32 %v2929, %v2931
      %v2985 = vmax.f32 %v2930, %v2932
      %s2986 = scalar_lea.vmem [#allocation3], 32
      %2987 = vst.msk [vmem:[%s2986] sm:$0xff] %vm2953, %v2984
      %2988 = vst.msk [vmem:[%s2986 + $0x8] sm:$0xff] %vm2953, %v2985
      %v2989 = vmax.f32 %v2933, %v2935
      %v2990 = vmax.f32 %v2934, %v2936
      %s2991 = scalar_lea.vmem [#allocation3], 48
      %2992 = vst.msk [vmem:[%s2991] sm:$0xff] %vm2953, %v2989
      %2993 = vst.msk [vmem:[%s2991 + $0x8] sm:$0xff] %vm2953, %v2990
      %v2994 = vmax.f32 %v2937, %v2939
      %v2995 = vmax.f32 %v2938, %v2940
      %s2996 = scalar_lea.vmem [#allocation3], 64
      %2997 = vst.msk [vmem:[%s2996] sm:$0xff] %vm2953, %v2994
      %2998 = vst.msk [vmem:[%s2996 + $0x8] sm:$0xff] %vm2953, %v2995
      %v2999 = vmax.f32 %v2941, %v2943
      %v3000 = vmax.f32 %v2942, %v2944
      %s3001 = scalar_lea.vmem [#allocation3], 80
      %3002 = vst.msk [vmem:[%s3001] sm:$0xff] %vm2953, %v2999
      %3003 = vst.msk [vmem:[%s3001 + $0x8] sm:$0xff] %vm2953, %v3000
      %v3004 = vmax.f32 %v2945, %v2947
      %v3005 = vmax.f32 %v2946, %v2948
      %s3006 = scalar_lea.vmem [#allocation3], 96
      %3007 = vst.msk [vmem:[%s3006] sm:$0xff] %vm2953, %v3004
      %3008 = vst.msk [vmem:[%s3006 + $0x8] sm:$0xff] %vm2953, %v3005
      %v3009 = vmax.f32 %v2949, %v2951
      %v3010 = vmax.f32 %v2950, %v2952
      %s3011 = scalar_lea.vmem [#allocation3], 112
      %3012 = vst.msk [vmem:[%s3011] sm:$0xff] %vm2953, %v3009
      %3013 = vst.msk [vmem:[%s3011 + $0x8] sm:$0xff] %vm2953, %v3010
      %v3014 = vld [vmem:[#allocation3] sm:$0x1]
      %v3015 = vld [vmem:[#allocation3 + $0x10] sm:$0x1]
      %v3016 = vld [vmem:[#allocation3 + $0x20] sm:$0x1]
      %v3017 = vld [vmem:[#allocation3 + $0x30] sm:$0x1]
      %v3018 = vld [vmem:[#allocation3 + $0x40] sm:$0x1]
      %v3019 = vld [vmem:[#allocation3 + $0x50] sm:$0x1]
      %v3020 = vld [vmem:[#allocation3 + $0x60] sm:$0x1]
      %v3021 = vld [vmem:[#allocation3 + $0x70] sm:$0x1]
      %v3022 = vld [vmem:[#allocation3 + $0x1] sm:$0x1]
      %v3023 = vld [vmem:[#allocation3 + $0x11] sm:$0x1]
      %v3024 = vld [vmem:[#allocation3 + $0x21] sm:$0x1]
      %v3025 = vld [vmem:[#allocation3 + $0x31] sm:$0x1]
      %v3026 = vld [vmem:[#allocation3 + $0x41] sm:$0x1]
      %v3027 = vld [vmem:[#allocation3 + $0x51] sm:$0x1]
      %v3028 = vld [vmem:[#allocation3 + $0x61] sm:$0x1]
      %v3029 = vld [vmem:[#allocation3 + $0x71] sm:$0x1]
      %v3030 = vmax.f32 %v3014, %v3022
      %v3031 = vmax.f32 %v3015, %v3023
      %v3032 = vmax.f32 %v3016, %v3024
      %v3033 = vmax.f32 %v3017, %v3025
      %v3034 = vmax.f32 %v3018, %v3026
      %v3035 = vmax.f32 %v3019, %v3027
      %v3036 = vmax.f32 %v3020, %v3028
      %v3037 = vmax.f32 %v3021, %v3029
      %s3038 = scalar_lea.vmem [#allocation4], 16
      %vm3039 = vcmask 122880
      %3040 = vst.msk [vmem:[%s3038 + $0x1] sm:$0x1] %vm3039, %v3030
      %3041 = vst.msk [vmem:[%s3038 + $0x11] sm:$0x1] %vm3039, %v3031
      %3042 = vst.msk [vmem:[%s3038 + $0x21] sm:$0x1] %vm3039, %v3032
      %3043 = vst.msk [vmem:[%s3038 + $0x31] sm:$0x1] %vm3039, %v3033
      %3044 = vst.msk [vmem:[%s3038 + $0x41] sm:$0x1] %vm3039, %v3034
      %3045 = vst.msk [vmem:[%s3038 + $0x51] sm:$0x1] %vm3039, %v3035
      %3046 = vst.msk [vmem:[%s3038 + $0x61] sm:$0x1] %vm3039, %v3036
      %3047 = vst.msk [vmem:[%s3038 + $0x71] sm:$0x1] %vm3039, %v3037
      %v3048 = vld [vmem:[#allocation3 + $0x2] sm:$0x1]
      %v3049 = vld [vmem:[#allocation3 + $0x12] sm:$0x1]
      %v3050 = vld [vmem:[#allocation3 + $0x22] sm:$0x1]
      %v3051 = vld [vmem:[#allocation3 + $0x32] sm:$0x1]
      %v3052 = vld [vmem:[#allocation3 + $0x42] sm:$0x1]
      %v3053 = vld [vmem:[#allocation3 + $0x52] sm:$0x1]
      %v3054 = vld [vmem:[#allocation3 + $0x62] sm:$0x1]
      %v3055 = vld [vmem:[#allocation3 + $0x72] sm:$0x1]
      %v3056 = vld [vmem:[#allocation3 + $0x3] sm:$0x1]
      %v3057 = vld [vmem:[#allocation3 + $0x13] sm:$0x1]
      %v3058 = vld [vmem:[#allocation3 + $0x23] sm:$0x1]
      %v3059 = vld [vmem:[#allocation3 + $0x33] sm:$0x1]
      %v3060 = vld [vmem:[#allocation3 + $0x43] sm:$0x1]
      %v3061 = vld [vmem:[#allocation3 + $0x53] sm:$0x1]
      %v3062 = vld [vmem:[#allocation3 + $0x63] sm:$0x1]
      %v3063 = vld [vmem:[#allocation3 + $0x73] sm:$0x1]
      %v3064 = vmax.f32 %v3048, %v3056
      %v3065 = vmax.f32 %v3049, %v3057
      %v3066 = vmax.f32 %v3050, %v3058
      %v3067 = vmax.f32 %v3051, %v3059
      %v3068 = vmax.f32 %v3052, %v3060
      %v3069 = vmax.f32 %v3053, %v3061
      %v3070 = vmax.f32 %v3054, %v3062
      %v3071 = vmax.f32 %v3055, %v3063
      %3072 = vst.msk [vmem:[%s3038 + $0x2] sm:$0x1] %vm3039, %v3064
      %3073 = vst.msk [vmem:[%s3038 + $0x12] sm:$0x1] %vm3039, %v3065
      %3074 = vst.msk [vmem:[%s3038 + $0x22] sm:$0x1] %vm3039, %v3066
      %3075 = vst.msk [vmem:[%s3038 + $0x32] sm:$0x1] %vm3039, %v3067
      %3076 = vst.msk [vmem:[%s3038 + $0x42] sm:$0x1] %vm3039, %v3068
      %3077 = vst.msk [vmem:[%s3038 + $0x52] sm:$0x1] %vm3039, %v3069
      %3078 = vst.msk [vmem:[%s3038 + $0x62] sm:$0x1] %vm3039, %v3070
      %3079 = vst.msk [vmem:[%s3038 + $0x72] sm:$0x1] %vm3039, %v3071
      %v3080 = vld [vmem:[#allocation3 + $0x4] sm:$0x1]
      %v3081 = vld [vmem:[#allocation3 + $0x14] sm:$0x1]
      %v3082 = vld [vmem:[#allocation3 + $0x24] sm:$0x1]
      %v3083 = vld [vmem:[#allocation3 + $0x34] sm:$0x1]
      %v3084 = vld [vmem:[#allocation3 + $0x44] sm:$0x1]
      %v3085 = vld [vmem:[#allocation3 + $0x54] sm:$0x1]
      %v3086 = vld [vmem:[#allocation3 + $0x64] sm:$0x1]
      %v3087 = vld [vmem:[#allocation3 + $0x74] sm:$0x1]
      %v3088 = vld [vmem:[#allocation3 + $0x5] sm:$0x1]
      %v3089 = vld [vmem:[#allocation3 + $0x15] sm:$0x1]
      %v3090 = vld [vmem:[#allocation3 + $0x25] sm:$0x1]
      %v3091 = vld [vmem:[#allocation3 + $0x35] sm:$0x1]
      %v3092 = vld [vmem:[#allocation3 + $0x45] sm:$0x1]
      %v3093 = vld [vmem:[#allocation3 + $0x55] sm:$0x1]
      %v3094 = vld [vmem:[#allocation3 + $0x65] sm:$0x1]
      %v3095 = vld [vmem:[#allocation3 + $0x75] sm:$0x1]
      %v3096 = vmax.f32 %v3080, %v3088
      %v3097 = vmax.f32 %v3081, %v3089
      %v3098 = vmax.f32 %v3082, %v3090
      %v3099 = vmax.f32 %v3083, %v3091
      %v3100 = vmax.f32 %v3084, %v3092
      %v3101 = vmax.f32 %v3085, %v3093
      %v3102 = vmax.f32 %v3086, %v3094
      %v3103 = vmax.f32 %v3087, %v3095
      %3104 = vst.msk [vmem:[%s3038 + $0x3] sm:$0x1] %vm3039, %v3096
      %3105 = vst.msk [vmem:[%s3038 + $0x13] sm:$0x1] %vm3039, %v3097
      %3106 = vst.msk [vmem:[%s3038 + $0x23] sm:$0x1] %vm3039, %v3098
      %3107 = vst.msk [vmem:[%s3038 + $0x33] sm:$0x1] %vm3039, %v3099
      %3108 = vst.msk [vmem:[%s3038 + $0x43] sm:$0x1] %vm3039, %v3100
      %3109 = vst.msk [vmem:[%s3038 + $0x53] sm:$0x1] %vm3039, %v3101
      %3110 = vst.msk [vmem:[%s3038 + $0x63] sm:$0x1] %vm3039, %v3102
      %3111 = vst.msk [vmem:[%s3038 + $0x73] sm:$0x1] %vm3039, %v3103
      %v3112 = vld [vmem:[#allocation3 + $0x6] sm:$0x1]
      %v3113 = vld [vmem:[#allocation3 + $0x16] sm:$0x1]
      %v3114 = vld [vmem:[#allocation3 + $0x26] sm:$0x1]
      %v3115 = vld [vmem:[#allocation3 + $0x36] sm:$0x1]
      %v3116 = vld [vmem:[#allocation3 + $0x46] sm:$0x1]
      %v3117 = vld [vmem:[#allocation3 + $0x56] sm:$0x1]
      %v3118 = vld [vmem:[#allocation3 + $0x66] sm:$0x1]
      %v3119 = vld [vmem:[#allocation3 + $0x76] sm:$0x1]
      %v3120 = vld [vmem:[#allocation3 + $0x7] sm:$0x1]
      %v3121 = vld [vmem:[#allocation3 + $0x17] sm:$0x1]
      %v3122 = vld [vmem:[#allocation3 + $0x27] sm:$0x1]
      %v3123 = vld [vmem:[#allocation3 + $0x37] sm:$0x1]
      %v3124 = vld [vmem:[#allocation3 + $0x47] sm:$0x1]
      %v3125 = vld [vmem:[#allocation3 + $0x57] sm:$0x1]
      %v3126 = vld [vmem:[#allocation3 + $0x67] sm:$0x1]
      %v3127 = vld [vmem:[#allocation3 + $0x77] sm:$0x1]
      %v3128 = vmax.f32 %v3112, %v3120
      %v3129 = vmax.f32 %v3113, %v3121
      %v3130 = vmax.f32 %v3114, %v3122
      %v3131 = vmax.f32 %v3115, %v3123
      %v3132 = vmax.f32 %v3116, %v3124
      %v3133 = vmax.f32 %v3117, %v3125
      %v3134 = vmax.f32 %v3118, %v3126
      %v3135 = vmax.f32 %v3119, %v3127
      %3136 = vst.msk [vmem:[%s3038 + $0x4] sm:$0x1] %vm3039, %v3128
      %3137 = vst.msk [vmem:[%s3038 + $0x14] sm:$0x1] %vm3039, %v3129
      %3138 = vst.msk [vmem:[%s3038 + $0x24] sm:$0x1] %vm3039, %v3130
      %3139 = vst.msk [vmem:[%s3038 + $0x34] sm:$0x1] %vm3039, %v3131
      %3140 = vst.msk [vmem:[%s3038 + $0x44] sm:$0x1] %vm3039, %v3132
      %3141 = vst.msk [vmem:[%s3038 + $0x54] sm:$0x1] %vm3039, %v3133
      %3142 = vst.msk [vmem:[%s3038 + $0x64] sm:$0x1] %vm3039, %v3134
      %3143 = vst.msk [vmem:[%s3038 + $0x74] sm:$0x1] %vm3039, %v3135
      %v3144 = vld [vmem:[#allocation3 + $0x8] sm:$0x1]
      %v3145 = vld [vmem:[#allocation3 + $0x18] sm:$0x1]
      %v3146 = vld [vmem:[#allocation3 + $0x28] sm:$0x1]
      %v3147 = vld [vmem:[#allocation3 + $0x38] sm:$0x1]
      %v3148 = vld [vmem:[#allocation3 + $0x48] sm:$0x1]
      %v3149 = vld [vmem:[#allocation3 + $0x58] sm:$0x1]
      %v3150 = vld [vmem:[#allocation3 + $0x68] sm:$0x1]
      %v3151 = vld [vmem:[#allocation3 + $0x78] sm:$0x1]
      %v3152 = vld [vmem:[#allocation3 + $0x9] sm:$0x1]
      %v3153 = vld [vmem:[#allocation3 + $0x19] sm:$0x1]
      %v3154 = vld [vmem:[#allocation3 + $0x29] sm:$0x1]
      %v3155 = vld [vmem:[#allocation3 + $0x39] sm:$0x1]
      %v3156 = vld [vmem:[#allocation3 + $0x49] sm:$0x1]
      %v3157 = vld [vmem:[#allocation3 + $0x59] sm:$0x1]
      %v3158 = vld [vmem:[#allocation3 + $0x69] sm:$0x1]
      %v3159 = vld [vmem:[#allocation3 + $0x79] sm:$0x1]
      %v3160 = vmax.f32 %v3144, %v3152
      %v3161 = vmax.f32 %v3145, %v3153
      %v3162 = vmax.f32 %v3146, %v3154
      %v3163 = vmax.f32 %v3147, %v3155
      %v3164 = vmax.f32 %v3148, %v3156
      %v3165 = vmax.f32 %v3149, %v3157
      %v3166 = vmax.f32 %v3150, %v3158
      %v3167 = vmax.f32 %v3151, %v3159
      %3168 = vst.msk [vmem:[%s3038 + $0x5] sm:$0x1] %vm3039, %v3160
      %3169 = vst.msk [vmem:[%s3038 + $0x15] sm:$0x1] %vm3039, %v3161
      %3170 = vst.msk [vmem:[%s3038 + $0x25] sm:$0x1] %vm3039, %v3162
      %3171 = vst.msk [vmem:[%s3038 + $0x35] sm:$0x1] %vm3039, %v3163
      %3172 = vst.msk [vmem:[%s3038 + $0x45] sm:$0x1] %vm3039, %v3164
      %3173 = vst.msk [vmem:[%s3038 + $0x55] sm:$0x1] %vm3039, %v3165
      %3174 = vst.msk [vmem:[%s3038 + $0x65] sm:$0x1] %vm3039, %v3166
      %3175 = vst.msk [vmem:[%s3038 + $0x75] sm:$0x1] %vm3039, %v3167
      %v3176 = vld [vmem:[#allocation3 + $0xa] sm:$0x1]
      %v3177 = vld [vmem:[#allocation3 + $0x1a] sm:$0x1]
      %v3178 = vld [vmem:[#allocation3 + $0x2a] sm:$0x1]
      %v3179 = vld [vmem:[#allocation3 + $0x3a] sm:$0x1]
      %v3180 = vld [vmem:[#allocation3 + $0x4a] sm:$0x1]
      %v3181 = vld [vmem:[#allocation3 + $0x5a] sm:$0x1]
      %v3182 = vld [vmem:[#allocation3 + $0x6a] sm:$0x1]
      %v3183 = vld [vmem:[#allocation3 + $0x7a] sm:$0x1]
      %v3184 = vld [vmem:[#allocation3 + $0xb] sm:$0x1]
      %v3185 = vld [vmem:[#allocation3 + $0x1b] sm:$0x1]
      %v3186 = vld [vmem:[#allocation3 + $0x2b] sm:$0x1]
      %v3187 = vld [vmem:[#allocation3 + $0x3b] sm:$0x1]
      %v3188 = vld [vmem:[#allocation3 + $0x4b] sm:$0x1]
      %v3189 = vld [vmem:[#allocation3 + $0x5b] sm:$0x1]
      %v3190 = vld [vmem:[#allocation3 + $0x6b] sm:$0x1]
      %v3191 = vld [vmem:[#allocation3 + $0x7b] sm:$0x1]
      %v3192 = vmax.f32 %v3176, %v3184
      %v3193 = vmax.f32 %v3177, %v3185
      %v3194 = vmax.f32 %v3178, %v3186
      %v3195 = vmax.f32 %v3179, %v3187
      %v3196 = vmax.f32 %v3180, %v3188
      %v3197 = vmax.f32 %v3181, %v3189
      %v3198 = vmax.f32 %v3182, %v3190
      %v3199 = vmax.f32 %v3183, %v3191
      %3200 = vst.msk [vmem:[%s3038 + $0x6] sm:$0x1] %vm3039, %v3192
      %3201 = vst.msk [vmem:[%s3038 + $0x16] sm:$0x1] %vm3039, %v3193
      %3202 = vst.msk [vmem:[%s3038 + $0x26] sm:$0x1] %vm3039, %v3194
      %3203 = vst.msk [vmem:[%s3038 + $0x36] sm:$0x1] %vm3039, %v3195
      %3204 = vst.msk [vmem:[%s3038 + $0x46] sm:$0x1] %vm3039, %v3196
      %3205 = vst.msk [vmem:[%s3038 + $0x56] sm:$0x1] %vm3039, %v3197
      %3206 = vst.msk [vmem:[%s3038 + $0x66] sm:$0x1] %vm3039, %v3198
      %3207 = vst.msk [vmem:[%s3038 + $0x76] sm:$0x1] %vm3039, %v3199
      %v3208 = vld [vmem:[#allocation3 + $0xc] sm:$0x1]
      %v3209 = vld [vmem:[#allocation3 + $0x1c] sm:$0x1]
      %v3210 = vld [vmem:[#allocation3 + $0x2c] sm:$0x1]
      %v3211 = vld [vmem:[#allocation3 + $0x3c] sm:$0x1]
      %v3212 = vld [vmem:[#allocation3 + $0x4c] sm:$0x1]
      %v3213 = vld [vmem:[#allocation3 + $0x5c] sm:$0x1]
      %v3214 = vld [vmem:[#allocation3 + $0x6c] sm:$0x1]
      %v3215 = vld [vmem:[#allocation3 + $0x7c] sm:$0x1]
      %v3216 = vld [vmem:[#allocation3 + $0xd] sm:$0x1]
      %v3217 = vld [vmem:[#allocation3 + $0x1d] sm:$0x1]
      %v3218 = vld [vmem:[#allocation3 + $0x2d] sm:$0x1]
      %v3219 = vld [vmem:[#allocation3 + $0x3d] sm:$0x1]
      %v3220 = vld [vmem:[#allocation3 + $0x4d] sm:$0x1]
      %v3221 = vld [vmem:[#allocation3 + $0x5d] sm:$0x1]
      %v3222 = vld [vmem:[#allocation3 + $0x6d] sm:$0x1]
      %v3223 = vld [vmem:[#allocation3 + $0x7d] sm:$0x1]
      %v3224 = vmax.f32 %v3208, %v3216
      %v3225 = vmax.f32 %v3209, %v3217
      %v3226 = vmax.f32 %v3210, %v3218
      %v3227 = vmax.f32 %v3211, %v3219
      %v3228 = vmax.f32 %v3212, %v3220
      %v3229 = vmax.f32 %v3213, %v3221
      %v3230 = vmax.f32 %v3214, %v3222
      %v3231 = vmax.f32 %v3215, %v3223
      %3232 = vst.msk [vmem:[%s3038 + $0x7] sm:$0x1] %vm3039, %v3224
      %3233 = vst.msk [vmem:[%s3038 + $0x17] sm:$0x1] %vm3039, %v3225
      %3234 = vst.msk [vmem:[%s3038 + $0x27] sm:$0x1] %vm3039, %v3226
      %3235 = vst.msk [vmem:[%s3038 + $0x37] sm:$0x1] %vm3039, %v3227
      %3236 = vst.msk [vmem:[%s3038 + $0x47] sm:$0x1] %vm3039, %v3228
      %3237 = vst.msk [vmem:[%s3038 + $0x57] sm:$0x1] %vm3039, %v3229
      %3238 = vst.msk [vmem:[%s3038 + $0x67] sm:$0x1] %vm3039, %v3230
      %3239 = vst.msk [vmem:[%s3038 + $0x77] sm:$0x1] %vm3039, %v3231
      %v3240 = vld [vmem:[#allocation3 + $0xe] sm:$0x1]
      %v3241 = vld [vmem:[#allocation3 + $0x1e] sm:$0x1]
      %v3242 = vld [vmem:[#allocation3 + $0x2e] sm:$0x1]
      %v3243 = vld [vmem:[#allocation3 + $0x3e] sm:$0x1]
      %v3244 = vld [vmem:[#allocation3 + $0x4e] sm:$0x1]
      %v3245 = vld [vmem:[#allocation3 + $0x5e] sm:$0x1]
      %v3246 = vld [vmem:[#allocation3 + $0x6e] sm:$0x1]
      %v3247 = vld [vmem:[#allocation3 + $0x7e] sm:$0x1]
      %v3248 = vld [vmem:[#allocation3 + $0xf] sm:$0x1]
      %v3249 = vld [vmem:[#allocation3 + $0x1f] sm:$0x1]
      %v3250 = vld [vmem:[#allocation3 + $0x2f] sm:$0x1]
      %v3251 = vld [vmem:[#allocation3 + $0x3f] sm:$0x1]
      %v3252 = vld [vmem:[#allocation3 + $0x4f] sm:$0x1]
      %v3253 = vld [vmem:[#allocation3 + $0x5f] sm:$0x1]
      %v3254 = vld [vmem:[#allocation3 + $0x6f] sm:$0x1]
      %v3255 = vld [vmem:[#allocation3 + $0x7f] sm:$0x1]
      %v3256 = vmax.f32 %v3240, %v3248
      %v3257 = vmax.f32 %v3241, %v3249
      %v3258 = vmax.f32 %v3242, %v3250
      %v3259 = vmax.f32 %v3243, %v3251
      %v3260 = vmax.f32 %v3244, %v3252
      %v3261 = vmax.f32 %v3245, %v3253
      %v3262 = vmax.f32 %v3246, %v3254
      %v3263 = vmax.f32 %v3247, %v3255
      %3264 = vst.msk [vmem:[%s3038 + $0x8] sm:$0x1] %vm3039, %v3256
      %3265 = vst.msk [vmem:[%s3038 + $0x18] sm:$0x1] %vm3039, %v3257
      %3266 = vst.msk [vmem:[%s3038 + $0x28] sm:$0x1] %vm3039, %v3258
      %3267 = vst.msk [vmem:[%s3038 + $0x38] sm:$0x1] %vm3039, %v3259
      %3268 = vst.msk [vmem:[%s3038 + $0x48] sm:$0x1] %vm3039, %v3260
      %3269 = vst.msk [vmem:[%s3038 + $0x58] sm:$0x1] %vm3039, %v3261
      %3270 = vst.msk [vmem:[%s3038 + $0x68] sm:$0x1] %vm3039, %v3262
      %3271 = vst.msk [vmem:[%s3038 + $0x78] sm:$0x1] %vm3039, %v3263
      %v3272 = vld [vmem:[#allocation4] sm:$0xff]
      %v3273 = vld [vmem:[#allocation4 + $0x10] sm:$0xff]
      %v3274 = vld [vmem:[#allocation4 + $0x20] sm:$0xff]
      %v3275 = vld [vmem:[#allocation4 + $0x30] sm:$0xff]
      %v3276 = vld [vmem:[#allocation4 + $0x40] sm:$0xff]
      %v3277 = vld [vmem:[#allocation4 + $0x50] sm:$0xff]
      %v3278 = vld [vmem:[#allocation4 + $0x60] sm:$0xff]
      %v3279 = vld [vmem:[#allocation4 + $0x70] sm:$0xff]
      %v3280 = vld [vmem:[%s3] sm:$0xff]
      %v3281 = vld [vmem:[%s3 + $0x8] sm:$0xff]
      %v3282 = vld [vmem:[#allocation4 + $0x1] sm:$0xff]
      %v3283 = vld [vmem:[#allocation4 + $0x11] sm:$0xff]
      %v3284 = vld [vmem:[#allocation4 + $0x21] sm:$0xff]
      %v3285 = vld [vmem:[#allocation4 + $0x31] sm:$0xff]
      %v3286 = vld [vmem:[#allocation4 + $0x41] sm:$0xff]
      %v3287 = vld [vmem:[#allocation4 + $0x51] sm:$0xff]
      %v3288 = vld [vmem:[#allocation4 + $0x61] sm:$0xff]
      %v3289 = vld [vmem:[#allocation4 + $0x71] sm:$0xff]
      %s3290 = scalar_lea.vmem %s3, 16
      %v3291 = vld [vmem:[%s3290] sm:$0xff]
      %v3292 = vld [vmem:[%s3290 + $0x8] sm:$0xff]
      %v3294 = vsel %vm2953, %v3282, 0
      %v3297 = vsel %vm2953, %v3283, 0
      %v3300 = vsel %vm2953, %v3284, 0
      %v3303 = vsel %vm2953, %v3285, 0
      %v3306 = vsel %vm2953, %v3286, 0
      %v3309 = vsel %vm2953, %v3287, 0
      %v3312 = vsel %vm2953, %v3288, 0
      %v3315 = vsel %vm2953, %v3289, 0
      %3317 = vmatprep.subr.mxu0 0.0
      %3318 = vmatpush1.msra.mxu0 %v3291
      %3319 = vmatprep.subr.mxu0 0.0
      %3320 = vmatpush1.msra.mxu0 %v3292
      %3321 = vmatprep.subr.mxu0 0.0
      %3322 = vmatpush1.msra.mxu0 0.0
      %3323 = vmatprep.subr.mxu0 0.0
      %3324 = vmatpush1.msra.mxu0 0.0
      %3325 = vmatprep.subr.mxu0 0.0
      %3326 = vmatpush1.msra.mxu0 0.0
      %3327 = vmatprep.subr.mxu0 0.0
      %3328 = vmatpush1.msra.mxu0 0.0
      %3329 = vmatprep.subr.mxu0 0.0
      %3330 = vmatpush1.msra.mxu0 0.0
      %3331 = vmatprep.subr.mxu0 0.0
      %3332 = vmatpush1.msra.mxu0 0.0
      %3333 = vmatprep.subr.mxu0 0.0
      %3334 = vmatpush1.msra.mxu0 0.0
      %3335 = vmatprep.subr.mxu0 0.0
      %3336 = vmatpush1.msra.mxu0 0.0
      %3337 = vmatprep.subr.mxu0 0.0
      %3338 = vmatpush1.msra.mxu0 0.0
      %3339 = vmatprep.subr.mxu0 0.0
      %3340 = vmatpush1.msra.mxu0 0.0
      %3341 = vmatprep.subr.mxu0 0.0
      %3342 = vmatpush1.msra.mxu0 0.0
      %3343 = vmatprep.subr.mxu0 0.0
      %3344 = vmatpush1.msra.mxu0 0.0
      %3345 = vmatprep.subr.mxu0 0.0
      %3346 = vmatpush1.msra.mxu0 0.0
      %3347 = vmatprep.subr.mxu0 0.0
      %3348 = vmatpush1.msra.mxu0 0.0
      %3349 = vmatprep.subr.mxu0 0.0
      %3350 = vmatpush1.msra.mxu0 0.0
      %3351 = vmatprep.subr.mxu0 0.0
      %3352 = vmatpush1.msra.mxu0 0.0
      %3353 = vmatprep.subr.mxu0 0.0
      %3354 = vmatpush1.msra.mxu0 0.0
      %3355 = vmatprep.subr.mxu0 0.0
      %3356 = vmatpush1.msra.mxu0 0.0
      %3357 = vmatprep.subr.mxu0 0.0
      %3358 = vmatpush1.msra.mxu0 0.0
      %3359 = vmatprep.subr.mxu0 0.0
      %3360 = vmatpush1.msra.mxu0 0.0
      %3361 = vmatprep.subr.mxu0 0.0
      %3362 = vmatpush1.msra.mxu0 0.0
      %3363 = vmatprep.subr.mxu0 0.0
      %3364 = vmatpush1.msra.mxu0 0.0
      %3365 = vmatprep.subr.mxu0 0.0
      %3366 = vmatpush1.msra.mxu0 0.0
      %3367 = vmatprep.subr.mxu0 0.0
      %3368 = vmatpush1.msra.mxu0 0.0
      %3369 = vmatprep.subr.mxu0 0.0
      %3370 = vmatpush1.msra.mxu0 0.0
      %3371 = vmatprep.subr.mxu0 0.0
      %3372 = vmatpush1.msra.mxu0 0.0
      %3373 = vmatprep.subr.mxu0 0.0
      %3374 = vmatpush1.msra.mxu0 0.0
      %3375 = vmatprep.subr.mxu0 0.0
      %3376 = vmatpush1.msra.mxu0 0.0
      %3377 = vmatprep.subr.mxu0 0.0
      %3378 = vmatpush1.msra.mxu0 0.0
      %3379 = vmatprep.subr.mxu0 0.0
      %3380 = vmatpush1.msra.mxu0 0.0
      %3381 = vmatprep.mubr.f32.mxu0 0.0
      %3382 = vmatmul.mubr.f32.gmra.mrb[0].mxu0 %v3294
      %v3383 = vpop.f32.mrb[0].mxu0
      %v3384 = vadd.f32 0.0, %v3383
      %v3385 = vpop.f32.mrb[0].mxu0
      %3386 = vmatprep.mubr.f32.mxu0 0.0
      %3387 = vmatmul.mubr.f32.gmra.mrb[0].mxu0 %v3297
      %v3388 = vpop.f32.mrb[0].mxu0
      %v3389 = vadd.f32 0.0, %v3388
      %v3390 = vpop.f32.mrb[0].mxu0
      %3391 = vmatprep.mubr.f32.mxu0 0.0
      %3392 = vmatmul.mubr.f32.gmra.mrb[0].mxu0 %v3300
      %v3393 = vpop.f32.mrb[0].mxu0
      %v3394 = vadd.f32 0.0, %v3393
      %v3395 = vpop.f32.mrb[0].mxu0
      %3396 = vmatprep.mubr.f32.mxu0 0.0
      %3397 = vmatmul.mubr.f32.gmra.mrb[0].mxu0 %v3303
      %v3398 = vpop.f32.mrb[0].mxu0
      %v3399 = vadd.f32 0.0, %v3398
      %v3400 = vpop.f32.mrb[0].mxu0
      %3401 = vmatprep.mubr.f32.mxu0 0.0
      %3402 = vmatmul.mubr.f32.gmra.mrb[0].mxu0 %v3306
      %v3403 = vpop.f32.mrb[0].mxu0
      %v3404 = vadd.f32 0.0, %v3403
      %v3405 = vpop.f32.mrb[0].mxu0
      %3406 = vmatprep.mubr.f32.mxu0 0.0
      %3407 = vmatmul.mubr.f32.gmra.mrb[0].mxu0 %v3309
      %v3408 = vpop.f32.mrb[0].mxu0
      %v3409 = vadd.f32 0.0, %v3408
      %v3410 = vpop.f32.mrb[0].mxu0
      %3411 = vmatprep.mubr.f32.mxu0 0.0
      %3412 = vmatmul.mubr.f32.gmra.mrb[0].mxu0 %v3312
      %v3413 = vpop.f32.mrb[0].mxu0
      %v3414 = vadd.f32 0.0, %v3413
      %v3415 = vpop.f32.mrb[0].mxu0
      %3416 = vmatprep.mubr.f32.mxu0 0.0
      %3417 = vmatmul.mubr.f32.gmra.mrb[0].mxu0 %v3315
      %v3418 = vpop.f32.mrb[0].mxu0
      %v3419 = vadd.f32 0.0, %v3418
      %v3420 = vpop.f32.mrb[0].mxu0
      %3421 = vdwg.mxu0
      %v3423 = vsel %vm2953, %v3272, 0
      %v3426 = vsel %vm2953, %v3273, 0
      %v3429 = vsel %vm2953, %v3274, 0
      %v3432 = vsel %vm2953, %v3275, 0
      %v3435 = vsel %vm2953, %v3276, 0
      %v3438 = vsel %vm2953, %v3277, 0
      %v3441 = vsel %vm2953, %v3278, 0
      %v3444 = vsel %vm2953, %v3279, 0
      %3446 = vmatprep.subr.mxu0 0.0
      %3447 = vmatpush1.msra.mxu0 %v3280
      %3448 = vmatprep.subr.mxu0 0.0
      %3449 = vmatpush1.msra.mxu0 %v3281
      %3450 = vmatprep.subr.mxu0 0.0
      %3451 = vmatpush1.msra.mxu0 0.0
      %3452 = vmatprep.subr.mxu0 0.0
      %3453 = vmatpush1.msra.mxu0 0.0
      %3454 = vmatprep.subr.mxu0 0.0
      %3455 = vmatpush1.msra.mxu0 0.0
      %3456 = vmatprep.subr.mxu0 0.0
      %3457 = vmatpush1.msra.mxu0 0.0
      %3458 = vmatprep.subr.mxu0 0.0
      %3459 = vmatpush1.msra.mxu0 0.0
      %3460 = vmatprep.subr.mxu0 0.0
      %3461 = vmatpush1.msra.mxu0 0.0
      %3462 = vmatprep.subr.mxu0 0.0
      %3463 = vmatpush1.msra.mxu0 0.0
      %3464 = vmatprep.subr.mxu0 0.0
      %3465 = vmatpush1.msra.mxu0 0.0
      %3466 = vmatprep.subr.mxu0 0.0
      %3467 = vmatpush1.msra.mxu0 0.0
      %3468 = vmatprep.subr.mxu0 0.0
      %3469 = vmatpush1.msra.mxu0 0.0
      %3470 = vmatprep.subr.mxu0 0.0
      %3471 = vmatpush1.msra.mxu0 0.0
      %3472 = vmatprep.subr.mxu0 0.0
      %3473 = vmatpush1.msra.mxu0 0.0
      %3474 = vmatprep.subr.mxu0 0.0
      %3475 = vmatpush1.msra.mxu0 0.0
      %3476 = vmatprep.subr.mxu0 0.0
      %3477 = vmatpush1.msra.mxu0 0.0
      %3478 = vmatprep.subr.mxu0 0.0
      %3479 = vmatpush1.msra.mxu0 0.0
      %3480 = vmatprep.subr.mxu0 0.0
      %3481 = vmatpush1.msra.mxu0 0.0
      %3482 = vmatprep.subr.mxu0 0.0
      %3483 = vmatpush1.msra.mxu0 0.0
      %3484 = vmatprep.subr.mxu0 0.0
      %3485 = vmatpush1.msra.mxu0 0.0
      %3486 = vmatprep.subr.mxu0 0.0
      %3487 = vmatpush1.msra.mxu0 0.0
      %3488 = vmatprep.subr.mxu0 0.0
      %3489 = vmatpush1.msra.mxu0 0.0
      %3490 = vmatprep.subr.mxu0 0.0
      %3491 = vmatpush1.msra.mxu0 0.0
      %3492 = vmatprep.subr.mxu0 0.0
      %3493 = vmatpush1.msra.mxu0 0.0
      %3494 = vmatprep.subr.mxu0 0.0
      %3495 = vmatpush1.msra.mxu0 0.0
      %3496 = vmatprep.subr.mxu0 0.0
      %3497 = vmatpush1.msra.mxu0 0.0
      %3498 = vmatprep.subr.mxu0 0.0
      %3499 = vmatpush1.msra.mxu0 0.0
      %3500 = vmatprep.subr.mxu0 0.0
      %3501 = vmatpush1.msra.mxu0 0.0
      %3502 = vmatprep.subr.mxu0 0.0
      %3503 = vmatpush1.msra.mxu0 0.0
      %3504 = vmatprep.subr.mxu0 0.0
      %3505 = vmatpush1.msra.mxu0 0.0
      %3506 = vmatprep.subr.mxu0 0.0
      %3507 = vmatpush1.msra.mxu0 0.0
      %3508 = vmatprep.subr.mxu0 0.0
      %3509 = vmatpush1.msra.mxu0 0.0
      %3510 = vmatprep.mubr.f32.mxu0 0.0
      %3511 = vmatmul.mubr.f32.gmra.mrb[0].mxu0 %v3423
      %v3512 = vpop.f32.mrb[0].mxu0
      %v3513 = vadd.f32 %v3384, %v3512
      %v3514 = vpop.f32.mrb[0].mxu0
      %3515 = vmatprep.mubr.f32.mxu0 0.0
      %3516 = vmatmul.mubr.f32.gmra.mrb[0].mxu0 %v3426
      %v3517 = vpop.f32.mrb[0].mxu0
      %v3518 = vadd.f32 %v3389, %v3517
      %v3519 = vpop.f32.mrb[0].mxu0
      %3520 = vmatprep.mubr.f32.mxu0 0.0
      %3521 = vmatmul.mubr.f32.gmra.mrb[0].mxu0 %v3429
      %v3522 = vpop.f32.mrb[0].mxu0
      %v3523 = vadd.f32 %v3394, %v3522
      %v3524 = vpop.f32.mrb[0].mxu0
      %3525 = vmatprep.mubr.f32.mxu0 0.0
      %3526 = vmatmul.mubr.f32.gmra.mrb[0].mxu0 %v3432
      %v3527 = vpop.f32.mrb[0].mxu0
      %v3528 = vadd.f32 %v3399, %v3527
      %v3529 = vpop.f32.mrb[0].mxu0
      %3530 = vmatprep.mubr.f32.mxu0 0.0
      %3531 = vmatmul.mubr.f32.gmra.mrb[0].mxu0 %v3435
      %v3532 = vpop.f32.mrb[0].mxu0
      %v3533 = vadd.f32 %v3404, %v3532
      %v3534 = vpop.f32.mrb[0].mxu0
      %3535 = vmatprep.mubr.f32.mxu0 0.0
      %3536 = vmatmul.mubr.f32.gmra.mrb[0].mxu0 %v3438
      %v3537 = vpop.f32.mrb[0].mxu0
      %v3538 = vadd.f32 %v3409, %v3537
      %v3539 = vpop.f32.mrb[0].mxu0
      %3540 = vmatprep.mubr.f32.mxu0 0.0
      %3541 = vmatmul.mubr.f32.gmra.mrb[0].mxu0 %v3441
      %v3542 = vpop.f32.mrb[0].mxu0
      %v3543 = vadd.f32 %v3414, %v3542
      %v3544 = vpop.f32.mrb[0].mxu0
      %3545 = vmatprep.mubr.f32.mxu0 0.0
      %3546 = vmatmul.mubr.f32.gmra.mrb[0].mxu0 %v3444
      %v3547 = vpop.f32.mrb[0].mxu0
      %v3548 = vadd.f32 %v3419, %v3547
      %v3549 = vpop.f32.mrb[0].mxu0
      %3550 = vdwg.mxu0
      %v3551 = vld [vmem:[#allocation4 + $0x2] sm:$0xff]
      %v3552 = vld [vmem:[#allocation4 + $0x12] sm:$0xff]
      %v3553 = vld [vmem:[#allocation4 + $0x22] sm:$0xff]
      %v3554 = vld [vmem:[#allocation4 + $0x32] sm:$0xff]
      %v3555 = vld [vmem:[#allocation4 + $0x42] sm:$0xff]
      %v3556 = vld [vmem:[#allocation4 + $0x52] sm:$0xff]
      %v3557 = vld [vmem:[#allocation4 + $0x62] sm:$0xff]
      %v3558 = vld [vmem:[#allocation4 + $0x72] sm:$0xff]
      %s3559 = scalar_lea.vmem %s3, 32
      %v3560 = vld [vmem:[%s3559] sm:$0xff]
      %v3561 = vld [vmem:[%s3559 + $0x8] sm:$0xff]
      %v3563 = vsel %vm2953, %v3551, 0
      %v3566 = vsel %vm2953, %v3552, 0
      %v3569 = vsel %vm2953, %v3553, 0
      %v3572 = vsel %vm2953, %v3554, 0
      %v3575 = vsel %vm2953, %v3555, 0
      %v3578 = vsel %vm2953, %v3556, 0
      %v3581 = vsel %vm2953, %v3557, 0
      %v3584 = vsel %vm2953, %v3558, 0
      %3586 = vmatprep.subr.mxu0 0.0
      %3587 = vmatpush1.msra.mxu0 %v3560
      %3588 = vmatprep.subr.mxu0 0.0
      %3589 = vmatpush1.msra.mxu0 %v3561
      %3590 = vmatprep.subr.mxu0 0.0
      %3591 = vmatpush1.msra.mxu0 0.0
      %3592 = vmatprep.subr.mxu0 0.0
      %3593 = vmatpush1.msra.mxu0 0.0
      %3594 = vmatprep.subr.mxu0 0.0
      %3595 = vmatpush1.msra.mxu0 0.0
      %3596 = vmatprep.subr.mxu0 0.0
      %3597 = vmatpush1.msra.mxu0 0.0
      %3598 = vmatprep.subr.mxu0 0.0
      %3599 = vmatpush1.msra.mxu0 0.0
      %3600 = vmatprep.subr.mxu0 0.0
      %3601 = vmatpush1.msra.mxu0 0.0
      %3602 = vmatprep.subr.mxu0 0.0
      %3603 = vmatpush1.msra.mxu0 0.0
      %3604 = vmatprep.subr.mxu0 0.0
      %3605 = vmatpush1.msra.mxu0 0.0
      %3606 = vmatprep.subr.mxu0 0.0
      %3607 = vmatpush1.msra.mxu0 0.0
      %3608 = vmatprep.subr.mxu0 0.0
      %3609 = vmatpush1.msra.mxu0 0.0
      %3610 = vmatprep.subr.mxu0 0.0
      %3611 = vmatpush1.msra.mxu0 0.0
      %3612 = vmatprep.subr.mxu0 0.0
      %3613 = vmatpush1.msra.mxu0 0.0
      %3614 = vmatprep.subr.mxu0 0.0
      %3615 = vmatpush1.msra.mxu0 0.0
      %3616 = vmatprep.subr.mxu0 0.0
      %3617 = vmatpush1.msra.mxu0 0.0
      %3618 = vmatprep.subr.mxu0 0.0
      %3619 = vmatpush1.msra.mxu0 0.0
      %3620 = vmatprep.subr.mxu0 0.0
      %3621 = vmatpush1.msra.mxu0 0.0
      %3622 = vmatprep.subr.mxu0 0.0
      %3623 = vmatpush1.msra.mxu0 0.0
      %3624 = vmatprep.subr.mxu0 0.0
      %3625 = vmatpush1.msra.mxu0 0.0
      %3626 = vmatprep.subr.mxu0 0.0
      %3627 = vmatpush1.msra.mxu0 0.0
      %3628 = vmatprep.subr.mxu0 0.0
      %3629 = vmatpush1.msra.mxu0 0.0
      %3630 = vmatprep.subr.mxu0 0.0
      %3631 = vmatpush1.msra.mxu0 0.0
      %3632 = vmatprep.subr.mxu0 0.0
      %3633 = vmatpush1.msra.mxu0 0.0
      %3634 = vmatprep.subr.mxu0 0.0
      %3635 = vmatpush1.msra.mxu0 0.0
      %3636 = vmatprep.subr.mxu0 0.0
      %3637 = vmatpush1.msra.mxu0 0.0
      %3638 = vmatprep.subr.mxu0 0.0
      %3639 = vmatpush1.msra.mxu0 0.0
      %3640 = vmatprep.subr.mxu0 0.0
      %3641 = vmatpush1.msra.mxu0 0.0
      %3642 = vmatprep.subr.mxu0 0.0
      %3643 = vmatpush1.msra.mxu0 0.0
      %3644 = vmatprep.subr.mxu0 0.0
      %3645 = vmatpush1.msra.mxu0 0.0
      %3646 = vmatprep.subr.mxu0 0.0
      %3647 = vmatpush1.msra.mxu0 0.0
      %3648 = vmatprep.subr.mxu0 0.0
      %3649 = vmatpush1.msra.mxu0 0.0
      %3650 = vmatprep.mubr.f32.mxu0 0.0
      %3651 = vmatmul.mubr.f32.gmra.mrb[0].mxu0 %v3563
      %v3652 = vpop.f32.mrb[0].mxu0
      %v3653 = vadd.f32 0.0, %v3652
      %v3654 = vpop.f32.mrb[0].mxu0
      %3655 = vmatprep.mubr.f32.mxu0 0.0
      %3656 = vmatmul.mubr.f32.gmra.mrb[0].mxu0 %v3566
      %v3657 = vpop.f32.mrb[0].mxu0
      %v3658 = vadd.f32 0.0, %v3657
      %v3659 = vpop.f32.mrb[0].mxu0
      %3660 = vmatprep.mubr.f32.mxu0 0.0
      %3661 = vmatmul.mubr.f32.gmra.mrb[0].mxu0 %v3569
      %v3662 = vpop.f32.mrb[0].mxu0
      %v3663 = vadd.f32 0.0, %v3662
      %v3664 = vpop.f32.mrb[0].mxu0
      %3665 = vmatprep.mubr.f32.mxu0 0.0
      %3666 = vmatmul.mubr.f32.gmra.mrb[0].mxu0 %v3572
      %v3667 = vpop.f32.mrb[0].mxu0
      %v3668 = vadd.f32 0.0, %v3667
      %v3669 = vpop.f32.mrb[0].mxu0
      %3670 = vmatprep.mubr.f32.mxu0 0.0
      %3671 = vmatmul.mubr.f32.gmra.mrb[0].mxu0 %v3575
      %v3672 = vpop.f32.mrb[0].mxu0
      %v3673 = vadd.f32 0.0, %v3672
      %v3674 = vpop.f32.mrb[0].mxu0
      %3675 = vmatprep.mubr.f32.mxu0 0.0
      %3676 = vmatmul.mubr.f32.gmra.mrb[0].mxu0 %v3578
      %v3677 = vpop.f32.mrb[0].mxu0
      %v3678 = vadd.f32 0.0, %v3677
      %v3679 = vpop.f32.mrb[0].mxu0
      %3680 = vmatprep.mubr.f32.mxu0 0.0
      %3681 = vmatmul.mubr.f32.gmra.mrb[0].mxu0 %v3581
      %v3682 = vpop.f32.mrb[0].mxu0
      %v3683 = vadd.f32 0.0, %v3682
      %v3684 = vpop.f32.mrb[0].mxu0
      %3685 = vmatprep.mubr.f32.mxu0 0.0
      %3686 = vmatmul.mubr.f32.gmra.mrb[0].mxu0 %v3584
      %v3687 = vpop.f32.mrb[0].mxu0
      %v3688 = vadd.f32 0.0, %v3687
      %v3689 = vpop.f32.mrb[0].mxu0
      %3690 = vdwg.mxu0
      %v3691 = vadd.f32 %v3513, %v3653
      %v3692 = vadd.f32 %v3518, %v3658
      %v3693 = vadd.f32 %v3523, %v3663
      %v3694 = vadd.f32 %v3528, %v3668
      %v3695 = vadd.f32 %v3533, %v3673
      %v3696 = vadd.f32 %v3538, %v3678
      %v3697 = vadd.f32 %v3543, %v3683
      %v3698 = vadd.f32 %v3548, %v3688
      %v3699 = vld [vmem:[%s3038] sm:$0xff]
      %v3700 = vld [vmem:[%s3038 + $0x10] sm:$0xff]
      %v3701 = vld [vmem:[%s3038 + $0x20] sm:$0xff]
      %v3702 = vld [vmem:[%s3038 + $0x30] sm:$0xff]
      %v3703 = vld [vmem:[%s3038 + $0x40] sm:$0xff]
      %v3704 = vld [vmem:[%s3038 + $0x50] sm:$0xff]
      %v3705 = vld [vmem:[%s3038 + $0x60] sm:$0xff]
      %v3706 = vld [vmem:[%s3038 + $0x70] sm:$0xff]
      %s3707 = scalar_lea.vmem %s3, 48
      %v3708 = vld [vmem:[%s3707] sm:$0xff]
      %v3709 = vld [vmem:[%s3707 + $0x8] sm:$0xff]
      %v3711 = vsel %vm2953, %v3699, 0
      %v3714 = vsel %vm2953, %v3700, 0
      %v3717 = vsel %vm2953, %v3701, 0
      %v3720 = vsel %vm2953, %v3702, 0
      %v3723 = vsel %vm2953, %v3703, 0
      %v3726 = vsel %vm2953, %v3704, 0
      %v3729 = vsel %vm2953, %v3705, 0
      %v3732 = vsel %vm2953, %v3706, 0
      %3734 = vmatprep.subr.mxu0 0.0
      %3735 = vmatpush1.msra.mxu0 %v3708
      %3736 = vmatprep.subr.mxu0 0.0
      %3737 = vmatpush1.msra.mxu0 %v3709
      %3738 = vmatprep.subr.mxu0 0.0
      %3739 = vmatpush1.msra.mxu0 0.0
      %3740 = vmatprep.subr.mxu0 0.0
      %3741 = vmatpush1.msra.mxu0 0.0
      %3742 = vmatprep.subr.mxu0 0.0
      %3743 = vmatpush1.msra.mxu0 0.0
      %3744 = vmatprep.subr.mxu0 0.0
      %3745 = vmatpush1.msra.mxu0 0.0
      %3746 = vmatprep.subr.mxu0 0.0
      %3747 = vmatpush1.msra.mxu0 0.0
      %3748 = vmatprep.subr.mxu0 0.0
      %3749 = vmatpush1.msra.mxu0 0.0
      %3750 = vmatprep.subr.mxu0 0.0
      %3751 = vmatpush1.msra.mxu0 0.0
      %3752 = vmatprep.subr.mxu0 0.0
      %3753 = vmatpush1.msra.mxu0 0.0
      %3754 = vmatprep.subr.mxu0 0.0
      %3755 = vmatpush1.msra.mxu0 0.0
      %3756 = vmatprep.subr.mxu0 0.0
      %3757 = vmatpush1.msra.mxu0 0.0
      %3758 = vmatprep.subr.mxu0 0.0
      %3759 = vmatpush1.msra.mxu0 0.0
      %3760 = vmatprep.subr.mxu0 0.0
      %3761 = vmatpush1.msra.mxu0 0.0
      %3762 = vmatprep.subr.mxu0 0.0
      %3763 = vmatpush1.msra.mxu0 0.0
      %3764 = vmatprep.subr.mxu0 0.0
      %3765 = vmatpush1.msra.mxu0 0.0
      %3766 = vmatprep.subr.mxu0 0.0
      %3767 = vmatpush1.msra.mxu0 0.0
      %3768 = vmatprep.subr.mxu0 0.0
      %3769 = vmatpush1.msra.mxu0 0.0
      %3770 = vmatprep.subr.mxu0 0.0
      %3771 = vmatpush1.msra.mxu0 0.0
      %3772 = vmatprep.subr.mxu0 0.0
      %3773 = vmatpush1.msra.mxu0 0.0
      %3774 = vmatprep.subr.mxu0 0.0
      %3775 = vmatpush1.msra.mxu0 0.0
      %3776 = vmatprep.subr.mxu0 0.0
      %3777 = vmatpush1.msra.mxu0 0.0
      %3778 = vmatprep.subr.mxu0 0.0
      %3779 = vmatpush1.msra.mxu0 0.0
      %3780 = vmatprep.subr.mxu0 0.0
      %3781 = vmatpush1.msra.mxu0 0.0
      %3782 = vmatprep.subr.mxu0 0.0
      %3783 = vmatpush1.msra.mxu0 0.0
      %3784 = vmatprep.subr.mxu0 0.0
      %3785 = vmatpush1.msra.mxu0 0.0
      %3786 = vmatprep.subr.mxu0 0.0
      %3787 = vmatpush1.msra.mxu0 0.0
      %3788 = vmatprep.subr.mxu0 0.0
      %3789 = vmatpush1.msra.mxu0 0.0
      %3790 = vmatprep.subr.mxu0 0.0
      %3791 = vmatpush1.msra.mxu0 0.0
      %3792 = vmatprep.subr.mxu0 0.0
      %3793 = vmatpush1.msra.mxu0 0.0
      %3794 = vmatprep.subr.mxu0 0.0
      %3795 = vmatpush1.msra.mxu0 0.0
      %3796 = vmatprep.subr.mxu0 0.0
      %3797 = vmatpush1.msra.mxu0 0.0
      %3798 = vmatprep.mubr.f32.mxu0 0.0
      %3799 = vmatmul.mubr.f32.gmra.mrb[0].mxu0 %v3711
      %v3800 = vpop.f32.mrb[0].mxu0
      %v3801 = vadd.f32 0.0, %v3800
      %v3802 = vpop.f32.mrb[0].mxu0
      %3803 = vmatprep.mubr.f32.mxu0 0.0
      %3804 = vmatmul.mubr.f32.gmra.mrb[0].mxu0 %v3714
      %v3805 = vpop.f32.mrb[0].mxu0
      %v3806 = vadd.f32 0.0, %v3805
      %v3807 = vpop.f32.mrb[0].mxu0
      %3808 = vmatprep.mubr.f32.mxu0 0.0
      %3809 = vmatmul.mubr.f32.gmra.mrb[0].mxu0 %v3717
      %v3810 = vpop.f32.mrb[0].mxu0
      %v3811 = vadd.f32 0.0, %v3810
      %v3812 = vpop.f32.mrb[0].mxu0
      %3813 = vmatprep.mubr.f32.mxu0 0.0
      %3814 = vmatmul.mubr.f32.gmra.mrb[0].mxu0 %v3720
      %v3815 = vpop.f32.mrb[0].mxu0
      %v3816 = vadd.f32 0.0, %v3815
      %v3817 = vpop.f32.mrb[0].mxu0
      %3818 = vmatprep.mubr.f32.mxu0 0.0
      %3819 = vmatmul.mubr.f32.gmra.mrb[0].mxu0 %v3723
      %v3820 = vpop.f32.mrb[0].mxu0
      %v3821 = vadd.f32 0.0, %v3820
      %v3822 = vpop.f32.mrb[0].mxu0
      %3823 = vmatprep.mubr.f32.mxu0 0.0
      %3824 = vmatmul.mubr.f32.gmra.mrb[0].mxu0 %v3726
      %v3825 = vpop.f32.mrb[0].mxu0
      %v3826 = vadd.f32 0.0, %v3825
      %v3827 = vpop.f32.mrb[0].mxu0
      %3828 = vmatprep.mubr.f32.mxu0 0.0
      %3829 = vmatmul.mubr.f32.gmra.mrb[0].mxu0 %v3729
      %v3830 = vpop.f32.mrb[0].mxu0
      %v3831 = vadd.f32 0.0, %v3830
      %v3832 = vpop.f32.mrb[0].mxu0
      %3833 = vmatprep.mubr.f32.mxu0 0.0
      %3834 = vmatmul.mubr.f32.gmra.mrb[0].mxu0 %v3732
      %v3835 = vpop.f32.mrb[0].mxu0
      %v3836 = vadd.f32 0.0, %v3835
      %v3837 = vpop.f32.mrb[0].mxu0
      %3838 = vdwg.mxu0
      %v3839 = vadd.f32 %v3691, %v3801
      %v3840 = vadd.f32 %v3692, %v3806
      %v3841 = vadd.f32 %v3693, %v3811
      %v3842 = vadd.f32 %v3694, %v3816
      %v3843 = vadd.f32 %v3695, %v3821
      %v3844 = vadd.f32 %v3696, %v3826
      %v3845 = vadd.f32 %v3697, %v3831
      %v3846 = vadd.f32 %v3698, %v3836
      %v3847 = vld [vmem:[%s3038 + $0x1] sm:$0xff]
      %v3848 = vld [vmem:[%s3038 + $0x11] sm:$0xff]
      %v3849 = vld [vmem:[%s3038 + $0x21] sm:$0xff]
      %v3850 = vld [vmem:[%s3038 + $0x31] sm:$0xff]
      %v3851 = vld [vmem:[%s3038 + $0x41] sm:$0xff]
      %v3852 = vld [vmem:[%s3038 + $0x51] sm:$0xff]
      %v3853 = vld [vmem:[%s3038 + $0x61] sm:$0xff]
      %v3854 = vld [vmem:[%s3038 + $0x71] sm:$0xff]
      %s3855 = scalar_lea.vmem %s3, 64
      %v3856 = vld [vmem:[%s3855] sm:$0xff]
      %v3857 = vld [vmem:[%s3855 + $0x8] sm:$0xff]
      %v3859 = vsel %vm2953, %v3847, 0
      %v3862 = vsel %vm2953, %v3848, 0
      %v3865 = vsel %vm2953, %v3849, 0
      %v3868 = vsel %vm2953, %v3850, 0
      %v3871 = vsel %vm2953, %v3851, 0
      %v3874 = vsel %vm2953, %v3852, 0
      %v3877 = vsel %vm2953, %v3853, 0
      %v3880 = vsel %vm2953, %v3854, 0
      %3882 = vmatprep.subr.mxu0 0.0
      %3883 = vmatpush1.msra.mxu0 %v3856
      %3884 = vmatprep.subr.mxu0 0.0
      %3885 = vmatpush1.msra.mxu0 %v3857
      %3886 = vmatprep.subr.mxu0 0.0
      %3887 = vmatpush1.msra.mxu0 0.0
      %3888 = vmatprep.subr.mxu0 0.0
      %3889 = vmatpush1.msra.mxu0 0.0
      %3890 = vmatprep.subr.mxu0 0.0
      %3891 = vmatpush1.msra.mxu0 0.0
      %3892 = vmatprep.subr.mxu0 0.0
      %3893 = vmatpush1.msra.mxu0 0.0
      %3894 = vmatprep.subr.mxu0 0.0
      %3895 = vmatpush1.msra.mxu0 0.0
      %3896 = vmatprep.subr.mxu0 0.0
      %3897 = vmatpush1.msra.mxu0 0.0
      %3898 = vmatprep.subr.mxu0 0.0
      %3899 = vmatpush1.msra.mxu0 0.0
      %3900 = vmatprep.subr.mxu0 0.0
      %3901 = vmatpush1.msra.mxu0 0.0
      %3902 = vmatprep.subr.mxu0 0.0
      %3903 = vmatpush1.msra.mxu0 0.0
      %3904 = vmatprep.subr.mxu0 0.0
      %3905 = vmatpush1.msra.mxu0 0.0
      %3906 = vmatprep.subr.mxu0 0.0
      %3907 = vmatpush1.msra.mxu0 0.0
      %3908 = vmatprep.subr.mxu0 0.0
      %3909 = vmatpush1.msra.mxu0 0.0
      %3910 = vmatprep.subr.mxu0 0.0
      %3911 = vmatpush1.msra.mxu0 0.0
      %3912 = vmatprep.subr.mxu0 0.0
      %3913 = vmatpush1.msra.mxu0 0.0
      %3914 = vmatprep.subr.mxu0 0.0
      %3915 = vmatpush1.msra.mxu0 0.0
      %3916 = vmatprep.subr.mxu0 0.0
      %3917 = vmatpush1.msra.mxu0 0.0
      %3918 = vmatprep.subr.mxu0 0.0
      %3919 = vmatpush1.msra.mxu0 0.0
      %3920 = vmatprep.subr.mxu0 0.0
      %3921 = vmatpush1.msra.mxu0 0.0
      %3922 = vmatprep.subr.mxu0 0.0
      %3923 = vmatpush1.msra.mxu0 0.0
      %3924 = vmatprep.subr.mxu0 0.0
      %3925 = vmatpush1.msra.mxu0 0.0
      %3926 = vmatprep.subr.mxu0 0.0
      %3927 = vmatpush1.msra.mxu0 0.0
      %3928 = vmatprep.subr.mxu0 0.0
      %3929 = vmatpush1.msra.mxu0 0.0
      %3930 = vmatprep.subr.mxu0 0.0
      %3931 = vmatpush1.msra.mxu0 0.0
      %3932 = vmatprep.subr.mxu0 0.0
      %3933 = vmatpush1.msra.mxu0 0.0
      %3934 = vmatprep.subr.mxu0 0.0
      %3935 = vmatpush1.msra.mxu0 0.0
      %3936 = vmatprep.subr.mxu0 0.0
      %3937 = vmatpush1.msra.mxu0 0.0
      %3938 = vmatprep.subr.mxu0 0.0
      %3939 = vmatpush1.msra.mxu0 0.0
      %3940 = vmatprep.subr.mxu0 0.0
      %3941 = vmatpush1.msra.mxu0 0.0
      %3942 = vmatprep.subr.mxu0 0.0
      %3943 = vmatpush1.msra.mxu0 0.0
      %3944 = vmatprep.subr.mxu0 0.0
      %3945 = vmatpush1.msra.mxu0 0.0
      %3946 = vmatprep.mubr.f32.mxu0 0.0
      %3947 = vmatmul.mubr.f32.gmra.mrb[0].mxu0 %v3859
      %v3948 = vpop.f32.mrb[0].mxu0
      %v3949 = vadd.f32 0.0, %v3948
      %v3950 = vpop.f32.mrb[0].mxu0
      %3951 = vmatprep.mubr.f32.mxu0 0.0
      %3952 = vmatmul.mubr.f32.gmra.mrb[0].mxu0 %v3862
      %v3953 = vpop.f32.mrb[0].mxu0
      %v3954 = vadd.f32 0.0, %v3953
      %v3955 = vpop.f32.mrb[0].mxu0
      %3956 = vmatprep.mubr.f32.mxu0 0.0
      %3957 = vmatmul.mubr.f32.gmra.mrb[0].mxu0 %v3865
      %v3958 = vpop.f32.mrb[0].mxu0
      %v3959 = vadd.f32 0.0, %v3958
      %v3960 = vpop.f32.mrb[0].mxu0
      %3961 = vmatprep.mubr.f32.mxu0 0.0
      %3962 = vmatmul.mubr.f32.gmra.mrb[0].mxu0 %v3868
      %v3963 = vpop.f32.mrb[0].mxu0
      %v3964 = vadd.f32 0.0, %v3963
      %v3965 = vpop.f32.mrb[0].mxu0
      %3966 = vmatprep.mubr.f32.mxu0 0.0
      %3967 = vmatmul.mubr.f32.gmra.mrb[0].mxu0 %v3871
      %v3968 = vpop.f32.mrb[0].mxu0
      %v3969 = vadd.f32 0.0, %v3968
      %v3970 = vpop.f32.mrb[0].mxu0
      %3971 = vmatprep.mubr.f32.mxu0 0.0
      %3972 = vmatmul.mubr.f32.gmra.mrb[0].mxu0 %v3874
      %v3973 = vpop.f32.mrb[0].mxu0
      %v3974 = vadd.f32 0.0, %v3973
      %v3975 = vpop.f32.mrb[0].mxu0
      %3976 = vmatprep.mubr.f32.mxu0 0.0
      %3977 = vmatmul.mubr.f32.gmra.mrb[0].mxu0 %v3877
      %v3978 = vpop.f32.mrb[0].mxu0
      %v3979 = vadd.f32 0.0, %v3978
      %v3980 = vpop.f32.mrb[0].mxu0
      %3981 = vmatprep.mubr.f32.mxu0 0.0
      %3982 = vmatmul.mubr.f32.gmra.mrb[0].mxu0 %v3880
      %v3983 = vpop.f32.mrb[0].mxu0
      %v3984 = vadd.f32 0.0, %v3983
      %v3985 = vpop.f32.mrb[0].mxu0
      %3986 = vdwg.mxu0
      %v3987 = vadd.f32 %v3839, %v3949
      %v3988 = vadd.f32 %v3840, %v3954
      %v3989 = vadd.f32 %v3841, %v3959
      %v3990 = vadd.f32 %v3842, %v3964
      %v3991 = vadd.f32 %v3843, %v3969
      %v3992 = vadd.f32 %v3844, %v3974
      %v3993 = vadd.f32 %v3845, %v3979
      %v3994 = vadd.f32 %v3846, %v3984
      %v3995 = vld [vmem:[%s3038 + $0x2] sm:$0xff]
      %v3996 = vld [vmem:[%s3038 + $0x12] sm:$0xff]
      %v3997 = vld [vmem:[%s3038 + $0x22] sm:$0xff]
      %v3998 = vld [vmem:[%s3038 + $0x32] sm:$0xff]
      %v3999 = vld [vmem:[%s3038 + $0x42] sm:$0xff]
      %v4000 = vld [vmem:[%s3038 + $0x52] sm:$0xff]
      %v4001 = vld [vmem:[%s3038 + $0x62] sm:$0xff]
      %v4002 = vld [vmem:[%s3038 + $0x72] sm:$0xff]
      %s4003 = scalar_lea.vmem %s3, 80
      %v4004 = vld [vmem:[%s4003] sm:$0xff]
      %v4005 = vld [vmem:[%s4003 + $0x8] sm:$0xff]
      %v4007 = vsel %vm2953, %v3995, 0
      %v4010 = vsel %vm2953, %v3996, 0
      %v4013 = vsel %vm2953, %v3997, 0
      %v4016 = vsel %vm2953, %v3998, 0
      %v4019 = vsel %vm2953, %v3999, 0
      %v4022 = vsel %vm2953, %v4000, 0
      %v4025 = vsel %vm2953, %v4001, 0
      %v4028 = vsel %vm2953, %v4002, 0
      %4030 = vmatprep.subr.mxu0 0.0
      %4031 = vmatpush1.msra.mxu0 %v4004
      %4032 = vmatprep.subr.mxu0 0.0
      %4033 = vmatpush1.msra.mxu0 %v4005
      %4034 = vmatprep.subr.mxu0 0.0
      %4035 = vmatpush1.msra.mxu0 0.0
      %4036 = vmatprep.subr.mxu0 0.0
      %4037 = vmatpush1.msra.mxu0 0.0
      %4038 = vmatprep.subr.mxu0 0.0
      %4039 = vmatpush1.msra.mxu0 0.0
      %4040 = vmatprep.subr.mxu0 0.0
      %4041 = vmatpush1.msra.mxu0 0.0
      %4042 = vmatprep.subr.mxu0 0.0
      %4043 = vmatpush1.msra.mxu0 0.0
      %4044 = vmatprep.subr.mxu0 0.0
      %4045 = vmatpush1.msra.mxu0 0.0
      %4046 = vmatprep.subr.mxu0 0.0
      %4047 = vmatpush1.msra.mxu0 0.0
      %4048 = vmatprep.subr.mxu0 0.0
      %4049 = vmatpush1.msra.mxu0 0.0
      %4050 = vmatprep.subr.mxu0 0.0
      %4051 = vmatpush1.msra.mxu0 0.0
      %4052 = vmatprep.subr.mxu0 0.0
      %4053 = vmatpush1.msra.mxu0 0.0
      %4054 = vmatprep.subr.mxu0 0.0
      %4055 = vmatpush1.msra.mxu0 0.0
      %4056 = vmatprep.subr.mxu0 0.0
      %4057 = vmatpush1.msra.mxu0 0.0
      %4058 = vmatprep.subr.mxu0 0.0
      %4059 = vmatpush1.msra.mxu0 0.0
      %4060 = vmatprep.subr.mxu0 0.0
      %4061 = vmatpush1.msra.mxu0 0.0
      %4062 = vmatprep.subr.mxu0 0.0
      %4063 = vmatpush1.msra.mxu0 0.0
      %4064 = vmatprep.subr.mxu0 0.0
      %4065 = vmatpush1.msra.mxu0 0.0
      %4066 = vmatprep.subr.mxu0 0.0
      %4067 = vmatpush1.msra.mxu0 0.0
      %4068 = vmatprep.subr.mxu0 0.0
      %4069 = vmatpush1.msra.mxu0 0.0
      %4070 = vmatprep.subr.mxu0 0.0
      %4071 = vmatpush1.msra.mxu0 0.0
      %4072 = vmatprep.subr.mxu0 0.0
      %4073 = vmatpush1.msra.mxu0 0.0
      %4074 = vmatprep.subr.mxu0 0.0
      %4075 = vmatpush1.msra.mxu0 0.0
      %4076 = vmatprep.subr.mxu0 0.0
      %4077 = vmatpush1.msra.mxu0 0.0
      %4078 = vmatprep.subr.mxu0 0.0
      %4079 = vmatpush1.msra.mxu0 0.0
      %4080 = vmatprep.subr.mxu0 0.0
      %4081 = vmatpush1.msra.mxu0 0.0
      %4082 = vmatprep.subr.mxu0 0.0
      %4083 = vmatpush1.msra.mxu0 0.0
      %4084 = vmatprep.subr.mxu0 0.0
      %4085 = vmatpush1.msra.mxu0 0.0
      %4086 = vmatprep.subr.mxu0 0.0
      %4087 = vmatpush1.msra.mxu0 0.0
      %4088 = vmatprep.subr.mxu0 0.0
      %4089 = vmatpush1.msra.mxu0 0.0
      %4090 = vmatprep.subr.mxu0 0.0
      %4091 = vmatpush1.msra.mxu0 0.0
      %4092 = vmatprep.subr.mxu0 0.0
      %4093 = vmatpush1.msra.mxu0 0.0
      %4094 = vmatprep.mubr.f32.mxu0 0.0
      %4095 = vmatmul.mubr.f32.gmra.mrb[0].mxu0 %v4007
      %v4096 = vpop.f32.mrb[0].mxu0
      %v4097 = vadd.f32 0.0, %v4096
      %v4098 = vpop.f32.mrb[0].mxu0
      %4099 = vmatprep.mubr.f32.mxu0 0.0
      %4100 = vmatmul.mubr.f32.gmra.mrb[0].mxu0 %v4010
      %v4101 = vpop.f32.mrb[0].mxu0
      %v4102 = vadd.f32 0.0, %v4101
      %v4103 = vpop.f32.mrb[0].mxu0
      %4104 = vmatprep.mubr.f32.mxu0 0.0
      %4105 = vmatmul.mubr.f32.gmra.mrb[0].mxu0 %v4013
      %v4106 = vpop.f32.mrb[0].mxu0
      %v4107 = vadd.f32 0.0, %v4106
      %v4108 = vpop.f32.mrb[0].mxu0
      %4109 = vmatprep.mubr.f32.mxu0 0.0
      %4110 = vmatmul.mubr.f32.gmra.mrb[0].mxu0 %v4016
      %v4111 = vpop.f32.mrb[0].mxu0
      %v4112 = vadd.f32 0.0, %v4111
      %v4113 = vpop.f32.mrb[0].mxu0
      %4114 = vmatprep.mubr.f32.mxu0 0.0
      %4115 = vmatmul.mubr.f32.gmra.mrb[0].mxu0 %v4019
      %v4116 = vpop.f32.mrb[0].mxu0
      %v4117 = vadd.f32 0.0, %v4116
      %v4118 = vpop.f32.mrb[0].mxu0
      %4119 = vmatprep.mubr.f32.mxu0 0.0
      %4120 = vmatmul.mubr.f32.gmra.mrb[0].mxu0 %v4022
      %v4121 = vpop.f32.mrb[0].mxu0
      %v4122 = vadd.f32 0.0, %v4121
      %v4123 = vpop.f32.mrb[0].mxu0
      %4124 = vmatprep.mubr.f32.mxu0 0.0
      %4125 = vmatmul.mubr.f32.gmra.mrb[0].mxu0 %v4025
      %v4126 = vpop.f32.mrb[0].mxu0
      %v4127 = vadd.f32 0.0, %v4126
      %v4128 = vpop.f32.mrb[0].mxu0
      %4129 = vmatprep.mubr.f32.mxu0 0.0
      %4130 = vmatmul.mubr.f32.gmra.mrb[0].mxu0 %v4028
      %v4131 = vpop.f32.mrb[0].mxu0
      %v4132 = vadd.f32 0.0, %v4131
      %v4133 = vpop.f32.mrb[0].mxu0
      %4134 = vdwg.mxu0
      %v4135 = vadd.f32 %v3987, %v4097
      %v4136 = vadd.f32 %v3988, %v4102
      %v4137 = vadd.f32 %v3989, %v4107
      %v4138 = vadd.f32 %v3990, %v4112
      %v4139 = vadd.f32 %v3991, %v4117
      %v4140 = vadd.f32 %v3992, %v4122
      %v4141 = vadd.f32 %v3993, %v4127
      %v4142 = vadd.f32 %v3994, %v4132
      %s4143 = scalar_lea.vmem [#allocation4], 32
      %v4144 = vld [vmem:[%s4143] sm:$0xff]
      %v4145 = vld [vmem:[%s4143 + $0x10] sm:$0xff]
      %v4146 = vld [vmem:[%s4143 + $0x20] sm:$0xff]
      %v4147 = vld [vmem:[%s4143 + $0x30] sm:$0xff]
      %v4148 = vld [vmem:[%s4143 + $0x40] sm:$0xff]
      %v4149 = vld [vmem:[%s4143 + $0x50] sm:$0xff]
      %v4150 = vld [vmem:[%s4143 + $0x60] sm:$0xff]
      %v4151 = vld [vmem:[%s4143 + $0x70] sm:$0xff]
      %s4152 = scalar_lea.vmem %s3, 96
      %v4153 = vld [vmem:[%s4152] sm:$0xff]
      %v4154 = vld [vmem:[%s4152 + $0x8] sm:$0xff]
      %v4156 = vsel %vm2953, %v4144, 0
      %v4159 = vsel %vm2953, %v4145, 0
      %v4162 = vsel %vm2953, %v4146, 0
      %v4165 = vsel %vm2953, %v4147, 0
      %v4168 = vsel %vm2953, %v4148, 0
      %v4171 = vsel %vm2953, %v4149, 0
      %v4174 = vsel %vm2953, %v4150, 0
      %v4177 = vsel %vm2953, %v4151, 0
      %4179 = vmatprep.subr.mxu0 0.0
      %4180 = vmatpush1.msra.mxu0 %v4153
      %4181 = vmatprep.subr.mxu0 0.0
      %4182 = vmatpush1.msra.mxu0 %v4154
      %4183 = vmatprep.subr.mxu0 0.0
      %4184 = vmatpush1.msra.mxu0 0.0
      %4185 = vmatprep.subr.mxu0 0.0
      %4186 = vmatpush1.msra.mxu0 0.0
      %4187 = vmatprep.subr.mxu0 0.0
      %4188 = vmatpush1.msra.mxu0 0.0
      %4189 = vmatprep.subr.mxu0 0.0
      %4190 = vmatpush1.msra.mxu0 0.0
      %4191 = vmatprep.subr.mxu0 0.0
      %4192 = vmatpush1.msra.mxu0 0.0
      %4193 = vmatprep.subr.mxu0 0.0
      %4194 = vmatpush1.msra.mxu0 0.0
      %4195 = vmatprep.subr.mxu0 0.0
      %4196 = vmatpush1.msra.mxu0 0.0
      %4197 = vmatprep.subr.mxu0 0.0
      %4198 = vmatpush1.msra.mxu0 0.0
      %4199 = vmatprep.subr.mxu0 0.0
      %4200 = vmatpush1.msra.mxu0 0.0
      %4201 = vmatprep.subr.mxu0 0.0
      %4202 = vmatpush1.msra.mxu0 0.0
      %4203 = vmatprep.subr.mxu0 0.0
      %4204 = vmatpush1.msra.mxu0 0.0
      %4205 = vmatprep.subr.mxu0 0.0
      %4206 = vmatpush1.msra.mxu0 0.0
      %4207 = vmatprep.subr.mxu0 0.0
      %4208 = vmatpush1.msra.mxu0 0.0
      %4209 = vmatprep.subr.mxu0 0.0
      %4210 = vmatpush1.msra.mxu0 0.0
      %4211 = vmatprep.subr.mxu0 0.0
      %4212 = vmatpush1.msra.mxu0 0.0
      %4213 = vmatprep.subr.mxu0 0.0
      %4214 = vmatpush1.msra.mxu0 0.0
      %4215 = vmatprep.subr.mxu0 0.0
      %4216 = vmatpush1.msra.mxu0 0.0
      %4217 = vmatprep.subr.mxu0 0.0
      %4218 = vmatpush1.msra.mxu0 0.0
      %4219 = vmatprep.subr.mxu0 0.0
      %4220 = vmatpush1.msra.mxu0 0.0
      %4221 = vmatprep.subr.mxu0 0.0
      %4222 = vmatpush1.msra.mxu0 0.0
      %4223 = vmatprep.subr.mxu0 0.0
      %4224 = vmatpush1.msra.mxu0 0.0
      %4225 = vmatprep.subr.mxu0 0.0
      %4226 = vmatpush1.msra.mxu0 0.0
      %4227 = vmatprep.subr.mxu0 0.0
      %4228 = vmatpush1.msra.mxu0 0.0
      %4229 = vmatprep.subr.mxu0 0.0
      %4230 = vmatpush1.msra.mxu0 0.0
      %4231 = vmatprep.subr.mxu0 0.0
      %4232 = vmatpush1.msra.mxu0 0.0
      %4233 = vmatprep.subr.mxu0 0.0
      %4234 = vmatpush1.msra.mxu0 0.0
      %4235 = vmatprep.subr.mxu0 0.0
      %4236 = vmatpush1.msra.mxu0 0.0
      %4237 = vmatprep.subr.mxu0 0.0
      %4238 = vmatpush1.msra.mxu0 0.0
      %4239 = vmatprep.subr.mxu0 0.0
      %4240 = vmatpush1.msra.mxu0 0.0
      %4241 = vmatprep.subr.mxu0 0.0
      %4242 = vmatpush1.msra.mxu0 0.0
      %4243 = vmatprep.mubr.f32.mxu0 0.0
      %4244 = vmatmul.mubr.f32.gmra.mrb[0].mxu0 %v4156
      %v4245 = vpop.f32.mrb[0].mxu0
      %v4246 = vadd.f32 0.0, %v4245
      %v4247 = vpop.f32.mrb[0].mxu0
      %4248 = vmatprep.mubr.f32.mxu0 0.0
      %4249 = vmatmul.mubr.f32.gmra.mrb[0].mxu0 %v4159
      %v4250 = vpop.f32.mrb[0].mxu0
      %v4251 = vadd.f32 0.0, %v4250
      %v4252 = vpop.f32.mrb[0].mxu0
      %4253 = vmatprep.mubr.f32.mxu0 0.0
      %4254 = vmatmul.mubr.f32.gmra.mrb[0].mxu0 %v4162
      %v4255 = vpop.f32.mrb[0].mxu0
      %v4256 = vadd.f32 0.0, %v4255
      %v4257 = vpop.f32.mrb[0].mxu0
      %4258 = vmatprep.mubr.f32.mxu0 0.0
      %4259 = vmatmul.mubr.f32.gmra.mrb[0].mxu0 %v4165
      %v4260 = vpop.f32.mrb[0].mxu0
      %v4261 = vadd.f32 0.0, %v4260
      %v4262 = vpop.f32.mrb[0].mxu0
      %4263 = vmatprep.mubr.f32.mxu0 0.0
      %4264 = vmatmul.mubr.f32.gmra.mrb[0].mxu0 %v4168
      %v4265 = vpop.f32.mrb[0].mxu0
      %v4266 = vadd.f32 0.0, %v4265
      %v4267 = vpop.f32.mrb[0].mxu0
      %4268 = vmatprep.mubr.f32.mxu0 0.0
      %4269 = vmatmul.mubr.f32.gmra.mrb[0].mxu0 %v4171
      %v4270 = vpop.f32.mrb[0].mxu0
      %v4271 = vadd.f32 0.0, %v4270
      %v4272 = vpop.f32.mrb[0].mxu0
      %4273 = vmatprep.mubr.f32.mxu0 0.0
      %4274 = vmatmul.mubr.f32.gmra.mrb[0].mxu0 %v4174
      %v4275 = vpop.f32.mrb[0].mxu0
      %v4276 = vadd.f32 0.0, %v4275
      %v4277 = vpop.f32.mrb[0].mxu0
      %4278 = vmatprep.mubr.f32.mxu0 0.0
      %4279 = vmatmul.mubr.f32.gmra.mrb[0].mxu0 %v4177
      %v4280 = vpop.f32.mrb[0].mxu0
      %v4281 = vadd.f32 0.0, %v4280
      %v4282 = vpop.f32.mrb[0].mxu0
      %4283 = vdwg.mxu0
      %v4284 = vadd.f32 %v4135, %v4246
      %v4285 = vadd.f32 %v4136, %v4251
      %v4286 = vadd.f32 %v4137, %v4256
      %v4287 = vadd.f32 %v4138, %v4261
      %v4288 = vadd.f32 %v4139, %v4266
      %v4289 = vadd.f32 %v4140, %v4271
      %v4290 = vadd.f32 %v4141, %v4276
      %v4291 = vadd.f32 %v4142, %v4281
      %v4292 = vld [vmem:[%s4143 + $0x1] sm:$0xff]
      %v4293 = vld [vmem:[%s4143 + $0x11] sm:$0xff]
      %v4294 = vld [vmem:[%s4143 + $0x21] sm:$0xff]
      %v4295 = vld [vmem:[%s4143 + $0x31] sm:$0xff]
      %v4296 = vld [vmem:[%s4143 + $0x41] sm:$0xff]
      %v4297 = vld [vmem:[%s4143 + $0x51] sm:$0xff]
      %v4298 = vld [vmem:[%s4143 + $0x61] sm:$0xff]
      %v4299 = vld [vmem:[%s4143 + $0x71] sm:$0xff]
      %s4300 = scalar_lea.vmem %s3, 112
      %v4301 = vld [vmem:[%s4300] sm:$0xff]
      %v4302 = vld [vmem:[%s4300 + $0x8] sm:$0xff]
      %v4304 = vsel %vm2953, %v4292, 0
      %v4307 = vsel %vm2953, %v4293, 0
      %v4310 = vsel %vm2953, %v4294, 0
      %v4313 = vsel %vm2953, %v4295, 0
      %v4316 = vsel %vm2953, %v4296, 0
      %v4319 = vsel %vm2953, %v4297, 0
      %v4322 = vsel %vm2953, %v4298, 0
      %v4325 = vsel %vm2953, %v4299, 0
      %4327 = vmatprep.subr.mxu0 0.0
      %4328 = vmatpush1.msra.mxu0 %v4301
      %4329 = vmatprep.subr.mxu0 0.0
      %4330 = vmatpush1.msra.mxu0 %v4302
      %4331 = vmatprep.subr.mxu0 0.0
      %4332 = vmatpush1.msra.mxu0 0.0
      %4333 = vmatprep.subr.mxu0 0.0
      %4334 = vmatpush1.msra.mxu0 0.0
      %4335 = vmatprep.subr.mxu0 0.0
      %4336 = vmatpush1.msra.mxu0 0.0
      %4337 = vmatprep.subr.mxu0 0.0
      %4338 = vmatpush1.msra.mxu0 0.0
      %4339 = vmatprep.subr.mxu0 0.0
      %4340 = vmatpush1.msra.mxu0 0.0
      %4341 = vmatprep.subr.mxu0 0.0
      %4342 = vmatpush1.msra.mxu0 0.0
      %4343 = vmatprep.subr.mxu0 0.0
      %4344 = vmatpush1.msra.mxu0 0.0
      %4345 = vmatprep.subr.mxu0 0.0
      %4346 = vmatpush1.msra.mxu0 0.0
      %4347 = vmatprep.subr.mxu0 0.0
      %4348 = vmatpush1.msra.mxu0 0.0
      %4349 = vmatprep.subr.mxu0 0.0
      %4350 = vmatpush1.msra.mxu0 0.0
      %4351 = vmatprep.subr.mxu0 0.0
      %4352 = vmatpush1.msra.mxu0 0.0
      %4353 = vmatprep.subr.mxu0 0.0
      %4354 = vmatpush1.msra.mxu0 0.0
      %4355 = vmatprep.subr.mxu0 0.0
      %4356 = vmatpush1.msra.mxu0 0.0
      %4357 = vmatprep.subr.mxu0 0.0
      %4358 = vmatpush1.msra.mxu0 0.0
      %4359 = vmatprep.subr.mxu0 0.0
      %4360 = vmatpush1.msra.mxu0 0.0
      %4361 = vmatprep.subr.mxu0 0.0
      %4362 = vmatpush1.msra.mxu0 0.0
      %4363 = vmatprep.subr.mxu0 0.0
      %4364 = vmatpush1.msra.mxu0 0.0
      %4365 = vmatprep.subr.mxu0 0.0
      %4366 = vmatpush1.msra.mxu0 0.0
      %4367 = vmatprep.subr.mxu0 0.0
      %4368 = vmatpush1.msra.mxu0 0.0
      %4369 = vmatprep.subr.mxu0 0.0
      %4370 = vmatpush1.msra.mxu0 0.0
      %4371 = vmatprep.subr.mxu0 0.0
      %4372 = vmatpush1.msra.mxu0 0.0
      %4373 = vmatprep.subr.mxu0 0.0
      %4374 = vmatpush1.msra.mxu0 0.0
      %4375 = vmatprep.subr.mxu0 0.0
      %4376 = vmatpush1.msra.mxu0 0.0
      %4377 = vmatprep.subr.mxu0 0.0
      %4378 = vmatpush1.msra.mxu0 0.0
      %4379 = vmatprep.subr.mxu0 0.0
      %4380 = vmatpush1.msra.mxu0 0.0
      %4381 = vmatprep.subr.mxu0 0.0
      %4382 = vmatpush1.msra.mxu0 0.0
      %4383 = vmatprep.subr.mxu0 0.0
      %4384 = vmatpush1.msra.mxu0 0.0
      %4385 = vmatprep.subr.mxu0 0.0
      %4386 = vmatpush1.msra.mxu0 0.0
      %4387 = vmatprep.subr.mxu0 0.0
      %4388 = vmatpush1.msra.mxu0 0.0
      %4389 = vmatprep.subr.mxu0 0.0
      %4390 = vmatpush1.msra.mxu0 0.0
      %4391 = vmatprep.mubr.f32.mxu0 0.0
      %4392 = vmatmul.mubr.f32.gmra.mrb[0].mxu0 %v4304
      %v4393 = vpop.f32.mrb[0].mxu0
      %v4394 = vadd.f32 0.0, %v4393
      %v4395 = vpop.f32.mrb[0].mxu0
      %4396 = vmatprep.mubr.f32.mxu0 0.0
      %4397 = vmatmul.mubr.f32.gmra.mrb[0].mxu0 %v4307
      %v4398 = vpop.f32.mrb[0].mxu0
      %v4399 = vadd.f32 0.0, %v4398
      %v4400 = vpop.f32.mrb[0].mxu0
      %4401 = vmatprep.mubr.f32.mxu0 0.0
      %4402 = vmatmul.mubr.f32.gmra.mrb[0].mxu0 %v4310
      %v4403 = vpop.f32.mrb[0].mxu0
      %v4404 = vadd.f32 0.0, %v4403
      %v4405 = vpop.f32.mrb[0].mxu0
      %4406 = vmatprep.mubr.f32.mxu0 0.0
      %4407 = vmatmul.mubr.f32.gmra.mrb[0].mxu0 %v4313
      %v4408 = vpop.f32.mrb[0].mxu0
      %v4409 = vadd.f32 0.0, %v4408
      %v4410 = vpop.f32.mrb[0].mxu0
      %4411 = vmatprep.mubr.f32.mxu0 0.0
      %4412 = vmatmul.mubr.f32.gmra.mrb[0].mxu0 %v4316
      %v4413 = vpop.f32.mrb[0].mxu0
      %v4414 = vadd.f32 0.0, %v4413
      %v4415 = vpop.f32.mrb[0].mxu0
      %4416 = vmatprep.mubr.f32.mxu0 0.0
      %4417 = vmatmul.mubr.f32.gmra.mrb[0].mxu0 %v4319
      %v4418 = vpop.f32.mrb[0].mxu0
      %v4419 = vadd.f32 0.0, %v4418
      %v4420 = vpop.f32.mrb[0].mxu0
      %4421 = vmatprep.mubr.f32.mxu0 0.0
      %4422 = vmatmul.mubr.f32.gmra.mrb[0].mxu0 %v4322
      %v4423 = vpop.f32.mrb[0].mxu0
      %v4424 = vadd.f32 0.0, %v4423
      %v4425 = vpop.f32.mrb[0].mxu0
      %4426 = vmatprep.mubr.f32.mxu0 0.0
      %4427 = vmatmul.mubr.f32.gmra.mrb[0].mxu0 %v4325
      %v4428 = vpop.f32.mrb[0].mxu0
      %v4429 = vadd.f32 0.0, %v4428
      %v4430 = vpop.f32.mrb[0].mxu0
      %4431 = vdwg.mxu0
      %v4432 = vadd.f32 %v4284, %v4394
      %v4433 = vadd.f32 %v4285, %v4399
      %v4434 = vadd.f32 %v4286, %v4404
      %v4435 = vadd.f32 %v4287, %v4409
      %v4436 = vadd.f32 %v4288, %v4414
      %v4437 = vadd.f32 %v4289, %v4419
      %v4438 = vadd.f32 %v4290, %v4424
      %v4439 = vadd.f32 %v4291, %v4429
      %v4440 = vld [vmem:[%s4143 + $0x2] sm:$0xff]
      %v4441 = vld [vmem:[%s4143 + $0x12] sm:$0xff]
      %v4442 = vld [vmem:[%s4143 + $0x22] sm:$0xff]
      %v4443 = vld [vmem:[%s4143 + $0x32] sm:$0xff]
      %v4444 = vld [vmem:[%s4143 + $0x42] sm:$0xff]
      %v4445 = vld [vmem:[%s4143 + $0x52] sm:$0xff]
      %v4446 = vld [vmem:[%s4143 + $0x62] sm:$0xff]
      %v4447 = vld [vmem:[%s4143 + $0x72] sm:$0xff]
      %s4448 = scalar_lea.vmem %s3, 128
      %v4449 = vld [vmem:[%s4448] sm:$0xff]
      %v4450 = vld [vmem:[%s4448 + $0x8] sm:$0xff]
      %v4452 = vsel %vm2953, %v4440, 0
      %v4455 = vsel %vm2953, %v4441, 0
      %v4458 = vsel %vm2953, %v4442, 0
      %v4461 = vsel %vm2953, %v4443, 0
      %v4464 = vsel %vm2953, %v4444, 0
      %v4467 = vsel %vm2953, %v4445, 0
      %v4470 = vsel %vm2953, %v4446, 0
      %v4473 = vsel %vm2953, %v4447, 0
      %4475 = vmatprep.subr.mxu0 0.0
      %4476 = vmatpush1.msra.mxu0 %v4449
      %4477 = vmatprep.subr.mxu0 0.0
      %4478 = vmatpush1.msra.mxu0 %v4450
      %4479 = vmatprep.subr.mxu0 0.0
      %4480 = vmatpush1.msra.mxu0 0.0
      %4481 = vmatprep.subr.mxu0 0.0
      %4482 = vmatpush1.msra.mxu0 0.0
      %4483 = vmatprep.subr.mxu0 0.0
      %4484 = vmatpush1.msra.mxu0 0.0
      %4485 = vmatprep.subr.mxu0 0.0
      %4486 = vmatpush1.msra.mxu0 0.0
      %4487 = vmatprep.subr.mxu0 0.0
      %4488 = vmatpush1.msra.mxu0 0.0
      %4489 = vmatprep.subr.mxu0 0.0
      %4490 = vmatpush1.msra.mxu0 0.0
      %4491 = vmatprep.subr.mxu0 0.0
      %4492 = vmatpush1.msra.mxu0 0.0
      %4493 = vmatprep.subr.mxu0 0.0
      %4494 = vmatpush1.msra.mxu0 0.0
      %4495 = vmatprep.subr.mxu0 0.0
      %4496 = vmatpush1.msra.mxu0 0.0
      %4497 = vmatprep.subr.mxu0 0.0
      %4498 = vmatpush1.msra.mxu0 0.0
      %4499 = vmatprep.subr.mxu0 0.0
      %4500 = vmatpush1.msra.mxu0 0.0
      %4501 = vmatprep.subr.mxu0 0.0
      %4502 = vmatpush1.msra.mxu0 0.0
      %4503 = vmatprep.subr.mxu0 0.0
      %4504 = vmatpush1.msra.mxu0 0.0
      %4505 = vmatprep.subr.mxu0 0.0
      %4506 = vmatpush1.msra.mxu0 0.0
      %4507 = vmatprep.subr.mxu0 0.0
      %4508 = vmatpush1.msra.mxu0 0.0
      %4509 = vmatprep.subr.mxu0 0.0
      %4510 = vmatpush1.msra.mxu0 0.0
      %4511 = vmatprep.subr.mxu0 0.0
      %4512 = vmatpush1.msra.mxu0 0.0
      %4513 = vmatprep.subr.mxu0 0.0
      %4514 = vmatpush1.msra.mxu0 0.0
      %4515 = vmatprep.subr.mxu0 0.0
      %4516 = vmatpush1.msra.mxu0 0.0
      %4517 = vmatprep.subr.mxu0 0.0
      %4518 = vmatpush1.msra.mxu0 0.0
      %4519 = vmatprep.subr.mxu0 0.0
      %4520 = vmatpush1.msra.mxu0 0.0
      %4521 = vmatprep.subr.mxu0 0.0
      %4522 = vmatpush1.msra.mxu0 0.0
      %4523 = vmatprep.subr.mxu0 0.0
      %4524 = vmatpush1.msra.mxu0 0.0
      %4525 = vmatprep.subr.mxu0 0.0
      %4526 = vmatpush1.msra.mxu0 0.0
      %4527 = vmatprep.subr.mxu0 0.0
      %4528 = vmatpush1.msra.mxu0 0.0
      %4529 = vmatprep.subr.mxu0 0.0
      %4530 = vmatpush1.msra.mxu0 0.0
      %4531 = vmatprep.subr.mxu0 0.0
      %4532 = vmatpush1.msra.mxu0 0.0
      %4533 = vmatprep.subr.mxu0 0.0
      %4534 = vmatpush1.msra.mxu0 0.0
      %4535 = vmatprep.subr.mxu0 0.0
      %4536 = vmatpush1.msra.mxu0 0.0
      %4537 = vmatprep.subr.mxu0 0.0
      %4538 = vmatpush1.msra.mxu0 0.0
      %4539 = vmatprep.mubr.f32.mxu0 0.0
      %4540 = vmatmul.mubr.f32.gmra.mrb[0].mxu0 %v4452
      %v4541 = vpop.f32.mrb[0].mxu0
      %v4542 = vadd.f32 0.0, %v4541
      %v4543 = vpop.f32.mrb[0].mxu0
      %4544 = vmatprep.mubr.f32.mxu0 0.0
      %4545 = vmatmul.mubr.f32.gmra.mrb[0].mxu0 %v4455
      %v4546 = vpop.f32.mrb[0].mxu0
      %v4547 = vadd.f32 0.0, %v4546
      %v4548 = vpop.f32.mrb[0].mxu0
      %4549 = vmatprep.mubr.f32.mxu0 0.0
      %4550 = vmatmul.mubr.f32.gmra.mrb[0].mxu0 %v4458
      %v4551 = vpop.f32.mrb[0].mxu0
      %v4552 = vadd.f32 0.0, %v4551
      %v4553 = vpop.f32.mrb[0].mxu0
      %4554 = vmatprep.mubr.f32.mxu0 0.0
      %4555 = vmatmul.mubr.f32.gmra.mrb[0].mxu0 %v4461
      %v4556 = vpop.f32.mrb[0].mxu0
      %v4557 = vadd.f32 0.0, %v4556
      %v4558 = vpop.f32.mrb[0].mxu0
      %4559 = vmatprep.mubr.f32.mxu0 0.0
      %4560 = vmatmul.mubr.f32.gmra.mrb[0].mxu0 %v4464
      %v4561 = vpop.f32.mrb[0].mxu0
      %v4562 = vadd.f32 0.0, %v4561
      %v4563 = vpop.f32.mrb[0].mxu0
      %4564 = vmatprep.mubr.f32.mxu0 0.0
      %4565 = vmatmul.mubr.f32.gmra.mrb[0].mxu0 %v4467
      %v4566 = vpop.f32.mrb[0].mxu0
      %v4567 = vadd.f32 0.0, %v4566
      %v4568 = vpop.f32.mrb[0].mxu0
      %4569 = vmatprep.mubr.f32.mxu0 0.0
      %4570 = vmatmul.mubr.f32.gmra.mrb[0].mxu0 %v4470
      %v4571 = vpop.f32.mrb[0].mxu0
      %v4572 = vadd.f32 0.0, %v4571
      %v4573 = vpop.f32.mrb[0].mxu0
      %4574 = vmatprep.mubr.f32.mxu0 0.0
      %4575 = vmatmul.mubr.f32.gmra.mrb[0].mxu0 %v4473
      %v4576 = vpop.f32.mrb[0].mxu0
      %v4577 = vadd.f32 0.0, %v4576
      %v4578 = vpop.f32.mrb[0].mxu0
      %4579 = vdwg.mxu0
      %v4580 = vadd.f32 %v4432, %v4542
      %v4581 = vadd.f32 %v4433, %v4547
      %v4582 = vadd.f32 %v4434, %v4552
      %v4583 = vadd.f32 %v4435, %v4557
      %v4584 = vadd.f32 %v4436, %v4562
      %v4585 = vadd.f32 %v4437, %v4567
      %v4586 = vadd.f32 %v4438, %v4572
      %v4587 = vadd.f32 %v4439, %v4577
      %v4588 = vld [vmem:[%s4] sm:$0x1]
      %v4590 = vlaneseq
      %v4591 = vshrl.u32 %v4590, 7
      %v4592 = vsub.s32 0, %v4591
      %v4593 = vrot.slane %v4588, %v4592
      %v4595 = vadd.f32 %v4580, %v4593
      %v4596 = vadd.f32 %v4581, %v4593
      %v4597 = vadd.f32 %v4582, %v4593
      %v4598 = vadd.f32 %v4583, %v4593
      %v4599 = vadd.f32 %v4584, %v4593
      %v4600 = vadd.f32 %v4585, %v4593
      %v4601 = vadd.f32 %v4586, %v4593
      %v4602 = vadd.f32 %v4587, %v4593
      %v4603 = vmax.f32 %v4595, 0.0
      %v4604 = vmax.f32 %v4596, 0.0
      %v4605 = vmax.f32 %v4597, 0.0
      %v4606 = vmax.f32 %v4598, 0.0
      %v4607 = vmax.f32 %v4599, 0.0
      %v4608 = vmax.f32 %v4600, 0.0
      %v4609 = vmax.f32 %v4601, 0.0
      %v4610 = vmax.f32 %v4602, 0.0
      %vm4611 = vcmask 259072
      %4612 = vst.msk [vmem:[#allocation6] sm:$0x3f] %vm4611, 0.0
      %4613 = vst.msk [vmem:[#allocation6 + $0x8] sm:$0x3f] %vm4611, 0.0
      %4614 = vst.msk [vmem:[#allocation6 + $0x10] sm:$0x3f] %vm4611, 0.0
      %4615 = vst.msk [vmem:[#allocation6 + $0x18] sm:$0x3f] %vm4611, 0.0
      %4616 = vst.msk [vmem:[#allocation6 + $0x20] sm:$0x3f] %vm4611, 0.0
      %4617 = vst.msk [vmem:[#allocation6 + $0x28] sm:$0x3f] %vm4611, 0.0
      %v4618 = vmax.f32 %v4603, %v4604
      %vm4619 = vcmask 261120
      %4620 = vst.msk [vmem:[#allocation5] sm:$0xff] %vm4619, %v4618
      %v4621 = vmax.f32 %v4605, %v4606
      %s4622 = scalar_lea.vmem [#allocation5], 8
      %4623 = vst.msk [vmem:[%s4622] sm:$0xff] %vm4619, %v4621
      %v4624 = vmax.f32 %v4607, %v4608
      %s4625 = scalar_lea.vmem [#allocation5], 16
      %4626 = vst.msk [vmem:[%s4625] sm:$0xff] %vm4619, %v4624
      %v4627 = vmax.f32 %v4609, %v4610
      %s4628 = scalar_lea.vmem [#allocation5], 24
      %4629 = vst.msk [vmem:[%s4628] sm:$0xff] %vm4619, %v4627
      %v4630 = vld [vmem:[#allocation5] sm:$0x1]
      %v4631 = vld [vmem:[#allocation5 + $0x8] sm:$0x1]
      %v4632 = vld [vmem:[#allocation5 + $0x10] sm:$0x1]
      %v4633 = vld [vmem:[#allocation5 + $0x18] sm:$0x1]
      %v4634 = vld [vmem:[#allocation5 + $0x1] sm:$0x1]
      %v4635 = vld [vmem:[#allocation5 + $0x9] sm:$0x1]
      %v4636 = vld [vmem:[#allocation5 + $0x11] sm:$0x1]
      %v4637 = vld [vmem:[#allocation5 + $0x19] sm:$0x1]
      %v4638 = vmax.f32 %v4630, %v4634
      %v4639 = vmax.f32 %v4631, %v4635
      %v4640 = vmax.f32 %v4632, %v4636
      %v4641 = vmax.f32 %v4633, %v4637
      %s4642 = scalar_lea.vmem [#allocation6], 8
      %vm4643 = vcmask 253952
      %4644 = vst.msk [vmem:[%s4642 + $0x1] sm:$0x1] %vm4643, %v4638
      %4645 = vst.msk [vmem:[%s4642 + $0x9] sm:$0x1] %vm4643, %v4639
      %4646 = vst.msk [vmem:[%s4642 + $0x11] sm:$0x1] %vm4643, %v4640
      %4647 = vst.msk [vmem:[%s4642 + $0x19] sm:$0x1] %vm4643, %v4641
      %v4648 = vld [vmem:[#allocation5 + $0x2] sm:$0x1]
      %v4649 = vld [vmem:[#allocation5 + $0xa] sm:$0x1]
      %v4650 = vld [vmem:[#allocation5 + $0x12] sm:$0x1]
      %v4651 = vld [vmem:[#allocation5 + $0x1a] sm:$0x1]
      %v4652 = vld [vmem:[#allocation5 + $0x3] sm:$0x1]
      %v4653 = vld [vmem:[#allocation5 + $0xb] sm:$0x1]
      %v4654 = vld [vmem:[#allocation5 + $0x13] sm:$0x1]
      %v4655 = vld [vmem:[#allocation5 + $0x1b] sm:$0x1]
      %v4656 = vmax.f32 %v4648, %v4652
      %v4657 = vmax.f32 %v4649, %v4653
      %v4658 = vmax.f32 %v4650, %v4654
      %v4659 = vmax.f32 %v4651, %v4655
      %4660 = vst.msk [vmem:[%s4642 + $0x2] sm:$0x1] %vm4643, %v4656
      %4661 = vst.msk [vmem:[%s4642 + $0xa] sm:$0x1] %vm4643, %v4657
      %4662 = vst.msk [vmem:[%s4642 + $0x12] sm:$0x1] %vm4643, %v4658
      %4663 = vst.msk [vmem:[%s4642 + $0x1a] sm:$0x1] %vm4643, %v4659
      %v4664 = vld [vmem:[#allocation5 + $0x4] sm:$0x1]
      %v4665 = vld [vmem:[#allocation5 + $0xc] sm:$0x1]
      %v4666 = vld [vmem:[#allocation5 + $0x14] sm:$0x1]
      %v4667 = vld [vmem:[#allocation5 + $0x1c] sm:$0x1]
      %v4668 = vld [vmem:[#allocation5 + $0x5] sm:$0x1]
      %v4669 = vld [vmem:[#allocation5 + $0xd] sm:$0x1]
      %v4670 = vld [vmem:[#allocation5 + $0x15] sm:$0x1]
      %v4671 = vld [vmem:[#allocation5 + $0x1d] sm:$0x1]
      %v4672 = vmax.f32 %v4664, %v4668
      %v4673 = vmax.f32 %v4665, %v4669
      %v4674 = vmax.f32 %v4666, %v4670
      %v4675 = vmax.f32 %v4667, %v4671
      %4676 = vst.msk [vmem:[%s4642 + $0x3] sm:$0x1] %vm4643, %v4672
      %4677 = vst.msk [vmem:[%s4642 + $0xb] sm:$0x1] %vm4643, %v4673
      %4678 = vst.msk [vmem:[%s4642 + $0x13] sm:$0x1] %vm4643, %v4674
      %4679 = vst.msk [vmem:[%s4642 + $0x1b] sm:$0x1] %vm4643, %v4675
      %v4680 = vld [vmem:[#allocation5 + $0x6] sm:$0x1]
      %v4681 = vld [vmem:[#allocation5 + $0xe] sm:$0x1]
      %v4682 = vld [vmem:[#allocation5 + $0x16] sm:$0x1]
      %v4683 = vld [vmem:[#allocation5 + $0x1e] sm:$0x1]
      %v4684 = vld [vmem:[#allocation5 + $0x7] sm:$0x1]
      %v4685 = vld [vmem:[#allocation5 + $0xf] sm:$0x1]
      %v4686 = vld [vmem:[#allocation5 + $0x17] sm:$0x1]
      %v4687 = vld [vmem:[#allocation5 + $0x1f] sm:$0x1]
      %v4688 = vmax.f32 %v4680, %v4684
      %v4689 = vmax.f32 %v4681, %v4685
      %v4690 = vmax.f32 %v4682, %v4686
      %v4691 = vmax.f32 %v4683, %v4687
      %4692 = vst.msk [vmem:[%s4642 + $0x4] sm:$0x1] %vm4643, %v4688
      %4693 = vst.msk [vmem:[%s4642 + $0xc] sm:$0x1] %vm4643, %v4689
      %4694 = vst.msk [vmem:[%s4642 + $0x14] sm:$0x1] %vm4643, %v4690
      %4695 = vst.msk [vmem:[%s4642 + $0x1c] sm:$0x1] %vm4643, %v4691
      %v4696 = vld [vmem:[#allocation6] sm:$0xf]
      %v4697 = vld [vmem:[%s5] sm:$0xff]
      %v4698 = vld [vmem:[%s5 + $0x8] sm:$0xff]
      %v4699 = vld [vmem:[%s5 + $0x10] sm:$0xff]
      %v4700 = vld [vmem:[%s5 + $0x18] sm:$0xff]
      %v4701 = vld [vmem:[#allocation6 + $0x1] sm:$0xf]
      %s4702 = scalar_lea.vmem %s5, 32
      %v4703 = vld [vmem:[%s4702] sm:$0xff]
      %v4704 = vld [vmem:[%s4702 + $0x8] sm:$0xff]
      %v4705 = vld [vmem:[%s4702 + $0x10] sm:$0xff]
      %v4706 = vld [vmem:[%s4702 + $0x18] sm:$0xff]
      %v4708 = vsel %vm4619, %v4701, 0
      %4710 = vmatprep.subr.mxu0 0.0
      %4711 = vmatpush1.msra.mxu0 %v4703
      %4712 = vmatprep.subr.mxu0 0.0
      %4713 = vmatpush1.msra.mxu0 %v4704
      %4714 = vmatprep.subr.mxu0 0.0
      %4715 = vmatpush1.msra.mxu0 %v4705
      %4716 = vmatprep.subr.mxu0 0.0
      %4717 = vmatpush1.msra.mxu0 %v4706
      %4718 = vmatprep.subr.mxu0 0.0
      %4719 = vmatpush1.msra.mxu0 0.0
      %4720 = vmatprep.subr.mxu0 0.0
      %4721 = vmatpush1.msra.mxu0 0.0
      %4722 = vmatprep.subr.mxu0 0.0
      %4723 = vmatpush1.msra.mxu0 0.0
      %4724 = vmatprep.subr.mxu0 0.0
      %4725 = vmatpush1.msra.mxu0 0.0
      %4726 = vmatprep.subr.mxu0 0.0
      %4727 = vmatpush1.msra.mxu0 0.0
      %4728 = vmatprep.subr.mxu0 0.0
      %4729 = vmatpush1.msra.mxu0 0.0
      %4730 = vmatprep.subr.mxu0 0.0
      %4731 = vmatpush1.msra.mxu0 0.0
      %4732 = vmatprep.subr.mxu0 0.0
      %4733 = vmatpush1.msra.mxu0 0.0
      %4734 = vmatprep.subr.mxu0 0.0
      %4735 = vmatpush1.msra.mxu0 0.0
      %4736 = vmatprep.subr.mxu0 0.0
      %4737 = vmatpush1.msra.mxu0 0.0
      %4738 = vmatprep.subr.mxu0 0.0
      %4739 = vmatpush1.msra.mxu0 0.0
      %4740 = vmatprep.subr.mxu0 0.0
      %4741 = vmatpush1.msra.mxu0 0.0
      %4742 = vmatprep.subr.mxu0 0.0
      %4743 = vmatpush1.msra.mxu0 0.0
      %4744 = vmatprep.subr.mxu0 0.0
      %4745 = vmatpush1.msra.mxu0 0.0
      %4746 = vmatprep.subr.mxu0 0.0
      %4747 = vmatpush1.msra.mxu0 0.0
      %4748 = vmatprep.subr.mxu0 0.0
      %4749 = vmatpush1.msra.mxu0 0.0
      %4750 = vmatprep.subr.mxu0 0.0
      %4751 = vmatpush1.msra.mxu0 0.0
      %4752 = vmatprep.subr.mxu0 0.0
      %4753 = vmatpush1.msra.mxu0 0.0
      %4754 = vmatprep.subr.mxu0 0.0
      %4755 = vmatpush1.msra.mxu0 0.0
      %4756 = vmatprep.subr.mxu0 0.0
      %4757 = vmatpush1.msra.mxu0 0.0
      %4758 = vmatprep.subr.mxu0 0.0
      %4759 = vmatpush1.msra.mxu0 0.0
      %4760 = vmatprep.subr.mxu0 0.0
      %4761 = vmatpush1.msra.mxu0 0.0
      %4762 = vmatprep.subr.mxu0 0.0
      %4763 = vmatpush1.msra.mxu0 0.0
      %4764 = vmatprep.subr.mxu0 0.0
      %4765 = vmatpush1.msra.mxu0 0.0
      %4766 = vmatprep.subr.mxu0 0.0
      %4767 = vmatpush1.msra.mxu0 0.0
      %4768 = vmatprep.subr.mxu0 0.0
      %4769 = vmatpush1.msra.mxu0 0.0
      %4770 = vmatprep.subr.mxu0 0.0
      %4771 = vmatpush1.msra.mxu0 0.0
      %4772 = vmatprep.subr.mxu0 0.0
      %4773 = vmatpush1.msra.mxu0 0.0
      %4774 = vmatprep.mubr.f32.mxu0 0.0
      %4775 = vmatmul.mubr.f32.gmra.mrb[0].mxu0 %v4708
      %v4776 = vpop.f32.mrb[0].mxu0
      %v4777 = vadd.f32 0.0, %v4776
      %v4778 = vpop.f32.mrb[0].mxu0
      %4779 = vdwg.mxu0
      %v4781 = vsel %vm4619, %v4696, 0
      %4783 = vmatprep.subr.mxu0 0.0
      %4784 = vmatpush1.msra.mxu0 %v4697
      %4785 = vmatprep.subr.mxu0 0.0
      %4786 = vmatpush1.msra.mxu0 %v4698
      %4787 = vmatprep.subr.mxu0 0.0
      %4788 = vmatpush1.msra.mxu0 %v4699
      %4789 = vmatprep.subr.mxu0 0.0
      %4790 = vmatpush1.msra.mxu0 %v4700
      %4791 = vmatprep.subr.mxu0 0.0
      %4792 = vmatpush1.msra.mxu0 0.0
      %4793 = vmatprep.subr.mxu0 0.0
      %4794 = vmatpush1.msra.mxu0 0.0
      %4795 = vmatprep.subr.mxu0 0.0
      %4796 = vmatpush1.msra.mxu0 0.0
      %4797 = vmatprep.subr.mxu0 0.0
      %4798 = vmatpush1.msra.mxu0 0.0
      %4799 = vmatprep.subr.mxu0 0.0
      %4800 = vmatpush1.msra.mxu0 0.0
      %4801 = vmatprep.subr.mxu0 0.0
      %4802 = vmatpush1.msra.mxu0 0.0
      %4803 = vmatprep.subr.mxu0 0.0
      %4804 = vmatpush1.msra.mxu0 0.0
      %4805 = vmatprep.subr.mxu0 0.0
      %4806 = vmatpush1.msra.mxu0 0.0
      %4807 = vmatprep.subr.mxu0 0.0
      %4808 = vmatpush1.msra.mxu0 0.0
      %4809 = vmatprep.subr.mxu0 0.0
      %4810 = vmatpush1.msra.mxu0 0.0
      %4811 = vmatprep.subr.mxu0 0.0
      %4812 = vmatpush1.msra.mxu0 0.0
      %4813 = vmatprep.subr.mxu0 0.0
      %4814 = vmatpush1.msra.mxu0 0.0
      %4815 = vmatprep.subr.mxu0 0.0
      %4816 = vmatpush1.msra.mxu0 0.0
      %4817 = vmatprep.subr.mxu0 0.0
      %4818 = vmatpush1.msra.mxu0 0.0
      %4819 = vmatprep.subr.mxu0 0.0
      %4820 = vmatpush1.msra.mxu0 0.0
      %4821 = vmatprep.subr.mxu0 0.0
      %4822 = vmatpush1.msra.mxu0 0.0
      %4823 = vmatprep.subr.mxu0 0.0
      %4824 = vmatpush1.msra.mxu0 0.0
      %4825 = vmatprep.subr.mxu0 0.0
      %4826 = vmatpush1.msra.mxu0 0.0
      %4827 = vmatprep.subr.mxu0 0.0
      %4828 = vmatpush1.msra.mxu0 0.0
      %4829 = vmatprep.subr.mxu0 0.0
      %4830 = vmatpush1.msra.mxu0 0.0
      %4831 = vmatprep.subr.mxu0 0.0
      %4832 = vmatpush1.msra.mxu0 0.0
      %4833 = vmatprep.subr.mxu0 0.0
      %4834 = vmatpush1.msra.mxu0 0.0
      %4835 = vmatprep.subr.mxu0 0.0
      %4836 = vmatpush1.msra.mxu0 0.0
      %4837 = vmatprep.subr.mxu0 0.0
      %4838 = vmatpush1.msra.mxu0 0.0
      %4839 = vmatprep.subr.mxu0 0.0
      %4840 = vmatpush1.msra.mxu0 0.0
      %4841 = vmatprep.subr.mxu0 0.0
      %4842 = vmatpush1.msra.mxu0 0.0
      %4843 = vmatprep.subr.mxu0 0.0
      %4844 = vmatpush1.msra.mxu0 0.0
      %4845 = vmatprep.subr.mxu0 0.0
      %4846 = vmatpush1.msra.mxu0 0.0
      %4847 = vmatprep.mubr.f32.mxu0 0.0
      %4848 = vmatmul.mubr.f32.gmra.mrb[0].mxu0 %v4781
      %v4849 = vpop.f32.mrb[0].mxu0
      %v4850 = vadd.f32 %v4777, %v4849
      %v4851 = vpop.f32.mrb[0].mxu0
      %4852 = vdwg.mxu0
      %v4853 = vld [vmem:[#allocation6 + $0x2] sm:$0xf]
      %s4854 = scalar_lea.vmem %s5, 64
      %v4855 = vld [vmem:[%s4854] sm:$0xff]
      %v4856 = vld [vmem:[%s4854 + $0x8] sm:$0xff]
      %v4857 = vld [vmem:[%s4854 + $0x10] sm:$0xff]
      %v4858 = vld [vmem:[%s4854 + $0x18] sm:$0xff]
      %v4860 = vsel %vm4619, %v4853, 0
      %4862 = vmatprep.subr.mxu0 0.0
      %4863 = vmatpush1.msra.mxu0 %v4855
      %4864 = vmatprep.subr.mxu0 0.0
      %4865 = vmatpush1.msra.mxu0 %v4856
      %4866 = vmatprep.subr.mxu0 0.0
      %4867 = vmatpush1.msra.mxu0 %v4857
      %4868 = vmatprep.subr.mxu0 0.0
      %4869 = vmatpush1.msra.mxu0 %v4858
      %4870 = vmatprep.subr.mxu0 0.0
      %4871 = vmatpush1.msra.mxu0 0.0
      %4872 = vmatprep.subr.mxu0 0.0
      %4873 = vmatpush1.msra.mxu0 0.0
      %4874 = vmatprep.subr.mxu0 0.0
      %4875 = vmatpush1.msra.mxu0 0.0
      %4876 = vmatprep.subr.mxu0 0.0
      %4877 = vmatpush1.msra.mxu0 0.0
      %4878 = vmatprep.subr.mxu0 0.0
      %4879 = vmatpush1.msra.mxu0 0.0
      %4880 = vmatprep.subr.mxu0 0.0
      %4881 = vmatpush1.msra.mxu0 0.0
      %4882 = vmatprep.subr.mxu0 0.0
      %4883 = vmatpush1.msra.mxu0 0.0
      %4884 = vmatprep.subr.mxu0 0.0
      %4885 = vmatpush1.msra.mxu0 0.0
      %4886 = vmatprep.subr.mxu0 0.0
      %4887 = vmatpush1.msra.mxu0 0.0
      %4888 = vmatprep.subr.mxu0 0.0
      %4889 = vmatpush1.msra.mxu0 0.0
      %4890 = vmatprep.subr.mxu0 0.0
      %4891 = vmatpush1.msra.mxu0 0.0
      %4892 = vmatprep.subr.mxu0 0.0
      %4893 = vmatpush1.msra.mxu0 0.0
      %4894 = vmatprep.subr.mxu0 0.0
      %4895 = vmatpush1.msra.mxu0 0.0
      %4896 = vmatprep.subr.mxu0 0.0
      %4897 = vmatpush1.msra.mxu0 0.0
      %4898 = vmatprep.subr.mxu0 0.0
      %4899 = vmatpush1.msra.mxu0 0.0
      %4900 = vmatprep.subr.mxu0 0.0
      %4901 = vmatpush1.msra.mxu0 0.0
      %4902 = vmatprep.subr.mxu0 0.0
      %4903 = vmatpush1.msra.mxu0 0.0
      %4904 = vmatprep.subr.mxu0 0.0
      %4905 = vmatpush1.msra.mxu0 0.0
      %4906 = vmatprep.subr.mxu0 0.0
      %4907 = vmatpush1.msra.mxu0 0.0
      %4908 = vmatprep.subr.mxu0 0.0
      %4909 = vmatpush1.msra.mxu0 0.0
      %4910 = vmatprep.subr.mxu0 0.0
      %4911 = vmatpush1.msra.mxu0 0.0
      %4912 = vmatprep.subr.mxu0 0.0
      %4913 = vmatpush1.msra.mxu0 0.0
      %4914 = vmatprep.subr.mxu0 0.0
      %4915 = vmatpush1.msra.mxu0 0.0
      %4916 = vmatprep.subr.mxu0 0.0
      %4917 = vmatpush1.msra.mxu0 0.0
      %4918 = vmatprep.subr.mxu0 0.0
      %4919 = vmatpush1.msra.mxu0 0.0
      %4920 = vmatprep.subr.mxu0 0.0
      %4921 = vmatpush1.msra.mxu0 0.0
      %4922 = vmatprep.subr.mxu0 0.0
      %4923 = vmatpush1.msra.mxu0 0.0
      %4924 = vmatprep.subr.mxu0 0.0
      %4925 = vmatpush1.msra.mxu0 0.0
      %4926 = vmatprep.mubr.f32.mxu0 0.0
      %4927 = vmatmul.mubr.f32.gmra.mrb[0].mxu0 %v4860
      %v4928 = vpop.f32.mrb[0].mxu0
      %v4929 = vadd.f32 0.0, %v4928
      %v4930 = vpop.f32.mrb[0].mxu0
      %4931 = vdwg.mxu0
      %v4932 = vadd.f32 %v4850, %v4929
      %v4933 = vld [vmem:[%s4642] sm:$0xf]
      %s4934 = scalar_lea.vmem %s5, 96
      %v4935 = vld [vmem:[%s4934] sm:$0xff]
      %v4936 = vld [vmem:[%s4934 + $0x8] sm:$0xff]
      %v4937 = vld [vmem:[%s4934 + $0x10] sm:$0xff]
      %v4938 = vld [vmem:[%s4934 + $0x18] sm:$0xff]
      %v4940 = vsel %vm4619, %v4933, 0
      %4942 = vmatprep.subr.mxu0 0.0
      %4943 = vmatpush1.msra.mxu0 %v4935
      %4944 = vmatprep.subr.mxu0 0.0
      %4945 = vmatpush1.msra.mxu0 %v4936
      %4946 = vmatprep.subr.mxu0 0.0
      %4947 = vmatpush1.msra.mxu0 %v4937
      %4948 = vmatprep.subr.mxu0 0.0
      %4949 = vmatpush1.msra.mxu0 %v4938
      %4950 = vmatprep.subr.mxu0 0.0
      %4951 = vmatpush1.msra.mxu0 0.0
      %4952 = vmatprep.subr.mxu0 0.0
      %4953 = vmatpush1.msra.mxu0 0.0
      %4954 = vmatprep.subr.mxu0 0.0
      %4955 = vmatpush1.msra.mxu0 0.0
      %4956 = vmatprep.subr.mxu0 0.0
      %4957 = vmatpush1.msra.mxu0 0.0
      %4958 = vmatprep.subr.mxu0 0.0
      %4959 = vmatpush1.msra.mxu0 0.0
      %4960 = vmatprep.subr.mxu0 0.0
      %4961 = vmatpush1.msra.mxu0 0.0
      %4962 = vmatprep.subr.mxu0 0.0
      %4963 = vmatpush1.msra.mxu0 0.0
      %4964 = vmatprep.subr.mxu0 0.0
      %4965 = vmatpush1.msra.mxu0 0.0
      %4966 = vmatprep.subr.mxu0 0.0
      %4967 = vmatpush1.msra.mxu0 0.0
      %4968 = vmatprep.subr.mxu0 0.0
      %4969 = vmatpush1.msra.mxu0 0.0
      %4970 = vmatprep.subr.mxu0 0.0
      %4971 = vmatpush1.msra.mxu0 0.0
      %4972 = vmatprep.subr.mxu0 0.0
      %4973 = vmatpush1.msra.mxu0 0.0
      %4974 = vmatprep.subr.mxu0 0.0
      %4975 = vmatpush1.msra.mxu0 0.0
      %4976 = vmatprep.subr.mxu0 0.0
      %4977 = vmatpush1.msra.mxu0 0.0
      %4978 = vmatprep.subr.mxu0 0.0
      %4979 = vmatpush1.msra.mxu0 0.0
      %4980 = vmatprep.subr.mxu0 0.0
      %4981 = vmatpush1.msra.mxu0 0.0
      %4982 = vmatprep.subr.mxu0 0.0
      %4983 = vmatpush1.msra.mxu0 0.0
      %4984 = vmatprep.subr.mxu0 0.0
      %4985 = vmatpush1.msra.mxu0 0.0
      %4986 = vmatprep.subr.mxu0 0.0
      %4987 = vmatpush1.msra.mxu0 0.0
      %4988 = vmatprep.subr.mxu0 0.0
      %4989 = vmatpush1.msra.mxu0 0.0
      %4990 = vmatprep.subr.mxu0 0.0
      %4991 = vmatpush1.msra.mxu0 0.0
      %4992 = vmatprep.subr.mxu0 0.0
      %4993 = vmatpush1.msra.mxu0 0.0
      %4994 = vmatprep.subr.mxu0 0.0
      %4995 = vmatpush1.msra.mxu0 0.0
      %4996 = vmatprep.subr.mxu0 0.0
      %4997 = vmatpush1.msra.mxu0 0.0
      %4998 = vmatprep.subr.mxu0 0.0
      %4999 = vmatpush1.msra.mxu0 0.0
      %5000 = vmatprep.subr.mxu0 0.0
      %5001 = vmatpush1.msra.mxu0 0.0
      %5002 = vmatprep.subr.mxu0 0.0
      %5003 = vmatpush1.msra.mxu0 0.0
      %5004 = vmatprep.subr.mxu0 0.0
      %5005 = vmatpush1.msra.mxu0 0.0
      %5006 = vmatprep.mubr.f32.mxu0 0.0
      %5007 = vmatmul.mubr.f32.gmra.mrb[0].mxu0 %v4940
      %v5008 = vpop.f32.mrb[0].mxu0
      %v5009 = vadd.f32 0.0, %v5008
      %v5010 = vpop.f32.mrb[0].mxu0
      %5011 = vdwg.mxu0
      %v5012 = vadd.f32 %v4932, %v5009
      %v5013 = vld [vmem:[%s4642 + $0x1] sm:$0xf]
      %s5014 = scalar_lea.vmem %s5, 128
      %v5015 = vld [vmem:[%s5014] sm:$0xff]
      %v5016 = vld [vmem:[%s5014 + $0x8] sm:$0xff]
      %v5017 = vld [vmem:[%s5014 + $0x10] sm:$0xff]
      %v5018 = vld [vmem:[%s5014 + $0x18] sm:$0xff]
      %v5020 = vsel %vm4619, %v5013, 0
      %5022 = vmatprep.subr.mxu0 0.0
      %5023 = vmatpush1.msra.mxu0 %v5015
      %5024 = vmatprep.subr.mxu0 0.0
      %5025 = vmatpush1.msra.mxu0 %v5016
      %5026 = vmatprep.subr.mxu0 0.0
      %5027 = vmatpush1.msra.mxu0 %v5017
      %5028 = vmatprep.subr.mxu0 0.0
      %5029 = vmatpush1.msra.mxu0 %v5018
      %5030 = vmatprep.subr.mxu0 0.0
      %5031 = vmatpush1.msra.mxu0 0.0
      %5032 = vmatprep.subr.mxu0 0.0
      %5033 = vmatpush1.msra.mxu0 0.0
      %5034 = vmatprep.subr.mxu0 0.0
      %5035 = vmatpush1.msra.mxu0 0.0
      %5036 = vmatprep.subr.mxu0 0.0
      %5037 = vmatpush1.msra.mxu0 0.0
      %5038 = vmatprep.subr.mxu0 0.0
      %5039 = vmatpush1.msra.mxu0 0.0
      %5040 = vmatprep.subr.mxu0 0.0
      %5041 = vmatpush1.msra.mxu0 0.0
      %5042 = vmatprep.subr.mxu0 0.0
      %5043 = vmatpush1.msra.mxu0 0.0
      %5044 = vmatprep.subr.mxu0 0.0
      %5045 = vmatpush1.msra.mxu0 0.0
      %5046 = vmatprep.subr.mxu0 0.0
      %5047 = vmatpush1.msra.mxu0 0.0
      %5048 = vmatprep.subr.mxu0 0.0
      %5049 = vmatpush1.msra.mxu0 0.0
      %5050 = vmatprep.subr.mxu0 0.0
      %5051 = vmatpush1.msra.mxu0 0.0
      %5052 = vmatprep.subr.mxu0 0.0
      %5053 = vmatpush1.msra.mxu0 0.0
      %5054 = vmatprep.subr.mxu0 0.0
      %5055 = vmatpush1.msra.mxu0 0.0
      %5056 = vmatprep.subr.mxu0 0.0
      %5057 = vmatpush1.msra.mxu0 0.0
      %5058 = vmatprep.subr.mxu0 0.0
      %5059 = vmatpush1.msra.mxu0 0.0
      %5060 = vmatprep.subr.mxu0 0.0
      %5061 = vmatpush1.msra.mxu0 0.0
      %5062 = vmatprep.subr.mxu0 0.0
      %5063 = vmatpush1.msra.mxu0 0.0
      %5064 = vmatprep.subr.mxu0 0.0
      %5065 = vmatpush1.msra.mxu0 0.0
      %5066 = vmatprep.subr.mxu0 0.0
      %5067 = vmatpush1.msra.mxu0 0.0
      %5068 = vmatprep.subr.mxu0 0.0
      %5069 = vmatpush1.msra.mxu0 0.0
      %5070 = vmatprep.subr.mxu0 0.0
      %5071 = vmatpush1.msra.mxu0 0.0
      %5072 = vmatprep.subr.mxu0 0.0
      %5073 = vmatpush1.msra.mxu0 0.0
      %5074 = vmatprep.subr.mxu0 0.0
      %5075 = vmatpush1.msra.mxu0 0.0
      %5076 = vmatprep.subr.mxu0 0.0
      %5077 = vmatpush1.msra.mxu0 0.0
      %5078 = vmatprep.subr.mxu0 0.0
      %5079 = vmatpush1.msra.mxu0 0.0
      %5080 = vmatprep.subr.mxu0 0.0
      %5081 = vmatpush1.msra.mxu0 0.0
      %5082 = vmatprep.subr.mxu0 0.0
      %5083 = vmatpush1.msra.mxu0 0.0
      %5084 = vmatprep.subr.mxu0 0.0
      %5085 = vmatpush1.msra.mxu0 0.0
      %5086 = vmatprep.mubr.f32.mxu0 0.0
      %5087 = vmatmul.mubr.f32.gmra.mrb[0].mxu0 %v5020
      %v5088 = vpop.f32.mrb[0].mxu0
      %v5089 = vadd.f32 0.0, %v5088
      %v5090 = vpop.f32.mrb[0].mxu0
      %5091 = vdwg.mxu0
      %v5092 = vadd.f32 %v5012, %v5089
      %v5093 = vld [vmem:[%s4642 + $0x2] sm:$0xf]
      %s5094 = scalar_lea.vmem %s5, 160
      %v5095 = vld [vmem:[%s5094] sm:$0xff]
      %v5096 = vld [vmem:[%s5094 + $0x8] sm:$0xff]
      %v5097 = vld [vmem:[%s5094 + $0x10] sm:$0xff]
      %v5098 = vld [vmem:[%s5094 + $0x18] sm:$0xff]
      %v5100 = vsel %vm4619, %v5093, 0
      %5102 = vmatprep.subr.mxu0 0.0
      %5103 = vmatpush1.msra.mxu0 %v5095
      %5104 = vmatprep.subr.mxu0 0.0
      %5105 = vmatpush1.msra.mxu0 %v5096
      %5106 = vmatprep.subr.mxu0 0.0
      %5107 = vmatpush1.msra.mxu0 %v5097
      %5108 = vmatprep.subr.mxu0 0.0
      %5109 = vmatpush1.msra.mxu0 %v5098
      %5110 = vmatprep.subr.mxu0 0.0
      %5111 = vmatpush1.msra.mxu0 0.0
      %5112 = vmatprep.subr.mxu0 0.0
      %5113 = vmatpush1.msra.mxu0 0.0
      %5114 = vmatprep.subr.mxu0 0.0
      %5115 = vmatpush1.msra.mxu0 0.0
      %5116 = vmatprep.subr.mxu0 0.0
      %5117 = vmatpush1.msra.mxu0 0.0
      %5118 = vmatprep.subr.mxu0 0.0
      %5119 = vmatpush1.msra.mxu0 0.0
      %5120 = vmatprep.subr.mxu0 0.0
      %5121 = vmatpush1.msra.mxu0 0.0
      %5122 = vmatprep.subr.mxu0 0.0
      %5123 = vmatpush1.msra.mxu0 0.0
      %5124 = vmatprep.subr.mxu0 0.0
      %5125 = vmatpush1.msra.mxu0 0.0
      %5126 = vmatprep.subr.mxu0 0.0
      %5127 = vmatpush1.msra.mxu0 0.0
      %5128 = vmatprep.subr.mxu0 0.0
      %5129 = vmatpush1.msra.mxu0 0.0
      %5130 = vmatprep.subr.mxu0 0.0
      %5131 = vmatpush1.msra.mxu0 0.0
      %5132 = vmatprep.subr.mxu0 0.0
      %5133 = vmatpush1.msra.mxu0 0.0
      %5134 = vmatprep.subr.mxu0 0.0
      %5135 = vmatpush1.msra.mxu0 0.0
      %5136 = vmatprep.subr.mxu0 0.0
      %5137 = vmatpush1.msra.mxu0 0.0
      %5138 = vmatprep.subr.mxu0 0.0
      %5139 = vmatpush1.msra.mxu0 0.0
      %5140 = vmatprep.subr.mxu0 0.0
      %5141 = vmatpush1.msra.mxu0 0.0
      %5142 = vmatprep.subr.mxu0 0.0
      %5143 = vmatpush1.msra.mxu0 0.0
      %5144 = vmatprep.subr.mxu0 0.0
      %5145 = vmatpush1.msra.mxu0 0.0
      %5146 = vmatprep.subr.mxu0 0.0
      %5147 = vmatpush1.msra.mxu0 0.0
      %5148 = vmatprep.subr.mxu0 0.0
      %5149 = vmatpush1.msra.mxu0 0.0
      %5150 = vmatprep.subr.mxu0 0.0
      %5151 = vmatpush1.msra.mxu0 0.0
      %5152 = vmatprep.subr.mxu0 0.0
      %5153 = vmatpush1.msra.mxu0 0.0
      %5154 = vmatprep.subr.mxu0 0.0
      %5155 = vmatpush1.msra.mxu0 0.0
      %5156 = vmatprep.subr.mxu0 0.0
      %5157 = vmatpush1.msra.mxu0 0.0
      %5158 = vmatprep.subr.mxu0 0.0
      %5159 = vmatpush1.msra.mxu0 0.0
      %5160 = vmatprep.subr.mxu0 0.0
      %5161 = vmatpush1.msra.mxu0 0.0
      %5162 = vmatprep.subr.mxu0 0.0
      %5163 = vmatpush1.msra.mxu0 0.0
      %5164 = vmatprep.subr.mxu0 0.0
      %5165 = vmatpush1.msra.mxu0 0.0
      %5166 = vmatprep.mubr.f32.mxu0 0.0
      %5167 = vmatmul.mubr.f32.gmra.mrb[0].mxu0 %v5100
      %v5168 = vpop.f32.mrb[0].mxu0
      %v5169 = vadd.f32 0.0, %v5168
      %v5170 = vpop.f32.mrb[0].mxu0
      %5171 = vdwg.mxu0
      %v5172 = vadd.f32 %v5092, %v5169
      %s5173 = scalar_lea.vmem [#allocation6], 16
      %v5174 = vld [vmem:[%s5173] sm:$0xf]
      %s5175 = scalar_lea.vmem %s5, 192
      %v5176 = vld [vmem:[%s5175] sm:$0xff]
      %v5177 = vld [vmem:[%s5175 + $0x8] sm:$0xff]
      %v5178 = vld [vmem:[%s5175 + $0x10] sm:$0xff]
      %v5179 = vld [vmem:[%s5175 + $0x18] sm:$0xff]
      %v5181 = vsel %vm4619, %v5174, 0
      %5183 = vmatprep.subr.mxu0 0.0
      %5184 = vmatpush1.msra.mxu0 %v5176
      %5185 = vmatprep.subr.mxu0 0.0
      %5186 = vmatpush1.msra.mxu0 %v5177
      %5187 = vmatprep.subr.mxu0 0.0
      %5188 = vmatpush1.msra.mxu0 %v5178
      %5189 = vmatprep.subr.mxu0 0.0
      %5190 = vmatpush1.msra.mxu0 %v5179
      %5191 = vmatprep.subr.mxu0 0.0
      %5192 = vmatpush1.msra.mxu0 0.0
      %5193 = vmatprep.subr.mxu0 0.0
      %5194 = vmatpush1.msra.mxu0 0.0
      %5195 = vmatprep.subr.mxu0 0.0
      %5196 = vmatpush1.msra.mxu0 0.0
      %5197 = vmatprep.subr.mxu0 0.0
      %5198 = vmatpush1.msra.mxu0 0.0
      %5199 = vmatprep.subr.mxu0 0.0
      %5200 = vmatpush1.msra.mxu0 0.0
      %5201 = vmatprep.subr.mxu0 0.0
      %5202 = vmatpush1.msra.mxu0 0.0
      %5203 = vmatprep.subr.mxu0 0.0
      %5204 = vmatpush1.msra.mxu0 0.0
      %5205 = vmatprep.subr.mxu0 0.0
      %5206 = vmatpush1.msra.mxu0 0.0
      %5207 = vmatprep.subr.mxu0 0.0
      %5208 = vmatpush1.msra.mxu0 0.0
      %5209 = vmatprep.subr.mxu0 0.0
      %5210 = vmatpush1.msra.mxu0 0.0
      %5211 = vmatprep.subr.mxu0 0.0
      %5212 = vmatpush1.msra.mxu0 0.0
      %5213 = vmatprep.subr.mxu0 0.0
      %5214 = vmatpush1.msra.mxu0 0.0
      %5215 = vmatprep.subr.mxu0 0.0
      %5216 = vmatpush1.msra.mxu0 0.0
      %5217 = vmatprep.subr.mxu0 0.0
      %5218 = vmatpush1.msra.mxu0 0.0
      %5219 = vmatprep.subr.mxu0 0.0
      %5220 = vmatpush1.msra.mxu0 0.0
      %5221 = vmatprep.subr.mxu0 0.0
      %5222 = vmatpush1.msra.mxu0 0.0
      %5223 = vmatprep.subr.mxu0 0.0
      %5224 = vmatpush1.msra.mxu0 0.0
      %5225 = vmatprep.subr.mxu0 0.0
      %5226 = vmatpush1.msra.mxu0 0.0
      %5227 = vmatprep.subr.mxu0 0.0
      %5228 = vmatpush1.msra.mxu0 0.0
      %5229 = vmatprep.subr.mxu0 0.0
      %5230 = vmatpush1.msra.mxu0 0.0
      %5231 = vmatprep.subr.mxu0 0.0
      %5232 = vmatpush1.msra.mxu0 0.0
      %5233 = vmatprep.subr.mxu0 0.0
      %5234 = vmatpush1.msra.mxu0 0.0
      %5235 = vmatprep.subr.mxu0 0.0
      %5236 = vmatpush1.msra.mxu0 0.0
      %5237 = vmatprep.subr.mxu0 0.0
      %5238 = vmatpush1.msra.mxu0 0.0
      %5239 = vmatprep.subr.mxu0 0.0
      %5240 = vmatpush1.msra.mxu0 0.0
      %5241 = vmatprep.subr.mxu0 0.0
      %5242 = vmatpush1.msra.mxu0 0.0
      %5243 = vmatprep.subr.mxu0 0.0
      %5244 = vmatpush1.msra.mxu0 0.0
      %5245 = vmatprep.subr.mxu0 0.0
      %5246 = vmatpush1.msra.mxu0 0.0
      %5247 = vmatprep.mubr.f32.mxu0 0.0
      %5248 = vmatmul.mubr.f32.gmra.mrb[0].mxu0 %v5181
      %v5249 = vpop.f32.mrb[0].mxu0
      %v5250 = vadd.f32 0.0, %v5249
      %v5251 = vpop.f32.mrb[0].mxu0
      %5252 = vdwg.mxu0
      %v5253 = vadd.f32 %v5172, %v5250
      %v5254 = vld [vmem:[%s5173 + $0x1] sm:$0xf]
      %s5255 = scalar_lea.vmem %s5, 224
      %v5256 = vld [vmem:[%s5255] sm:$0xff]
      %v5257 = vld [vmem:[%s5255 + $0x8] sm:$0xff]
      %v5258 = vld [vmem:[%s5255 + $0x10] sm:$0xff]
      %v5259 = vld [vmem:[%s5255 + $0x18] sm:$0xff]
      %v5261 = vsel %vm4619, %v5254, 0
      %5263 = vmatprep.subr.mxu0 0.0
      %5264 = vmatpush1.msra.mxu0 %v5256
      %5265 = vmatprep.subr.mxu0 0.0
      %5266 = vmatpush1.msra.mxu0 %v5257
      %5267 = vmatprep.subr.mxu0 0.0
      %5268 = vmatpush1.msra.mxu0 %v5258
      %5269 = vmatprep.subr.mxu0 0.0
      %5270 = vmatpush1.msra.mxu0 %v5259
      %5271 = vmatprep.subr.mxu0 0.0
      %5272 = vmatpush1.msra.mxu0 0.0
      %5273 = vmatprep.subr.mxu0 0.0
      %5274 = vmatpush1.msra.mxu0 0.0
      %5275 = vmatprep.subr.mxu0 0.0
      %5276 = vmatpush1.msra.mxu0 0.0
      %5277 = vmatprep.subr.mxu0 0.0
      %5278 = vmatpush1.msra.mxu0 0.0
      %5279 = vmatprep.subr.mxu0 0.0
      %5280 = vmatpush1.msra.mxu0 0.0
      %5281 = vmatprep.subr.mxu0 0.0
      %5282 = vmatpush1.msra.mxu0 0.0
      %5283 = vmatprep.subr.mxu0 0.0
      %5284 = vmatpush1.msra.mxu0 0.0
      %5285 = vmatprep.subr.mxu0 0.0
      %5286 = vmatpush1.msra.mxu0 0.0
      %5287 = vmatprep.subr.mxu0 0.0
      %5288 = vmatpush1.msra.mxu0 0.0
      %5289 = vmatprep.subr.mxu0 0.0
      %5290 = vmatpush1.msra.mxu0 0.0
      %5291 = vmatprep.subr.mxu0 0.0
      %5292 = vmatpush1.msra.mxu0 0.0
      %5293 = vmatprep.subr.mxu0 0.0
      %5294 = vmatpush1.msra.mxu0 0.0
      %5295 = vmatprep.subr.mxu0 0.0
      %5296 = vmatpush1.msra.mxu0 0.0
      %5297 = vmatprep.subr.mxu0 0.0
      %5298 = vmatpush1.msra.mxu0 0.0
      %5299 = vmatprep.subr.mxu0 0.0
      %5300 = vmatpush1.msra.mxu0 0.0
      %5301 = vmatprep.subr.mxu0 0.0
      %5302 = vmatpush1.msra.mxu0 0.0
      %5303 = vmatprep.subr.mxu0 0.0
      %5304 = vmatpush1.msra.mxu0 0.0
      %5305 = vmatprep.subr.mxu0 0.0
      %5306 = vmatpush1.msra.mxu0 0.0
      %5307 = vmatprep.subr.mxu0 0.0
      %5308 = vmatpush1.msra.mxu0 0.0
      %5309 = vmatprep.subr.mxu0 0.0
      %5310 = vmatpush1.msra.mxu0 0.0
      %5311 = vmatprep.subr.mxu0 0.0
      %5312 = vmatpush1.msra.mxu0 0.0
      %5313 = vmatprep.subr.mxu0 0.0
      %5314 = vmatpush1.msra.mxu0 0.0
      %5315 = vmatprep.subr.mxu0 0.0
      %5316 = vmatpush1.msra.mxu0 0.0
      %5317 = vmatprep.subr.mxu0 0.0
      %5318 = vmatpush1.msra.mxu0 0.0
      %5319 = vmatprep.subr.mxu0 0.0
      %5320 = vmatpush1.msra.mxu0 0.0
      %5321 = vmatprep.subr.mxu0 0.0
      %5322 = vmatpush1.msra.mxu0 0.0
      %5323 = vmatprep.subr.mxu0 0.0
      %5324 = vmatpush1.msra.mxu0 0.0
      %5325 = vmatprep.subr.mxu0 0.0
      %5326 = vmatpush1.msra.mxu0 0.0
      %5327 = vmatprep.mubr.f32.mxu0 0.0
      %5328 = vmatmul.mubr.f32.gmra.mrb[0].mxu0 %v5261
      %v5329 = vpop.f32.mrb[0].mxu0
      %v5330 = vadd.f32 0.0, %v5329
      %v5331 = vpop.f32.mrb[0].mxu0
      %5332 = vdwg.mxu0
      %v5333 = vadd.f32 %v5253, %v5330
      %v5334 = vld [vmem:[%s5173 + $0x2] sm:$0xf]
      %s5335 = scalar_lea.vmem %s5, 256
      %v5336 = vld [vmem:[%s5335] sm:$0xff]
      %v5337 = vld [vmem:[%s5335 + $0x8] sm:$0xff]
      %v5338 = vld [vmem:[%s5335 + $0x10] sm:$0xff]
      %v5339 = vld [vmem:[%s5335 + $0x18] sm:$0xff]
      %v5341 = vsel %vm4619, %v5334, 0
      %5343 = vmatprep.subr.mxu0 0.0
      %5344 = vmatpush1.msra.mxu0 %v5336
      %5345 = vmatprep.subr.mxu0 0.0
      %5346 = vmatpush1.msra.mxu0 %v5337
      %5347 = vmatprep.subr.mxu0 0.0
      %5348 = vmatpush1.msra.mxu0 %v5338
      %5349 = vmatprep.subr.mxu0 0.0
      %5350 = vmatpush1.msra.mxu0 %v5339
      %5351 = vmatprep.subr.mxu0 0.0
      %5352 = vmatpush1.msra.mxu0 0.0
      %5353 = vmatprep.subr.mxu0 0.0
      %5354 = vmatpush1.msra.mxu0 0.0
      %5355 = vmatprep.subr.mxu0 0.0
      %5356 = vmatpush1.msra.mxu0 0.0
      %5357 = vmatprep.subr.mxu0 0.0
      %5358 = vmatpush1.msra.mxu0 0.0
      %5359 = vmatprep.subr.mxu0 0.0
      %5360 = vmatpush1.msra.mxu0 0.0
      %5361 = vmatprep.subr.mxu0 0.0
      %5362 = vmatpush1.msra.mxu0 0.0
      %5363 = vmatprep.subr.mxu0 0.0
      %5364 = vmatpush1.msra.mxu0 0.0
      %5365 = vmatprep.subr.mxu0 0.0
      %5366 = vmatpush1.msra.mxu0 0.0
      %5367 = vmatprep.subr.mxu0 0.0
      %5368 = vmatpush1.msra.mxu0 0.0
      %5369 = vmatprep.subr.mxu0 0.0
      %5370 = vmatpush1.msra.mxu0 0.0
      %5371 = vmatprep.subr.mxu0 0.0
      %5372 = vmatpush1.msra.mxu0 0.0
      %5373 = vmatprep.subr.mxu0 0.0
      %5374 = vmatpush1.msra.mxu0 0.0
      %5375 = vmatprep.subr.mxu0 0.0
      %5376 = vmatpush1.msra.mxu0 0.0
      %5377 = vmatprep.subr.mxu0 0.0
      %5378 = vmatpush1.msra.mxu0 0.0
      %5379 = vmatprep.subr.mxu0 0.0
      %5380 = vmatpush1.msra.mxu0 0.0
      %5381 = vmatprep.subr.mxu0 0.0
      %5382 = vmatpush1.msra.mxu0 0.0
      %5383 = vmatprep.subr.mxu0 0.0
      %5384 = vmatpush1.msra.mxu0 0.0
      %5385 = vmatprep.subr.mxu0 0.0
      %5386 = vmatpush1.msra.mxu0 0.0
      %5387 = vmatprep.subr.mxu0 0.0
      %5388 = vmatpush1.msra.mxu0 0.0
      %5389 = vmatprep.subr.mxu0 0.0
      %5390 = vmatpush1.msra.mxu0 0.0
      %5391 = vmatprep.subr.mxu0 0.0
      %5392 = vmatpush1.msra.mxu0 0.0
      %5393 = vmatprep.subr.mxu0 0.0
      %5394 = vmatpush1.msra.mxu0 0.0
      %5395 = vmatprep.subr.mxu0 0.0
      %5396 = vmatpush1.msra.mxu0 0.0
      %5397 = vmatprep.subr.mxu0 0.0
      %5398 = vmatpush1.msra.mxu0 0.0
      %5399 = vmatprep.subr.mxu0 0.0
      %5400 = vmatpush1.msra.mxu0 0.0
      %5401 = vmatprep.subr.mxu0 0.0
      %5402 = vmatpush1.msra.mxu0 0.0
      %5403 = vmatprep.subr.mxu0 0.0
      %5404 = vmatpush1.msra.mxu0 0.0
      %5405 = vmatprep.subr.mxu0 0.0
      %5406 = vmatpush1.msra.mxu0 0.0
      %5407 = vmatprep.mubr.f32.mxu0 0.0
      %5408 = vmatmul.mubr.f32.gmra.mrb[0].mxu0 %v5341
      %v5409 = vpop.f32.mrb[0].mxu0
      %v5410 = vadd.f32 0.0, %v5409
      %v5411 = vpop.f32.mrb[0].mxu0
      %5412 = vdwg.mxu0
      %v5413 = vadd.f32 %v5333, %v5410
      %v5414 = vld [vmem:[%s6] sm:$0x1]
      %v5416 = vlaneseq
      %v5417 = vshrl.u32 %v5416, 7
      %v5418 = vsub.s32 0, %v5417
      %v5419 = vrot.slane %v5414, %v5418
      %v5421 = vadd.f32 %v5413, %v5419
      %v5422 = vmax.f32 %v5421, 0.0
      %vm5423 = vcmask 519168
      %v5424 = vsel %vm5423, %v5422, 0.0
      %v5425 = vrot.slane %v5424, 4
      %v5426 = vadd.f32 %v5424, %v5425
      %v5427 = vrot.slane %v5426, 2
      %v5428 = vadd.f32 %v5426, %v5427
      %v5429 = vrot.slane %v5428, 1
      %v5430 = vadd.f32 %v5428, %v5429
      %v5431 = vadd.f32 %v5430, 0.0
      %5432 = vmatprep.subr.mxu0 0.0
      %5433 = vmatpush1.msra.mxu0 %v4703
      %5434 = vmatprep.subr.mxu0 0.0
      %5435 = vmatpush1.msra.mxu0 %v4704
      %5436 = vmatprep.subr.mxu0 0.0
      %5437 = vmatpush1.msra.mxu0 %v4705
      %5438 = vmatprep.subr.mxu0 0.0
      %5439 = vmatpush1.msra.mxu0 %v4706
      %5440 = vmatprep.subr.mxu0 0.0
      %5441 = vmatpush1.msra.mxu0 0.0
      %5442 = vmatprep.subr.mxu0 0.0
      %5443 = vmatpush1.msra.mxu0 0.0
      %5444 = vmatprep.subr.mxu0 0.0
      %5445 = vmatpush1.msra.mxu0 0.0
      %5446 = vmatprep.subr.mxu0 0.0
      %5447 = vmatpush1.msra.mxu0 0.0
      %5448 = vmatprep.subr.mxu0 0.0
      %5449 = vmatpush1.msra.mxu0 0.0
      %5450 = vmatprep.subr.mxu0 0.0
      %5451 = vmatpush1.msra.mxu0 0.0
      %5452 = vmatprep.subr.mxu0 0.0
      %5453 = vmatpush1.msra.mxu0 0.0
      %5454 = vmatprep.subr.mxu0 0.0
      %5455 = vmatpush1.msra.mxu0 0.0
      %5456 = vmatprep.subr.mxu0 0.0
      %5457 = vmatpush1.msra.mxu0 0.0
      %5458 = vmatprep.subr.mxu0 0.0
      %5459 = vmatpush1.msra.mxu0 0.0
      %5460 = vmatprep.subr.mxu0 0.0
      %5461 = vmatpush1.msra.mxu0 0.0
      %5462 = vmatprep.subr.mxu0 0.0
      %5463 = vmatpush1.msra.mxu0 0.0
      %5464 = vmatprep.subr.mxu0 0.0
      %5465 = vmatpush1.msra.mxu0 0.0
      %5466 = vmatprep.subr.mxu0 0.0
      %5467 = vmatpush1.msra.mxu0 0.0
      %5468 = vmatprep.subr.mxu0 0.0
      %5469 = vmatpush1.msra.mxu0 0.0
      %5470 = vmatprep.subr.mxu0 0.0
      %5471 = vmatpush1.msra.mxu0 0.0
      %5472 = vmatprep.subr.mxu0 0.0
      %5473 = vmatpush1.msra.mxu0 0.0
      %5474 = vmatprep.subr.mxu0 0.0
      %5475 = vmatpush1.msra.mxu0 0.0
      %5476 = vmatprep.subr.mxu0 0.0
      %5477 = vmatpush1.msra.mxu0 0.0
      %5478 = vmatprep.subr.mxu0 0.0
      %5479 = vmatpush1.msra.mxu0 0.0
      %5480 = vmatprep.subr.mxu0 0.0
      %5481 = vmatpush1.msra.mxu0 0.0
      %5482 = vmatprep.subr.mxu0 0.0
      %5483 = vmatpush1.msra.mxu0 0.0
      %5484 = vmatprep.subr.mxu0 0.0
      %5485 = vmatpush1.msra.mxu0 0.0
      %5486 = vmatprep.subr.mxu0 0.0
      %5487 = vmatpush1.msra.mxu0 0.0
      %5488 = vmatprep.subr.mxu0 0.0
      %5489 = vmatpush1.msra.mxu0 0.0
      %5490 = vmatprep.subr.mxu0 0.0
      %5491 = vmatpush1.msra.mxu0 0.0
      %5492 = vmatprep.subr.mxu0 0.0
      %5493 = vmatpush1.msra.mxu0 0.0
      %5494 = vmatprep.subr.mxu0 0.0
      %5495 = vmatpush1.msra.mxu0 0.0
      %5496 = vmatprep.mubr.f32.mxu0 0.0
      %5497 = vmatmul.mubr.f32.gmra.mrb[0].mxu0 %v5020
      %v5498 = vpop.f32.mrb[0].mxu0
      %v5499 = vadd.f32 0.0, %v5498
      %v5500 = vpop.f32.mrb[0].mxu0
      %5501 = vdwg.mxu0
      %5502 = vmatprep.subr.mxu0 0.0
      %5503 = vmatpush1.msra.mxu0 %v4697
      %5504 = vmatprep.subr.mxu0 0.0
      %5505 = vmatpush1.msra.mxu0 %v4698
      %5506 = vmatprep.subr.mxu0 0.0
      %5507 = vmatpush1.msra.mxu0 %v4699
      %5508 = vmatprep.subr.mxu0 0.0
      %5509 = vmatpush1.msra.mxu0 %v4700
      %5510 = vmatprep.subr.mxu0 0.0
      %5511 = vmatpush1.msra.mxu0 0.0
      %5512 = vmatprep.subr.mxu0 0.0
      %5513 = vmatpush1.msra.mxu0 0.0
      %5514 = vmatprep.subr.mxu0 0.0
      %5515 = vmatpush1.msra.mxu0 0.0
      %5516 = vmatprep.subr.mxu0 0.0
      %5517 = vmatpush1.msra.mxu0 0.0
      %5518 = vmatprep.subr.mxu0 0.0
      %5519 = vmatpush1.msra.mxu0 0.0
      %5520 = vmatprep.subr.mxu0 0.0
      %5521 = vmatpush1.msra.mxu0 0.0
      %5522 = vmatprep.subr.mxu0 0.0
      %5523 = vmatpush1.msra.mxu0 0.0
      %5524 = vmatprep.subr.mxu0 0.0
      %5525 = vmatpush1.msra.mxu0 0.0
      %5526 = vmatprep.subr.mxu0 0.0
      %5527 = vmatpush1.msra.mxu0 0.0
      %5528 = vmatprep.subr.mxu0 0.0
      %5529 = vmatpush1.msra.mxu0 0.0
      %5530 = vmatprep.subr.mxu0 0.0
      %5531 = vmatpush1.msra.mxu0 0.0
      %5532 = vmatprep.subr.mxu0 0.0
      %5533 = vmatpush1.msra.mxu0 0.0
      %5534 = vmatprep.subr.mxu0 0.0
      %5535 = vmatpush1.msra.mxu0 0.0
      %5536 = vmatprep.subr.mxu0 0.0
      %5537 = vmatpush1.msra.mxu0 0.0
      %5538 = vmatprep.subr.mxu0 0.0
      %5539 = vmatpush1.msra.mxu0 0.0
      %5540 = vmatprep.subr.mxu0 0.0
      %5541 = vmatpush1.msra.mxu0 0.0
      %5542 = vmatprep.subr.mxu0 0.0
      %5543 = vmatpush1.msra.mxu0 0.0
      %5544 = vmatprep.subr.mxu0 0.0
      %5545 = vmatpush1.msra.mxu0 0.0
      %5546 = vmatprep.subr.mxu0 0.0
      %5547 = vmatpush1.msra.mxu0 0.0
      %5548 = vmatprep.subr.mxu0 0.0
      %5549 = vmatpush1.msra.mxu0 0.0
      %5550 = vmatprep.subr.mxu0 0.0
      %5551 = vmatpush1.msra.mxu0 0.0
      %5552 = vmatprep.subr.mxu0 0.0
      %5553 = vmatpush1.msra.mxu0 0.0
      %5554 = vmatprep.subr.mxu0 0.0
      %5555 = vmatpush1.msra.mxu0 0.0
      %5556 = vmatprep.subr.mxu0 0.0
      %5557 = vmatpush1.msra.mxu0 0.0
      %5558 = vmatprep.subr.mxu0 0.0
      %5559 = vmatpush1.msra.mxu0 0.0
      %5560 = vmatprep.subr.mxu0 0.0
      %5561 = vmatpush1.msra.mxu0 0.0
      %5562 = vmatprep.subr.mxu0 0.0
      %5563 = vmatpush1.msra.mxu0 0.0
      %5564 = vmatprep.subr.mxu0 0.0
      %5565 = vmatpush1.msra.mxu0 0.0
      %5566 = vmatprep.mubr.f32.mxu0 0.0
      %5567 = vmatmul.mubr.f32.gmra.mrb[0].mxu0 %v4940
      %v5568 = vpop.f32.mrb[0].mxu0
      %v5569 = vadd.f32 %v5499, %v5568
      %v5570 = vpop.f32.mrb[0].mxu0
      %5571 = vdwg.mxu0
      %5572 = vmatprep.subr.mxu0 0.0
      %5573 = vmatpush1.msra.mxu0 %v4855
      %5574 = vmatprep.subr.mxu0 0.0
      %5575 = vmatpush1.msra.mxu0 %v4856
      %5576 = vmatprep.subr.mxu0 0.0
      %5577 = vmatpush1.msra.mxu0 %v4857
      %5578 = vmatprep.subr.mxu0 0.0
      %5579 = vmatpush1.msra.mxu0 %v4858
      %5580 = vmatprep.subr.mxu0 0.0
      %5581 = vmatpush1.msra.mxu0 0.0
      %5582 = vmatprep.subr.mxu0 0.0
      %5583 = vmatpush1.msra.mxu0 0.0
      %5584 = vmatprep.subr.mxu0 0.0
      %5585 = vmatpush1.msra.mxu0 0.0
      %5586 = vmatprep.subr.mxu0 0.0
      %5587 = vmatpush1.msra.mxu0 0.0
      %5588 = vmatprep.subr.mxu0 0.0
      %5589 = vmatpush1.msra.mxu0 0.0
      %5590 = vmatprep.subr.mxu0 0.0
      %5591 = vmatpush1.msra.mxu0 0.0
      %5592 = vmatprep.subr.mxu0 0.0
      %5593 = vmatpush1.msra.mxu0 0.0
      %5594 = vmatprep.subr.mxu0 0.0
      %5595 = vmatpush1.msra.mxu0 0.0
      %5596 = vmatprep.subr.mxu0 0.0
      %5597 = vmatpush1.msra.mxu0 0.0
      %5598 = vmatprep.subr.mxu0 0.0
      %5599 = vmatpush1.msra.mxu0 0.0
      %5600 = vmatprep.subr.mxu0 0.0
      %5601 = vmatpush1.msra.mxu0 0.0
      %5602 = vmatprep.subr.mxu0 0.0
      %5603 = vmatpush1.msra.mxu0 0.0
      %5604 = vmatprep.subr.mxu0 0.0
      %5605 = vmatpush1.msra.mxu0 0.0
      %5606 = vmatprep.subr.mxu0 0.0
      %5607 = vmatpush1.msra.mxu0 0.0
      %5608 = vmatprep.subr.mxu0 0.0
      %5609 = vmatpush1.msra.mxu0 0.0
      %5610 = vmatprep.subr.mxu0 0.0
      %5611 = vmatpush1.msra.mxu0 0.0
      %5612 = vmatprep.subr.mxu0 0.0
      %5613 = vmatpush1.msra.mxu0 0.0
      %5614 = vmatprep.subr.mxu0 0.0
      %5615 = vmatpush1.msra.mxu0 0.0
      %5616 = vmatprep.subr.mxu0 0.0
      %5617 = vmatpush1.msra.mxu0 0.0
      %5618 = vmatprep.subr.mxu0 0.0
      %5619 = vmatpush1.msra.mxu0 0.0
      %5620 = vmatprep.subr.mxu0 0.0
      %5621 = vmatpush1.msra.mxu0 0.0
      %5622 = vmatprep.subr.mxu0 0.0
      %5623 = vmatpush1.msra.mxu0 0.0
      %5624 = vmatprep.subr.mxu0 0.0
      %5625 = vmatpush1.msra.mxu0 0.0
      %5626 = vmatprep.subr.mxu0 0.0
      %5627 = vmatpush1.msra.mxu0 0.0
      %5628 = vmatprep.subr.mxu0 0.0
      %5629 = vmatpush1.msra.mxu0 0.0
      %5630 = vmatprep.subr.mxu0 0.0
      %5631 = vmatpush1.msra.mxu0 0.0
      %5632 = vmatprep.subr.mxu0 0.0
      %5633 = vmatpush1.msra.mxu0 0.0
      %5634 = vmatprep.subr.mxu0 0.0
      %5635 = vmatpush1.msra.mxu0 0.0
      %5636 = vmatprep.mubr.f32.mxu0 0.0
      %5637 = vmatmul.mubr.f32.gmra.mrb[0].mxu0 %v5100
      %v5638 = vpop.f32.mrb[0].mxu0
      %v5639 = vadd.f32 0.0, %v5638
      %v5640 = vpop.f32.mrb[0].mxu0
      %5641 = vdwg.mxu0
      %v5642 = vadd.f32 %v5569, %v5639
      %5643 = vmatprep.subr.mxu0 0.0
      %5644 = vmatpush1.msra.mxu0 %v4935
      %5645 = vmatprep.subr.mxu0 0.0
      %5646 = vmatpush1.msra.mxu0 %v4936
      %5647 = vmatprep.subr.mxu0 0.0
      %5648 = vmatpush1.msra.mxu0 %v4937
      %5649 = vmatprep.subr.mxu0 0.0
      %5650 = vmatpush1.msra.mxu0 %v4938
      %5651 = vmatprep.subr.mxu0 0.0
      %5652 = vmatpush1.msra.mxu0 0.0
      %5653 = vmatprep.subr.mxu0 0.0
      %5654 = vmatpush1.msra.mxu0 0.0
      %5655 = vmatprep.subr.mxu0 0.0
      %5656 = vmatpush1.msra.mxu0 0.0
      %5657 = vmatprep.subr.mxu0 0.0
      %5658 = vmatpush1.msra.mxu0 0.0
      %5659 = vmatprep.subr.mxu0 0.0
      %5660 = vmatpush1.msra.mxu0 0.0
      %5661 = vmatprep.subr.mxu0 0.0
      %5662 = vmatpush1.msra.mxu0 0.0
      %5663 = vmatprep.subr.mxu0 0.0
      %5664 = vmatpush1.msra.mxu0 0.0
      %5665 = vmatprep.subr.mxu0 0.0
      %5666 = vmatpush1.msra.mxu0 0.0
      %5667 = vmatprep.subr.mxu0 0.0
      %5668 = vmatpush1.msra.mxu0 0.0
      %5669 = vmatprep.subr.mxu0 0.0
      %5670 = vmatpush1.msra.mxu0 0.0
      %5671 = vmatprep.subr.mxu0 0.0
      %5672 = vmatpush1.msra.mxu0 0.0
      %5673 = vmatprep.subr.mxu0 0.0
      %5674 = vmatpush1.msra.mxu0 0.0
      %5675 = vmatprep.subr.mxu0 0.0
      %5676 = vmatpush1.msra.mxu0 0.0
      %5677 = vmatprep.subr.mxu0 0.0
      %5678 = vmatpush1.msra.mxu0 0.0
      %5679 = vmatprep.subr.mxu0 0.0
      %5680 = vmatpush1.msra.mxu0 0.0
      %5681 = vmatprep.subr.mxu0 0.0
      %5682 = vmatpush1.msra.mxu0 0.0
      %5683 = vmatprep.subr.mxu0 0.0
      %5684 = vmatpush1.msra.mxu0 0.0
      %5685 = vmatprep.subr.mxu0 0.0
      %5686 = vmatpush1.msra.mxu0 0.0
      %5687 = vmatprep.subr.mxu0 0.0
      %5688 = vmatpush1.msra.mxu0 0.0
      %5689 = vmatprep.subr.mxu0 0.0
      %5690 = vmatpush1.msra.mxu0 0.0
      %5691 = vmatprep.subr.mxu0 0.0
      %5692 = vmatpush1.msra.mxu0 0.0
      %5693 = vmatprep.subr.mxu0 0.0
      %5694 = vmatpush1.msra.mxu0 0.0
      %5695 = vmatprep.subr.mxu0 0.0
      %5696 = vmatpush1.msra.mxu0 0.0
      %5697 = vmatprep.subr.mxu0 0.0
      %5698 = vmatpush1.msra.mxu0 0.0
      %5699 = vmatprep.subr.mxu0 0.0
      %5700 = vmatpush1.msra.mxu0 0.0
      %5701 = vmatprep.subr.mxu0 0.0
      %5702 = vmatpush1.msra.mxu0 0.0
      %5703 = vmatprep.subr.mxu0 0.0
      %5704 = vmatpush1.msra.mxu0 0.0
      %5705 = vmatprep.subr.mxu0 0.0
      %5706 = vmatpush1.msra.mxu0 0.0
      %5707 = vmatprep.mubr.f32.mxu0 0.0
      %5708 = vmatmul.mubr.f32.gmra.mrb[0].mxu0 %v5181
      %v5709 = vpop.f32.mrb[0].mxu0
      %v5710 = vadd.f32 0.0, %v5709
      %v5711 = vpop.f32.mrb[0].mxu0
      %5712 = vdwg.mxu0
      %v5713 = vadd.f32 %v5642, %v5710
      %5714 = vmatprep.subr.mxu0 0.0
      %5715 = vmatpush1.msra.mxu0 %v5015
      %5716 = vmatprep.subr.mxu0 0.0
      %5717 = vmatpush1.msra.mxu0 %v5016
      %5718 = vmatprep.subr.mxu0 0.0
      %5719 = vmatpush1.msra.mxu0 %v5017
      %5720 = vmatprep.subr.mxu0 0.0
      %5721 = vmatpush1.msra.mxu0 %v5018
      %5722 = vmatprep.subr.mxu0 0.0
      %5723 = vmatpush1.msra.mxu0 0.0
      %5724 = vmatprep.subr.mxu0 0.0
      %5725 = vmatpush1.msra.mxu0 0.0
      %5726 = vmatprep.subr.mxu0 0.0
      %5727 = vmatpush1.msra.mxu0 0.0
      %5728 = vmatprep.subr.mxu0 0.0
      %5729 = vmatpush1.msra.mxu0 0.0
      %5730 = vmatprep.subr.mxu0 0.0
      %5731 = vmatpush1.msra.mxu0 0.0
      %5732 = vmatprep.subr.mxu0 0.0
      %5733 = vmatpush1.msra.mxu0 0.0
      %5734 = vmatprep.subr.mxu0 0.0
      %5735 = vmatpush1.msra.mxu0 0.0
      %5736 = vmatprep.subr.mxu0 0.0
      %5737 = vmatpush1.msra.mxu0 0.0
      %5738 = vmatprep.subr.mxu0 0.0
      %5739 = vmatpush1.msra.mxu0 0.0
      %5740 = vmatprep.subr.mxu0 0.0
      %5741 = vmatpush1.msra.mxu0 0.0
      %5742 = vmatprep.subr.mxu0 0.0
      %5743 = vmatpush1.msra.mxu0 0.0
      %5744 = vmatprep.subr.mxu0 0.0
      %5745 = vmatpush1.msra.mxu0 0.0
      %5746 = vmatprep.subr.mxu0 0.0
      %5747 = vmatpush1.msra.mxu0 0.0
      %5748 = vmatprep.subr.mxu0 0.0
      %5749 = vmatpush1.msra.mxu0 0.0
      %5750 = vmatprep.subr.mxu0 0.0
      %5751 = vmatpush1.msra.mxu0 0.0
      %5752 = vmatprep.subr.mxu0 0.0
      %5753 = vmatpush1.msra.mxu0 0.0
      %5754 = vmatprep.subr.mxu0 0.0
      %5755 = vmatpush1.msra.mxu0 0.0
      %5756 = vmatprep.subr.mxu0 0.0
      %5757 = vmatpush1.msra.mxu0 0.0
      %5758 = vmatprep.subr.mxu0 0.0
      %5759 = vmatpush1.msra.mxu0 0.0
      %5760 = vmatprep.subr.mxu0 0.0
      %5761 = vmatpush1.msra.mxu0 0.0
      %5762 = vmatprep.subr.mxu0 0.0
      %5763 = vmatpush1.msra.mxu0 0.0
      %5764 = vmatprep.subr.mxu0 0.0
      %5765 = vmatpush1.msra.mxu0 0.0
      %5766 = vmatprep.subr.mxu0 0.0
      %5767 = vmatpush1.msra.mxu0 0.0
      %5768 = vmatprep.subr.mxu0 0.0
      %5769 = vmatpush1.msra.mxu0 0.0
      %5770 = vmatprep.subr.mxu0 0.0
      %5771 = vmatpush1.msra.mxu0 0.0
      %5772 = vmatprep.subr.mxu0 0.0
      %5773 = vmatpush1.msra.mxu0 0.0
      %5774 = vmatprep.subr.mxu0 0.0
      %5775 = vmatpush1.msra.mxu0 0.0
      %5776 = vmatprep.subr.mxu0 0.0
      %5777 = vmatpush1.msra.mxu0 0.0
      %5778 = vmatprep.mubr.f32.mxu0 0.0
      %5779 = vmatmul.mubr.f32.gmra.mrb[0].mxu0 %v5261
      %v5780 = vpop.f32.mrb[0].mxu0
      %v5781 = vadd.f32 0.0, %v5780
      %v5782 = vpop.f32.mrb[0].mxu0
      %5783 = vdwg.mxu0
      %v5784 = vadd.f32 %v5713, %v5781
      %5785 = vmatprep.subr.mxu0 0.0
      %5786 = vmatpush1.msra.mxu0 %v5095
      %5787 = vmatprep.subr.mxu0 0.0
      %5788 = vmatpush1.msra.mxu0 %v5096
      %5789 = vmatprep.subr.mxu0 0.0
      %5790 = vmatpush1.msra.mxu0 %v5097
      %5791 = vmatprep.subr.mxu0 0.0
      %5792 = vmatpush1.msra.mxu0 %v5098
      %5793 = vmatprep.subr.mxu0 0.0
      %5794 = vmatpush1.msra.mxu0 0.0
      %5795 = vmatprep.subr.mxu0 0.0
      %5796 = vmatpush1.msra.mxu0 0.0
      %5797 = vmatprep.subr.mxu0 0.0
      %5798 = vmatpush1.msra.mxu0 0.0
      %5799 = vmatprep.subr.mxu0 0.0
      %5800 = vmatpush1.msra.mxu0 0.0
      %5801 = vmatprep.subr.mxu0 0.0
      %5802 = vmatpush1.msra.mxu0 0.0
      %5803 = vmatprep.subr.mxu0 0.0
      %5804 = vmatpush1.msra.mxu0 0.0
      %5805 = vmatprep.subr.mxu0 0.0
      %5806 = vmatpush1.msra.mxu0 0.0
      %5807 = vmatprep.subr.mxu0 0.0
      %5808 = vmatpush1.msra.mxu0 0.0
      %5809 = vmatprep.subr.mxu0 0.0
      %5810 = vmatpush1.msra.mxu0 0.0
      %5811 = vmatprep.subr.mxu0 0.0
      %5812 = vmatpush1.msra.mxu0 0.0
      %5813 = vmatprep.subr.mxu0 0.0
      %5814 = vmatpush1.msra.mxu0 0.0
      %5815 = vmatprep.subr.mxu0 0.0
      %5816 = vmatpush1.msra.mxu0 0.0
      %5817 = vmatprep.subr.mxu0 0.0
      %5818 = vmatpush1.msra.mxu0 0.0
      %5819 = vmatprep.subr.mxu0 0.0
      %5820 = vmatpush1.msra.mxu0 0.0
      %5821 = vmatprep.subr.mxu0 0.0
      %5822 = vmatpush1.msra.mxu0 0.0
      %5823 = vmatprep.subr.mxu0 0.0
      %5824 = vmatpush1.msra.mxu0 0.0
      %5825 = vmatprep.subr.mxu0 0.0
      %5826 = vmatpush1.msra.mxu0 0.0
      %5827 = vmatprep.subr.mxu0 0.0
      %5828 = vmatpush1.msra.mxu0 0.0
      %5829 = vmatprep.subr.mxu0 0.0
      %5830 = vmatpush1.msra.mxu0 0.0
      %5831 = vmatprep.subr.mxu0 0.0
      %5832 = vmatpush1.msra.mxu0 0.0
      %5833 = vmatprep.subr.mxu0 0.0
      %5834 = vmatpush1.msra.mxu0 0.0
      %5835 = vmatprep.subr.mxu0 0.0
      %5836 = vmatpush1.msra.mxu0 0.0
      %5837 = vmatprep.subr.mxu0 0.0
      %5838 = vmatpush1.msra.mxu0 0.0
      %5839 = vmatprep.subr.mxu0 0.0
      %5840 = vmatpush1.msra.mxu0 0.0
      %5841 = vmatprep.subr.mxu0 0.0
      %5842 = vmatpush1.msra.mxu0 0.0
      %5843 = vmatprep.subr.mxu0 0.0
      %5844 = vmatpush1.msra.mxu0 0.0
      %5845 = vmatprep.subr.mxu0 0.0
      %5846 = vmatpush1.msra.mxu0 0.0
      %5847 = vmatprep.subr.mxu0 0.0
      %5848 = vmatpush1.msra.mxu0 0.0
      %5849 = vmatprep.mubr.f32.mxu0 0.0
      %5850 = vmatmul.mubr.f32.gmra.mrb[0].mxu0 %v5341
      %v5851 = vpop.f32.mrb[0].mxu0
      %v5852 = vadd.f32 0.0, %v5851
      %v5853 = vpop.f32.mrb[0].mxu0
      %5854 = vdwg.mxu0
      %v5855 = vadd.f32 %v5784, %v5852
      %s5856 = scalar_lea.vmem [#allocation6], 24
      %v5857 = vld [vmem:[%s5856] sm:$0xf]
      %v5859 = vsel %vm4619, %v5857, 0
      %5861 = vmatprep.subr.mxu0 0.0
      %5862 = vmatpush1.msra.mxu0 %v5176
      %5863 = vmatprep.subr.mxu0 0.0
      %5864 = vmatpush1.msra.mxu0 %v5177
      %5865 = vmatprep.subr.mxu0 0.0
      %5866 = vmatpush1.msra.mxu0 %v5178
      %5867 = vmatprep.subr.mxu0 0.0
      %5868 = vmatpush1.msra.mxu0 %v5179
      %5869 = vmatprep.subr.mxu0 0.0
      %5870 = vmatpush1.msra.mxu0 0.0
      %5871 = vmatprep.subr.mxu0 0.0
      %5872 = vmatpush1.msra.mxu0 0.0
      %5873 = vmatprep.subr.mxu0 0.0
      %5874 = vmatpush1.msra.mxu0 0.0
      %5875 = vmatprep.subr.mxu0 0.0
      %5876 = vmatpush1.msra.mxu0 0.0
      %5877 = vmatprep.subr.mxu0 0.0
      %5878 = vmatpush1.msra.mxu0 0.0
      %5879 = vmatprep.subr.mxu0 0.0
      %5880 = vmatpush1.msra.mxu0 0.0
      %5881 = vmatprep.subr.mxu0 0.0
      %5882 = vmatpush1.msra.mxu0 0.0
      %5883 = vmatprep.subr.mxu0 0.0
      %5884 = vmatpush1.msra.mxu0 0.0
      %5885 = vmatprep.subr.mxu0 0.0
      %5886 = vmatpush1.msra.mxu0 0.0
      %5887 = vmatprep.subr.mxu0 0.0
      %5888 = vmatpush1.msra.mxu0 0.0
      %5889 = vmatprep.subr.mxu0 0.0
      %5890 = vmatpush1.msra.mxu0 0.0
      %5891 = vmatprep.subr.mxu0 0.0
      %5892 = vmatpush1.msra.mxu0 0.0
      %5893 = vmatprep.subr.mxu0 0.0
      %5894 = vmatpush1.msra.mxu0 0.0
      %5895 = vmatprep.subr.mxu0 0.0
      %5896 = vmatpush1.msra.mxu0 0.0
      %5897 = vmatprep.subr.mxu0 0.0
      %5898 = vmatpush1.msra.mxu0 0.0
      %5899 = vmatprep.subr.mxu0 0.0
      %5900 = vmatpush1.msra.mxu0 0.0
      %5901 = vmatprep.subr.mxu0 0.0
      %5902 = vmatpush1.msra.mxu0 0.0
      %5903 = vmatprep.subr.mxu0 0.0
      %5904 = vmatpush1.msra.mxu0 0.0
      %5905 = vmatprep.subr.mxu0 0.0
      %5906 = vmatpush1.msra.mxu0 0.0
      %5907 = vmatprep.subr.mxu0 0.0
      %5908 = vmatpush1.msra.mxu0 0.0
      %5909 = vmatprep.subr.mxu0 0.0
      %5910 = vmatpush1.msra.mxu0 0.0
      %5911 = vmatprep.subr.mxu0 0.0
      %5912 = vmatpush1.msra.mxu0 0.0
      %5913 = vmatprep.subr.mxu0 0.0
      %5914 = vmatpush1.msra.mxu0 0.0
      %5915 = vmatprep.subr.mxu0 0.0
      %5916 = vmatpush1.msra.mxu0 0.0
      %5917 = vmatprep.subr.mxu0 0.0
      %5918 = vmatpush1.msra.mxu0 0.0
      %5919 = vmatprep.subr.mxu0 0.0
      %5920 = vmatpush1.msra.mxu0 0.0
      %5921 = vmatprep.subr.mxu0 0.0
      %5922 = vmatpush1.msra.mxu0 0.0
      %5923 = vmatprep.subr.mxu0 0.0
      %5924 = vmatpush1.msra.mxu0 0.0
      %5925 = vmatprep.mubr.f32.mxu0 0.0
      %5926 = vmatmul.mubr.f32.gmra.mrb[0].mxu0 %v5859
      %v5927 = vpop.f32.mrb[0].mxu0
      %v5928 = vadd.f32 0.0, %v5927
      %v5929 = vpop.f32.mrb[0].mxu0
      %5930 = vdwg.mxu0
      %v5931 = vadd.f32 %v5855, %v5928
      %v5932 = vld [vmem:[%s5856 + $0x1] sm:$0xf]
      %v5934 = vsel %vm4619, %v5932, 0
      %5936 = vmatprep.subr.mxu0 0.0
      %5937 = vmatpush1.msra.mxu0 %v5256
      %5938 = vmatprep.subr.mxu0 0.0
      %5939 = vmatpush1.msra.mxu0 %v5257
      %5940 = vmatprep.subr.mxu0 0.0
      %5941 = vmatpush1.msra.mxu0 %v5258
      %5942 = vmatprep.subr.mxu0 0.0
      %5943 = vmatpush1.msra.mxu0 %v5259
      %5944 = vmatprep.subr.mxu0 0.0
      %5945 = vmatpush1.msra.mxu0 0.0
      %5946 = vmatprep.subr.mxu0 0.0
      %5947 = vmatpush1.msra.mxu0 0.0
      %5948 = vmatprep.subr.mxu0 0.0
      %5949 = vmatpush1.msra.mxu0 0.0
      %5950 = vmatprep.subr.mxu0 0.0
      %5951 = vmatpush1.msra.mxu0 0.0
      %5952 = vmatprep.subr.mxu0 0.0
      %5953 = vmatpush1.msra.mxu0 0.0
      %5954 = vmatprep.subr.mxu0 0.0
      %5955 = vmatpush1.msra.mxu0 0.0
      %5956 = vmatprep.subr.mxu0 0.0
      %5957 = vmatpush1.msra.mxu0 0.0
      %5958 = vmatprep.subr.mxu0 0.0
      %5959 = vmatpush1.msra.mxu0 0.0
      %5960 = vmatprep.subr.mxu0 0.0
      %5961 = vmatpush1.msra.mxu0 0.0
      %5962 = vmatprep.subr.mxu0 0.0
      %5963 = vmatpush1.msra.mxu0 0.0
      %5964 = vmatprep.subr.mxu0 0.0
      %5965 = vmatpush1.msra.mxu0 0.0
      %5966 = vmatprep.subr.mxu0 0.0
      %5967 = vmatpush1.msra.mxu0 0.0
      %5968 = vmatprep.subr.mxu0 0.0
      %5969 = vmatpush1.msra.mxu0 0.0
      %5970 = vmatprep.subr.mxu0 0.0
      %5971 = vmatpush1.msra.mxu0 0.0
      %5972 = vmatprep.subr.mxu0 0.0
      %5973 = vmatpush1.msra.mxu0 0.0
      %5974 = vmatprep.subr.mxu0 0.0
      %5975 = vmatpush1.msra.mxu0 0.0
      %5976 = vmatprep.subr.mxu0 0.0
      %5977 = vmatpush1.msra.mxu0 0.0
      %5978 = vmatprep.subr.mxu0 0.0
      %5979 = vmatpush1.msra.mxu0 0.0
      %5980 = vmatprep.subr.mxu0 0.0
      %5981 = vmatpush1.msra.mxu0 0.0
      %5982 = vmatprep.subr.mxu0 0.0
      %5983 = vmatpush1.msra.mxu0 0.0
      %5984 = vmatprep.subr.mxu0 0.0
      %5985 = vmatpush1.msra.mxu0 0.0
      %5986 = vmatprep.subr.mxu0 0.0
      %5987 = vmatpush1.msra.mxu0 0.0
      %5988 = vmatprep.subr.mxu0 0.0
      %5989 = vmatpush1.msra.mxu0 0.0
      %5990 = vmatprep.subr.mxu0 0.0
      %5991 = vmatpush1.msra.mxu0 0.0
      %5992 = vmatprep.subr.mxu0 0.0
      %5993 = vmatpush1.msra.mxu0 0.0
      %5994 = vmatprep.subr.mxu0 0.0
      %5995 = vmatpush1.msra.mxu0 0.0
      %5996 = vmatprep.subr.mxu0 0.0
      %5997 = vmatpush1.msra.mxu0 0.0
      %5998 = vmatprep.subr.mxu0 0.0
      %5999 = vmatpush1.msra.mxu0 0.0
      %6000 = vmatprep.mubr.f32.mxu0 0.0
      %6001 = vmatmul.mubr.f32.gmra.mrb[0].mxu0 %v5934
      %v6002 = vpop.f32.mrb[0].mxu0
      %v6003 = vadd.f32 0.0, %v6002
      %v6004 = vpop.f32.mrb[0].mxu0
      %6005 = vdwg.mxu0
      %v6006 = vadd.f32 %v5931, %v6003
      %v6007 = vld [vmem:[%s5856 + $0x2] sm:$0xf]
      %v6009 = vsel %vm4619, %v6007, 0
      %6011 = vmatprep.subr.mxu0 0.0
      %6012 = vmatpush1.msra.mxu0 %v5336
      %6013 = vmatprep.subr.mxu0 0.0
      %6014 = vmatpush1.msra.mxu0 %v5337
      %6015 = vmatprep.subr.mxu0 0.0
      %6016 = vmatpush1.msra.mxu0 %v5338
      %6017 = vmatprep.subr.mxu0 0.0
      %6018 = vmatpush1.msra.mxu0 %v5339
      %6019 = vmatprep.subr.mxu0 0.0
      %6020 = vmatpush1.msra.mxu0 0.0
      %6021 = vmatprep.subr.mxu0 0.0
      %6022 = vmatpush1.msra.mxu0 0.0
      %6023 = vmatprep.subr.mxu0 0.0
      %6024 = vmatpush1.msra.mxu0 0.0
      %6025 = vmatprep.subr.mxu0 0.0
      %6026 = vmatpush1.msra.mxu0 0.0
      %6027 = vmatprep.subr.mxu0 0.0
      %6028 = vmatpush1.msra.mxu0 0.0
      %6029 = vmatprep.subr.mxu0 0.0
      %6030 = vmatpush1.msra.mxu0 0.0
      %6031 = vmatprep.subr.mxu0 0.0
      %6032 = vmatpush1.msra.mxu0 0.0
      %6033 = vmatprep.subr.mxu0 0.0
      %6034 = vmatpush1.msra.mxu0 0.0
      %6035 = vmatprep.subr.mxu0 0.0
      %6036 = vmatpush1.msra.mxu0 0.0
      %6037 = vmatprep.subr.mxu0 0.0
      %6038 = vmatpush1.msra.mxu0 0.0
      %6039 = vmatprep.subr.mxu0 0.0
      %6040 = vmatpush1.msra.mxu0 0.0
      %6041 = vmatprep.subr.mxu0 0.0
      %6042 = vmatpush1.msra.mxu0 0.0
      %6043 = vmatprep.subr.mxu0 0.0
      %6044 = vmatpush1.msra.mxu0 0.0
      %6045 = vmatprep.subr.mxu0 0.0
      %6046 = vmatpush1.msra.mxu0 0.0
      %6047 = vmatprep.subr.mxu0 0.0
      %6048 = vmatpush1.msra.mxu0 0.0
      %6049 = vmatprep.subr.mxu0 0.0
      %6050 = vmatpush1.msra.mxu0 0.0
      %6051 = vmatprep.subr.mxu0 0.0
      %6052 = vmatpush1.msra.mxu0 0.0
      %6053 = vmatprep.subr.mxu0 0.0
      %6054 = vmatpush1.msra.mxu0 0.0
      %6055 = vmatprep.subr.mxu0 0.0
      %6056 = vmatpush1.msra.mxu0 0.0
      %6057 = vmatprep.subr.mxu0 0.0
      %6058 = vmatpush1.msra.mxu0 0.0
      %6059 = vmatprep.subr.mxu0 0.0
      %6060 = vmatpush1.msra.mxu0 0.0
      %6061 = vmatprep.subr.mxu0 0.0
      %6062 = vmatpush1.msra.mxu0 0.0
      %6063 = vmatprep.subr.mxu0 0.0
      %6064 = vmatpush1.msra.mxu0 0.0
      %6065 = vmatprep.subr.mxu0 0.0
      %6066 = vmatpush1.msra.mxu0 0.0
      %6067 = vmatprep.subr.mxu0 0.0
      %6068 = vmatpush1.msra.mxu0 0.0
      %6069 = vmatprep.subr.mxu0 0.0
      %6070 = vmatpush1.msra.mxu0 0.0
      %6071 = vmatprep.subr.mxu0 0.0
      %6072 = vmatpush1.msra.mxu0 0.0
      %6073 = vmatprep.subr.mxu0 0.0
      %6074 = vmatpush1.msra.mxu0 0.0
      %6075 = vmatprep.mubr.f32.mxu0 0.0
      %6076 = vmatmul.mubr.f32.gmra.mrb[0].mxu0 %v6009
      %v6077 = vpop.f32.mrb[0].mxu0
      %v6078 = vadd.f32 0.0, %v6077
      %v6079 = vpop.f32.mrb[0].mxu0
      %6080 = vdwg.mxu0
      %v6081 = vadd.f32 %v6006, %v6078
      %v6082 = vadd.f32 %v6081, %v5419
      %v6083 = vmax.f32 %v6082, 0.0
      %v6084 = vsel %vm5423, %v6083, 0.0
      %v6085 = vrot.slane %v6084, 4
      %v6086 = vadd.f32 %v6084, %v6085
      %v6087 = vrot.slane %v6086, 2
      %v6088 = vadd.f32 %v6086, %v6087
      %v6089 = vrot.slane %v6088, 1
      %v6090 = vadd.f32 %v6088, %v6089
      %v6091 = vadd.f32 %v5431, %v6090
      %6092 = vmatprep.subr.mxu0 0.0
      %6093 = vmatpush1.msra.mxu0 %v4703
      %6094 = vmatprep.subr.mxu0 0.0
      %6095 = vmatpush1.msra.mxu0 %v4704
      %6096 = vmatprep.subr.mxu0 0.0
      %6097 = vmatpush1.msra.mxu0 %v4705
      %6098 = vmatprep.subr.mxu0 0.0
      %6099 = vmatpush1.msra.mxu0 %v4706
      %6100 = vmatprep.subr.mxu0 0.0
      %6101 = vmatpush1.msra.mxu0 0.0
      %6102 = vmatprep.subr.mxu0 0.0
      %6103 = vmatpush1.msra.mxu0 0.0
      %6104 = vmatprep.subr.mxu0 0.0
      %6105 = vmatpush1.msra.mxu0 0.0
      %6106 = vmatprep.subr.mxu0 0.0
      %6107 = vmatpush1.msra.mxu0 0.0
      %6108 = vmatprep.subr.mxu0 0.0
      %6109 = vmatpush1.msra.mxu0 0.0
      %6110 = vmatprep.subr.mxu0 0.0
      %6111 = vmatpush1.msra.mxu0 0.0
      %6112 = vmatprep.subr.mxu0 0.0
      %6113 = vmatpush1.msra.mxu0 0.0
      %6114 = vmatprep.subr.mxu0 0.0
      %6115 = vmatpush1.msra.mxu0 0.0
      %6116 = vmatprep.subr.mxu0 0.0
      %6117 = vmatpush1.msra.mxu0 0.0
      %6118 = vmatprep.subr.mxu0 0.0
      %6119 = vmatpush1.msra.mxu0 0.0
      %6120 = vmatprep.subr.mxu0 0.0
      %6121 = vmatpush1.msra.mxu0 0.0
      %6122 = vmatprep.subr.mxu0 0.0
      %6123 = vmatpush1.msra.mxu0 0.0
      %6124 = vmatprep.subr.mxu0 0.0
      %6125 = vmatpush1.msra.mxu0 0.0
      %6126 = vmatprep.subr.mxu0 0.0
      %6127 = vmatpush1.msra.mxu0 0.0
      %6128 = vmatprep.subr.mxu0 0.0
      %6129 = vmatpush1.msra.mxu0 0.0
      %6130 = vmatprep.subr.mxu0 0.0
      %6131 = vmatpush1.msra.mxu0 0.0
      %6132 = vmatprep.subr.mxu0 0.0
      %6133 = vmatpush1.msra.mxu0 0.0
      %6134 = vmatprep.subr.mxu0 0.0
      %6135 = vmatpush1.msra.mxu0 0.0
      %6136 = vmatprep.subr.mxu0 0.0
      %6137 = vmatpush1.msra.mxu0 0.0
      %6138 = vmatprep.subr.mxu0 0.0
      %6139 = vmatpush1.msra.mxu0 0.0
      %6140 = vmatprep.subr.mxu0 0.0
      %6141 = vmatpush1.msra.mxu0 0.0
      %6142 = vmatprep.subr.mxu0 0.0
      %6143 = vmatpush1.msra.mxu0 0.0
      %6144 = vmatprep.subr.mxu0 0.0
      %6145 = vmatpush1.msra.mxu0 0.0
      %6146 = vmatprep.subr.mxu0 0.0
      %6147 = vmatpush1.msra.mxu0 0.0
      %6148 = vmatprep.subr.mxu0 0.0
      %6149 = vmatpush1.msra.mxu0 0.0
      %6150 = vmatprep.subr.mxu0 0.0
      %6151 = vmatpush1.msra.mxu0 0.0
      %6152 = vmatprep.subr.mxu0 0.0
      %6153 = vmatpush1.msra.mxu0 0.0
      %6154 = vmatprep.subr.mxu0 0.0
      %6155 = vmatpush1.msra.mxu0 0.0
      %6156 = vmatprep.mubr.f32.mxu0 0.0
      %6157 = vmatmul.mubr.f32.gmra.mrb[0].mxu0 %v5261
      %v6158 = vpop.f32.mrb[0].mxu0
      %v6159 = vadd.f32 0.0, %v6158
      %v6160 = vpop.f32.mrb[0].mxu0
      %6161 = vdwg.mxu0
      %6162 = vmatprep.subr.mxu0 0.0
      %6163 = vmatpush1.msra.mxu0 %v4697
      %6164 = vmatprep.subr.mxu0 0.0
      %6165 = vmatpush1.msra.mxu0 %v4698
      %6166 = vmatprep.subr.mxu0 0.0
      %6167 = vmatpush1.msra.mxu0 %v4699
      %6168 = vmatprep.subr.mxu0 0.0
      %6169 = vmatpush1.msra.mxu0 %v4700
      %6170 = vmatprep.subr.mxu0 0.0
      %6171 = vmatpush1.msra.mxu0 0.0
      %6172 = vmatprep.subr.mxu0 0.0
      %6173 = vmatpush1.msra.mxu0 0.0
      %6174 = vmatprep.subr.mxu0 0.0
      %6175 = vmatpush1.msra.mxu0 0.0
      %6176 = vmatprep.subr.mxu0 0.0
      %6177 = vmatpush1.msra.mxu0 0.0
      %6178 = vmatprep.subr.mxu0 0.0
      %6179 = vmatpush1.msra.mxu0 0.0
      %6180 = vmatprep.subr.mxu0 0.0
      %6181 = vmatpush1.msra.mxu0 0.0
      %6182 = vmatprep.subr.mxu0 0.0
      %6183 = vmatpush1.msra.mxu0 0.0
      %6184 = vmatprep.subr.mxu0 0.0
      %6185 = vmatpush1.msra.mxu0 0.0
      %6186 = vmatprep.subr.mxu0 0.0
      %6187 = vmatpush1.msra.mxu0 0.0
      %6188 = vmatprep.subr.mxu0 0.0
      %6189 = vmatpush1.msra.mxu0 0.0
      %6190 = vmatprep.subr.mxu0 0.0
      %6191 = vmatpush1.msra.mxu0 0.0
      %6192 = vmatprep.subr.mxu0 0.0
      %6193 = vmatpush1.msra.mxu0 0.0
      %6194 = vmatprep.subr.mxu0 0.0
      %6195 = vmatpush1.msra.mxu0 0.0
      %6196 = vmatprep.subr.mxu0 0.0
      %6197 = vmatpush1.msra.mxu0 0.0
      %6198 = vmatprep.subr.mxu0 0.0
      %6199 = vmatpush1.msra.mxu0 0.0
      %6200 = vmatprep.subr.mxu0 0.0
      %6201 = vmatpush1.msra.mxu0 0.0
      %6202 = vmatprep.subr.mxu0 0.0
      %6203 = vmatpush1.msra.mxu0 0.0
      %6204 = vmatprep.subr.mxu0 0.0
      %6205 = vmatpush1.msra.mxu0 0.0
      %6206 = vmatprep.subr.mxu0 0.0
      %6207 = vmatpush1.msra.mxu0 0.0
      %6208 = vmatprep.subr.mxu0 0.0
      %6209 = vmatpush1.msra.mxu0 0.0
      %6210 = vmatprep.subr.mxu0 0.0
      %6211 = vmatpush1.msra.mxu0 0.0
      %6212 = vmatprep.subr.mxu0 0.0
      %6213 = vmatpush1.msra.mxu0 0.0
      %6214 = vmatprep.subr.mxu0 0.0
      %6215 = vmatpush1.msra.mxu0 0.0
      %6216 = vmatprep.subr.mxu0 0.0
      %6217 = vmatpush1.msra.mxu0 0.0
      %6218 = vmatprep.subr.mxu0 0.0
      %6219 = vmatpush1.msra.mxu0 0.0
      %6220 = vmatprep.subr.mxu0 0.0
      %6221 = vmatpush1.msra.mxu0 0.0
      %6222 = vmatprep.subr.mxu0 0.0
      %6223 = vmatpush1.msra.mxu0 0.0
      %6224 = vmatprep.subr.mxu0 0.0
      %6225 = vmatpush1.msra.mxu0 0.0
      %6226 = vmatprep.mubr.f32.mxu0 0.0
      %6227 = vmatmul.mubr.f32.gmra.mrb[0].mxu0 %v5181
      %v6228 = vpop.f32.mrb[0].mxu0
      %v6229 = vadd.f32 %v6159, %v6228
      %v6230 = vpop.f32.mrb[0].mxu0
      %6231 = vdwg.mxu0
      %6232 = vmatprep.subr.mxu0 0.0
      %6233 = vmatpush1.msra.mxu0 %v4855
      %6234 = vmatprep.subr.mxu0 0.0
      %6235 = vmatpush1.msra.mxu0 %v4856
      %6236 = vmatprep.subr.mxu0 0.0
      %6237 = vmatpush1.msra.mxu0 %v4857
      %6238 = vmatprep.subr.mxu0 0.0
      %6239 = vmatpush1.msra.mxu0 %v4858
      %6240 = vmatprep.subr.mxu0 0.0
      %6241 = vmatpush1.msra.mxu0 0.0
      %6242 = vmatprep.subr.mxu0 0.0
      %6243 = vmatpush1.msra.mxu0 0.0
      %6244 = vmatprep.subr.mxu0 0.0
      %6245 = vmatpush1.msra.mxu0 0.0
      %6246 = vmatprep.subr.mxu0 0.0
      %6247 = vmatpush1.msra.mxu0 0.0
      %6248 = vmatprep.subr.mxu0 0.0
      %6249 = vmatpush1.msra.mxu0 0.0
      %6250 = vmatprep.subr.mxu0 0.0
      %6251 = vmatpush1.msra.mxu0 0.0
      %6252 = vmatprep.subr.mxu0 0.0
      %6253 = vmatpush1.msra.mxu0 0.0
      %6254 = vmatprep.subr.mxu0 0.0
      %6255 = vmatpush1.msra.mxu0 0.0
      %6256 = vmatprep.subr.mxu0 0.0
      %6257 = vmatpush1.msra.mxu0 0.0
      %6258 = vmatprep.subr.mxu0 0.0
      %6259 = vmatpush1.msra.mxu0 0.0
      %6260 = vmatprep.subr.mxu0 0.0
      %6261 = vmatpush1.msra.mxu0 0.0
      %6262 = vmatprep.subr.mxu0 0.0
      %6263 = vmatpush1.msra.mxu0 0.0
      %6264 = vmatprep.subr.mxu0 0.0
      %6265 = vmatpush1.msra.mxu0 0.0
      %6266 = vmatprep.subr.mxu0 0.0
      %6267 = vmatpush1.msra.mxu0 0.0
      %6268 = vmatprep.subr.mxu0 0.0
      %6269 = vmatpush1.msra.mxu0 0.0
      %6270 = vmatprep.subr.mxu0 0.0
      %6271 = vmatpush1.msra.mxu0 0.0
      %6272 = vmatprep.subr.mxu0 0.0
      %6273 = vmatpush1.msra.mxu0 0.0
      %6274 = vmatprep.subr.mxu0 0.0
      %6275 = vmatpush1.msra.mxu0 0.0
      %6276 = vmatprep.subr.mxu0 0.0
      %6277 = vmatpush1.msra.mxu0 0.0
      %6278 = vmatprep.subr.mxu0 0.0
      %6279 = vmatpush1.msra.mxu0 0.0
      %6280 = vmatprep.subr.mxu0 0.0
      %6281 = vmatpush1.msra.mxu0 0.0
      %6282 = vmatprep.subr.mxu0 0.0
      %6283 = vmatpush1.msra.mxu0 0.0
      %6284 = vmatprep.subr.mxu0 0.0
      %6285 = vmatpush1.msra.mxu0 0.0
      %6286 = vmatprep.subr.mxu0 0.0
      %6287 = vmatpush1.msra.mxu0 0.0
      %6288 = vmatprep.subr.mxu0 0.0
      %6289 = vmatpush1.msra.mxu0 0.0
      %6290 = vmatprep.subr.mxu0 0.0
      %6291 = vmatpush1.msra.mxu0 0.0
      %6292 = vmatprep.subr.mxu0 0.0
      %6293 = vmatpush1.msra.mxu0 0.0
      %6294 = vmatprep.subr.mxu0 0.0
      %6295 = vmatpush1.msra.mxu0 0.0
      %6296 = vmatprep.mubr.f32.mxu0 0.0
      %6297 = vmatmul.mubr.f32.gmra.mrb[0].mxu0 %v5341
      %v6298 = vpop.f32.mrb[0].mxu0
      %v6299 = vadd.f32 0.0, %v6298
      %v6300 = vpop.f32.mrb[0].mxu0
      %6301 = vdwg.mxu0
      %v6302 = vadd.f32 %v6229, %v6299
      %6303 = vmatprep.subr.mxu0 0.0
      %6304 = vmatpush1.msra.mxu0 %v4935
      %6305 = vmatprep.subr.mxu0 0.0
      %6306 = vmatpush1.msra.mxu0 %v4936
      %6307 = vmatprep.subr.mxu0 0.0
      %6308 = vmatpush1.msra.mxu0 %v4937
      %6309 = vmatprep.subr.mxu0 0.0
      %6310 = vmatpush1.msra.mxu0 %v4938
      %6311 = vmatprep.subr.mxu0 0.0
      %6312 = vmatpush1.msra.mxu0 0.0
      %6313 = vmatprep.subr.mxu0 0.0
      %6314 = vmatpush1.msra.mxu0 0.0
      %6315 = vmatprep.subr.mxu0 0.0
      %6316 = vmatpush1.msra.mxu0 0.0
      %6317 = vmatprep.subr.mxu0 0.0
      %6318 = vmatpush1.msra.mxu0 0.0
      %6319 = vmatprep.subr.mxu0 0.0
      %6320 = vmatpush1.msra.mxu0 0.0
      %6321 = vmatprep.subr.mxu0 0.0
      %6322 = vmatpush1.msra.mxu0 0.0
      %6323 = vmatprep.subr.mxu0 0.0
      %6324 = vmatpush1.msra.mxu0 0.0
      %6325 = vmatprep.subr.mxu0 0.0
      %6326 = vmatpush1.msra.mxu0 0.0
      %6327 = vmatprep.subr.mxu0 0.0
      %6328 = vmatpush1.msra.mxu0 0.0
      %6329 = vmatprep.subr.mxu0 0.0
      %6330 = vmatpush1.msra.mxu0 0.0
      %6331 = vmatprep.subr.mxu0 0.0
      %6332 = vmatpush1.msra.mxu0 0.0
      %6333 = vmatprep.subr.mxu0 0.0
      %6334 = vmatpush1.msra.mxu0 0.0
      %6335 = vmatprep.subr.mxu0 0.0
      %6336 = vmatpush1.msra.mxu0 0.0
      %6337 = vmatprep.subr.mxu0 0.0
      %6338 = vmatpush1.msra.mxu0 0.0
      %6339 = vmatprep.subr.mxu0 0.0
      %6340 = vmatpush1.msra.mxu0 0.0
      %6341 = vmatprep.subr.mxu0 0.0
      %6342 = vmatpush1.msra.mxu0 0.0
      %6343 = vmatprep.subr.mxu0 0.0
      %6344 = vmatpush1.msra.mxu0 0.0
      %6345 = vmatprep.subr.mxu0 0.0
      %6346 = vmatpush1.msra.mxu0 0.0
      %6347 = vmatprep.subr.mxu0 0.0
      %6348 = vmatpush1.msra.mxu0 0.0
      %6349 = vmatprep.subr.mxu0 0.0
      %6350 = vmatpush1.msra.mxu0 0.0
      %6351 = vmatprep.subr.mxu0 0.0
      %6352 = vmatpush1.msra.mxu0 0.0
      %6353 = vmatprep.subr.mxu0 0.0
      %6354 = vmatpush1.msra.mxu0 0.0
      %6355 = vmatprep.subr.mxu0 0.0
      %6356 = vmatpush1.msra.mxu0 0.0
      %6357 = vmatprep.subr.mxu0 0.0
      %6358 = vmatpush1.msra.mxu0 0.0
      %6359 = vmatprep.subr.mxu0 0.0
      %6360 = vmatpush1.msra.mxu0 0.0
      %6361 = vmatprep.subr.mxu0 0.0
      %6362 = vmatpush1.msra.mxu0 0.0
      %6363 = vmatprep.subr.mxu0 0.0
      %6364 = vmatpush1.msra.mxu0 0.0
      %6365 = vmatprep.subr.mxu0 0.0
      %6366 = vmatpush1.msra.mxu0 0.0
      %6367 = vmatprep.mubr.f32.mxu0 0.0
      %6368 = vmatmul.mubr.f32.gmra.mrb[0].mxu0 %v5859
      %v6369 = vpop.f32.mrb[0].mxu0
      %v6370 = vadd.f32 0.0, %v6369
      %v6371 = vpop.f32.mrb[0].mxu0
      %6372 = vdwg.mxu0
      %v6373 = vadd.f32 %v6302, %v6370
      %6374 = vmatprep.subr.mxu0 0.0
      %6375 = vmatpush1.msra.mxu0 %v5015
      %6376 = vmatprep.subr.mxu0 0.0
      %6377 = vmatpush1.msra.mxu0 %v5016
      %6378 = vmatprep.subr.mxu0 0.0
      %6379 = vmatpush1.msra.mxu0 %v5017
      %6380 = vmatprep.subr.mxu0 0.0
      %6381 = vmatpush1.msra.mxu0 %v5018
      %6382 = vmatprep.subr.mxu0 0.0
      %6383 = vmatpush1.msra.mxu0 0.0
      %6384 = vmatprep.subr.mxu0 0.0
      %6385 = vmatpush1.msra.mxu0 0.0
      %6386 = vmatprep.subr.mxu0 0.0
      %6387 = vmatpush1.msra.mxu0 0.0
      %6388 = vmatprep.subr.mxu0 0.0
      %6389 = vmatpush1.msra.mxu0 0.0
      %6390 = vmatprep.subr.mxu0 0.0
      %6391 = vmatpush1.msra.mxu0 0.0
      %6392 = vmatprep.subr.mxu0 0.0
      %6393 = vmatpush1.msra.mxu0 0.0
      %6394 = vmatprep.subr.mxu0 0.0
      %6395 = vmatpush1.msra.mxu0 0.0
      %6396 = vmatprep.subr.mxu0 0.0
      %6397 = vmatpush1.msra.mxu0 0.0
      %6398 = vmatprep.subr.mxu0 0.0
      %6399 = vmatpush1.msra.mxu0 0.0
      %6400 = vmatprep.subr.mxu0 0.0
      %6401 = vmatpush1.msra.mxu0 0.0
      %6402 = vmatprep.subr.mxu0 0.0
      %6403 = vmatpush1.msra.mxu0 0.0
      %6404 = vmatprep.subr.mxu0 0.0
      %6405 = vmatpush1.msra.mxu0 0.0
      %6406 = vmatprep.subr.mxu0 0.0
      %6407 = vmatpush1.msra.mxu0 0.0
      %6408 = vmatprep.subr.mxu0 0.0
      %6409 = vmatpush1.msra.mxu0 0.0
      %6410 = vmatprep.subr.mxu0 0.0
      %6411 = vmatpush1.msra.mxu0 0.0
      %6412 = vmatprep.subr.mxu0 0.0
      %6413 = vmatpush1.msra.mxu0 0.0
      %6414 = vmatprep.subr.mxu0 0.0
      %6415 = vmatpush1.msra.mxu0 0.0
      %6416 = vmatprep.subr.mxu0 0.0
      %6417 = vmatpush1.msra.mxu0 0.0
      %6418 = vmatprep.subr.mxu0 0.0
      %6419 = vmatpush1.msra.mxu0 0.0
      %6420 = vmatprep.subr.mxu0 0.0
      %6421 = vmatpush1.msra.mxu0 0.0
      %6422 = vmatprep.subr.mxu0 0.0
      %6423 = vmatpush1.msra.mxu0 0.0
      %6424 = vmatprep.subr.mxu0 0.0
      %6425 = vmatpush1.msra.mxu0 0.0
      %6426 = vmatprep.subr.mxu0 0.0
      %6427 = vmatpush1.msra.mxu0 0.0
      %6428 = vmatprep.subr.mxu0 0.0
      %6429 = vmatpush1.msra.mxu0 0.0
      %6430 = vmatprep.subr.mxu0 0.0
      %6431 = vmatpush1.msra.mxu0 0.0
      %6432 = vmatprep.subr.mxu0 0.0
      %6433 = vmatpush1.msra.mxu0 0.0
      %6434 = vmatprep.subr.mxu0 0.0
      %6435 = vmatpush1.msra.mxu0 0.0
      %6436 = vmatprep.subr.mxu0 0.0
      %6437 = vmatpush1.msra.mxu0 0.0
      %6438 = vmatprep.mubr.f32.mxu0 0.0
      %6439 = vmatmul.mubr.f32.gmra.mrb[0].mxu0 %v5934
      %v6440 = vpop.f32.mrb[0].mxu0
      %v6441 = vadd.f32 0.0, %v6440
      %v6442 = vpop.f32.mrb[0].mxu0
      %6443 = vdwg.mxu0
      %v6444 = vadd.f32 %v6373, %v6441
      %6445 = vmatprep.subr.mxu0 0.0
      %6446 = vmatpush1.msra.mxu0 %v5095
      %6447 = vmatprep.subr.mxu0 0.0
      %6448 = vmatpush1.msra.mxu0 %v5096
      %6449 = vmatprep.subr.mxu0 0.0
      %6450 = vmatpush1.msra.mxu0 %v5097
      %6451 = vmatprep.subr.mxu0 0.0
      %6452 = vmatpush1.msra.mxu0 %v5098
      %6453 = vmatprep.subr.mxu0 0.0
      %6454 = vmatpush1.msra.mxu0 0.0
      %6455 = vmatprep.subr.mxu0 0.0
      %6456 = vmatpush1.msra.mxu0 0.0
      %6457 = vmatprep.subr.mxu0 0.0
      %6458 = vmatpush1.msra.mxu0 0.0
      %6459 = vmatprep.subr.mxu0 0.0
      %6460 = vmatpush1.msra.mxu0 0.0
      %6461 = vmatprep.subr.mxu0 0.0
      %6462 = vmatpush1.msra.mxu0 0.0
      %6463 = vmatprep.subr.mxu0 0.0
      %6464 = vmatpush1.msra.mxu0 0.0
      %6465 = vmatprep.subr.mxu0 0.0
      %6466 = vmatpush1.msra.mxu0 0.0
      %6467 = vmatprep.subr.mxu0 0.0
      %6468 = vmatpush1.msra.mxu0 0.0
      %6469 = vmatprep.subr.mxu0 0.0
      %6470 = vmatpush1.msra.mxu0 0.0
      %6471 = vmatprep.subr.mxu0 0.0
      %6472 = vmatpush1.msra.mxu0 0.0
      %6473 = vmatprep.subr.mxu0 0.0
      %6474 = vmatpush1.msra.mxu0 0.0
      %6475 = vmatprep.subr.mxu0 0.0
      %6476 = vmatpush1.msra.mxu0 0.0
      %6477 = vmatprep.subr.mxu0 0.0
      %6478 = vmatpush1.msra.mxu0 0.0
      %6479 = vmatprep.subr.mxu0 0.0
      %6480 = vmatpush1.msra.mxu0 0.0
      %6481 = vmatprep.subr.mxu0 0.0
      %6482 = vmatpush1.msra.mxu0 0.0
      %6483 = vmatprep.subr.mxu0 0.0
      %6484 = vmatpush1.msra.mxu0 0.0
      %6485 = vmatprep.subr.mxu0 0.0
      %6486 = vmatpush1.msra.mxu0 0.0
      %6487 = vmatprep.subr.mxu0 0.0
      %6488 = vmatpush1.msra.mxu0 0.0
      %6489 = vmatprep.subr.mxu0 0.0
      %6490 = vmatpush1.msra.mxu0 0.0
      %6491 = vmatprep.subr.mxu0 0.0
      %6492 = vmatpush1.msra.mxu0 0.0
      %6493 = vmatprep.subr.mxu0 0.0
      %6494 = vmatpush1.msra.mxu0 0.0
      %6495 = vmatprep.subr.mxu0 0.0
      %6496 = vmatpush1.msra.mxu0 0.0
      %6497 = vmatprep.subr.mxu0 0.0
      %6498 = vmatpush1.msra.mxu0 0.0
      %6499 = vmatprep.subr.mxu0 0.0
      %6500 = vmatpush1.msra.mxu0 0.0
      %6501 = vmatprep.subr.mxu0 0.0
      %6502 = vmatpush1.msra.mxu0 0.0
      %6503 = vmatprep.subr.mxu0 0.0
      %6504 = vmatpush1.msra.mxu0 0.0
      %6505 = vmatprep.subr.mxu0 0.0
      %6506 = vmatpush1.msra.mxu0 0.0
      %6507 = vmatprep.subr.mxu0 0.0
      %6508 = vmatpush1.msra.mxu0 0.0
      %6509 = vmatprep.mubr.f32.mxu0 0.0
      %6510 = vmatmul.mubr.f32.gmra.mrb[0].mxu0 %v6009
      %v6511 = vpop.f32.mrb[0].mxu0
      %v6512 = vadd.f32 0.0, %v6511
      %v6513 = vpop.f32.mrb[0].mxu0
      %6514 = vdwg.mxu0
      %v6515 = vadd.f32 %v6444, %v6512
      %s6516 = scalar_lea.vmem [#allocation6], 32
      %v6517 = vld [vmem:[%s6516] sm:$0xf]
      %v6519 = vsel %vm4619, %v6517, 0
      %6521 = vmatprep.subr.mxu0 0.0
      %6522 = vmatpush1.msra.mxu0 %v5176
      %6523 = vmatprep.subr.mxu0 0.0
      %6524 = vmatpush1.msra.mxu0 %v5177
      %6525 = vmatprep.subr.mxu0 0.0
      %6526 = vmatpush1.msra.mxu0 %v5178
      %6527 = vmatprep.subr.mxu0 0.0
      %6528 = vmatpush1.msra.mxu0 %v5179
      %6529 = vmatprep.subr.mxu0 0.0
      %6530 = vmatpush1.msra.mxu0 0.0
      %6531 = vmatprep.subr.mxu0 0.0
      %6532 = vmatpush1.msra.mxu0 0.0
      %6533 = vmatprep.subr.mxu0 0.0
      %6534 = vmatpush1.msra.mxu0 0.0
      %6535 = vmatprep.subr.mxu0 0.0
      %6536 = vmatpush1.msra.mxu0 0.0
      %6537 = vmatprep.subr.mxu0 0.0
      %6538 = vmatpush1.msra.mxu0 0.0
      %6539 = vmatprep.subr.mxu0 0.0
      %6540 = vmatpush1.msra.mxu0 0.0
      %6541 = vmatprep.subr.mxu0 0.0
      %6542 = vmatpush1.msra.mxu0 0.0
      %6543 = vmatprep.subr.mxu0 0.0
      %6544 = vmatpush1.msra.mxu0 0.0
      %6545 = vmatprep.subr.mxu0 0.0
      %6546 = vmatpush1.msra.mxu0 0.0
      %6547 = vmatprep.subr.mxu0 0.0
      %6548 = vmatpush1.msra.mxu0 0.0
      %6549 = vmatprep.subr.mxu0 0.0
      %6550 = vmatpush1.msra.mxu0 0.0
      %6551 = vmatprep.subr.mxu0 0.0
      %6552 = vmatpush1.msra.mxu0 0.0
      %6553 = vmatprep.subr.mxu0 0.0
      %6554 = vmatpush1.msra.mxu0 0.0
      %6555 = vmatprep.subr.mxu0 0.0
      %6556 = vmatpush1.msra.mxu0 0.0
      %6557 = vmatprep.subr.mxu0 0.0
      %6558 = vmatpush1.msra.mxu0 0.0
      %6559 = vmatprep.subr.mxu0 0.0
      %6560 = vmatpush1.msra.mxu0 0.0
      %6561 = vmatprep.subr.mxu0 0.0
      %6562 = vmatpush1.msra.mxu0 0.0
      %6563 = vmatprep.subr.mxu0 0.0
      %6564 = vmatpush1.msra.mxu0 0.0
      %6565 = vmatprep.subr.mxu0 0.0
      %6566 = vmatpush1.msra.mxu0 0.0
      %6567 = vmatprep.subr.mxu0 0.0
      %6568 = vmatpush1.msra.mxu0 0.0
      %6569 = vmatprep.subr.mxu0 0.0
      %6570 = vmatpush1.msra.mxu0 0.0
      %6571 = vmatprep.subr.mxu0 0.0
      %6572 = vmatpush1.msra.mxu0 0.0
      %6573 = vmatprep.subr.mxu0 0.0
      %6574 = vmatpush1.msra.mxu0 0.0
      %6575 = vmatprep.subr.mxu0 0.0
      %6576 = vmatpush1.msra.mxu0 0.0
      %6577 = vmatprep.subr.mxu0 0.0
      %6578 = vmatpush1.msra.mxu0 0.0
      %6579 = vmatprep.subr.mxu0 0.0
      %6580 = vmatpush1.msra.mxu0 0.0
      %6581 = vmatprep.subr.mxu0 0.0
      %6582 = vmatpush1.msra.mxu0 0.0
      %6583 = vmatprep.subr.mxu0 0.0
      %6584 = vmatpush1.msra.mxu0 0.0
      %6585 = vmatprep.mubr.f32.mxu0 0.0
      %6586 = vmatmul.mubr.f32.gmra.mrb[0].mxu0 %v6519
      %v6587 = vpop.f32.mrb[0].mxu0
      %v6588 = vadd.f32 0.0, %v6587
      %v6589 = vpop.f32.mrb[0].mxu0
      %6590 = vdwg.mxu0
      %v6591 = vadd.f32 %v6515, %v6588
      %v6592 = vld [vmem:[%s6516 + $0x1] sm:$0xf]
      %v6594 = vsel %vm4619, %v6592, 0
      %6596 = vmatprep.subr.mxu0 0.0
      %6597 = vmatpush1.msra.mxu0 %v5256
      %6598 = vmatprep.subr.mxu0 0.0
      %6599 = vmatpush1.msra.mxu0 %v5257
      %6600 = vmatprep.subr.mxu0 0.0
      %6601 = vmatpush1.msra.mxu0 %v5258
      %6602 = vmatprep.subr.mxu0 0.0
      %6603 = vmatpush1.msra.mxu0 %v5259
      %6604 = vmatprep.subr.mxu0 0.0
      %6605 = vmatpush1.msra.mxu0 0.0
      %6606 = vmatprep.subr.mxu0 0.0
      %6607 = vmatpush1.msra.mxu0 0.0
      %6608 = vmatprep.subr.mxu0 0.0
      %6609 = vmatpush1.msra.mxu0 0.0
      %6610 = vmatprep.subr.mxu0 0.0
      %6611 = vmatpush1.msra.mxu0 0.0
      %6612 = vmatprep.subr.mxu0 0.0
      %6613 = vmatpush1.msra.mxu0 0.0
      %6614 = vmatprep.subr.mxu0 0.0
      %6615 = vmatpush1.msra.mxu0 0.0
      %6616 = vmatprep.subr.mxu0 0.0
      %6617 = vmatpush1.msra.mxu0 0.0
      %6618 = vmatprep.subr.mxu0 0.0
      %6619 = vmatpush1.msra.mxu0 0.0
      %6620 = vmatprep.subr.mxu0 0.0
      %6621 = vmatpush1.msra.mxu0 0.0
      %6622 = vmatprep.subr.mxu0 0.0
      %6623 = vmatpush1.msra.mxu0 0.0
      %6624 = vmatprep.subr.mxu0 0.0
      %6625 = vmatpush1.msra.mxu0 0.0
      %6626 = vmatprep.subr.mxu0 0.0
      %6627 = vmatpush1.msra.mxu0 0.0
      %6628 = vmatprep.subr.mxu0 0.0
      %6629 = vmatpush1.msra.mxu0 0.0
      %6630 = vmatprep.subr.mxu0 0.0
      %6631 = vmatpush1.msra.mxu0 0.0
      %6632 = vmatprep.subr.mxu0 0.0
      %6633 = vmatpush1.msra.mxu0 0.0
      %6634 = vmatprep.subr.mxu0 0.0
      %6635 = vmatpush1.msra.mxu0 0.0
      %6636 = vmatprep.subr.mxu0 0.0
      %6637 = vmatpush1.msra.mxu0 0.0
      %6638 = vmatprep.subr.mxu0 0.0
      %6639 = vmatpush1.msra.mxu0 0.0
      %6640 = vmatprep.subr.mxu0 0.0
      %6641 = vmatpush1.msra.mxu0 0.0
      %6642 = vmatprep.subr.mxu0 0.0
      %6643 = vmatpush1.msra.mxu0 0.0
      %6644 = vmatprep.subr.mxu0 0.0
      %6645 = vmatpush1.msra.mxu0 0.0
      %6646 = vmatprep.subr.mxu0 0.0
      %6647 = vmatpush1.msra.mxu0 0.0
      %6648 = vmatprep.subr.mxu0 0.0
      %6649 = vmatpush1.msra.mxu0 0.0
      %6650 = vmatprep.subr.mxu0 0.0
      %6651 = vmatpush1.msra.mxu0 0.0
      %6652 = vmatprep.subr.mxu0 0.0
      %6653 = vmatpush1.msra.mxu0 0.0
      %6654 = vmatprep.subr.mxu0 0.0
      %6655 = vmatpush1.msra.mxu0 0.0
      %6656 = vmatprep.subr.mxu0 0.0
      %6657 = vmatpush1.msra.mxu0 0.0
      %6658 = vmatprep.subr.mxu0 0.0
      %6659 = vmatpush1.msra.mxu0 0.0
      %6660 = vmatprep.mubr.f32.mxu0 0.0
      %6661 = vmatmul.mubr.f32.gmra.mrb[0].mxu0 %v6594
      %v6662 = vpop.f32.mrb[0].mxu0
      %v6663 = vadd.f32 0.0, %v6662
      %v6664 = vpop.f32.mrb[0].mxu0
      %6665 = vdwg.mxu0
      %v6666 = vadd.f32 %v6591, %v6663
      %v6667 = vld [vmem:[%s6516 + $0x2] sm:$0xf]
      %v6669 = vsel %vm4619, %v6667, 0
      %6671 = vmatprep.subr.mxu0 0.0
      %6672 = vmatpush1.msra.mxu0 %v5336
      %6673 = vmatprep.subr.mxu0 0.0
      %6674 = vmatpush1.msra.mxu0 %v5337
      %6675 = vmatprep.subr.mxu0 0.0
      %6676 = vmatpush1.msra.mxu0 %v5338
      %6677 = vmatprep.subr.mxu0 0.0
      %6678 = vmatpush1.msra.mxu0 %v5339
      %6679 = vmatprep.subr.mxu0 0.0
      %6680 = vmatpush1.msra.mxu0 0.0
      %6681 = vmatprep.subr.mxu0 0.0
      %6682 = vmatpush1.msra.mxu0 0.0
      %6683 = vmatprep.subr.mxu0 0.0
      %6684 = vmatpush1.msra.mxu0 0.0
      %6685 = vmatprep.subr.mxu0 0.0
      %6686 = vmatpush1.msra.mxu0 0.0
      %6687 = vmatprep.subr.mxu0 0.0
      %6688 = vmatpush1.msra.mxu0 0.0
      %6689 = vmatprep.subr.mxu0 0.0
      %6690 = vmatpush1.msra.mxu0 0.0
      %6691 = vmatprep.subr.mxu0 0.0
      %6692 = vmatpush1.msra.mxu0 0.0
      %6693 = vmatprep.subr.mxu0 0.0
      %6694 = vmatpush1.msra.mxu0 0.0
      %6695 = vmatprep.subr.mxu0 0.0
      %6696 = vmatpush1.msra.mxu0 0.0
      %6697 = vmatprep.subr.mxu0 0.0
      %6698 = vmatpush1.msra.mxu0 0.0
      %6699 = vmatprep.subr.mxu0 0.0
      %6700 = vmatpush1.msra.mxu0 0.0
      %6701 = vmatprep.subr.mxu0 0.0
      %6702 = vmatpush1.msra.mxu0 0.0
      %6703 = vmatprep.subr.mxu0 0.0
      %6704 = vmatpush1.msra.mxu0 0.0
      %6705 = vmatprep.subr.mxu0 0.0
      %6706 = vmatpush1.msra.mxu0 0.0
      %6707 = vmatprep.subr.mxu0 0.0
      %6708 = vmatpush1.msra.mxu0 0.0
      %6709 = vmatprep.subr.mxu0 0.0
      %6710 = vmatpush1.msra.mxu0 0.0
      %6711 = vmatprep.subr.mxu0 0.0
      %6712 = vmatpush1.msra.mxu0 0.0
      %6713 = vmatprep.subr.mxu0 0.0
      %6714 = vmatpush1.msra.mxu0 0.0
      %6715 = vmatprep.subr.mxu0 0.0
      %6716 = vmatpush1.msra.mxu0 0.0
      %6717 = vmatprep.subr.mxu0 0.0
      %6718 = vmatpush1.msra.mxu0 0.0
      %6719 = vmatprep.subr.mxu0 0.0
      %6720 = vmatpush1.msra.mxu0 0.0
      %6721 = vmatprep.subr.mxu0 0.0
      %6722 = vmatpush1.msra.mxu0 0.0
      %6723 = vmatprep.subr.mxu0 0.0
      %6724 = vmatpush1.msra.mxu0 0.0
      %6725 = vmatprep.subr.mxu0 0.0
      %6726 = vmatpush1.msra.mxu0 0.0
      %6727 = vmatprep.subr.mxu0 0.0
      %6728 = vmatpush1.msra.mxu0 0.0
      %6729 = vmatprep.subr.mxu0 0.0
      %6730 = vmatpush1.msra.mxu0 0.0
      %6731 = vmatprep.subr.mxu0 0.0
      %6732 = vmatpush1.msra.mxu0 0.0
      %6733 = vmatprep.subr.mxu0 0.0
      %6734 = vmatpush1.msra.mxu0 0.0
      %6735 = vmatprep.mubr.f32.mxu0 0.0
      %6736 = vmatmul.mubr.f32.gmra.mrb[0].mxu0 %v6669
      %v6737 = vpop.f32.mrb[0].mxu0
      %v6738 = vadd.f32 0.0, %v6737
      %v6739 = vpop.f32.mrb[0].mxu0
      %6740 = vdwg.mxu0
      %v6741 = vadd.f32 %v6666, %v6738
      %v6742 = vadd.f32 %v6741, %v5419
      %v6743 = vmax.f32 %v6742, 0.0
      %v6744 = vsel %vm5423, %v6743, 0.0
      %v6745 = vrot.slane %v6744, 4
      %v6746 = vadd.f32 %v6744, %v6745
      %v6747 = vrot.slane %v6746, 2
      %v6748 = vadd.f32 %v6746, %v6747
      %v6749 = vrot.slane %v6748, 1
      %v6750 = vadd.f32 %v6748, %v6749
      %v6751 = vadd.f32 %v6091, %v6750
      %6752 = vmatprep.subr.mxu0 0.0
      %6753 = vmatpush1.msra.mxu0 %v4703
      %6754 = vmatprep.subr.mxu0 0.0
      %6755 = vmatpush1.msra.mxu0 %v4704
      %6756 = vmatprep.subr.mxu0 0.0
      %6757 = vmatpush1.msra.mxu0 %v4705
      %6758 = vmatprep.subr.mxu0 0.0
      %6759 = vmatpush1.msra.mxu0 %v4706
      %6760 = vmatprep.subr.mxu0 0.0
      %6761 = vmatpush1.msra.mxu0 0.0
      %6762 = vmatprep.subr.mxu0 0.0
      %6763 = vmatpush1.msra.mxu0 0.0
      %6764 = vmatprep.subr.mxu0 0.0
      %6765 = vmatpush1.msra.mxu0 0.0
      %6766 = vmatprep.subr.mxu0 0.0
      %6767 = vmatpush1.msra.mxu0 0.0
      %6768 = vmatprep.subr.mxu0 0.0
      %6769 = vmatpush1.msra.mxu0 0.0
      %6770 = vmatprep.subr.mxu0 0.0
      %6771 = vmatpush1.msra.mxu0 0.0
      %6772 = vmatprep.subr.mxu0 0.0
      %6773 = vmatpush1.msra.mxu0 0.0
      %6774 = vmatprep.subr.mxu0 0.0
      %6775 = vmatpush1.msra.mxu0 0.0
      %6776 = vmatprep.subr.mxu0 0.0
      %6777 = vmatpush1.msra.mxu0 0.0
      %6778 = vmatprep.subr.mxu0 0.0
      %6779 = vmatpush1.msra.mxu0 0.0
      %6780 = vmatprep.subr.mxu0 0.0
      %6781 = vmatpush1.msra.mxu0 0.0
      %6782 = vmatprep.subr.mxu0 0.0
      %6783 = vmatpush1.msra.mxu0 0.0
      %6784 = vmatprep.subr.mxu0 0.0
      %6785 = vmatpush1.msra.mxu0 0.0
      %6786 = vmatprep.subr.mxu0 0.0
      %6787 = vmatpush1.msra.mxu0 0.0
      %6788 = vmatprep.subr.mxu0 0.0
      %6789 = vmatpush1.msra.mxu0 0.0
      %6790 = vmatprep.subr.mxu0 0.0
      %6791 = vmatpush1.msra.mxu0 0.0
      %6792 = vmatprep.subr.mxu0 0.0
      %6793 = vmatpush1.msra.mxu0 0.0
      %6794 = vmatprep.subr.mxu0 0.0
      %6795 = vmatpush1.msra.mxu0 0.0
      %6796 = vmatprep.subr.mxu0 0.0
      %6797 = vmatpush1.msra.mxu0 0.0
      %6798 = vmatprep.subr.mxu0 0.0
      %6799 = vmatpush1.msra.mxu0 0.0
      %6800 = vmatprep.subr.mxu0 0.0
      %6801 = vmatpush1.msra.mxu0 0.0
      %6802 = vmatprep.subr.mxu0 0.0
      %6803 = vmatpush1.msra.mxu0 0.0
      %6804 = vmatprep.subr.mxu0 0.0
      %6805 = vmatpush1.msra.mxu0 0.0
      %6806 = vmatprep.subr.mxu0 0.0
      %6807 = vmatpush1.msra.mxu0 0.0
      %6808 = vmatprep.subr.mxu0 0.0
      %6809 = vmatpush1.msra.mxu0 0.0
      %6810 = vmatprep.subr.mxu0 0.0
      %6811 = vmatpush1.msra.mxu0 0.0
      %6812 = vmatprep.subr.mxu0 0.0
      %6813 = vmatpush1.msra.mxu0 0.0
      %6814 = vmatprep.subr.mxu0 0.0
      %6815 = vmatpush1.msra.mxu0 0.0
      %6816 = vmatprep.mubr.f32.mxu0 0.0
      %6817 = vmatmul.mubr.f32.gmra.mrb[0].mxu0 %v5934
      %v6818 = vpop.f32.mrb[0].mxu0
      %v6819 = vadd.f32 0.0, %v6818
      %v6820 = vpop.f32.mrb[0].mxu0
      %6821 = vdwg.mxu0
      %6822 = vmatprep.subr.mxu0 0.0
      %6823 = vmatpush1.msra.mxu0 %v4697
      %6824 = vmatprep.subr.mxu0 0.0
      %6825 = vmatpush1.msra.mxu0 %v4698
      %6826 = vmatprep.subr.mxu0 0.0
      %6827 = vmatpush1.msra.mxu0 %v4699
      %6828 = vmatprep.subr.mxu0 0.0
      %6829 = vmatpush1.msra.mxu0 %v4700
      %6830 = vmatprep.subr.mxu0 0.0
      %6831 = vmatpush1.msra.mxu0 0.0
      %6832 = vmatprep.subr.mxu0 0.0
      %6833 = vmatpush1.msra.mxu0 0.0
      %6834 = vmatprep.subr.mxu0 0.0
      %6835 = vmatpush1.msra.mxu0 0.0
      %6836 = vmatprep.subr.mxu0 0.0
      %6837 = vmatpush1.msra.mxu0 0.0
      %6838 = vmatprep.subr.mxu0 0.0
      %6839 = vmatpush1.msra.mxu0 0.0
      %6840 = vmatprep.subr.mxu0 0.0
      %6841 = vmatpush1.msra.mxu0 0.0
      %6842 = vmatprep.subr.mxu0 0.0
      %6843 = vmatpush1.msra.mxu0 0.0
      %6844 = vmatprep.subr.mxu0 0.0
      %6845 = vmatpush1.msra.mxu0 0.0
      %6846 = vmatprep.subr.mxu0 0.0
      %6847 = vmatpush1.msra.mxu0 0.0
      %6848 = vmatprep.subr.mxu0 0.0
      %6849 = vmatpush1.msra.mxu0 0.0
      %6850 = vmatprep.subr.mxu0 0.0
      %6851 = vmatpush1.msra.mxu0 0.0
      %6852 = vmatprep.subr.mxu0 0.0
      %6853 = vmatpush1.msra.mxu0 0.0
      %6854 = vmatprep.subr.mxu0 0.0
      %6855 = vmatpush1.msra.mxu0 0.0
      %6856 = vmatprep.subr.mxu0 0.0
      %6857 = vmatpush1.msra.mxu0 0.0
      %6858 = vmatprep.subr.mxu0 0.0
      %6859 = vmatpush1.msra.mxu0 0.0
      %6860 = vmatprep.subr.mxu0 0.0
      %6861 = vmatpush1.msra.mxu0 0.0
      %6862 = vmatprep.subr.mxu0 0.0
      %6863 = vmatpush1.msra.mxu0 0.0
      %6864 = vmatprep.subr.mxu0 0.0
      %6865 = vmatpush1.msra.mxu0 0.0
      %6866 = vmatprep.subr.mxu0 0.0
      %6867 = vmatpush1.msra.mxu0 0.0
      %6868 = vmatprep.subr.mxu0 0.0
      %6869 = vmatpush1.msra.mxu0 0.0
      %6870 = vmatprep.subr.mxu0 0.0
      %6871 = vmatpush1.msra.mxu0 0.0
      %6872 = vmatprep.subr.mxu0 0.0
      %6873 = vmatpush1.msra.mxu0 0.0
      %6874 = vmatprep.subr.mxu0 0.0
      %6875 = vmatpush1.msra.mxu0 0.0
      %6876 = vmatprep.subr.mxu0 0.0
      %6877 = vmatpush1.msra.mxu0 0.0
      %6878 = vmatprep.subr.mxu0 0.0
      %6879 = vmatpush1.msra.mxu0 0.0
      %6880 = vmatprep.subr.mxu0 0.0
      %6881 = vmatpush1.msra.mxu0 0.0
      %6882 = vmatprep.subr.mxu0 0.0
      %6883 = vmatpush1.msra.mxu0 0.0
      %6884 = vmatprep.subr.mxu0 0.0
      %6885 = vmatpush1.msra.mxu0 0.0
      %6886 = vmatprep.mubr.f32.mxu0 0.0
      %6887 = vmatmul.mubr.f32.gmra.mrb[0].mxu0 %v5859
      %v6888 = vpop.f32.mrb[0].mxu0
      %v6889 = vadd.f32 %v6819, %v6888
      %v6890 = vpop.f32.mrb[0].mxu0
      %6891 = vdwg.mxu0
      %6892 = vmatprep.subr.mxu0 0.0
      %6893 = vmatpush1.msra.mxu0 %v4855
      %6894 = vmatprep.subr.mxu0 0.0
      %6895 = vmatpush1.msra.mxu0 %v4856
      %6896 = vmatprep.subr.mxu0 0.0
      %6897 = vmatpush1.msra.mxu0 %v4857
      %6898 = vmatprep.subr.mxu0 0.0
      %6899 = vmatpush1.msra.mxu0 %v4858
      %6900 = vmatprep.subr.mxu0 0.0
      %6901 = vmatpush1.msra.mxu0 0.0
      %6902 = vmatprep.subr.mxu0 0.0
      %6903 = vmatpush1.msra.mxu0 0.0
      %6904 = vmatprep.subr.mxu0 0.0
      %6905 = vmatpush1.msra.mxu0 0.0
      %6906 = vmatprep.subr.mxu0 0.0
      %6907 = vmatpush1.msra.mxu0 0.0
      %6908 = vmatprep.subr.mxu0 0.0
      %6909 = vmatpush1.msra.mxu0 0.0
      %6910 = vmatprep.subr.mxu0 0.0
      %6911 = vmatpush1.msra.mxu0 0.0
      %6912 = vmatprep.subr.mxu0 0.0
      %6913 = vmatpush1.msra.mxu0 0.0
      %6914 = vmatprep.subr.mxu0 0.0
      %6915 = vmatpush1.msra.mxu0 0.0
      %6916 = vmatprep.subr.mxu0 0.0
      %6917 = vmatpush1.msra.mxu0 0.0
      %6918 = vmatprep.subr.mxu0 0.0
      %6919 = vmatpush1.msra.mxu0 0.0
      %6920 = vmatprep.subr.mxu0 0.0
      %6921 = vmatpush1.msra.mxu0 0.0
      %6922 = vmatprep.subr.mxu0 0.0
      %6923 = vmatpush1.msra.mxu0 0.0
      %6924 = vmatprep.subr.mxu0 0.0
      %6925 = vmatpush1.msra.mxu0 0.0
      %6926 = vmatprep.subr.mxu0 0.0
      %6927 = vmatpush1.msra.mxu0 0.0
      %6928 = vmatprep.subr.mxu0 0.0
      %6929 = vmatpush1.msra.mxu0 0.0
      %6930 = vmatprep.subr.mxu0 0.0
      %6931 = vmatpush1.msra.mxu0 0.0
      %6932 = vmatprep.subr.mxu0 0.0
      %6933 = vmatpush1.msra.mxu0 0.0
      %6934 = vmatprep.subr.mxu0 0.0
      %6935 = vmatpush1.msra.mxu0 0.0
      %6936 = vmatprep.subr.mxu0 0.0
      %6937 = vmatpush1.msra.mxu0 0.0
      %6938 = vmatprep.subr.mxu0 0.0
      %6939 = vmatpush1.msra.mxu0 0.0
      %6940 = vmatprep.subr.mxu0 0.0
      %6941 = vmatpush1.msra.mxu0 0.0
      %6942 = vmatprep.subr.mxu0 0.0
      %6943 = vmatpush1.msra.mxu0 0.0
      %6944 = vmatprep.subr.mxu0 0.0
      %6945 = vmatpush1.msra.mxu0 0.0
      %6946 = vmatprep.subr.mxu0 0.0
      %6947 = vmatpush1.msra.mxu0 0.0
      %6948 = vmatprep.subr.mxu0 0.0
      %6949 = vmatpush1.msra.mxu0 0.0
      %6950 = vmatprep.subr.mxu0 0.0
      %6951 = vmatpush1.msra.mxu0 0.0
      %6952 = vmatprep.subr.mxu0 0.0
      %6953 = vmatpush1.msra.mxu0 0.0
      %6954 = vmatprep.subr.mxu0 0.0
      %6955 = vmatpush1.msra.mxu0 0.0
      %6956 = vmatprep.mubr.f32.mxu0 0.0
      %6957 = vmatmul.mubr.f32.gmra.mrb[0].mxu0 %v6009
      %v6958 = vpop.f32.mrb[0].mxu0
      %v6959 = vadd.f32 0.0, %v6958
      %v6960 = vpop.f32.mrb[0].mxu0
      %6961 = vdwg.mxu0
      %v6962 = vadd.f32 %v6889, %v6959
      %6963 = vmatprep.subr.mxu0 0.0
      %6964 = vmatpush1.msra.mxu0 %v4935
      %6965 = vmatprep.subr.mxu0 0.0
      %6966 = vmatpush1.msra.mxu0 %v4936
      %6967 = vmatprep.subr.mxu0 0.0
      %6968 = vmatpush1.msra.mxu0 %v4937
      %6969 = vmatprep.subr.mxu0 0.0
      %6970 = vmatpush1.msra.mxu0 %v4938
      %6971 = vmatprep.subr.mxu0 0.0
      %6972 = vmatpush1.msra.mxu0 0.0
      %6973 = vmatprep.subr.mxu0 0.0
      %6974 = vmatpush1.msra.mxu0 0.0
      %6975 = vmatprep.subr.mxu0 0.0
      %6976 = vmatpush1.msra.mxu0 0.0
      %6977 = vmatprep.subr.mxu0 0.0
      %6978 = vmatpush1.msra.mxu0 0.0
      %6979 = vmatprep.subr.mxu0 0.0
      %6980 = vmatpush1.msra.mxu0 0.0
      %6981 = vmatprep.subr.mxu0 0.0
      %6982 = vmatpush1.msra.mxu0 0.0
      %6983 = vmatprep.subr.mxu0 0.0
      %6984 = vmatpush1.msra.mxu0 0.0
      %6985 = vmatprep.subr.mxu0 0.0
      %6986 = vmatpush1.msra.mxu0 0.0
      %6987 = vmatprep.subr.mxu0 0.0
      %6988 = vmatpush1.msra.mxu0 0.0
      %6989 = vmatprep.subr.mxu0 0.0
      %6990 = vmatpush1.msra.mxu0 0.0
      %6991 = vmatprep.subr.mxu0 0.0
      %6992 = vmatpush1.msra.mxu0 0.0
      %6993 = vmatprep.subr.mxu0 0.0
      %6994 = vmatpush1.msra.mxu0 0.0
      %6995 = vmatprep.subr.mxu0 0.0
      %6996 = vmatpush1.msra.mxu0 0.0
      %6997 = vmatprep.subr.mxu0 0.0
      %6998 = vmatpush1.msra.mxu0 0.0
      %6999 = vmatprep.subr.mxu0 0.0
      %7000 = vmatpush1.msra.mxu0 0.0
      %7001 = vmatprep.subr.mxu0 0.0
      %7002 = vmatpush1.msra.mxu0 0.0
      %7003 = vmatprep.subr.mxu0 0.0
      %7004 = vmatpush1.msra.mxu0 0.0
      %7005 = vmatprep.subr.mxu0 0.0
      %7006 = vmatpush1.msra.mxu0 0.0
      %7007 = vmatprep.subr.mxu0 0.0
      %7008 = vmatpush1.msra.mxu0 0.0
      %7009 = vmatprep.subr.mxu0 0.0
      %7010 = vmatpush1.msra.mxu0 0.0
      %7011 = vmatprep.subr.mxu0 0.0
      %7012 = vmatpush1.msra.mxu0 0.0
      %7013 = vmatprep.subr.mxu0 0.0
      %7014 = vmatpush1.msra.mxu0 0.0
      %7015 = vmatprep.subr.mxu0 0.0
      %7016 = vmatpush1.msra.mxu0 0.0
      %7017 = vmatprep.subr.mxu0 0.0
      %7018 = vmatpush1.msra.mxu0 0.0
      %7019 = vmatprep.subr.mxu0 0.0
      %7020 = vmatpush1.msra.mxu0 0.0
      %7021 = vmatprep.subr.mxu0 0.0
      %7022 = vmatpush1.msra.mxu0 0.0
      %7023 = vmatprep.subr.mxu0 0.0
      %7024 = vmatpush1.msra.mxu0 0.0
      %7025 = vmatprep.subr.mxu0 0.0
      %7026 = vmatpush1.msra.mxu0 0.0
      %7027 = vmatprep.mubr.f32.mxu0 0.0
      %7028 = vmatmul.mubr.f32.gmra.mrb[0].mxu0 %v6519
      %v7029 = vpop.f32.mrb[0].mxu0
      %v7030 = vadd.f32 0.0, %v7029
      %v7031 = vpop.f32.mrb[0].mxu0
      %7032 = vdwg.mxu0
      %v7033 = vadd.f32 %v6962, %v7030
      %7034 = vmatprep.subr.mxu0 0.0
      %7035 = vmatpush1.msra.mxu0 %v5015
      %7036 = vmatprep.subr.mxu0 0.0
      %7037 = vmatpush1.msra.mxu0 %v5016
      %7038 = vmatprep.subr.mxu0 0.0
      %7039 = vmatpush1.msra.mxu0 %v5017
      %7040 = vmatprep.subr.mxu0 0.0
      %7041 = vmatpush1.msra.mxu0 %v5018
      %7042 = vmatprep.subr.mxu0 0.0
      %7043 = vmatpush1.msra.mxu0 0.0
      %7044 = vmatprep.subr.mxu0 0.0
      %7045 = vmatpush1.msra.mxu0 0.0
      %7046 = vmatprep.subr.mxu0 0.0
      %7047 = vmatpush1.msra.mxu0 0.0
      %7048 = vmatprep.subr.mxu0 0.0
      %7049 = vmatpush1.msra.mxu0 0.0
      %7050 = vmatprep.subr.mxu0 0.0
      %7051 = vmatpush1.msra.mxu0 0.0
      %7052 = vmatprep.subr.mxu0 0.0
      %7053 = vmatpush1.msra.mxu0 0.0
      %7054 = vmatprep.subr.mxu0 0.0
      %7055 = vmatpush1.msra.mxu0 0.0
      %7056 = vmatprep.subr.mxu0 0.0
      %7057 = vmatpush1.msra.mxu0 0.0
      %7058 = vmatprep.subr.mxu0 0.0
      %7059 = vmatpush1.msra.mxu0 0.0
      %7060 = vmatprep.subr.mxu0 0.0
      %7061 = vmatpush1.msra.mxu0 0.0
      %7062 = vmatprep.subr.mxu0 0.0
      %7063 = vmatpush1.msra.mxu0 0.0
      %7064 = vmatprep.subr.mxu0 0.0
      %7065 = vmatpush1.msra.mxu0 0.0
      %7066 = vmatprep.subr.mxu0 0.0
      %7067 = vmatpush1.msra.mxu0 0.0
      %7068 = vmatprep.subr.mxu0 0.0
      %7069 = vmatpush1.msra.mxu0 0.0
      %7070 = vmatprep.subr.mxu0 0.0
      %7071 = vmatpush1.msra.mxu0 0.0
      %7072 = vmatprep.subr.mxu0 0.0
      %7073 = vmatpush1.msra.mxu0 0.0
      %7074 = vmatprep.subr.mxu0 0.0
      %7075 = vmatpush1.msra.mxu0 0.0
      %7076 = vmatprep.subr.mxu0 0.0
      %7077 = vmatpush1.msra.mxu0 0.0
      %7078 = vmatprep.subr.mxu0 0.0
      %7079 = vmatpush1.msra.mxu0 0.0
      %7080 = vmatprep.subr.mxu0 0.0
      %7081 = vmatpush1.msra.mxu0 0.0
      %7082 = vmatprep.subr.mxu0 0.0
      %7083 = vmatpush1.msra.mxu0 0.0
      %7084 = vmatprep.subr.mxu0 0.0
      %7085 = vmatpush1.msra.mxu0 0.0
      %7086 = vmatprep.subr.mxu0 0.0
      %7087 = vmatpush1.msra.mxu0 0.0
      %7088 = vmatprep.subr.mxu0 0.0
      %7089 = vmatpush1.msra.mxu0 0.0
      %7090 = vmatprep.subr.mxu0 0.0
      %7091 = vmatpush1.msra.mxu0 0.0
      %7092 = vmatprep.subr.mxu0 0.0
      %7093 = vmatpush1.msra.mxu0 0.0
      %7094 = vmatprep.subr.mxu0 0.0
      %7095 = vmatpush1.msra.mxu0 0.0
      %7096 = vmatprep.subr.mxu0 0.0
      %7097 = vmatpush1.msra.mxu0 0.0
      %7098 = vmatprep.mubr.f32.mxu0 0.0
      %7099 = vmatmul.mubr.f32.gmra.mrb[0].mxu0 %v6594
      %v7100 = vpop.f32.mrb[0].mxu0
      %v7101 = vadd.f32 0.0, %v7100
      %v7102 = vpop.f32.mrb[0].mxu0
      %7103 = vdwg.mxu0
      %v7104 = vadd.f32 %v7033, %v7101
      %7105 = vmatprep.subr.mxu0 0.0
      %7106 = vmatpush1.msra.mxu0 %v5095
      %7107 = vmatprep.subr.mxu0 0.0
      %7108 = vmatpush1.msra.mxu0 %v5096
      %7109 = vmatprep.subr.mxu0 0.0
      %7110 = vmatpush1.msra.mxu0 %v5097
      %7111 = vmatprep.subr.mxu0 0.0
      %7112 = vmatpush1.msra.mxu0 %v5098
      %7113 = vmatprep.subr.mxu0 0.0
      %7114 = vmatpush1.msra.mxu0 0.0
      %7115 = vmatprep.subr.mxu0 0.0
      %7116 = vmatpush1.msra.mxu0 0.0
      %7117 = vmatprep.subr.mxu0 0.0
      %7118 = vmatpush1.msra.mxu0 0.0
      %7119 = vmatprep.subr.mxu0 0.0
      %7120 = vmatpush1.msra.mxu0 0.0
      %7121 = vmatprep.subr.mxu0 0.0
      %7122 = vmatpush1.msra.mxu0 0.0
      %7123 = vmatprep.subr.mxu0 0.0
      %7124 = vmatpush1.msra.mxu0 0.0
      %7125 = vmatprep.subr.mxu0 0.0
      %7126 = vmatpush1.msra.mxu0 0.0
      %7127 = vmatprep.subr.mxu0 0.0
      %7128 = vmatpush1.msra.mxu0 0.0
      %7129 = vmatprep.subr.mxu0 0.0
      %7130 = vmatpush1.msra.mxu0 0.0
      %7131 = vmatprep.subr.mxu0 0.0
      %7132 = vmatpush1.msra.mxu0 0.0
      %7133 = vmatprep.subr.mxu0 0.0
      %7134 = vmatpush1.msra.mxu0 0.0
      %7135 = vmatprep.subr.mxu0 0.0
      %7136 = vmatpush1.msra.mxu0 0.0
      %7137 = vmatprep.subr.mxu0 0.0
      %7138 = vmatpush1.msra.mxu0 0.0
      %7139 = vmatprep.subr.mxu0 0.0
      %7140 = vmatpush1.msra.mxu0 0.0
      %7141 = vmatprep.subr.mxu0 0.0
      %7142 = vmatpush1.msra.mxu0 0.0
      %7143 = vmatprep.subr.mxu0 0.0
      %7144 = vmatpush1.msra.mxu0 0.0
      %7145 = vmatprep.subr.mxu0 0.0
      %7146 = vmatpush1.msra.mxu0 0.0
      %7147 = vmatprep.subr.mxu0 0.0
      %7148 = vmatpush1.msra.mxu0 0.0
      %7149 = vmatprep.subr.mxu0 0.0
      %7150 = vmatpush1.msra.mxu0 0.0
      %7151 = vmatprep.subr.mxu0 0.0
      %7152 = vmatpush1.msra.mxu0 0.0
      %7153 = vmatprep.subr.mxu0 0.0
      %7154 = vmatpush1.msra.mxu0 0.0
      %7155 = vmatprep.subr.mxu0 0.0
      %7156 = vmatpush1.msra.mxu0 0.0
      %7157 = vmatprep.subr.mxu0 0.0
      %7158 = vmatpush1.msra.mxu0 0.0
      %7159 = vmatprep.subr.mxu0 0.0
      %7160 = vmatpush1.msra.mxu0 0.0
      %7161 = vmatprep.subr.mxu0 0.0
      %7162 = vmatpush1.msra.mxu0 0.0
      %7163 = vmatprep.subr.mxu0 0.0
      %7164 = vmatpush1.msra.mxu0 0.0
      %7165 = vmatprep.subr.mxu0 0.0
      %7166 = vmatpush1.msra.mxu0 0.0
      %7167 = vmatprep.subr.mxu0 0.0
      %7168 = vmatpush1.msra.mxu0 0.0
      %7169 = vmatprep.mubr.f32.mxu0 0.0
      %7170 = vmatmul.mubr.f32.gmra.mrb[0].mxu0 %v6669
      %v7171 = vpop.f32.mrb[0].mxu0
      %v7172 = vadd.f32 0.0, %v7171
      %v7173 = vpop.f32.mrb[0].mxu0
      %7174 = vdwg.mxu0
      %v7175 = vadd.f32 %v7104, %v7172
      %s7176 = scalar_lea.vmem [#allocation6], 40
      %v7177 = vld [vmem:[%s7176] sm:$0xf]
      %v7179 = vsel %vm4619, %v7177, 0
      %7181 = vmatprep.subr.mxu0 0.0
      %7182 = vmatpush1.msra.mxu0 %v5176
      %7183 = vmatprep.subr.mxu0 0.0
      %7184 = vmatpush1.msra.mxu0 %v5177
      %7185 = vmatprep.subr.mxu0 0.0
      %7186 = vmatpush1.msra.mxu0 %v5178
      %7187 = vmatprep.subr.mxu0 0.0
      %7188 = vmatpush1.msra.mxu0 %v5179
      %7189 = vmatprep.subr.mxu0 0.0
      %7190 = vmatpush1.msra.mxu0 0.0
      %7191 = vmatprep.subr.mxu0 0.0
      %7192 = vmatpush1.msra.mxu0 0.0
      %7193 = vmatprep.subr.mxu0 0.0
      %7194 = vmatpush1.msra.mxu0 0.0
      %7195 = vmatprep.subr.mxu0 0.0
      %7196 = vmatpush1.msra.mxu0 0.0
      %7197 = vmatprep.subr.mxu0 0.0
      %7198 = vmatpush1.msra.mxu0 0.0
      %7199 = vmatprep.subr.mxu0 0.0
      %7200 = vmatpush1.msra.mxu0 0.0
      %7201 = vmatprep.subr.mxu0 0.0
      %7202 = vmatpush1.msra.mxu0 0.0
      %7203 = vmatprep.subr.mxu0 0.0
      %7204 = vmatpush1.msra.mxu0 0.0
      %7205 = vmatprep.subr.mxu0 0.0
      %7206 = vmatpush1.msra.mxu0 0.0
      %7207 = vmatprep.subr.mxu0 0.0
      %7208 = vmatpush1.msra.mxu0 0.0
      %7209 = vmatprep.subr.mxu0 0.0
      %7210 = vmatpush1.msra.mxu0 0.0
      %7211 = vmatprep.subr.mxu0 0.0
      %7212 = vmatpush1.msra.mxu0 0.0
      %7213 = vmatprep.subr.mxu0 0.0
      %7214 = vmatpush1.msra.mxu0 0.0
      %7215 = vmatprep.subr.mxu0 0.0
      %7216 = vmatpush1.msra.mxu0 0.0
      %7217 = vmatprep.subr.mxu0 0.0
      %7218 = vmatpush1.msra.mxu0 0.0
      %7219 = vmatprep.subr.mxu0 0.0
      %7220 = vmatpush1.msra.mxu0 0.0
      %7221 = vmatprep.subr.mxu0 0.0
      %7222 = vmatpush1.msra.mxu0 0.0
      %7223 = vmatprep.subr.mxu0 0.0
      %7224 = vmatpush1.msra.mxu0 0.0
      %7225 = vmatprep.subr.mxu0 0.0
      %7226 = vmatpush1.msra.mxu0 0.0
      %7227 = vmatprep.subr.mxu0 0.0
      %7228 = vmatpush1.msra.mxu0 0.0
      %7229 = vmatprep.subr.mxu0 0.0
      %7230 = vmatpush1.msra.mxu0 0.0
      %7231 = vmatprep.subr.mxu0 0.0
      %7232 = vmatpush1.msra.mxu0 0.0
      %7233 = vmatprep.subr.mxu0 0.0
      %7234 = vmatpush1.msra.mxu0 0.0
      %7235 = vmatprep.subr.mxu0 0.0
      %7236 = vmatpush1.msra.mxu0 0.0
      %7237 = vmatprep.subr.mxu0 0.0
      %7238 = vmatpush1.msra.mxu0 0.0
      %7239 = vmatprep.subr.mxu0 0.0
      %7240 = vmatpush1.msra.mxu0 0.0
      %7241 = vmatprep.subr.mxu0 0.0
      %7242 = vmatpush1.msra.mxu0 0.0
      %7243 = vmatprep.subr.mxu0 0.0
      %7244 = vmatpush1.msra.mxu0 0.0
      %7245 = vmatprep.mubr.f32.mxu0 0.0
      %7246 = vmatmul.mubr.f32.gmra.mrb[0].mxu0 %v7179
      %v7247 = vpop.f32.mrb[0].mxu0
      %v7248 = vadd.f32 0.0, %v7247
      %v7249 = vpop.f32.mrb[0].mxu0
      %7250 = vdwg.mxu0
      %v7251 = vadd.f32 %v7175, %v7248
      %v7252 = vld [vmem:[%s7176 + $0x1] sm:$0xf]
      %v7254 = vsel %vm4619, %v7252, 0
      %7256 = vmatprep.subr.mxu0 0.0
      %7257 = vmatpush1.msra.mxu0 %v5256
      %7258 = vmatprep.subr.mxu0 0.0
      %7259 = vmatpush1.msra.mxu0 %v5257
      %7260 = vmatprep.subr.mxu0 0.0
      %7261 = vmatpush1.msra.mxu0 %v5258
      %7262 = vmatprep.subr.mxu0 0.0
      %7263 = vmatpush1.msra.mxu0 %v5259
      %7264 = vmatprep.subr.mxu0 0.0
      %7265 = vmatpush1.msra.mxu0 0.0
      %7266 = vmatprep.subr.mxu0 0.0
      %7267 = vmatpush1.msra.mxu0 0.0
      %7268 = vmatprep.subr.mxu0 0.0
      %7269 = vmatpush1.msra.mxu0 0.0
      %7270 = vmatprep.subr.mxu0 0.0
      %7271 = vmatpush1.msra.mxu0 0.0
      %7272 = vmatprep.subr.mxu0 0.0
      %7273 = vmatpush1.msra.mxu0 0.0
      %7274 = vmatprep.subr.mxu0 0.0
      %7275 = vmatpush1.msra.mxu0 0.0
      %7276 = vmatprep.subr.mxu0 0.0
      %7277 = vmatpush1.msra.mxu0 0.0
      %7278 = vmatprep.subr.mxu0 0.0
      %7279 = vmatpush1.msra.mxu0 0.0
      %7280 = vmatprep.subr.mxu0 0.0
      %7281 = vmatpush1.msra.mxu0 0.0
      %7282 = vmatprep.subr.mxu0 0.0
      %7283 = vmatpush1.msra.mxu0 0.0
      %7284 = vmatprep.subr.mxu0 0.0
      %7285 = vmatpush1.msra.mxu0 0.0
      %7286 = vmatprep.subr.mxu0 0.0
      %7287 = vmatpush1.msra.mxu0 0.0
      %7288 = vmatprep.subr.mxu0 0.0
      %7289 = vmatpush1.msra.mxu0 0.0
      %7290 = vmatprep.subr.mxu0 0.0
      %7291 = vmatpush1.msra.mxu0 0.0
      %7292 = vmatprep.subr.mxu0 0.0
      %7293 = vmatpush1.msra.mxu0 0.0
      %7294 = vmatprep.subr.mxu0 0.0
      %7295 = vmatpush1.msra.mxu0 0.0
      %7296 = vmatprep.subr.mxu0 0.0
      %7297 = vmatpush1.msra.mxu0 0.0
      %7298 = vmatprep.subr.mxu0 0.0
      %7299 = vmatpush1.msra.mxu0 0.0
      %7300 = vmatprep.subr.mxu0 0.0
      %7301 = vmatpush1.msra.mxu0 0.0
      %7302 = vmatprep.subr.mxu0 0.0
      %7303 = vmatpush1.msra.mxu0 0.0
      %7304 = vmatprep.subr.mxu0 0.0
      %7305 = vmatpush1.msra.mxu0 0.0
      %7306 = vmatprep.subr.mxu0 0.0
      %7307 = vmatpush1.msra.mxu0 0.0
      %7308 = vmatprep.subr.mxu0 0.0
      %7309 = vmatpush1.msra.mxu0 0.0
      %7310 = vmatprep.subr.mxu0 0.0
      %7311 = vmatpush1.msra.mxu0 0.0
      %7312 = vmatprep.subr.mxu0 0.0
      %7313 = vmatpush1.msra.mxu0 0.0
      %7314 = vmatprep.subr.mxu0 0.0
      %7315 = vmatpush1.msra.mxu0 0.0
      %7316 = vmatprep.subr.mxu0 0.0
      %7317 = vmatpush1.msra.mxu0 0.0
      %7318 = vmatprep.subr.mxu0 0.0
      %7319 = vmatpush1.msra.mxu0 0.0
      %7320 = vmatprep.mubr.f32.mxu0 0.0
      %7321 = vmatmul.mubr.f32.gmra.mrb[0].mxu0 %v7254
      %v7322 = vpop.f32.mrb[0].mxu0
      %v7323 = vadd.f32 0.0, %v7322
      %v7324 = vpop.f32.mrb[0].mxu0
      %7325 = vdwg.mxu0
      %v7326 = vadd.f32 %v7251, %v7323
      %v7327 = vld [vmem:[%s7176 + $0x2] sm:$0xf]
      %v7329 = vsel %vm4619, %v7327, 0
      %7331 = vmatprep.subr.mxu0 0.0
      %7332 = vmatpush1.msra.mxu0 %v5336
      %7333 = vmatprep.subr.mxu0 0.0
      %7334 = vmatpush1.msra.mxu0 %v5337
      %7335 = vmatprep.subr.mxu0 0.0
      %7336 = vmatpush1.msra.mxu0 %v5338
      %7337 = vmatprep.subr.mxu0 0.0
      %7338 = vmatpush1.msra.mxu0 %v5339
      %7339 = vmatprep.subr.mxu0 0.0
      %7340 = vmatpush1.msra.mxu0 0.0
      %7341 = vmatprep.subr.mxu0 0.0
      %7342 = vmatpush1.msra.mxu0 0.0
      %7343 = vmatprep.subr.mxu0 0.0
      %7344 = vmatpush1.msra.mxu0 0.0
      %7345 = vmatprep.subr.mxu0 0.0
      %7346 = vmatpush1.msra.mxu0 0.0
      %7347 = vmatprep.subr.mxu0 0.0
      %7348 = vmatpush1.msra.mxu0 0.0
      %7349 = vmatprep.subr.mxu0 0.0
      %7350 = vmatpush1.msra.mxu0 0.0
      %7351 = vmatprep.subr.mxu0 0.0
      %7352 = vmatpush1.msra.mxu0 0.0
      %7353 = vmatprep.subr.mxu0 0.0
      %7354 = vmatpush1.msra.mxu0 0.0
      %7355 = vmatprep.subr.mxu0 0.0
      %7356 = vmatpush1.msra.mxu0 0.0
      %7357 = vmatprep.subr.mxu0 0.0
      %7358 = vmatpush1.msra.mxu0 0.0
      %7359 = vmatprep.subr.mxu0 0.0
      %7360 = vmatpush1.msra.mxu0 0.0
      %7361 = vmatprep.subr.mxu0 0.0
      %7362 = vmatpush1.msra.mxu0 0.0
      %7363 = vmatprep.subr.mxu0 0.0
      %7364 = vmatpush1.msra.mxu0 0.0
      %7365 = vmatprep.subr.mxu0 0.0
      %7366 = vmatpush1.msra.mxu0 0.0
      %7367 = vmatprep.subr.mxu0 0.0
      %7368 = vmatpush1.msra.mxu0 0.0
      %7369 = vmatprep.subr.mxu0 0.0
      %7370 = vmatpush1.msra.mxu0 0.0
      %7371 = vmatprep.subr.mxu0 0.0
      %7372 = vmatpush1.msra.mxu0 0.0
      %7373 = vmatprep.subr.mxu0 0.0
      %7374 = vmatpush1.msra.mxu0 0.0
      %7375 = vmatprep.subr.mxu0 0.0
      %7376 = vmatpush1.msra.mxu0 0.0
      %7377 = vmatprep.subr.mxu0 0.0
      %7378 = vmatpush1.msra.mxu0 0.0
      %7379 = vmatprep.subr.mxu0 0.0
      %7380 = vmatpush1.msra.mxu0 0.0
      %7381 = vmatprep.subr.mxu0 0.0
      %7382 = vmatpush1.msra.mxu0 0.0
      %7383 = vmatprep.subr.mxu0 0.0
      %7384 = vmatpush1.msra.mxu0 0.0
      %7385 = vmatprep.subr.mxu0 0.0
      %7386 = vmatpush1.msra.mxu0 0.0
      %7387 = vmatprep.subr.mxu0 0.0
      %7388 = vmatpush1.msra.mxu0 0.0
      %7389 = vmatprep.subr.mxu0 0.0
      %7390 = vmatpush1.msra.mxu0 0.0
      %7391 = vmatprep.subr.mxu0 0.0
      %7392 = vmatpush1.msra.mxu0 0.0
      %7393 = vmatprep.subr.mxu0 0.0
      %7394 = vmatpush1.msra.mxu0 0.0
      %7395 = vmatprep.mubr.f32.mxu0 0.0
      %7396 = vmatmul.mubr.f32.gmra.mrb[0].mxu0 %v7329
      %v7397 = vpop.f32.mrb[0].mxu0
      %v7398 = vadd.f32 0.0, %v7397
      %v7399 = vpop.f32.mrb[0].mxu0
      %7400 = vdwg.mxu0
      %v7401 = vadd.f32 %v7326, %v7398
      %v7402 = vadd.f32 %v7401, %v5419
      %v7403 = vmax.f32 %v7402, 0.0
      %v7404 = vsel %vm5423, %v7403, 0.0
      %v7405 = vrot.slane %v7404, 4
      %v7406 = vadd.f32 %v7404, %v7405
      %v7407 = vrot.slane %v7406, 2
      %v7408 = vadd.f32 %v7406, %v7407
      %v7409 = vrot.slane %v7408, 1
      %v7410 = vadd.f32 %v7408, %v7409
      %v7411 = vadd.f32 %v6751, %v7410
      %v7412 = vmul.f32 %v7411, 0.0625
      %v7413 = vld [vmem:[%s7] sm:$0xff]
      %v7414 = vld [vmem:[%s7 + $0x8] sm:$0xff]
      %v7415 = vld [vmem:[%s7 + $0x10] sm:$0xff]
      %v7416 = vld [vmem:[%s7 + $0x18] sm:$0xff]
      %v7417 = vld [vmem:[%s7 + $0x20] sm:$0xff]
      %v7418 = vld [vmem:[%s7 + $0x28] sm:$0xff]
      %v7419 = vld [vmem:[%s7 + $0x30] sm:$0xff]
      %v7420 = vld [vmem:[%s7 + $0x38] sm:$0xff]
      %v7421 = vld [vmem:[%s8] sm:$0x1]
      %vm7422 = vcmask 523264
      %v7424 = vsel %vm7422, %v7412, 0
      %7426 = vmatprep.subr.mxu0 0.0
      %7427 = vmatpush1.msra.mxu0 %v7413
      %7428 = vmatprep.subr.mxu0 0.0
      %7429 = vmatpush1.msra.mxu0 %v7414
      %7430 = vmatprep.subr.mxu0 0.0
      %7431 = vmatpush1.msra.mxu0 %v7415
      %7432 = vmatprep.subr.mxu0 0.0
      %7433 = vmatpush1.msra.mxu0 %v7416
      %7434 = vmatprep.subr.mxu0 0.0
      %7435 = vmatpush1.msra.mxu0 %v7417
      %7436 = vmatprep.subr.mxu0 0.0
      %7437 = vmatpush1.msra.mxu0 %v7418
      %7438 = vmatprep.subr.mxu0 0.0
      %7439 = vmatpush1.msra.mxu0 %v7419
      %7440 = vmatprep.subr.mxu0 0.0
      %7441 = vmatpush1.msra.mxu0 %v7420
      %7442 = vmatprep.subr.mxu0 0.0
      %7443 = vmatpush1.msra.mxu0 0.0
      %7444 = vmatprep.subr.mxu0 0.0
      %7445 = vmatpush1.msra.mxu0 0.0
      %7446 = vmatprep.subr.mxu0 0.0
      %7447 = vmatpush1.msra.mxu0 0.0
      %7448 = vmatprep.subr.mxu0 0.0
      %7449 = vmatpush1.msra.mxu0 0.0
      %7450 = vmatprep.subr.mxu0 0.0
      %7451 = vmatpush1.msra.mxu0 0.0
      %7452 = vmatprep.subr.mxu0 0.0
      %7453 = vmatpush1.msra.mxu0 0.0
      %7454 = vmatprep.subr.mxu0 0.0
      %7455 = vmatpush1.msra.mxu0 0.0
      %7456 = vmatprep.subr.mxu0 0.0
      %7457 = vmatpush1.msra.mxu0 0.0
      %7458 = vmatprep.subr.mxu0 0.0
      %7459 = vmatpush1.msra.mxu0 0.0
      %7460 = vmatprep.subr.mxu0 0.0
      %7461 = vmatpush1.msra.mxu0 0.0
      %7462 = vmatprep.subr.mxu0 0.0
      %7463 = vmatpush1.msra.mxu0 0.0
      %7464 = vmatprep.subr.mxu0 0.0
      %7465 = vmatpush1.msra.mxu0 0.0
      %7466 = vmatprep.subr.mxu0 0.0
      %7467 = vmatpush1.msra.mxu0 0.0
      %7468 = vmatprep.subr.mxu0 0.0
      %7469 = vmatpush1.msra.mxu0 0.0
      %7470 = vmatprep.subr.mxu0 0.0
      %7471 = vmatpush1.msra.mxu0 0.0
      %7472 = vmatprep.subr.mxu0 0.0
      %7473 = vmatpush1.msra.mxu0 0.0
      %7474 = vmatprep.subr.mxu0 0.0
      %7475 = vmatpush1.msra.mxu0 0.0
      %7476 = vmatprep.subr.mxu0 0.0
      %7477 = vmatpush1.msra.mxu0 0.0
      %7478 = vmatprep.subr.mxu0 0.0
      %7479 = vmatpush1.msra.mxu0 0.0
      %7480 = vmatprep.subr.mxu0 0.0
      %7481 = vmatpush1.msra.mxu0 0.0
      %7482 = vmatprep.subr.mxu0 0.0
      %7483 = vmatpush1.msra.mxu0 0.0
      %7484 = vmatprep.subr.mxu0 0.0
      %7485 = vmatpush1.msra.mxu0 0.0
      %7486 = vmatprep.subr.mxu0 0.0
      %7487 = vmatpush1.msra.mxu0 0.0
      %7488 = vmatprep.subr.mxu0 0.0
      %7489 = vmatpush1.msra.mxu0 0.0
      %7490 = vmatprep.mubr.f32.mxu0 0.0
      %7491 = vmatmul.mubr.f32.gmra.mrb[0].mxu0 %v7424
      %v7492 = vpop.f32.mrb[0].mxu0
      %v7493 = vadd.f32 %v7421, %v7492
      %v7494 = vpop.f32.mrb[0].mxu0
      %7495 = vdwg.mxu0
      %v7496 = vmax.f32 %v7493, 0.0
      %v7497 = vld [vmem:[%s9] sm:$0x1]
      %v7498 = vmul.f32 %v7496, %v7497
      %vm7499 = vcmask 516096
      %v7500 = vsel %vm7499, %v7498, 0.0
      %7501 = vadd.xlane.f32.xlu0 %v7500
      %v7502 = vpop.xlane.xlu0 %7501
      %v7503 = vld [vmem:[#allocation7] sm:$0x1]
      %v7504 = vadd.f32 %v7502, %v7503
      %vm7505 = vcmask 0
      %7506 = vst.msk [vmem:[%s384] sm:$0x1] %vm7505, %v7504
      %p7507 = scmp.lt.s32.totalorder %s24, 1
      %s7508 = scalar_select %p7507, %s24, 1
      %s7509 = scalar_lea.vmem %s11, %s7508
      // Predicated region
      $region65: #{pallas_forward.1} parent=63 // pred_check
        %p7510 = pneg %p278
      $region66: #{pallas_forward.1} parent=63 // pred_check_branch
        %7512 = sbr.rel (%p7510) target = $region68
      $region67: #{pallas_forward.1} parent=63 // pred_region
        _
      $region68: #{pallas_forward.1} parent=63 // pred_fallthru
        _
    $region64: #{pallas_forward.1} parent=5 // pred_fallthru
      _
    %p7513 = scmp.le.s32.totalorder 2, %s19
    // Predicated region
    $region69: #{pallas_forward.1} parent=5 // pred_check
      %p7514 = pneg %p7513
    $region70: #{pallas_forward.1} parent=5 // pred_check_branch
      %7516 = sbr.rel (%p7514) target = $region72
    $region71: #{pallas_forward.1} parent=5 // pred_region
      %s7517 = ssub.s32 %s19, 2
      // Predicated region
      $region73: #{pallas_forward.1} parent=71 // pred_check
        %p7518 = pneg %p284
      $region74: #{pallas_forward.1} parent=71 // pred_check_branch
        %7520 = sbr.rel (%p7518) target = $region76
      $region75: #{pallas_forward.1} parent=71 // pred_region
        %p7521 = scmp.lt.s32.totalorder %s25, 1
        %s7522 = scalar_select %p7521, %s25, 1
        %s7523 = scalar_lea.vmem %s11, %s7522
      $region76: #{pallas_forward.1} parent=71 // pred_fallthru
        _
    $region72: #{pallas_forward.1} parent=5 // pred_fallthru
      _
  $region6: #{pallas_forward.1} parent=0 // loop_footer
    %s23 = sadd.s32 1, %s19
  $region7: #{pallas_forward.1} parent=0 // loop_footer_branch
    %18 = sbr.rel target = $region3
  $region8: #{pallas_forward.1} parent=0 // loop_exit
    _

</llo_original>
